<compile_context>
chip_gen: v6e
topology: v6e:2x2x1
jax: 0.10.0
libtpu: 0.0.40
codegen_flags: <defaults>
</compile_context>

<pallas_src>
import jax
import jax.numpy as jnp
from jax.experimental import pallas as pl
from jax.experimental.pallas import tpu as pltpu


# Flat layer list (in_c, out_c, (kh, kw)): conv1, then 2 x [dec1(3), dec2(2), merge(1)].
_LAYER_SHAPES = (
    [(2, 2, (5, 5))]
    + [(2, 2, (3, 3)), (2, 7, (1, 9)), (7, 7, (9, 1)),
       (2, 2, (1, 5)), (2, 7, (5, 1)),
       (14, 2, (1, 1))]
    + [(2, 2, (3, 3)), (2, 7, (1, 9)), (7, 7, (9, 1)),
       (2, 2, (1, 5)), (2, 7, (5, 1)),
       (14, 2, (1, 1))]
)


# ----------------------------------------------------------------------------- Mish
def _mish(x):
    # mish(x) = x * tanh(softplus(x)); overflow-safe softplus (EUP exp/tanh/log).
    sp = jnp.where(x > 20.0, x, jnp.log(1.0 + jnp.exp(jnp.minimum(x, 20.0))))
    return x * jnp.tanh(sp)


# ------------------------------------------------------------------ lane-shift helper
def _shift_lanes(x, s):
    """result[..., f] = x[..., f + s]; positions that fall outside [0, n) become 0
    (those positions are killed by the validity mask anyway)."""
    if s == 0:
        return x
    if s > 0:
        return jnp.concatenate([x[..., s:], jnp.zeros_like(x[..., :s])], axis=-1)
    return jnp.concatenate([jnp.zeros_like(x[..., s:]), x[..., :s]], axis=-1)


# --------------------------------------------------- ConvBN(+Mish) as im2col + MXU matmul
def _conv_bn_mish_mxu(a, w_eff, b_eff, mask, kh, kw, H, W):
    """One ConvBN layer on a single batch element.

    a     : (Cin, H*W)  channel-major, spatially flattened activation (lane-dense).
    w_eff : (Cout, kh*kw*Cin) BN-scale-folded conv weight, columns ordered (dh, dw, ic).
    b_eff : (Cout, 1)   folded additive term (conv_bias*bn_scale + bn_shift).
    mask  : (kh*kw*Cin, H*W) 0/1 'same'-padding validity mask, or None for 1x1 convs.
    """
    ph, pw = (kh - 1) // 2, (kw - 1) // 2
    slabs = []
    for dh in range(kh):
        for dw in range(kw):
            slabs.append(_shift_lanes(a, (dh - ph) * W + (dw - pw)))
    patches = slabs[0] if len(slabs) == 1 else jnp.concatenate(slabs, axis=0)
    if mask is not None:
        patches = patches * mask                           # in-kernel zero padding
    y = jnp.dot(w_eff, patches, preferred_element_type=jnp.float32) + b_eff
    return _mish(y)                                        # (Cout, H*W)


# -------------------------------------------------------------------- fused forward kernel
def _make_crdecoder_kernel(B, H, W, mask_index, n_masks):
    HW = H * W
    n_layers = len(_LAYER_SHAPES)

    def kernel(*refs):
        x_ref, fc_w_ref, fc_b_ref = refs[:3]
        w_refs = refs[3:3 + n_layers]
        b_refs = refs[3 + n_layers:3 + 2 * n_layers]
        mask_refs = refs[3 + 2 * n_layers:3 + 2 * n_layers + n_masks]
        o_ref = refs[3 + 2 * n_layers + n_masks]

        # Load all (tiny) parameters once; they stay VMEM/vreg-resident.
        ws = [w_refs[i][...] for i in range(n_layers)]
        bs = [b_refs[i][...] for i in range(n_layers)]
        ms = [mask_refs[i][...] for i in range(n_masks)]

        # ---- Linear + Mish for the whole batch: one MXU matmul -------------------
        y = jnp.dot(x_ref[...], fc_w_ref[...], preferred_element_type=jnp.float32)
        y = _mish(y + fc_b_ref[...])                       # (B, 2*HW)

        def convbn(a, li):
            _, _, (kh, kw) = _LAYER_SHAPES[li]
            mi = mask_index[li]
            mask = ms[mi] if mi is not None else None
            return _conv_bn_mish_mxu(a, ws[li], bs[li], mask, kh, kw, H, W)

        for b in range(B):
            # torch `.view(B, 2, H, W)`: channel-major split of the fc output row.
            a = jnp.concatenate([y[b:b + 1, 0:HW], y[b:b + 1, HW:2 * HW]], axis=0)

            li = 0
            a = convbn(a, li); li += 1                     # conv1 (5x5)
            for _ in range(2):                             # 2 x CRBlock
                skip = a
                x1 = a
                for _ in range(3):                         # dec1: 3x3, 1x9, 9x1
                    x1 = convbn(x1, li); li += 1
                x2 = a
                for _ in range(2):                         # dec2: 1x5, 5x1
                    x2 = convbn(x2, li); li += 1
                x3 = jnp.concatenate([x1, x2], axis=0)     # fused channel concat (14, HW)
                a = convbn(x3, li) + skip; li += 1         # merge(1x1) + residual after Mish
            o_ref[b, :, :] = a                             # (2, HW) lane-dense store

    return kernel


# ----------------------------------------------------------------- parameter construction
def make_convbn_params(key, in_c, out_c, size):
    kh, kw = size
    k1, k2, k3, k4, k5, k6 = jax.random.split(key, 6)
    fan_in = in_c * kh * kw
    w = jax.random.normal(k1, (out_c, in_c, kh, kw), jnp.float32) / jnp.sqrt(float(fan_in))
    b = 0.05 * jax.random.normal(k2, (out_c,), jnp.float32)
    gamma = 1.0 + 0.1 * jax.random.normal(k3, (out_c,), jnp.float32)
    beta = 0.05 * jax.random.normal(k4, (out_c,), jnp.float32)
    mean = 0.1 * jax.random.normal(k5, (out_c,), jnp.float32)
    var = 1.0 + 0.1 * jax.random.uniform(k6, (out_c,), jnp.float32)
    eps = 1e-5
    scale = gamma / jnp.sqrt(var + eps)                    # inference BatchNorm fold
    shift = beta - mean * scale
    # im2col weight with columns ordered (dh, dw, ic) to match the in-kernel patch
    # build; BN scale folded into the weight, conv bias + BN shift into b_eff.
    w_eff = (jnp.transpose(w, (0, 2, 3, 1)).reshape(out_c, kh * kw * in_c)
             * scale[:, None])
    b_eff = (b * scale + shift)[:, None]
    return dict(w=w_eff, b=b_eff)


def make_tap_mask(cin, kh, kw, H, W):
    """0/1 validity of each shifted tap row ('same' zero padding), shape (kh*kw*cin, H*W)."""
    ph, pw = (kh - 1) // 2, (kw - 1) // 2
    hh = jnp.arange(H)[:, None]
    ww = jnp.arange(W)[None, :]
    rows = []
    for dh in range(kh):
        for dw in range(kw):
            ddh, ddw = dh - ph, dw - pw
            valid = ((hh + ddh >= 0) & (hh + ddh < H) &
                     (ww + ddw >= 0) & (ww + ddw < W)).astype(jnp.float32)   # (H, W)
            rows.append(jnp.broadcast_to(valid.reshape(1, H * W), (cin, H * W)))
    return jnp.concatenate(rows, axis=0)


def make_crdecoder_params(key, bits, dim1=24, dim2=16):
    quan = 4
    din = bits // quan
    dout = 2 * dim1 * dim2
    n_layers = len(_LAYER_SHAPES)
    keys = jax.random.split(key, 2 + n_layers)
    fc_w = jax.random.normal(keys[0], (din, dout), jnp.float32) / jnp.sqrt(float(din))
    fc_b = 0.05 * jax.random.normal(keys[1], (1, dout), jnp.float32)
    layers = [make_convbn_params(keys[2 + i], cin, cout, size)
              for i, (cin, cout, size) in enumerate(_LAYER_SHAPES)]

    # One mask per distinct (cin, kh, kw); 1x1 convs need none.
    mask_sigs, masks, mask_index = [], [], []
    for cin, _, (kh, kw) in _LAYER_SHAPES:
        if kh == 1 and kw == 1:
            mask_index.append(None)
            continue
        sig = (cin, kh, kw)
        if sig not in mask_sigs:
            mask_sigs.append(sig)
            masks.append(make_tap_mask(cin, kh, kw, dim1, dim2))
        mask_index.append(mask_sigs.index(sig))

    return dict(fc_w=fc_w, fc_b=fc_b, layers=layers, masks=masks,
                mask_index=tuple(mask_index), dim1=dim1, dim2=dim2)


# ------------------------------------------------------------------------------ forward
def crdecoder_forward(params, x):
    B = x.shape[0]
    H, W = params["dim1"], params["dim2"]
    HW = H * W
    n_layers = len(_LAYER_SHAPES)
    masks = params["masks"]

    kernel = _make_crdecoder_kernel(B, H, W, params["mask_index"], len(masks))
    n_inputs = 3 + 2 * n_layers + len(masks)

    out = pl.pallas_call(
        kernel,
        out_shape=jax.ShapeDtypeStruct((B, 2, HW), jnp.float32),
        in_specs=[pl.BlockSpec(memory_space=pltpu.MemorySpace.VMEM)] * n_inputs,
        out_specs=pl.BlockSpec(memory_space=pltpu.MemorySpace.VMEM),
    )(x, params["fc_w"], params["fc_b"],
      *[l["w"] for l in params["layers"]],
      *[l["b"] for l in params["layers"]],
      *masks)
    # (B, 2, H*W) -> NCHW; row-major reshape outside the kernel (metadata only).
    return out.reshape(B, 2, H, W)


# -------------------------------------------------------------------------------- main
if __name__ == "__main__":
    bits = 128          # -> fc input dim = bits / quan = 32
    dim1, dim2 = 24, 16
    batch = 2

    root = jax.random.PRNGKey(0)
    kparams, kx = jax.random.split(root)
    params = make_crdecoder_params(kparams, bits, dim1, dim2)
    x = jax.random.normal(kx, (batch, bits // 4), jnp.float32)

    out = crdecoder_forward(params, x)
    out = jax.block_until_ready(out)

    assert out.shape == (batch, 2, dim1, dim2), out.shape
    assert bool(jnp.all(jnp.isfinite(out)))
    print("KERNEL_OK")
</pallas_src>

<mosaic_0001>
module attributes {stable_mosaic.version = 11 : i64} {
  func.func @kernel(%arg0: memref<2x32xf32, #tpu.memory_space<vmem>>, %arg1: memref<32x768xf32, #tpu.memory_space<vmem>>, %arg2: memref<1x768xf32, #tpu.memory_space<vmem>>, %arg3: memref<2x50xf32, #tpu.memory_space<vmem>>, %arg4: memref<2x18xf32, #tpu.memory_space<vmem>>, %arg5: memref<7x18xf32, #tpu.memory_space<vmem>>, %arg6: memref<7x63xf32, #tpu.memory_space<vmem>>, %arg7: memref<2x10xf32, #tpu.memory_space<vmem>>, %arg8: memref<7x10xf32, #tpu.memory_space<vmem>>, %arg9: memref<2x14xf32, #tpu.memory_space<vmem>>, %arg10: memref<2x18xf32, #tpu.memory_space<vmem>>, %arg11: memref<7x18xf32, #tpu.memory_space<vmem>>, %arg12: memref<7x63xf32, #tpu.memory_space<vmem>>, %arg13: memref<2x10xf32, #tpu.memory_space<vmem>>, %arg14: memref<7x10xf32, #tpu.memory_space<vmem>>, %arg15: memref<2x14xf32, #tpu.memory_space<vmem>>, %arg16: memref<2x1xf32, #tpu.memory_space<vmem>>, %arg17: memref<2x1xf32, #tpu.memory_space<vmem>>, %arg18: memref<7x1xf32, #tpu.memory_space<vmem>>, %arg19: memref<7x1xf32, #tpu.memory_space<vmem>>, %arg20: memref<2x1xf32, #tpu.memory_space<vmem>>, %arg21: memref<7x1xf32, #tpu.memory_space<vmem>>, %arg22: memref<2x1xf32, #tpu.memory_space<vmem>>, %arg23: memref<2x1xf32, #tpu.memory_space<vmem>>, %arg24: memref<7x1xf32, #tpu.memory_space<vmem>>, %arg25: memref<7x1xf32, #tpu.memory_space<vmem>>, %arg26: memref<2x1xf32, #tpu.memory_space<vmem>>, %arg27: memref<7x1xf32, #tpu.memory_space<vmem>>, %arg28: memref<2x1xf32, #tpu.memory_space<vmem>>, %arg29: memref<50x384xf32, #tpu.memory_space<vmem>>, %arg30: memref<18x384xf32, #tpu.memory_space<vmem>>, %arg31: memref<18x384xf32, #tpu.memory_space<vmem>>, %arg32: memref<63x384xf32, #tpu.memory_space<vmem>>, %arg33: memref<10x384xf32, #tpu.memory_space<vmem>>, %arg34: memref<10x384xf32, #tpu.memory_space<vmem>>, %arg35: memref<2x2x384xf32, #tpu.memory_space<vmem>>) attributes {dimension_semantics = [], scalar_prefetch = 0 : i64, scratch_operands = 0 : i64, tpu.core_type = #tpu.core_type<tc>} {
    %c0 = arith.constant 0 : index
    %c0_0 = arith.constant 0 : index
    %0 = vector.load %arg3[%c0, %c0_0] : memref<2x50xf32, #tpu.memory_space<vmem>>, vector<2x50xf32>
    %c0_1 = arith.constant 0 : index
    %c0_2 = arith.constant 0 : index
    %1 = vector.load %arg4[%c0_1, %c0_2] : memref<2x18xf32, #tpu.memory_space<vmem>>, vector<2x18xf32>
    %c0_3 = arith.constant 0 : index
    %c0_4 = arith.constant 0 : index
    %2 = vector.load %arg5[%c0_3, %c0_4] : memref<7x18xf32, #tpu.memory_space<vmem>>, vector<7x18xf32>
    %c0_5 = arith.constant 0 : index
    %c0_6 = arith.constant 0 : index
    %3 = vector.load %arg6[%c0_5, %c0_6] : memref<7x63xf32, #tpu.memory_space<vmem>>, vector<7x63xf32>
    %c0_7 = arith.constant 0 : index
    %c0_8 = arith.constant 0 : index
    %4 = vector.load %arg7[%c0_7, %c0_8] : memref<2x10xf32, #tpu.memory_space<vmem>>, vector<2x10xf32>
    %c0_9 = arith.constant 0 : index
    %c0_10 = arith.constant 0 : index
    %5 = vector.load %arg8[%c0_9, %c0_10] : memref<7x10xf32, #tpu.memory_space<vmem>>, vector<7x10xf32>
    %c0_11 = arith.constant 0 : index
    %c0_12 = arith.constant 0 : index
    %6 = vector.load %arg9[%c0_11, %c0_12] : memref<2x14xf32, #tpu.memory_space<vmem>>, vector<2x14xf32>
    %c0_13 = arith.constant 0 : index
    %c0_14 = arith.constant 0 : index
    %7 = vector.load %arg10[%c0_13, %c0_14] : memref<2x18xf32, #tpu.memory_space<vmem>>, vector<2x18xf32>
    %c0_15 = arith.constant 0 : index
    %c0_16 = arith.constant 0 : index
    %8 = vector.load %arg11[%c0_15, %c0_16] : memref<7x18xf32, #tpu.memory_space<vmem>>, vector<7x18xf32>
    %c0_17 = arith.constant 0 : index
    %c0_18 = arith.constant 0 : index
    %9 = vector.load %arg12[%c0_17, %c0_18] : memref<7x63xf32, #tpu.memory_space<vmem>>, vector<7x63xf32>
    %c0_19 = arith.constant 0 : index
    %c0_20 = arith.constant 0 : index
    %10 = vector.load %arg13[%c0_19, %c0_20] : memref<2x10xf32, #tpu.memory_space<vmem>>, vector<2x10xf32>
    %c0_21 = arith.constant 0 : index
    %c0_22 = arith.constant 0 : index
    %11 = vector.load %arg14[%c0_21, %c0_22] : memref<7x10xf32, #tpu.memory_space<vmem>>, vector<7x10xf32>
    %c0_23 = arith.constant 0 : index
    %c0_24 = arith.constant 0 : index
    %12 = vector.load %arg15[%c0_23, %c0_24] : memref<2x14xf32, #tpu.memory_space<vmem>>, vector<2x14xf32>
    %c0_25 = arith.constant 0 : index
    %c0_26 = arith.constant 0 : index
    %13 = vector.load %arg16[%c0_25, %c0_26] : memref<2x1xf32, #tpu.memory_space<vmem>>, vector<2x1xf32>
    %c0_27 = arith.constant 0 : index
    %c0_28 = arith.constant 0 : index
    %14 = vector.load %arg17[%c0_27, %c0_28] : memref<2x1xf32, #tpu.memory_space<vmem>>, vector<2x1xf32>
    %c0_29 = arith.constant 0 : index
    %c0_30 = arith.constant 0 : index
    %15 = vector.load %arg18[%c0_29, %c0_30] : memref<7x1xf32, #tpu.memory_space<vmem>>, vector<7x1xf32>
    %c0_31 = arith.constant 0 : index
    %c0_32 = arith.constant 0 : index
    %16 = vector.load %arg19[%c0_31, %c0_32] : memref<7x1xf32, #tpu.memory_space<vmem>>, vector<7x1xf32>
    %c0_33 = arith.constant 0 : index
    %c0_34 = arith.constant 0 : index
    %17 = vector.load %arg20[%c0_33, %c0_34] : memref<2x1xf32, #tpu.memory_space<vmem>>, vector<2x1xf32>
    %c0_35 = arith.constant 0 : index
    %c0_36 = arith.constant 0 : index
    %18 = vector.load %arg21[%c0_35, %c0_36] : memref<7x1xf32, #tpu.memory_space<vmem>>, vector<7x1xf32>
    %c0_37 = arith.constant 0 : index
    %c0_38 = arith.constant 0 : index
    %19 = vector.load %arg22[%c0_37, %c0_38] : memref<2x1xf32, #tpu.memory_space<vmem>>, vector<2x1xf32>
    %c0_39 = arith.constant 0 : index
    %c0_40 = arith.constant 0 : index
    %20 = vector.load %arg23[%c0_39, %c0_40] : memref<2x1xf32, #tpu.memory_space<vmem>>, vector<2x1xf32>
    %c0_41 = arith.constant 0 : index
    %c0_42 = arith.constant 0 : index
    %21 = vector.load %arg24[%c0_41, %c0_42] : memref<7x1xf32, #tpu.memory_space<vmem>>, vector<7x1xf32>
    %c0_43 = arith.constant 0 : index
    %c0_44 = arith.constant 0 : index
    %22 = vector.load %arg25[%c0_43, %c0_44] : memref<7x1xf32, #tpu.memory_space<vmem>>, vector<7x1xf32>
    %c0_45 = arith.constant 0 : index
    %c0_46 = arith.constant 0 : index
    %23 = vector.load %arg26[%c0_45, %c0_46] : memref<2x1xf32, #tpu.memory_space<vmem>>, vector<2x1xf32>
    %c0_47 = arith.constant 0 : index
    %c0_48 = arith.constant 0 : index
    %24 = vector.load %arg27[%c0_47, %c0_48] : memref<7x1xf32, #tpu.memory_space<vmem>>, vector<7x1xf32>
    %c0_49 = arith.constant 0 : index
    %c0_50 = arith.constant 0 : index
    %25 = vector.load %arg28[%c0_49, %c0_50] : memref<2x1xf32, #tpu.memory_space<vmem>>, vector<2x1xf32>
    %c0_51 = arith.constant 0 : index
    %c0_52 = arith.constant 0 : index
    %26 = vector.load %arg29[%c0_51, %c0_52] : memref<50x384xf32, #tpu.memory_space<vmem>>, vector<50x384xf32>
    %c0_53 = arith.constant 0 : index
    %c0_54 = arith.constant 0 : index
    %27 = vector.load %arg30[%c0_53, %c0_54] : memref<18x384xf32, #tpu.memory_space<vmem>>, vector<18x384xf32>
    %c0_55 = arith.constant 0 : index
    %c0_56 = arith.constant 0 : index
    %28 = vector.load %arg31[%c0_55, %c0_56] : memref<18x384xf32, #tpu.memory_space<vmem>>, vector<18x384xf32>
    %c0_57 = arith.constant 0 : index
    %c0_58 = arith.constant 0 : index
    %29 = vector.load %arg32[%c0_57, %c0_58] : memref<63x384xf32, #tpu.memory_space<vmem>>, vector<63x384xf32>
    %c0_59 = arith.constant 0 : index
    %c0_60 = arith.constant 0 : index
    %30 = vector.load %arg33[%c0_59, %c0_60] : memref<10x384xf32, #tpu.memory_space<vmem>>, vector<10x384xf32>
    %c0_61 = arith.constant 0 : index
    %c0_62 = arith.constant 0 : index
    %31 = vector.load %arg34[%c0_61, %c0_62] : memref<10x384xf32, #tpu.memory_space<vmem>>, vector<10x384xf32>
    %c0_63 = arith.constant 0 : index
    %c0_64 = arith.constant 0 : index
    %32 = vector.load %arg0[%c0_63, %c0_64] : memref<2x32xf32, #tpu.memory_space<vmem>>, vector<2x32xf32>
    %c0_65 = arith.constant 0 : index
    %c0_66 = arith.constant 0 : index
    %33 = vector.load %arg1[%c0_65, %c0_66] : memref<32x768xf32, #tpu.memory_space<vmem>>, vector<32x768xf32>
    %cst = arith.constant dense<0.000000e+00> : vector<2x768xf32>
    %34 = tpu.matmul %32, %33, %cst {dimension_numbers = #tpu.dot_dimension_numbers<[1], [0], [0], [1], [0, 0, 1, 1], [], []>} : vector<2x32xf32>, vector<32x768xf32>, vector<2x768xf32> -> vector<2x768xf32>
    %c0_67 = arith.constant 0 : index
    %c0_68 = arith.constant 0 : index
    %35 = vector.load %arg2[%c0_67, %c0_68] : memref<1x768xf32, #tpu.memory_space<vmem>>, vector<1x768xf32>
    %36 = vector.broadcast %35 : vector<1x768xf32> to vector<2x768xf32>
    %37 = arith.addf %34, %36 : vector<2x768xf32>
    %cst_69 = arith.constant 2.000000e+01 : f32
    %38 = vector.broadcast %cst_69 : f32 to vector<2x768xf32>
    %39 = arith.cmpf ogt, %37, %38 : vector<2x768xf32>
    %cst_70 = arith.constant 2.000000e+01 : f32
    %40 = vector.broadcast %cst_70 : f32 to vector<2x768xf32>
    %41 = arith.minimumf %37, %40 : vector<2x768xf32>
    %42 = math.exp %41 : vector<2x768xf32>
    %cst_71 = arith.constant 1.000000e+00 : f32
    %43 = vector.broadcast %cst_71 : f32 to vector<2x768xf32>
    %44 = arith.addf %43, %42 : vector<2x768xf32>
    %45 = math.log %44 : vector<2x768xf32>
    %46 = arith.select %39, %37, %45 : vector<2x768xi1>, vector<2x768xf32>
    %47 = math.tanh %46 : vector<2x768xf32>
    %48 = arith.mulf %37, %47 : vector<2x768xf32>
    %49 = vector.extract_strided_slice %48 {offsets = [0, 0], sizes = [1, 384], strides = [1, 1]} : vector<2x768xf32> to vector<1x384xf32>
    %50 = vector.extract_strided_slice %48 {offsets = [0, 384], sizes = [1, 384], strides = [1, 1]} : vector<2x768xf32> to vector<1x384xf32>
    %51 = tpu.concatenate %49, %50 in 0 : vector<1x384xf32>, vector<1x384xf32> -> vector<2x384xf32>
    %cst_72 = arith.constant 0.000000e+00 : f32
    %52 = vector.broadcast %cst_72 : f32 to vector<2x34xf32>
    %53 = vector.extract_strided_slice %51 {offsets = [0, 0], sizes = [2, 350], strides = [1, 1]} : vector<2x384xf32> to vector<2x350xf32>
    %54 = tpu.concatenate %52, %53 in 1 : vector<2x34xf32>, vector<2x350xf32> -> vector<2x384xf32>
    %cst_73 = arith.constant 0.000000e+00 : f32
    %55 = vector.broadcast %cst_73 : f32 to vector<2x33xf32>
    %56 = vector.extract_strided_slice %51 {offsets = [0, 0], sizes = [2, 351], strides = [1, 1]} : vector<2x384xf32> to vector<2x351xf32>
    %57 = tpu.concatenate %55, %56 in 1 : vector<2x33xf32>, vector<2x351xf32> -> vector<2x384xf32>
    %cst_74 = arith.constant 0.000000e+00 : f32
    %58 = vector.broadcast %cst_74 : f32 to vector<2x32xf32>
    %59 = vector.extract_strided_slice %51 {offsets = [0, 0], sizes = [2, 352], strides = [1, 1]} : vector<2x384xf32> to vector<2x352xf32>
    %60 = tpu.concatenate %58, %59 in 1 : vector<2x32xf32>, vector<2x352xf32> -> vector<2x384xf32>
    %cst_75 = arith.constant 0.000000e+00 : f32
    %61 = vector.broadcast %cst_75 : f32 to vector<2x31xf32>
    %62 = vector.extract_strided_slice %51 {offsets = [0, 0], sizes = [2, 353], strides = [1, 1]} : vector<2x384xf32> to vector<2x353xf32>
    %63 = tpu.concatenate %61, %62 in 1 : vector<2x31xf32>, vector<2x353xf32> -> vector<2x384xf32>
    %cst_76 = arith.constant 0.000000e+00 : f32
    %64 = vector.broadcast %cst_76 : f32 to vector<2x30xf32>
    %65 = vector.extract_strided_slice %51 {offsets = [0, 0], sizes = [2, 354], strides = [1, 1]} : vector<2x384xf32> to vector<2x354xf32>
    %66 = tpu.concatenate %64, %65 in 1 : vector<2x30xf32>, vector<2x354xf32> -> vector<2x384xf32>
    %cst_77 = arith.constant 0.000000e+00 : f32
    %67 = vector.broadcast %cst_77 : f32 to vector<2x18xf32>
    %68 = vector.extract_strided_slice %51 {offsets = [0, 0], sizes = [2, 366], strides = [1, 1]} : vector<2x384xf32> to vector<2x366xf32>
    %69 = tpu.concatenate %67, %68 in 1 : vector<2x18xf32>, vector<2x366xf32> -> vector<2x384xf32>
    %cst_78 = arith.constant 0.000000e+00 : f32
    %70 = vector.broadcast %cst_78 : f32 to vector<2x17xf32>
    %71 = vector.extract_strided_slice %51 {offsets = [0, 0], sizes = [2, 367], strides = [1, 1]} : vector<2x384xf32> to vector<2x367xf32>
    %72 = tpu.concatenate %70, %71 in 1 : vector<2x17xf32>, vector<2x367xf32> -> vector<2x384xf32>
    %cst_79 = arith.constant 0.000000e+00 : f32
    %73 = vector.broadcast %cst_79 : f32 to vector<2x16xf32>
    %74 = vector.extract_strided_slice %51 {offsets = [0, 0], sizes = [2, 368], strides = [1, 1]} : vector<2x384xf32> to vector<2x368xf32>
    %75 = tpu.concatenate %73, %74 in 1 : vector<2x16xf32>, vector<2x368xf32> -> vector<2x384xf32>
    %cst_80 = arith.constant 0.000000e+00 : f32
    %76 = vector.broadcast %cst_80 : f32 to vector<2x15xf32>
    %77 = vector.extract_strided_slice %51 {offsets = [0, 0], sizes = [2, 369], strides = [1, 1]} : vector<2x384xf32> to vector<2x369xf32>
    %78 = tpu.concatenate %76, %77 in 1 : vector<2x15xf32>, vector<2x369xf32> -> vector<2x384xf32>
    %cst_81 = arith.constant 0.000000e+00 : f32
    %79 = vector.broadcast %cst_81 : f32 to vector<2x14xf32>
    %80 = vector.extract_strided_slice %51 {offsets = [0, 0], sizes = [2, 370], strides = [1, 1]} : vector<2x384xf32> to vector<2x370xf32>
    %81 = tpu.concatenate %79, %80 in 1 : vector<2x14xf32>, vector<2x370xf32> -> vector<2x384xf32>
    %cst_82 = arith.constant 0.000000e+00 : f32
    %82 = vector.broadcast %cst_82 : f32 to vector<2x2xf32>
    %83 = vector.extract_strided_slice %51 {offsets = [0, 0], sizes = [2, 382], strides = [1, 1]} : vector<2x384xf32> to vector<2x382xf32>
    %84 = tpu.concatenate %82, %83 in 1 : vector<2x2xf32>, vector<2x382xf32> -> vector<2x384xf32>
    %cst_83 = arith.constant 0.000000e+00 : f32
    %85 = vector.broadcast %cst_83 : f32 to vector<2x1xf32>
    %86 = vector.extract_strided_slice %51 {offsets = [0, 0], sizes = [2, 383], strides = [1, 1]} : vector<2x384xf32> to vector<2x383xf32>
    %87 = tpu.concatenate %85, %86 in 1 : vector<2x1xf32>, vector<2x383xf32> -> vector<2x384xf32>
    %88 = vector.extract_strided_slice %51 {offsets = [0, 1], sizes = [2, 383], strides = [1, 1]} : vector<2x384xf32> to vector<2x383xf32>
    %cst_84 = arith.constant 0.000000e+00 : f32
    %89 = vector.broadcast %cst_84 : f32 to vector<2x1xf32>
    %90 = tpu.concatenate %88, %89 in 1 : vector<2x383xf32>, vector<2x1xf32> -> vector<2x384xf32>
    %91 = vector.extract_strided_slice %51 {offsets = [0, 2], sizes = [2, 382], strides = [1, 1]} : vector<2x384xf32> to vector<2x382xf32>
    %cst_85 = arith.constant 0.000000e+00 : f32
    %92 = vector.broadcast %cst_85 : f32 to vector<2x2xf32>
    %93 = tpu.concatenate %91, %92 in 1 : vector<2x382xf32>, vector<2x2xf32> -> vector<2x384xf32>
    %94 = vector.extract_strided_slice %51 {offsets = [0, 14], sizes = [2, 370], strides = [1, 1]} : vector<2x384xf32> to vector<2x370xf32>
    %cst_86 = arith.constant 0.000000e+00 : f32
    %95 = vector.broadcast %cst_86 : f32 to vector<2x14xf32>
    %96 = tpu.concatenate %94, %95 in 1 : vector<2x370xf32>, vector<2x14xf32> -> vector<2x384xf32>
    %97 = vector.extract_strided_slice %51 {offsets = [0, 15], sizes = [2, 369], strides = [1, 1]} : vector<2x384xf32> to vector<2x369xf32>
    %cst_87 = arith.constant 0.000000e+00 : f32
    %98 = vector.broadcast %cst_87 : f32 to vector<2x15xf32>
    %99 = tpu.concatenate %97, %98 in 1 : vector<2x369xf32>, vector<2x15xf32> -> vector<2x384xf32>
    %100 = vector.extract_strided_slice %51 {offsets = [0, 16], sizes = [2, 368], strides = [1, 1]} : vector<2x384xf32> to vector<2x368xf32>
    %cst_88 = arith.constant 0.000000e+00 : f32
    %101 = vector.broadcast %cst_88 : f32 to vector<2x16xf32>
    %102 = tpu.concatenate %100, %101 in 1 : vector<2x368xf32>, vector<2x16xf32> -> vector<2x384xf32>
    %103 = vector.extract_strided_slice %51 {offsets = [0, 17], sizes = [2, 367], strides = [1, 1]} : vector<2x384xf32> to vector<2x367xf32>
    %cst_89 = arith.constant 0.000000e+00 : f32
    %104 = vector.broadcast %cst_89 : f32 to vector<2x17xf32>
    %105 = tpu.concatenate %103, %104 in 1 : vector<2x367xf32>, vector<2x17xf32> -> vector<2x384xf32>
    %106 = vector.extract_strided_slice %51 {offsets = [0, 18], sizes = [2, 366], strides = [1, 1]} : vector<2x384xf32> to vector<2x366xf32>
    %cst_90 = arith.constant 0.000000e+00 : f32
    %107 = vector.broadcast %cst_90 : f32 to vector<2x18xf32>
    %108 = tpu.concatenate %106, %107 in 1 : vector<2x366xf32>, vector<2x18xf32> -> vector<2x384xf32>
    %109 = vector.extract_strided_slice %51 {offsets = [0, 30], sizes = [2, 354], strides = [1, 1]} : vector<2x384xf32> to vector<2x354xf32>
    %cst_91 = arith.constant 0.000000e+00 : f32
    %110 = vector.broadcast %cst_91 : f32 to vector<2x30xf32>
    %111 = tpu.concatenate %109, %110 in 1 : vector<2x354xf32>, vector<2x30xf32> -> vector<2x384xf32>
    %112 = vector.extract_strided_slice %51 {offsets = [0, 31], sizes = [2, 353], strides = [1, 1]} : vector<2x384xf32> to vector<2x353xf32>
    %cst_92 = arith.constant 0.000000e+00 : f32
    %113 = vector.broadcast %cst_92 : f32 to vector<2x31xf32>
    %114 = tpu.concatenate %112, %113 in 1 : vector<2x353xf32>, vector<2x31xf32> -> vector<2x384xf32>
    %115 = vector.extract_strided_slice %51 {offsets = [0, 32], sizes = [2, 352], strides = [1, 1]} : vector<2x384xf32> to vector<2x352xf32>
    %cst_93 = arith.constant 0.000000e+00 : f32
    %116 = vector.broadcast %cst_93 : f32 to vector<2x32xf32>
    %117 = tpu.concatenate %115, %116 in 1 : vector<2x352xf32>, vector<2x32xf32> -> vector<2x384xf32>
    %118 = vector.extract_strided_slice %51 {offsets = [0, 33], sizes = [2, 351], strides = [1, 1]} : vector<2x384xf32> to vector<2x351xf32>
    %cst_94 = arith.constant 0.000000e+00 : f32
    %119 = vector.broadcast %cst_94 : f32 to vector<2x33xf32>
    %120 = tpu.concatenate %118, %119 in 1 : vector<2x351xf32>, vector<2x33xf32> -> vector<2x384xf32>
    %121 = vector.extract_strided_slice %51 {offsets = [0, 34], sizes = [2, 350], strides = [1, 1]} : vector<2x384xf32> to vector<2x350xf32>
    %cst_95 = arith.constant 0.000000e+00 : f32
    %122 = vector.broadcast %cst_95 : f32 to vector<2x34xf32>
    %123 = tpu.concatenate %121, %122 in 1 : vector<2x350xf32>, vector<2x34xf32> -> vector<2x384xf32>
    %124 = tpu.concatenate %54, %57, %60, %63, %66, %69, %72, %75, %78, %81, %84, %87, %51, %90, %93, %96 in 0 : vector<2x384xf32>, vector<2x384xf32>, vector<2x384xf32>, vector<2x384xf32>, vector<2x384xf32>, vector<2x384xf32>, vector<2x384xf32>, vector<2x384xf32>, vector<2x384xf32>, vector<2x384xf32>, vector<2x384xf32>, vector<2x384xf32>, vector<2x384xf32>, vector<2x384xf32>, vector<2x384xf32>, vector<2x384xf32> -> vector<32x384xf32>
    %125 = tpu.concatenate %99, %102, %105, %108, %111, %114, %117, %120, %123 in 0 : vector<2x384xf32>, vector<2x384xf32>, vector<2x384xf32>, vector<2x384xf32>, vector<2x384xf32>, vector<2x384xf32>, vector<2x384xf32>, vector<2x384xf32>, vector<2x384xf32> -> vector<18x384xf32>
    %126 = tpu.concatenate %124, %125 in 0 : vector<32x384xf32>, vector<18x384xf32> -> vector<50x384xf32>
    %127 = arith.mulf %126, %26 : vector<50x384xf32>
    %cst_96 = arith.constant dense<0.000000e+00> : vector<2x384xf32>
    %128 = tpu.matmul %0, %127, %cst_96 {dimension_numbers = #tpu.dot_dimension_numbers<[1], [0], [0], [1], [0, 0, 1, 1], [], []>} : vector<2x50xf32>, vector<50x384xf32>, vector<2x384xf32> -> vector<2x384xf32>
    %129 = vector.broadcast %13 : vector<2x1xf32> to vector<2x384xf32>
    %130 = arith.addf %128, %129 : vector<2x384xf32>
    %cst_97 = arith.constant 2.000000e+01 : f32
    %131 = vector.broadcast %cst_97 : f32 to vector<2x384xf32>
    %132 = arith.cmpf ogt, %130, %131 : vector<2x384xf32>
    %cst_98 = arith.constant 2.000000e+01 : f32
    %133 = vector.broadcast %cst_98 : f32 to vector<2x384xf32>
    %134 = arith.minimumf %130, %133 : vector<2x384xf32>
    %135 = math.exp %134 : vector<2x384xf32>
    %cst_99 = arith.constant 1.000000e+00 : f32
    %136 = vector.broadcast %cst_99 : f32 to vector<2x384xf32>
    %137 = arith.addf %136, %135 : vector<2x384xf32>
    %138 = math.log %137 : vector<2x384xf32>
    %139 = arith.select %132, %130, %138 : vector<2x384xi1>, vector<2x384xf32>
    %140 = math.tanh %139 : vector<2x384xf32>
    %141 = arith.mulf %130, %140 : vector<2x384xf32>
    %cst_100 = arith.constant 0.000000e+00 : f32
    %142 = vector.broadcast %cst_100 : f32 to vector<2x17xf32>
    %143 = vector.extract_strided_slice %141 {offsets = [0, 0], sizes = [2, 367], strides = [1, 1]} : vector<2x384xf32> to vector<2x367xf32>
    %144 = tpu.concatenate %142, %143 in 1 : vector<2x17xf32>, vector<2x367xf32> -> vector<2x384xf32>
    %cst_101 = arith.constant 0.000000e+00 : f32
    %145 = vector.broadcast %cst_101 : f32 to vector<2x16xf32>
    %146 = vector.extract_strided_slice %141 {offsets = [0, 0], sizes = [2, 368], strides = [1, 1]} : vector<2x384xf32> to vector<2x368xf32>
    %147 = tpu.concatenate %145, %146 in 1 : vector<2x16xf32>, vector<2x368xf32> -> vector<2x384xf32>
    %cst_102 = arith.constant 0.000000e+00 : f32
    %148 = vector.broadcast %cst_102 : f32 to vector<2x15xf32>
    %149 = vector.extract_strided_slice %141 {offsets = [0, 0], sizes = [2, 369], strides = [1, 1]} : vector<2x384xf32> to vector<2x369xf32>
    %150 = tpu.concatenate %148, %149 in 1 : vector<2x15xf32>, vector<2x369xf32> -> vector<2x384xf32>
    %cst_103 = arith.constant 0.000000e+00 : f32
    %151 = vector.broadcast %cst_103 : f32 to vector<2x1xf32>
    %152 = vector.extract_strided_slice %141 {offsets = [0, 0], sizes = [2, 383], strides = [1, 1]} : vector<2x384xf32> to vector<2x383xf32>
    %153 = tpu.concatenate %151, %152 in 1 : vector<2x1xf32>, vector<2x383xf32> -> vector<2x384xf32>
    %154 = vector.extract_strided_slice %141 {offsets = [0, 1], sizes = [2, 383], strides = [1, 1]} : vector<2x384xf32> to vector<2x383xf32>
    %cst_104 = arith.constant 0.000000e+00 : f32
    %155 = vector.broadcast %cst_104 : f32 to vector<2x1xf32>
    %156 = tpu.concatenate %154, %155 in 1 : vector<2x383xf32>, vector<2x1xf32> -> vector<2x384xf32>
    %157 = vector.extract_strided_slice %141 {offsets = [0, 15], sizes = [2, 369], strides = [1, 1]} : vector<2x384xf32> to vector<2x369xf32>
    %cst_105 = arith.constant 0.000000e+00 : f32
    %158 = vector.broadcast %cst_105 : f32 to vector<2x15xf32>
    %159 = tpu.concatenate %157, %158 in 1 : vector<2x369xf32>, vector<2x15xf32> -> vector<2x384xf32>
    %160 = vector.extract_strided_slice %141 {offsets = [0, 16], sizes = [2, 368], strides = [1, 1]} : vector<2x384xf32> to vector<2x368xf32>
    %cst_106 = arith.constant 0.000000e+00 : f32
    %161 = vector.broadcast %cst_106 : f32 to vector<2x16xf32>
    %162 = tpu.concatenate %160, %161 in 1 : vector<2x368xf32>, vector<2x16xf32> -> vector<2x384xf32>
    %163 = vector.extract_strided_slice %141 {offsets = [0, 17], sizes = [2, 367], strides = [1, 1]} : vector<2x384xf32> to vector<2x367xf32>
    %cst_107 = arith.constant 0.000000e+00 : f32
    %164 = vector.broadcast %cst_107 : f32 to vector<2x17xf32>
    %165 = tpu.concatenate %163, %164 in 1 : vector<2x367xf32>, vector<2x17xf32> -> vector<2x384xf32>
    %166 = tpu.concatenate %144, %147, %150, %153, %141, %156, %159, %162, %165 in 0 : vector<2x384xf32>, vector<2x384xf32>, vector<2x384xf32>, vector<2x384xf32>, vector<2x384xf32>, vector<2x384xf32>, vector<2x384xf32>, vector<2x384xf32>, vector<2x384xf32> -> vector<18x384xf32>
    %167 = arith.mulf %166, %27 : vector<18x384xf32>
    %cst_108 = arith.constant dense<0.000000e+00> : vector<2x384xf32>
    %168 = tpu.matmul %1, %167, %cst_108 {dimension_numbers = #tpu.dot_dimension_numbers<[1], [0], [0], [1], [0, 0, 1, 1], [], []>} : vector<2x18xf32>, vector<18x384xf32>, vector<2x384xf32> -> vector<2x384xf32>
    %169 = vector.broadcast %14 : vector<2x1xf32> to vector<2x384xf32>
    %170 = arith.addf %168, %169 : vector<2x384xf32>
    %cst_109 = arith.constant 2.000000e+01 : f32
    %171 = vector.broadcast %cst_109 : f32 to vector<2x384xf32>
    %172 = arith.cmpf ogt, %170, %171 : vector<2x384xf32>
    %cst_110 = arith.constant 2.000000e+01 : f32
    %173 = vector.broadcast %cst_110 : f32 to vector<2x384xf32>
    %174 = arith.minimumf %170, %173 : vector<2x384xf32>
    %175 = math.exp %174 : vector<2x384xf32>
    %cst_111 = arith.constant 1.000000e+00 : f32
    %176 = vector.broadcast %cst_111 : f32 to vector<2x384xf32>
    %177 = arith.addf %176, %175 : vector<2x384xf32>
    %178 = math.log %177 : vector<2x384xf32>
    %179 = arith.select %172, %170, %178 : vector<2x384xi1>, vector<2x384xf32>
    %180 = math.tanh %179 : vector<2x384xf32>
    %181 = arith.mulf %170, %180 : vector<2x384xf32>
    %cst_112 = arith.constant 0.000000e+00 : f32
    %182 = vector.broadcast %cst_112 : f32 to vector<2x4xf32>
    %183 = vector.extract_strided_slice %181 {offsets = [0, 0], sizes = [2, 380], strides = [1, 1]} : vector<2x384xf32> to vector<2x380xf32>
    %184 = tpu.concatenate %182, %183 in 1 : vector<2x4xf32>, vector<2x380xf32> -> vector<2x384xf32>
    %cst_113 = arith.constant 0.000000e+00 : f32
    %185 = vector.broadcast %cst_113 : f32 to vector<2x3xf32>
    %186 = vector.extract_strided_slice %181 {offsets = [0, 0], sizes = [2, 381], strides = [1, 1]} : vector<2x384xf32> to vector<2x381xf32>
    %187 = tpu.concatenate %185, %186 in 1 : vector<2x3xf32>, vector<2x381xf32> -> vector<2x384xf32>
    %cst_114 = arith.constant 0.000000e+00 : f32
    %188 = vector.broadcast %cst_114 : f32 to vector<2x2xf32>
    %189 = vector.extract_strided_slice %181 {offsets = [0, 0], sizes = [2, 382], strides = [1, 1]} : vector<2x384xf32> to vector<2x382xf32>
    %190 = tpu.concatenate %188, %189 in 1 : vector<2x2xf32>, vector<2x382xf32> -> vector<2x384xf32>
    %cst_115 = arith.constant 0.000000e+00 : f32
    %191 = vector.broadcast %cst_115 : f32 to vector<2x1xf32>
    %192 = vector.extract_strided_slice %181 {offsets = [0, 0], sizes = [2, 383], strides = [1, 1]} : vector<2x384xf32> to vector<2x383xf32>
    %193 = tpu.concatenate %191, %192 in 1 : vector<2x1xf32>, vector<2x383xf32> -> vector<2x384xf32>
    %194 = vector.extract_strided_slice %181 {offsets = [0, 1], sizes = [2, 383], strides = [1, 1]} : vector<2x384xf32> to vector<2x383xf32>
    %cst_116 = arith.constant 0.000000e+00 : f32
    %195 = vector.broadcast %cst_116 : f32 to vector<2x1xf32>
    %196 = tpu.concatenate %194, %195 in 1 : vector<2x383xf32>, vector<2x1xf32> -> vector<2x384xf32>
    %197 = vector.extract_strided_slice %181 {offsets = [0, 2], sizes = [2, 382], strides = [1, 1]} : vector<2x384xf32> to vector<2x382xf32>
    %cst_117 = arith.constant 0.000000e+00 : f32
    %198 = vector.broadcast %cst_117 : f32 to vector<2x2xf32>
    %199 = tpu.concatenate %197, %198 in 1 : vector<2x382xf32>, vector<2x2xf32> -> vector<2x384xf32>
    %200 = vector.extract_strided_slice %181 {offsets = [0, 3], sizes = [2, 381], strides = [1, 1]} : vector<2x384xf32> to vector<2x381xf32>
    %cst_118 = arith.constant 0.000000e+00 : f32
    %201 = vector.broadcast %cst_118 : f32 to vector<2x3xf32>
    %202 = tpu.concatenate %200, %201 in 1 : vector<2x381xf32>, vector<2x3xf32> -> vector<2x384xf32>
    %203 = vector.extract_strided_slice %181 {offsets = [0, 4], sizes = [2, 380], strides = [1, 1]} : vector<2x384xf32> to vector<2x380xf32>
    %cst_119 = arith.constant 0.000000e+00 : f32
    %204 = vector.broadcast %cst_119 : f32 to vector<2x4xf32>
    %205 = tpu.concatenate %203, %204 in 1 : vector<2x380xf32>, vector<2x4xf32> -> vector<2x384xf32>
    %206 = tpu.concatenate %184, %187, %190, %193, %181, %196, %199, %202, %205 in 0 : vector<2x384xf32>, vector<2x384xf32>, vector<2x384xf32>, vector<2x384xf32>, vector<2x384xf32>, vector<2x384xf32>, vector<2x384xf32>, vector<2x384xf32>, vector<2x384xf32> -> vector<18x384xf32>
    %207 = arith.mulf %206, %28 : vector<18x384xf32>
    %cst_120 = arith.constant dense<0.000000e+00> : vector<7x384xf32>
    %208 = tpu.matmul %2, %207, %cst_120 {dimension_numbers = #tpu.dot_dimension_numbers<[1], [0], [0], [1], [0, 0, 1, 1], [], []>} : vector<7x18xf32>, vector<18x384xf32>, vector<7x384xf32> -> vector<7x384xf32>
    %209 = vector.broadcast %15 : vector<7x1xf32> to vector<7x384xf32>
    %210 = arith.addf %208, %209 : vector<7x384xf32>
    %cst_121 = arith.constant 2.000000e+01 : f32
    %211 = vector.broadcast %cst_121 : f32 to vector<7x384xf32>
    %212 = arith.cmpf ogt, %210, %211 : vector<7x384xf32>
    %cst_122 = arith.constant 2.000000e+01 : f32
    %213 = vector.broadcast %cst_122 : f32 to vector<7x384xf32>
    %214 = arith.minimumf %210, %213 : vector<7x384xf32>
    %215 = math.exp %214 : vector<7x384xf32>
    %cst_123 = arith.constant 1.000000e+00 : f32
    %216 = vector.broadcast %cst_123 : f32 to vector<7x384xf32>
    %217 = arith.addf %216, %215 : vector<7x384xf32>
    %218 = math.log %217 : vector<7x384xf32>
    %219 = arith.select %212, %210, %218 : vector<7x384xi1>, vector<7x384xf32>
    %220 = math.tanh %219 : vector<7x384xf32>
    %221 = arith.mulf %210, %220 : vector<7x384xf32>
    %cst_124 = arith.constant 0.000000e+00 : f32
    %222 = vector.broadcast %cst_124 : f32 to vector<7x64xf32>
    %223 = vector.extract_strided_slice %221 {offsets = [0, 0], sizes = [7, 320], strides = [1, 1]} : vector<7x384xf32> to vector<7x320xf32>
    %224 = tpu.concatenate %222, %223 in 1 : vector<7x64xf32>, vector<7x320xf32> -> vector<7x384xf32>
    %cst_125 = arith.constant 0.000000e+00 : f32
    %225 = vector.broadcast %cst_125 : f32 to vector<7x48xf32>
    %226 = vector.extract_strided_slice %221 {offsets = [0, 0], sizes = [7, 336], strides = [1, 1]} : vector<7x384xf32> to vector<7x336xf32>
    %227 = tpu.concatenate %225, %226 in 1 : vector<7x48xf32>, vector<7x336xf32> -> vector<7x384xf32>
    %cst_126 = arith.constant 0.000000e+00 : f32
    %228 = vector.broadcast %cst_126 : f32 to vector<7x32xf32>
    %229 = vector.extract_strided_slice %221 {offsets = [0, 0], sizes = [7, 352], strides = [1, 1]} : vector<7x384xf32> to vector<7x352xf32>
    %230 = tpu.concatenate %228, %229 in 1 : vector<7x32xf32>, vector<7x352xf32> -> vector<7x384xf32>
    %cst_127 = arith.constant 0.000000e+00 : f32
    %231 = vector.broadcast %cst_127 : f32 to vector<7x16xf32>
    %232 = vector.extract_strided_slice %221 {offsets = [0, 0], sizes = [7, 368], strides = [1, 1]} : vector<7x384xf32> to vector<7x368xf32>
    %233 = tpu.concatenate %231, %232 in 1 : vector<7x16xf32>, vector<7x368xf32> -> vector<7x384xf32>
    %234 = vector.extract_strided_slice %221 {offsets = [0, 16], sizes = [7, 368], strides = [1, 1]} : vector<7x384xf32> to vector<7x368xf32>
    %cst_128 = arith.constant 0.000000e+00 : f32
    %235 = vector.broadcast %cst_128 : f32 to vector<7x16xf32>
    %236 = tpu.concatenate %234, %235 in 1 : vector<7x368xf32>, vector<7x16xf32> -> vector<7x384xf32>
    %237 = vector.extract_strided_slice %221 {offsets = [0, 32], sizes = [7, 352], strides = [1, 1]} : vector<7x384xf32> to vector<7x352xf32>
    %cst_129 = arith.constant 0.000000e+00 : f32
    %238 = vector.broadcast %cst_129 : f32 to vector<7x32xf32>
    %239 = tpu.concatenate %237, %238 in 1 : vector<7x352xf32>, vector<7x32xf32> -> vector<7x384xf32>
    %240 = vector.extract_strided_slice %221 {offsets = [0, 48], sizes = [7, 336], strides = [1, 1]} : vector<7x384xf32> to vector<7x336xf32>
    %cst_130 = arith.constant 0.000000e+00 : f32
    %241 = vector.broadcast %cst_130 : f32 to vector<7x48xf32>
    %242 = tpu.concatenate %240, %241 in 1 : vector<7x336xf32>, vector<7x48xf32> -> vector<7x384xf32>
    %243 = vector.extract_strided_slice %221 {offsets = [0, 64], sizes = [7, 320], strides = [1, 1]} : vector<7x384xf32> to vector<7x320xf32>
    %cst_131 = arith.constant 0.000000e+00 : f32
    %244 = vector.broadcast %cst_131 : f32 to vector<7x64xf32>
    %245 = tpu.concatenate %243, %244 in 1 : vector<7x320xf32>, vector<7x64xf32> -> vector<7x384xf32>
    %246 = tpu.concatenate %224, %227, %230, %233, %221, %236, %239, %242, %245 in 0 : vector<7x384xf32>, vector<7x384xf32>, vector<7x384xf32>, vector<7x384xf32>, vector<7x384xf32>, vector<7x384xf32>, vector<7x384xf32>, vector<7x384xf32>, vector<7x384xf32> -> vector<63x384xf32>
    %247 = arith.mulf %246, %29 : vector<63x384xf32>
    %cst_132 = arith.constant dense<0.000000e+00> : vector<7x384xf32>
    %248 = tpu.matmul %3, %247, %cst_132 {dimension_numbers = #tpu.dot_dimension_numbers<[1], [0], [0], [1], [0, 0, 1, 1], [], []>} : vector<7x63xf32>, vector<63x384xf32>, vector<7x384xf32> -> vector<7x384xf32>
    %249 = vector.broadcast %16 : vector<7x1xf32> to vector<7x384xf32>
    %250 = arith.addf %248, %249 : vector<7x384xf32>
    %cst_133 = arith.constant 2.000000e+01 : f32
    %251 = vector.broadcast %cst_133 : f32 to vector<7x384xf32>
    %252 = arith.cmpf ogt, %250, %251 : vector<7x384xf32>
    %cst_134 = arith.constant 2.000000e+01 : f32
    %253 = vector.broadcast %cst_134 : f32 to vector<7x384xf32>
    %254 = arith.minimumf %250, %253 : vector<7x384xf32>
    %255 = math.exp %254 : vector<7x384xf32>
    %cst_135 = arith.constant 1.000000e+00 : f32
    %256 = vector.broadcast %cst_135 : f32 to vector<7x384xf32>
    %257 = arith.addf %256, %255 : vector<7x384xf32>
    %258 = math.log %257 : vector<7x384xf32>
    %259 = arith.select %252, %250, %258 : vector<7x384xi1>, vector<7x384xf32>
    %260 = math.tanh %259 : vector<7x384xf32>
    %261 = arith.mulf %250, %260 : vector<7x384xf32>
    %cst_136 = arith.constant 0.000000e+00 : f32
    %262 = vector.broadcast %cst_136 : f32 to vector<2x2xf32>
    %263 = vector.extract_strided_slice %141 {offsets = [0, 0], sizes = [2, 382], strides = [1, 1]} : vector<2x384xf32> to vector<2x382xf32>
    %264 = tpu.concatenate %262, %263 in 1 : vector<2x2xf32>, vector<2x382xf32> -> vector<2x384xf32>
    %cst_137 = arith.constant 0.000000e+00 : f32
    %265 = vector.broadcast %cst_137 : f32 to vector<2x1xf32>
    %266 = vector.extract_strided_slice %141 {offsets = [0, 0], sizes = [2, 383], strides = [1, 1]} : vector<2x384xf32> to vector<2x383xf32>
    %267 = tpu.concatenate %265, %266 in 1 : vector<2x1xf32>, vector<2x383xf32> -> vector<2x384xf32>
    %268 = vector.extract_strided_slice %141 {offsets = [0, 1], sizes = [2, 383], strides = [1, 1]} : vector<2x384xf32> to vector<2x383xf32>
    %cst_138 = arith.constant 0.000000e+00 : f32
    %269 = vector.broadcast %cst_138 : f32 to vector<2x1xf32>
    %270 = tpu.concatenate %268, %269 in 1 : vector<2x383xf32>, vector<2x1xf32> -> vector<2x384xf32>
    %271 = vector.extract_strided_slice %141 {offsets = [0, 2], sizes = [2, 382], strides = [1, 1]} : vector<2x384xf32> to vector<2x382xf32>
    %cst_139 = arith.constant 0.000000e+00 : f32
    %272 = vector.broadcast %cst_139 : f32 to vector<2x2xf32>
    %273 = tpu.concatenate %271, %272 in 1 : vector<2x382xf32>, vector<2x2xf32> -> vector<2x384xf32>
    %274 = tpu.concatenate %264, %267, %141, %270, %273 in 0 : vector<2x384xf32>, vector<2x384xf32>, vector<2x384xf32>, vector<2x384xf32>, vector<2x384xf32> -> vector<10x384xf32>
    %275 = arith.mulf %274, %30 : vector<10x384xf32>
    %cst_140 = arith.constant dense<0.000000e+00> : vector<2x384xf32>
    %276 = tpu.matmul %4, %275, %cst_140 {dimension_numbers = #tpu.dot_dimension_numbers<[1], [0], [0], [1], [0, 0, 1, 1], [], []>} : vector<2x10xf32>, vector<10x384xf32>, vector<2x384xf32> -> vector<2x384xf32>
    %277 = vector.broadcast %17 : vector<2x1xf32> to vector<2x384xf32>
    %278 = arith.addf %276, %277 : vector<2x384xf32>
    %cst_141 = arith.constant 2.000000e+01 : f32
    %279 = vector.broadcast %cst_141 : f32 to vector<2x384xf32>
    %280 = arith.cmpf ogt, %278, %279 : vector<2x384xf32>
    %cst_142 = arith.constant 2.000000e+01 : f32
    %281 = vector.broadcast %cst_142 : f32 to vector<2x384xf32>
    %282 = arith.minimumf %278, %281 : vector<2x384xf32>
    %283 = math.exp %282 : vector<2x384xf32>
    %cst_143 = arith.constant 1.000000e+00 : f32
    %284 = vector.broadcast %cst_143 : f32 to vector<2x384xf32>
    %285 = arith.addf %284, %283 : vector<2x384xf32>
    %286 = math.log %285 : vector<2x384xf32>
    %287 = arith.select %280, %278, %286 : vector<2x384xi1>, vector<2x384xf32>
    %288 = math.tanh %287 : vector<2x384xf32>
    %289 = arith.mulf %278, %288 : vector<2x384xf32>
    %cst_144 = arith.constant 0.000000e+00 : f32
    %290 = vector.broadcast %cst_144 : f32 to vector<2x32xf32>
    %291 = vector.extract_strided_slice %289 {offsets = [0, 0], sizes = [2, 352], strides = [1, 1]} : vector<2x384xf32> to vector<2x352xf32>
    %292 = tpu.concatenate %290, %291 in 1 : vector<2x32xf32>, vector<2x352xf32> -> vector<2x384xf32>
    %cst_145 = arith.constant 0.000000e+00 : f32
    %293 = vector.broadcast %cst_145 : f32 to vector<2x16xf32>
    %294 = vector.extract_strided_slice %289 {offsets = [0, 0], sizes = [2, 368], strides = [1, 1]} : vector<2x384xf32> to vector<2x368xf32>
    %295 = tpu.concatenate %293, %294 in 1 : vector<2x16xf32>, vector<2x368xf32> -> vector<2x384xf32>
    %296 = vector.extract_strided_slice %289 {offsets = [0, 16], sizes = [2, 368], strides = [1, 1]} : vector<2x384xf32> to vector<2x368xf32>
    %cst_146 = arith.constant 0.000000e+00 : f32
    %297 = vector.broadcast %cst_146 : f32 to vector<2x16xf32>
    %298 = tpu.concatenate %296, %297 in 1 : vector<2x368xf32>, vector<2x16xf32> -> vector<2x384xf32>
    %299 = vector.extract_strided_slice %289 {offsets = [0, 32], sizes = [2, 352], strides = [1, 1]} : vector<2x384xf32> to vector<2x352xf32>
    %cst_147 = arith.constant 0.000000e+00 : f32
    %300 = vector.broadcast %cst_147 : f32 to vector<2x32xf32>
    %301 = tpu.concatenate %299, %300 in 1 : vector<2x352xf32>, vector<2x32xf32> -> vector<2x384xf32>
    %302 = tpu.concatenate %292, %295, %289, %298, %301 in 0 : vector<2x384xf32>, vector<2x384xf32>, vector<2x384xf32>, vector<2x384xf32>, vector<2x384xf32> -> vector<10x384xf32>
    %303 = arith.mulf %302, %31 : vector<10x384xf32>
    %cst_148 = arith.constant dense<0.000000e+00> : vector<7x384xf32>
    %304 = tpu.matmul %5, %303, %cst_148 {dimension_numbers = #tpu.dot_dimension_numbers<[1], [0], [0], [1], [0, 0, 1, 1], [], []>} : vector<7x10xf32>, vector<10x384xf32>, vector<7x384xf32> -> vector<7x384xf32>
    %305 = vector.broadcast %18 : vector<7x1xf32> to vector<7x384xf32>
    %306 = arith.addf %304, %305 : vector<7x384xf32>
    %cst_149 = arith.constant 2.000000e+01 : f32
    %307 = vector.broadcast %cst_149 : f32 to vector<7x384xf32>
    %308 = arith.cmpf ogt, %306, %307 : vector<7x384xf32>
    %cst_150 = arith.constant 2.000000e+01 : f32
    %309 = vector.broadcast %cst_150 : f32 to vector<7x384xf32>
    %310 = arith.minimumf %306, %309 : vector<7x384xf32>
    %311 = math.exp %310 : vector<7x384xf32>
    %cst_151 = arith.constant 1.000000e+00 : f32
    %312 = vector.broadcast %cst_151 : f32 to vector<7x384xf32>
    %313 = arith.addf %312, %311 : vector<7x384xf32>
    %314 = math.log %313 : vector<7x384xf32>
    %315 = arith.select %308, %306, %314 : vector<7x384xi1>, vector<7x384xf32>
    %316 = math.tanh %315 : vector<7x384xf32>
    %317 = arith.mulf %306, %316 : vector<7x384xf32>
    %318 = tpu.concatenate %261, %317 in 0 : vector<7x384xf32>, vector<7x384xf32> -> vector<14x384xf32>
    %cst_152 = arith.constant dense<0.000000e+00> : vector<2x384xf32>
    %319 = tpu.matmul %6, %318, %cst_152 {dimension_numbers = #tpu.dot_dimension_numbers<[1], [0], [0], [1], [0, 0, 1, 1], [], []>} : vector<2x14xf32>, vector<14x384xf32>, vector<2x384xf32> -> vector<2x384xf32>
    %320 = vector.broadcast %19 : vector<2x1xf32> to vector<2x384xf32>
    %321 = arith.addf %319, %320 : vector<2x384xf32>
    %cst_153 = arith.constant 2.000000e+01 : f32
    %322 = vector.broadcast %cst_153 : f32 to vector<2x384xf32>
    %323 = arith.cmpf ogt, %321, %322 : vector<2x384xf32>
    %cst_154 = arith.constant 2.000000e+01 : f32
    %324 = vector.broadcast %cst_154 : f32 to vector<2x384xf32>
    %325 = arith.minimumf %321, %324 : vector<2x384xf32>
    %326 = math.exp %325 : vector<2x384xf32>
    %cst_155 = arith.constant 1.000000e+00 : f32
    %327 = vector.broadcast %cst_155 : f32 to vector<2x384xf32>
    %328 = arith.addf %327, %326 : vector<2x384xf32>
    %329 = math.log %328 : vector<2x384xf32>
    %330 = arith.select %323, %321, %329 : vector<2x384xi1>, vector<2x384xf32>
    %331 = math.tanh %330 : vector<2x384xf32>
    %332 = arith.mulf %321, %331 : vector<2x384xf32>
    %333 = arith.addf %332, %141 : vector<2x384xf32>
    %cst_156 = arith.constant 0.000000e+00 : f32
    %334 = vector.broadcast %cst_156 : f32 to vector<2x17xf32>
    %335 = vector.extract_strided_slice %333 {offsets = [0, 0], sizes = [2, 367], strides = [1, 1]} : vector<2x384xf32> to vector<2x367xf32>
    %336 = tpu.concatenate %334, %335 in 1 : vector<2x17xf32>, vector<2x367xf32> -> vector<2x384xf32>
    %cst_157 = arith.constant 0.000000e+00 : f32
    %337 = vector.broadcast %cst_157 : f32 to vector<2x16xf32>
    %338 = vector.extract_strided_slice %333 {offsets = [0, 0], sizes = [2, 368], strides = [1, 1]} : vector<2x384xf32> to vector<2x368xf32>
    %339 = tpu.concatenate %337, %338 in 1 : vector<2x16xf32>, vector<2x368xf32> -> vector<2x384xf32>
    %cst_158 = arith.constant 0.000000e+00 : f32
    %340 = vector.broadcast %cst_158 : f32 to vector<2x15xf32>
    %341 = vector.extract_strided_slice %333 {offsets = [0, 0], sizes = [2, 369], strides = [1, 1]} : vector<2x384xf32> to vector<2x369xf32>
    %342 = tpu.concatenate %340, %341 in 1 : vector<2x15xf32>, vector<2x369xf32> -> vector<2x384xf32>
    %cst_159 = arith.constant 0.000000e+00 : f32
    %343 = vector.broadcast %cst_159 : f32 to vector<2x1xf32>
    %344 = vector.extract_strided_slice %333 {offsets = [0, 0], sizes = [2, 383], strides = [1, 1]} : vector<2x384xf32> to vector<2x383xf32>
    %345 = tpu.concatenate %343, %344 in 1 : vector<2x1xf32>, vector<2x383xf32> -> vector<2x384xf32>
    %346 = vector.extract_strided_slice %333 {offsets = [0, 1], sizes = [2, 383], strides = [1, 1]} : vector<2x384xf32> to vector<2x383xf32>
    %cst_160 = arith.constant 0.000000e+00 : f32
    %347 = vector.broadcast %cst_160 : f32 to vector<2x1xf32>
    %348 = tpu.concatenate %346, %347 in 1 : vector<2x383xf32>, vector<2x1xf32> -> vector<2x384xf32>
    %349 = vector.extract_strided_slice %333 {offsets = [0, 15], sizes = [2, 369], strides = [1, 1]} : vector<2x384xf32> to vector<2x369xf32>
    %cst_161 = arith.constant 0.000000e+00 : f32
    %350 = vector.broadcast %cst_161 : f32 to vector<2x15xf32>
    %351 = tpu.concatenate %349, %350 in 1 : vector<2x369xf32>, vector<2x15xf32> -> vector<2x384xf32>
    %352 = vector.extract_strided_slice %333 {offsets = [0, 16], sizes = [2, 368], strides = [1, 1]} : vector<2x384xf32> to vector<2x368xf32>
    %cst_162 = arith.constant 0.000000e+00 : f32
    %353 = vector.broadcast %cst_162 : f32 to vector<2x16xf32>
    %354 = tpu.concatenate %352, %353 in 1 : vector<2x368xf32>, vector<2x16xf32> -> vector<2x384xf32>
    %355 = vector.extract_strided_slice %333 {offsets = [0, 17], sizes = [2, 367], strides = [1, 1]} : vector<2x384xf32> to vector<2x367xf32>
    %cst_163 = arith.constant 0.000000e+00 : f32
    %356 = vector.broadcast %cst_163 : f32 to vector<2x17xf32>
    %357 = tpu.concatenate %355, %356 in 1 : vector<2x367xf32>, vector<2x17xf32> -> vector<2x384xf32>
    %358 = tpu.concatenate %336, %339, %342, %345, %333, %348, %351, %354, %357 in 0 : vector<2x384xf32>, vector<2x384xf32>, vector<2x384xf32>, vector<2x384xf32>, vector<2x384xf32>, vector<2x384xf32>, vector<2x384xf32>, vector<2x384xf32>, vector<2x384xf32> -> vector<18x384xf32>
    %359 = arith.mulf %358, %27 : vector<18x384xf32>
    %cst_164 = arith.constant dense<0.000000e+00> : vector<2x384xf32>
    %360 = tpu.matmul %7, %359, %cst_164 {dimension_numbers = #tpu.dot_dimension_numbers<[1], [0], [0], [1], [0, 0, 1, 1], [], []>} : vector<2x18xf32>, vector<18x384xf32>, vector<2x384xf32> -> vector<2x384xf32>
    %361 = vector.broadcast %20 : vector<2x1xf32> to vector<2x384xf32>
    %362 = arith.addf %360, %361 : vector<2x384xf32>
    %cst_165 = arith.constant 2.000000e+01 : f32
    %363 = vector.broadcast %cst_165 : f32 to vector<2x384xf32>
    %364 = arith.cmpf ogt, %362, %363 : vector<2x384xf32>
    %cst_166 = arith.constant 2.000000e+01 : f32
    %365 = vector.broadcast %cst_166 : f32 to vector<2x384xf32>
    %366 = arith.minimumf %362, %365 : vector<2x384xf32>
    %367 = math.exp %366 : vector<2x384xf32>
    %cst_167 = arith.constant 1.000000e+00 : f32
    %368 = vector.broadcast %cst_167 : f32 to vector<2x384xf32>
    %369 = arith.addf %368, %367 : vector<2x384xf32>
    %370 = math.log %369 : vector<2x384xf32>
    %371 = arith.select %364, %362, %370 : vector<2x384xi1>, vector<2x384xf32>
    %372 = math.tanh %371 : vector<2x384xf32>
    %373 = arith.mulf %362, %372 : vector<2x384xf32>
    %cst_168 = arith.constant 0.000000e+00 : f32
    %374 = vector.broadcast %cst_168 : f32 to vector<2x4xf32>
    %375 = vector.extract_strided_slice %373 {offsets = [0, 0], sizes = [2, 380], strides = [1, 1]} : vector<2x384xf32> to vector<2x380xf32>
    %376 = tpu.concatenate %374, %375 in 1 : vector<2x4xf32>, vector<2x380xf32> -> vector<2x384xf32>
    %cst_169 = arith.constant 0.000000e+00 : f32
    %377 = vector.broadcast %cst_169 : f32 to vector<2x3xf32>
    %378 = vector.extract_strided_slice %373 {offsets = [0, 0], sizes = [2, 381], strides = [1, 1]} : vector<2x384xf32> to vector<2x381xf32>
    %379 = tpu.concatenate %377, %378 in 1 : vector<2x3xf32>, vector<2x381xf32> -> vector<2x384xf32>
    %cst_170 = arith.constant 0.000000e+00 : f32
    %380 = vector.broadcast %cst_170 : f32 to vector<2x2xf32>
    %381 = vector.extract_strided_slice %373 {offsets = [0, 0], sizes = [2, 382], strides = [1, 1]} : vector<2x384xf32> to vector<2x382xf32>
    %382 = tpu.concatenate %380, %381 in 1 : vector<2x2xf32>, vector<2x382xf32> -> vector<2x384xf32>
    %cst_171 = arith.constant 0.000000e+00 : f32
    %383 = vector.broadcast %cst_171 : f32 to vector<2x1xf32>
    %384 = vector.extract_strided_slice %373 {offsets = [0, 0], sizes = [2, 383], strides = [1, 1]} : vector<2x384xf32> to vector<2x383xf32>
    %385 = tpu.concatenate %383, %384 in 1 : vector<2x1xf32>, vector<2x383xf32> -> vector<2x384xf32>
    %386 = vector.extract_strided_slice %373 {offsets = [0, 1], sizes = [2, 383], strides = [1, 1]} : vector<2x384xf32> to vector<2x383xf32>
    %cst_172 = arith.constant 0.000000e+00 : f32
    %387 = vector.broadcast %cst_172 : f32 to vector<2x1xf32>
    %388 = tpu.concatenate %386, %387 in 1 : vector<2x383xf32>, vector<2x1xf32> -> vector<2x384xf32>
    %389 = vector.extract_strided_slice %373 {offsets = [0, 2], sizes = [2, 382], strides = [1, 1]} : vector<2x384xf32> to vector<2x382xf32>
    %cst_173 = arith.constant 0.000000e+00 : f32
    %390 = vector.broadcast %cst_173 : f32 to vector<2x2xf32>
    %391 = tpu.concatenate %389, %390 in 1 : vector<2x382xf32>, vector<2x2xf32> -> vector<2x384xf32>
    %392 = vector.extract_strided_slice %373 {offsets = [0, 3], sizes = [2, 381], strides = [1, 1]} : vector<2x384xf32> to vector<2x381xf32>
    %cst_174 = arith.constant 0.000000e+00 : f32
    %393 = vector.broadcast %cst_174 : f32 to vector<2x3xf32>
    %394 = tpu.concatenate %392, %393 in 1 : vector<2x381xf32>, vector<2x3xf32> -> vector<2x384xf32>
    %395 = vector.extract_strided_slice %373 {offsets = [0, 4], sizes = [2, 380], strides = [1, 1]} : vector<2x384xf32> to vector<2x380xf32>
    %cst_175 = arith.constant 0.000000e+00 : f32
    %396 = vector.broadcast %cst_175 : f32 to vector<2x4xf32>
    %397 = tpu.concatenate %395, %396 in 1 : vector<2x380xf32>, vector<2x4xf32> -> vector<2x384xf32>
    %398 = tpu.concatenate %376, %379, %382, %385, %373, %388, %391, %394, %397 in 0 : vector<2x384xf32>, vector<2x384xf32>, vector<2x384xf32>, vector<2x384xf32>, vector<2x384xf32>, vector<2x384xf32>, vector<2x384xf32>, vector<2x384xf32>, vector<2x384xf32> -> vector<18x384xf32>
    %399 = arith.mulf %398, %28 : vector<18x384xf32>
    %cst_176 = arith.constant dense<0.000000e+00> : vector<7x384xf32>
    %400 = tpu.matmul %8, %399, %cst_176 {dimension_numbers = #tpu.dot_dimension_numbers<[1], [0], [0], [1], [0, 0, 1, 1], [], []>} : vector<7x18xf32>, vector<18x384xf32>, vector<7x384xf32> -> vector<7x384xf32>
    %401 = vector.broadcast %21 : vector<7x1xf32> to vector<7x384xf32>
    %402 = arith.addf %400, %401 : vector<7x384xf32>
    %cst_177 = arith.constant 2.000000e+01 : f32
    %403 = vector.broadcast %cst_177 : f32 to vector<7x384xf32>
    %404 = arith.cmpf ogt, %402, %403 : vector<7x384xf32>
    %cst_178 = arith.constant 2.000000e+01 : f32
    %405 = vector.broadcast %cst_178 : f32 to vector<7x384xf32>
    %406 = arith.minimumf %402, %405 : vector<7x384xf32>
    %407 = math.exp %406 : vector<7x384xf32>
    %cst_179 = arith.constant 1.000000e+00 : f32
    %408 = vector.broadcast %cst_179 : f32 to vector<7x384xf32>
    %409 = arith.addf %408, %407 : vector<7x384xf32>
    %410 = math.log %409 : vector<7x384xf32>
    %411 = arith.select %404, %402, %410 : vector<7x384xi1>, vector<7x384xf32>
    %412 = math.tanh %411 : vector<7x384xf32>
    %413 = arith.mulf %402, %412 : vector<7x384xf32>
    %cst_180 = arith.constant 0.000000e+00 : f32
    %414 = vector.broadcast %cst_180 : f32 to vector<7x64xf32>
    %415 = vector.extract_strided_slice %413 {offsets = [0, 0], sizes = [7, 320], strides = [1, 1]} : vector<7x384xf32> to vector<7x320xf32>
    %416 = tpu.concatenate %414, %415 in 1 : vector<7x64xf32>, vector<7x320xf32> -> vector<7x384xf32>
    %cst_181 = arith.constant 0.000000e+00 : f32
    %417 = vector.broadcast %cst_181 : f32 to vector<7x48xf32>
    %418 = vector.extract_strided_slice %413 {offsets = [0, 0], sizes = [7, 336], strides = [1, 1]} : vector<7x384xf32> to vector<7x336xf32>
    %419 = tpu.concatenate %417, %418 in 1 : vector<7x48xf32>, vector<7x336xf32> -> vector<7x384xf32>
    %cst_182 = arith.constant 0.000000e+00 : f32
    %420 = vector.broadcast %cst_182 : f32 to vector<7x32xf32>
    %421 = vector.extract_strided_slice %413 {offsets = [0, 0], sizes = [7, 352], strides = [1, 1]} : vector<7x384xf32> to vector<7x352xf32>
    %422 = tpu.concatenate %420, %421 in 1 : vector<7x32xf32>, vector<7x352xf32> -> vector<7x384xf32>
    %cst_183 = arith.constant 0.000000e+00 : f32
    %423 = vector.broadcast %cst_183 : f32 to vector<7x16xf32>
    %424 = vector.extract_strided_slice %413 {offsets = [0, 0], sizes = [7, 368], strides = [1, 1]} : vector<7x384xf32> to vector<7x368xf32>
    %425 = tpu.concatenate %423, %424 in 1 : vector<7x16xf32>, vector<7x368xf32> -> vector<7x384xf32>
    %426 = vector.extract_strided_slice %413 {offsets = [0, 16], sizes = [7, 368], strides = [1, 1]} : vector<7x384xf32> to vector<7x368xf32>
    %cst_184 = arith.constant 0.000000e+00 : f32
    %427 = vector.broadcast %cst_184 : f32 to vector<7x16xf32>
    %428 = tpu.concatenate %426, %427 in 1 : vector<7x368xf32>, vector<7x16xf32> -> vector<7x384xf32>
    %429 = vector.extract_strided_slice %413 {offsets = [0, 32], sizes = [7, 352], strides = [1, 1]} : vector<7x384xf32> to vector<7x352xf32>
    %cst_185 = arith.constant 0.000000e+00 : f32
    %430 = vector.broadcast %cst_185 : f32 to vector<7x32xf32>
    %431 = tpu.concatenate %429, %430 in 1 : vector<7x352xf32>, vector<7x32xf32> -> vector<7x384xf32>
    %432 = vector.extract_strided_slice %413 {offsets = [0, 48], sizes = [7, 336], strides = [1, 1]} : vector<7x384xf32> to vector<7x336xf32>
    %cst_186 = arith.constant 0.000000e+00 : f32
    %433 = vector.broadcast %cst_186 : f32 to vector<7x48xf32>
    %434 = tpu.concatenate %432, %433 in 1 : vector<7x336xf32>, vector<7x48xf32> -> vector<7x384xf32>
    %435 = vector.extract_strided_slice %413 {offsets = [0, 64], sizes = [7, 320], strides = [1, 1]} : vector<7x384xf32> to vector<7x320xf32>
    %cst_187 = arith.constant 0.000000e+00 : f32
    %436 = vector.broadcast %cst_187 : f32 to vector<7x64xf32>
    %437 = tpu.concatenate %435, %436 in 1 : vector<7x320xf32>, vector<7x64xf32> -> vector<7x384xf32>
    %438 = tpu.concatenate %416, %419, %422, %425, %413, %428, %431, %434, %437 in 0 : vector<7x384xf32>, vector<7x384xf32>, vector<7x384xf32>, vector<7x384xf32>, vector<7x384xf32>, vector<7x384xf32>, vector<7x384xf32>, vector<7x384xf32>, vector<7x384xf32> -> vector<63x384xf32>
    %439 = arith.mulf %438, %29 : vector<63x384xf32>
    %cst_188 = arith.constant dense<0.000000e+00> : vector<7x384xf32>
    %440 = tpu.matmul %9, %439, %cst_188 {dimension_numbers = #tpu.dot_dimension_numbers<[1], [0], [0], [1], [0, 0, 1, 1], [], []>} : vector<7x63xf32>, vector<63x384xf32>, vector<7x384xf32> -> vector<7x384xf32>
    %441 = vector.broadcast %22 : vector<7x1xf32> to vector<7x384xf32>
    %442 = arith.addf %440, %441 : vector<7x384xf32>
    %cst_189 = arith.constant 2.000000e+01 : f32
    %443 = vector.broadcast %cst_189 : f32 to vector<7x384xf32>
    %444 = arith.cmpf ogt, %442, %443 : vector<7x384xf32>
    %cst_190 = arith.constant 2.000000e+01 : f32
    %445 = vector.broadcast %cst_190 : f32 to vector<7x384xf32>
    %446 = arith.minimumf %442, %445 : vector<7x384xf32>
    %447 = math.exp %446 : vector<7x384xf32>
    %cst_191 = arith.constant 1.000000e+00 : f32
    %448 = vector.broadcast %cst_191 : f32 to vector<7x384xf32>
    %449 = arith.addf %448, %447 : vector<7x384xf32>
    %450 = math.log %449 : vector<7x384xf32>
    %451 = arith.select %444, %442, %450 : vector<7x384xi1>, vector<7x384xf32>
    %452 = math.tanh %451 : vector<7x384xf32>
    %453 = arith.mulf %442, %452 : vector<7x384xf32>
    %cst_192 = arith.constant 0.000000e+00 : f32
    %454 = vector.broadcast %cst_192 : f32 to vector<2x2xf32>
    %455 = vector.extract_strided_slice %333 {offsets = [0, 0], sizes = [2, 382], strides = [1, 1]} : vector<2x384xf32> to vector<2x382xf32>
    %456 = tpu.concatenate %454, %455 in 1 : vector<2x2xf32>, vector<2x382xf32> -> vector<2x384xf32>
    %cst_193 = arith.constant 0.000000e+00 : f32
    %457 = vector.broadcast %cst_193 : f32 to vector<2x1xf32>
    %458 = vector.extract_strided_slice %333 {offsets = [0, 0], sizes = [2, 383], strides = [1, 1]} : vector<2x384xf32> to vector<2x383xf32>
    %459 = tpu.concatenate %457, %458 in 1 : vector<2x1xf32>, vector<2x383xf32> -> vector<2x384xf32>
    %460 = vector.extract_strided_slice %333 {offsets = [0, 1], sizes = [2, 383], strides = [1, 1]} : vector<2x384xf32> to vector<2x383xf32>
    %cst_194 = arith.constant 0.000000e+00 : f32
    %461 = vector.broadcast %cst_194 : f32 to vector<2x1xf32>
    %462 = tpu.concatenate %460, %461 in 1 : vector<2x383xf32>, vector<2x1xf32> -> vector<2x384xf32>
    %463 = vector.extract_strided_slice %333 {offsets = [0, 2], sizes = [2, 382], strides = [1, 1]} : vector<2x384xf32> to vector<2x382xf32>
    %cst_195 = arith.constant 0.000000e+00 : f32
    %464 = vector.broadcast %cst_195 : f32 to vector<2x2xf32>
    %465 = tpu.concatenate %463, %464 in 1 : vector<2x382xf32>, vector<2x2xf32> -> vector<2x384xf32>
    %466 = tpu.concatenate %456, %459, %333, %462, %465 in 0 : vector<2x384xf32>, vector<2x384xf32>, vector<2x384xf32>, vector<2x384xf32>, vector<2x384xf32> -> vector<10x384xf32>
    %467 = arith.mulf %466, %30 : vector<10x384xf32>
    %cst_196 = arith.constant dense<0.000000e+00> : vector<2x384xf32>
    %468 = tpu.matmul %10, %467, %cst_196 {dimension_numbers = #tpu.dot_dimension_numbers<[1], [0], [0], [1], [0, 0, 1, 1], [], []>} : vector<2x10xf32>, vector<10x384xf32>, vector<2x384xf32> -> vector<2x384xf32>
    %469 = vector.broadcast %23 : vector<2x1xf32> to vector<2x384xf32>
    %470 = arith.addf %468, %469 : vector<2x384xf32>
    %cst_197 = arith.constant 2.000000e+01 : f32
    %471 = vector.broadcast %cst_197 : f32 to vector<2x384xf32>
    %472 = arith.cmpf ogt, %470, %471 : vector<2x384xf32>
    %cst_198 = arith.constant 2.000000e+01 : f32
    %473 = vector.broadcast %cst_198 : f32 to vector<2x384xf32>
    %474 = arith.minimumf %470, %473 : vector<2x384xf32>
    %475 = math.exp %474 : vector<2x384xf32>
    %cst_199 = arith.constant 1.000000e+00 : f32
    %476 = vector.broadcast %cst_199 : f32 to vector<2x384xf32>
    %477 = arith.addf %476, %475 : vector<2x384xf32>
    %478 = math.log %477 : vector<2x384xf32>
    %479 = arith.select %472, %470, %478 : vector<2x384xi1>, vector<2x384xf32>
    %480 = math.tanh %479 : vector<2x384xf32>
    %481 = arith.mulf %470, %480 : vector<2x384xf32>
    %cst_200 = arith.constant 0.000000e+00 : f32
    %482 = vector.broadcast %cst_200 : f32 to vector<2x32xf32>
    %483 = vector.extract_strided_slice %481 {offsets = [0, 0], sizes = [2, 352], strides = [1, 1]} : vector<2x384xf32> to vector<2x352xf32>
    %484 = tpu.concatenate %482, %483 in 1 : vector<2x32xf32>, vector<2x352xf32> -> vector<2x384xf32>
    %cst_201 = arith.constant 0.000000e+00 : f32
    %485 = vector.broadcast %cst_201 : f32 to vector<2x16xf32>
    %486 = vector.extract_strided_slice %481 {offsets = [0, 0], sizes = [2, 368], strides = [1, 1]} : vector<2x384xf32> to vector<2x368xf32>
    %487 = tpu.concatenate %485, %486 in 1 : vector<2x16xf32>, vector<2x368xf32> -> vector<2x384xf32>
    %488 = vector.extract_strided_slice %481 {offsets = [0, 16], sizes = [2, 368], strides = [1, 1]} : vector<2x384xf32> to vector<2x368xf32>
    %cst_202 = arith.constant 0.000000e+00 : f32
    %489 = vector.broadcast %cst_202 : f32 to vector<2x16xf32>
    %490 = tpu.concatenate %488, %489 in 1 : vector<2x368xf32>, vector<2x16xf32> -> vector<2x384xf32>
    %491 = vector.extract_strided_slice %481 {offsets = [0, 32], sizes = [2, 352], strides = [1, 1]} : vector<2x384xf32> to vector<2x352xf32>
    %cst_203 = arith.constant 0.000000e+00 : f32
    %492 = vector.broadcast %cst_203 : f32 to vector<2x32xf32>
    %493 = tpu.concatenate %491, %492 in 1 : vector<2x352xf32>, vector<2x32xf32> -> vector<2x384xf32>
    %494 = tpu.concatenate %484, %487, %481, %490, %493 in 0 : vector<2x384xf32>, vector<2x384xf32>, vector<2x384xf32>, vector<2x384xf32>, vector<2x384xf32> -> vector<10x384xf32>
    %495 = arith.mulf %494, %31 : vector<10x384xf32>
    %cst_204 = arith.constant dense<0.000000e+00> : vector<7x384xf32>
    %496 = tpu.matmul %11, %495, %cst_204 {dimension_numbers = #tpu.dot_dimension_numbers<[1], [0], [0], [1], [0, 0, 1, 1], [], []>} : vector<7x10xf32>, vector<10x384xf32>, vector<7x384xf32> -> vector<7x384xf32>
    %497 = vector.broadcast %24 : vector<7x1xf32> to vector<7x384xf32>
    %498 = arith.addf %496, %497 : vector<7x384xf32>
    %cst_205 = arith.constant 2.000000e+01 : f32
    %499 = vector.broadcast %cst_205 : f32 to vector<7x384xf32>
    %500 = arith.cmpf ogt, %498, %499 : vector<7x384xf32>
    %cst_206 = arith.constant 2.000000e+01 : f32
    %501 = vector.broadcast %cst_206 : f32 to vector<7x384xf32>
    %502 = arith.minimumf %498, %501 : vector<7x384xf32>
    %503 = math.exp %502 : vector<7x384xf32>
    %cst_207 = arith.constant 1.000000e+00 : f32
    %504 = vector.broadcast %cst_207 : f32 to vector<7x384xf32>
    %505 = arith.addf %504, %503 : vector<7x384xf32>
    %506 = math.log %505 : vector<7x384xf32>
    %507 = arith.select %500, %498, %506 : vector<7x384xi1>, vector<7x384xf32>
    %508 = math.tanh %507 : vector<7x384xf32>
    %509 = arith.mulf %498, %508 : vector<7x384xf32>
    %510 = tpu.concatenate %453, %509 in 0 : vector<7x384xf32>, vector<7x384xf32> -> vector<14x384xf32>
    %cst_208 = arith.constant dense<0.000000e+00> : vector<2x384xf32>
    %511 = tpu.matmul %12, %510, %cst_208 {dimension_numbers = #tpu.dot_dimension_numbers<[1], [0], [0], [1], [0, 0, 1, 1], [], []>} : vector<2x14xf32>, vector<14x384xf32>, vector<2x384xf32> -> vector<2x384xf32>
    %512 = vector.broadcast %25 : vector<2x1xf32> to vector<2x384xf32>
    %513 = arith.addf %511, %512 : vector<2x384xf32>
    %cst_209 = arith.constant 2.000000e+01 : f32
    %514 = vector.broadcast %cst_209 : f32 to vector<2x384xf32>
    %515 = arith.cmpf ogt, %513, %514 : vector<2x384xf32>
    %cst_210 = arith.constant 2.000000e+01 : f32
    %516 = vector.broadcast %cst_210 : f32 to vector<2x384xf32>
    %517 = arith.minimumf %513, %516 : vector<2x384xf32>
    %518 = math.exp %517 : vector<2x384xf32>
    %cst_211 = arith.constant 1.000000e+00 : f32
    %519 = vector.broadcast %cst_211 : f32 to vector<2x384xf32>
    %520 = arith.addf %519, %518 : vector<2x384xf32>
    %521 = math.log %520 : vector<2x384xf32>
    %522 = arith.select %515, %513, %521 : vector<2x384xi1>, vector<2x384xf32>
    %523 = math.tanh %522 : vector<2x384xf32>
    %524 = arith.mulf %513, %523 : vector<2x384xf32>
    %525 = arith.addf %524, %333 : vector<2x384xf32>
    %c0_212 = arith.constant 0 : index
    %c0_213 = arith.constant 0 : index
    %c0_214 = arith.constant 0 : index
    %526 = vector.load %arg35[%c0_212, %c0_213, %c0_214] : memref<2x2x384xf32, #tpu.memory_space<vmem>>, vector<1x2x384xf32>
    %527 = vector.shape_cast %526 : vector<1x2x384xf32> to vector<2x384xf32>
    %528 = vector.shape_cast %525 : vector<2x384xf32> to vector<1x2x384xf32>
    tpu.vector_store %arg35[%c0_212, %c0_213, %c0_214], %528 {strides = array<i32>} : memref<2x2x384xf32, #tpu.memory_space<vmem>>, vector<1x2x384xf32>,
    %529 = vector.extract_strided_slice %48 {offsets = [1, 0], sizes = [1, 384], strides = [1, 1]} : vector<2x768xf32> to vector<1x384xf32>
    %530 = vector.extract_strided_slice %48 {offsets = [1, 384], sizes = [1, 384], strides = [1, 1]} : vector<2x768xf32> to vector<1x384xf32>
    %531 = tpu.concatenate %529, %530 in 0 : vector<1x384xf32>, vector<1x384xf32> -> vector<2x384xf32>
    %cst_215 = arith.constant 0.000000e+00 : f32
    %532 = vector.broadcast %cst_215 : f32 to vector<2x34xf32>
    %533 = vector.extract_strided_slice %531 {offsets = [0, 0], sizes = [2, 350], strides = [1, 1]} : vector<2x384xf32> to vector<2x350xf32>
    %534 = tpu.concatenate %532, %533 in 1 : vector<2x34xf32>, vector<2x350xf32> -> vector<2x384xf32>
    %cst_216 = arith.constant 0.000000e+00 : f32
    %535 = vector.broadcast %cst_216 : f32 to vector<2x33xf32>
    %536 = vector.extract_strided_slice %531 {offsets = [0, 0], sizes = [2, 351], strides = [1, 1]} : vector<2x384xf32> to vector<2x351xf32>
    %537 = tpu.concatenate %535, %536 in 1 : vector<2x33xf32>, vector<2x351xf32> -> vector<2x384xf32>
    %cst_217 = arith.constant 0.000000e+00 : f32
    %538 = vector.broadcast %cst_217 : f32 to vector<2x32xf32>
    %539 = vector.extract_strided_slice %531 {offsets = [0, 0], sizes = [2, 352], strides = [1, 1]} : vector<2x384xf32> to vector<2x352xf32>
    %540 = tpu.concatenate %538, %539 in 1 : vector<2x32xf32>, vector<2x352xf32> -> vector<2x384xf32>
    %cst_218 = arith.constant 0.000000e+00 : f32
    %541 = vector.broadcast %cst_218 : f32 to vector<2x31xf32>
    %542 = vector.extract_strided_slice %531 {offsets = [0, 0], sizes = [2, 353], strides = [1, 1]} : vector<2x384xf32> to vector<2x353xf32>
    %543 = tpu.concatenate %541, %542 in 1 : vector<2x31xf32>, vector<2x353xf32> -> vector<2x384xf32>
    %cst_219 = arith.constant 0.000000e+00 : f32
    %544 = vector.broadcast %cst_219 : f32 to vector<2x30xf32>
    %545 = vector.extract_strided_slice %531 {offsets = [0, 0], sizes = [2, 354], strides = [1, 1]} : vector<2x384xf32> to vector<2x354xf32>
    %546 = tpu.concatenate %544, %545 in 1 : vector<2x30xf32>, vector<2x354xf32> -> vector<2x384xf32>
    %cst_220 = arith.constant 0.000000e+00 : f32
    %547 = vector.broadcast %cst_220 : f32 to vector<2x18xf32>
    %548 = vector.extract_strided_slice %531 {offsets = [0, 0], sizes = [2, 366], strides = [1, 1]} : vector<2x384xf32> to vector<2x366xf32>
    %549 = tpu.concatenate %547, %548 in 1 : vector<2x18xf32>, vector<2x366xf32> -> vector<2x384xf32>
    %cst_221 = arith.constant 0.000000e+00 : f32
    %550 = vector.broadcast %cst_221 : f32 to vector<2x17xf32>
    %551 = vector.extract_strided_slice %531 {offsets = [0, 0], sizes = [2, 367], strides = [1, 1]} : vector<2x384xf32> to vector<2x367xf32>
    %552 = tpu.concatenate %550, %551 in 1 : vector<2x17xf32>, vector<2x367xf32> -> vector<2x384xf32>
    %cst_222 = arith.constant 0.000000e+00 : f32
    %553 = vector.broadcast %cst_222 : f32 to vector<2x16xf32>
    %554 = vector.extract_strided_slice %531 {offsets = [0, 0], sizes = [2, 368], strides = [1, 1]} : vector<2x384xf32> to vector<2x368xf32>
    %555 = tpu.concatenate %553, %554 in 1 : vector<2x16xf32>, vector<2x368xf32> -> vector<2x384xf32>
    %cst_223 = arith.constant 0.000000e+00 : f32
    %556 = vector.broadcast %cst_223 : f32 to vector<2x15xf32>
    %557 = vector.extract_strided_slice %531 {offsets = [0, 0], sizes = [2, 369], strides = [1, 1]} : vector<2x384xf32> to vector<2x369xf32>
    %558 = tpu.concatenate %556, %557 in 1 : vector<2x15xf32>, vector<2x369xf32> -> vector<2x384xf32>
    %cst_224 = arith.constant 0.000000e+00 : f32
    %559 = vector.broadcast %cst_224 : f32 to vector<2x14xf32>
    %560 = vector.extract_strided_slice %531 {offsets = [0, 0], sizes = [2, 370], strides = [1, 1]} : vector<2x384xf32> to vector<2x370xf32>
    %561 = tpu.concatenate %559, %560 in 1 : vector<2x14xf32>, vector<2x370xf32> -> vector<2x384xf32>
    %cst_225 = arith.constant 0.000000e+00 : f32
    %562 = vector.broadcast %cst_225 : f32 to vector<2x2xf32>
    %563 = vector.extract_strided_slice %531 {offsets = [0, 0], sizes = [2, 382], strides = [1, 1]} : vector<2x384xf32> to vector<2x382xf32>
    %564 = tpu.concatenate %562, %563 in 1 : vector<2x2xf32>, vector<2x382xf32> -> vector<2x384xf32>
    %cst_226 = arith.constant 0.000000e+00 : f32
    %565 = vector.broadcast %cst_226 : f32 to vector<2x1xf32>
    %566 = vector.extract_strided_slice %531 {offsets = [0, 0], sizes = [2, 383], strides = [1, 1]} : vector<2x384xf32> to vector<2x383xf32>
    %567 = tpu.concatenate %565, %566 in 1 : vector<2x1xf32>, vector<2x383xf32> -> vector<2x384xf32>
    %568 = vector.extract_strided_slice %531 {offsets = [0, 1], sizes = [2, 383], strides = [1, 1]} : vector<2x384xf32> to vector<2x383xf32>
    %cst_227 = arith.constant 0.000000e+00 : f32
    %569 = vector.broadcast %cst_227 : f32 to vector<2x1xf32>
    %570 = tpu.concatenate %568, %569 in 1 : vector<2x383xf32>, vector<2x1xf32> -> vector<2x384xf32>
    %571 = vector.extract_strided_slice %531 {offsets = [0, 2], sizes = [2, 382], strides = [1, 1]} : vector<2x384xf32> to vector<2x382xf32>
    %cst_228 = arith.constant 0.000000e+00 : f32
    %572 = vector.broadcast %cst_228 : f32 to vector<2x2xf32>
    %573 = tpu.concatenate %571, %572 in 1 : vector<2x382xf32>, vector<2x2xf32> -> vector<2x384xf32>
    %574 = vector.extract_strided_slice %531 {offsets = [0, 14], sizes = [2, 370], strides = [1, 1]} : vector<2x384xf32> to vector<2x370xf32>
    %cst_229 = arith.constant 0.000000e+00 : f32
    %575 = vector.broadcast %cst_229 : f32 to vector<2x14xf32>
    %576 = tpu.concatenate %574, %575 in 1 : vector<2x370xf32>, vector<2x14xf32> -> vector<2x384xf32>
    %577 = vector.extract_strided_slice %531 {offsets = [0, 15], sizes = [2, 369], strides = [1, 1]} : vector<2x384xf32> to vector<2x369xf32>
    %cst_230 = arith.constant 0.000000e+00 : f32
    %578 = vector.broadcast %cst_230 : f32 to vector<2x15xf32>
    %579 = tpu.concatenate %577, %578 in 1 : vector<2x369xf32>, vector<2x15xf32> -> vector<2x384xf32>
    %580 = vector.extract_strided_slice %531 {offsets = [0, 16], sizes = [2, 368], strides = [1, 1]} : vector<2x384xf32> to vector<2x368xf32>
    %cst_231 = arith.constant 0.000000e+00 : f32
    %581 = vector.broadcast %cst_231 : f32 to vector<2x16xf32>
    %582 = tpu.concatenate %580, %581 in 1 : vector<2x368xf32>, vector<2x16xf32> -> vector<2x384xf32>
    %583 = vector.extract_strided_slice %531 {offsets = [0, 17], sizes = [2, 367], strides = [1, 1]} : vector<2x384xf32> to vector<2x367xf32>
    %cst_232 = arith.constant 0.000000e+00 : f32
    %584 = vector.broadcast %cst_232 : f32 to vector<2x17xf32>
    %585 = tpu.concatenate %583, %584 in 1 : vector<2x367xf32>, vector<2x17xf32> -> vector<2x384xf32>
    %586 = vector.extract_strided_slice %531 {offsets = [0, 18], sizes = [2, 366], strides = [1, 1]} : vector<2x384xf32> to vector<2x366xf32>
    %cst_233 = arith.constant 0.000000e+00 : f32
    %587 = vector.broadcast %cst_233 : f32 to vector<2x18xf32>
    %588 = tpu.concatenate %586, %587 in 1 : vector<2x366xf32>, vector<2x18xf32> -> vector<2x384xf32>
    %589 = vector.extract_strided_slice %531 {offsets = [0, 30], sizes = [2, 354], strides = [1, 1]} : vector<2x384xf32> to vector<2x354xf32>
    %cst_234 = arith.constant 0.000000e+00 : f32
    %590 = vector.broadcast %cst_234 : f32 to vector<2x30xf32>
    %591 = tpu.concatenate %589, %590 in 1 : vector<2x354xf32>, vector<2x30xf32> -> vector<2x384xf32>
    %592 = vector.extract_strided_slice %531 {offsets = [0, 31], sizes = [2, 353], strides = [1, 1]} : vector<2x384xf32> to vector<2x353xf32>
    %cst_235 = arith.constant 0.000000e+00 : f32
    %593 = vector.broadcast %cst_235 : f32 to vector<2x31xf32>
    %594 = tpu.concatenate %592, %593 in 1 : vector<2x353xf32>, vector<2x31xf32> -> vector<2x384xf32>
    %595 = vector.extract_strided_slice %531 {offsets = [0, 32], sizes = [2, 352], strides = [1, 1]} : vector<2x384xf32> to vector<2x352xf32>
    %cst_236 = arith.constant 0.000000e+00 : f32
    %596 = vector.broadcast %cst_236 : f32 to vector<2x32xf32>
    %597 = tpu.concatenate %595, %596 in 1 : vector<2x352xf32>, vector<2x32xf32> -> vector<2x384xf32>
    %598 = vector.extract_strided_slice %531 {offsets = [0, 33], sizes = [2, 351], strides = [1, 1]} : vector<2x384xf32> to vector<2x351xf32>
    %cst_237 = arith.constant 0.000000e+00 : f32
    %599 = vector.broadcast %cst_237 : f32 to vector<2x33xf32>
    %600 = tpu.concatenate %598, %599 in 1 : vector<2x351xf32>, vector<2x33xf32> -> vector<2x384xf32>
    %601 = vector.extract_strided_slice %531 {offsets = [0, 34], sizes = [2, 350], strides = [1, 1]} : vector<2x384xf32> to vector<2x350xf32>
    %cst_238 = arith.constant 0.000000e+00 : f32
    %602 = vector.broadcast %cst_238 : f32 to vector<2x34xf32>
    %603 = tpu.concatenate %601, %602 in 1 : vector<2x350xf32>, vector<2x34xf32> -> vector<2x384xf32>
    %604 = tpu.concatenate %534, %537, %540, %543, %546, %549, %552, %555, %558, %561, %564, %567, %531, %570, %573, %576 in 0 : vector<2x384xf32>, vector<2x384xf32>, vector<2x384xf32>, vector<2x384xf32>, vector<2x384xf32>, vector<2x384xf32>, vector<2x384xf32>, vector<2x384xf32>, vector<2x384xf32>, vector<2x384xf32>, vector<2x384xf32>, vector<2x384xf32>, vector<2x384xf32>, vector<2x384xf32>, vector<2x384xf32>, vector<2x384xf32> -> vector<32x384xf32>
    %605 = tpu.concatenate %579, %582, %585, %588, %591, %594, %597, %600, %603 in 0 : vector<2x384xf32>, vector<2x384xf32>, vector<2x384xf32>, vector<2x384xf32>, vector<2x384xf32>, vector<2x384xf32>, vector<2x384xf32>, vector<2x384xf32>, vector<2x384xf32> -> vector<18x384xf32>
    %606 = tpu.concatenate %604, %605 in 0 : vector<32x384xf32>, vector<18x384xf32> -> vector<50x384xf32>
    %607 = arith.mulf %606, %26 : vector<50x384xf32>
    %cst_239 = arith.constant dense<0.000000e+00> : vector<2x384xf32>
    %608 = tpu.matmul %0, %607, %cst_239 {dimension_numbers = #tpu.dot_dimension_numbers<[1], [0], [0], [1], [0, 0, 1, 1], [], []>} : vector<2x50xf32>, vector<50x384xf32>, vector<2x384xf32> -> vector<2x384xf32>
    %609 = vector.broadcast %13 : vector<2x1xf32> to vector<2x384xf32>
    %610 = arith.addf %608, %609 : vector<2x384xf32>
    %cst_240 = arith.constant 2.000000e+01 : f32
    %611 = vector.broadcast %cst_240 : f32 to vector<2x384xf32>
    %612 = arith.cmpf ogt, %610, %611 : vector<2x384xf32>
    %cst_241 = arith.constant 2.000000e+01 : f32
    %613 = vector.broadcast %cst_241 : f32 to vector<2x384xf32>
    %614 = arith.minimumf %610, %613 : vector<2x384xf32>
    %615 = math.exp %614 : vector<2x384xf32>
    %cst_242 = arith.constant 1.000000e+00 : f32
    %616 = vector.broadcast %cst_242 : f32 to vector<2x384xf32>
    %617 = arith.addf %616, %615 : vector<2x384xf32>
    %618 = math.log %617 : vector<2x384xf32>
    %619 = arith.select %612, %610, %618 : vector<2x384xi1>, vector<2x384xf32>
    %620 = math.tanh %619 : vector<2x384xf32>
    %621 = arith.mulf %610, %620 : vector<2x384xf32>
    %cst_243 = arith.constant 0.000000e+00 : f32
    %622 = vector.broadcast %cst_243 : f32 to vector<2x17xf32>
    %623 = vector.extract_strided_slice %621 {offsets = [0, 0], sizes = [2, 367], strides = [1, 1]} : vector<2x384xf32> to vector<2x367xf32>
    %624 = tpu.concatenate %622, %623 in 1 : vector<2x17xf32>, vector<2x367xf32> -> vector<2x384xf32>
    %cst_244 = arith.constant 0.000000e+00 : f32
    %625 = vector.broadcast %cst_244 : f32 to vector<2x16xf32>
    %626 = vector.extract_strided_slice %621 {offsets = [0, 0], sizes = [2, 368], strides = [1, 1]} : vector<2x384xf32> to vector<2x368xf32>
    %627 = tpu.concatenate %625, %626 in 1 : vector<2x16xf32>, vector<2x368xf32> -> vector<2x384xf32>
    %cst_245 = arith.constant 0.000000e+00 : f32
    %628 = vector.broadcast %cst_245 : f32 to vector<2x15xf32>
    %629 = vector.extract_strided_slice %621 {offsets = [0, 0], sizes = [2, 369], strides = [1, 1]} : vector<2x384xf32> to vector<2x369xf32>
    %630 = tpu.concatenate %628, %629 in 1 : vector<2x15xf32>, vector<2x369xf32> -> vector<2x384xf32>
    %cst_246 = arith.constant 0.000000e+00 : f32
    %631 = vector.broadcast %cst_246 : f32 to vector<2x1xf32>
    %632 = vector.extract_strided_slice %621 {offsets = [0, 0], sizes = [2, 383], strides = [1, 1]} : vector<2x384xf32> to vector<2x383xf32>
    %633 = tpu.concatenate %631, %632 in 1 : vector<2x1xf32>, vector<2x383xf32> -> vector<2x384xf32>
    %634 = vector.extract_strided_slice %621 {offsets = [0, 1], sizes = [2, 383], strides = [1, 1]} : vector<2x384xf32> to vector<2x383xf32>
    %cst_247 = arith.constant 0.000000e+00 : f32
    %635 = vector.broadcast %cst_247 : f32 to vector<2x1xf32>
    %636 = tpu.concatenate %634, %635 in 1 : vector<2x383xf32>, vector<2x1xf32> -> vector<2x384xf32>
    %637 = vector.extract_strided_slice %621 {offsets = [0, 15], sizes = [2, 369], strides = [1, 1]} : vector<2x384xf32> to vector<2x369xf32>
    %cst_248 = arith.constant 0.000000e+00 : f32
    %638 = vector.broadcast %cst_248 : f32 to vector<2x15xf32>
    %639 = tpu.concatenate %637, %638 in 1 : vector<2x369xf32>, vector<2x15xf32> -> vector<2x384xf32>
    %640 = vector.extract_strided_slice %621 {offsets = [0, 16], sizes = [2, 368], strides = [1, 1]} : vector<2x384xf32> to vector<2x368xf32>
    %cst_249 = arith.constant 0.000000e+00 : f32
    %641 = vector.broadcast %cst_249 : f32 to vector<2x16xf32>
    %642 = tpu.concatenate %640, %641 in 1 : vector<2x368xf32>, vector<2x16xf32> -> vector<2x384xf32>
    %643 = vector.extract_strided_slice %621 {offsets = [0, 17], sizes = [2, 367], strides = [1, 1]} : vector<2x384xf32> to vector<2x367xf32>
    %cst_250 = arith.constant 0.000000e+00 : f32
    %644 = vector.broadcast %cst_250 : f32 to vector<2x17xf32>
    %645 = tpu.concatenate %643, %644 in 1 : vector<2x367xf32>, vector<2x17xf32> -> vector<2x384xf32>
    %646 = tpu.concatenate %624, %627, %630, %633, %621, %636, %639, %642, %645 in 0 : vector<2x384xf32>, vector<2x384xf32>, vector<2x384xf32>, vector<2x384xf32>, vector<2x384xf32>, vector<2x384xf32>, vector<2x384xf32>, vector<2x384xf32>, vector<2x384xf32> -> vector<18x384xf32>
    %647 = arith.mulf %646, %27 : vector<18x384xf32>
    %cst_251 = arith.constant dense<0.000000e+00> : vector<2x384xf32>
    %648 = tpu.matmul %1, %647, %cst_251 {dimension_numbers = #tpu.dot_dimension_numbers<[1], [0], [0], [1], [0, 0, 1, 1], [], []>} : vector<2x18xf32>, vector<18x384xf32>, vector<2x384xf32> -> vector<2x384xf32>
    %649 = vector.broadcast %14 : vector<2x1xf32> to vector<2x384xf32>
    %650 = arith.addf %648, %649 : vector<2x384xf32>
    %cst_252 = arith.constant 2.000000e+01 : f32
    %651 = vector.broadcast %cst_252 : f32 to vector<2x384xf32>
    %652 = arith.cmpf ogt, %650, %651 : vector<2x384xf32>
    %cst_253 = arith.constant 2.000000e+01 : f32
    %653 = vector.broadcast %cst_253 : f32 to vector<2x384xf32>
    %654 = arith.minimumf %650, %653 : vector<2x384xf32>
    %655 = math.exp %654 : vector<2x384xf32>
    %cst_254 = arith.constant 1.000000e+00 : f32
    %656 = vector.broadcast %cst_254 : f32 to vector<2x384xf32>
    %657 = arith.addf %656, %655 : vector<2x384xf32>
    %658 = math.log %657 : vector<2x384xf32>
    %659 = arith.select %652, %650, %658 : vector<2x384xi1>, vector<2x384xf32>
    %660 = math.tanh %659 : vector<2x384xf32>
    %661 = arith.mulf %650, %660 : vector<2x384xf32>
    %cst_255 = arith.constant 0.000000e+00 : f32
    %662 = vector.broadcast %cst_255 : f32 to vector<2x4xf32>
    %663 = vector.extract_strided_slice %661 {offsets = [0, 0], sizes = [2, 380], strides = [1, 1]} : vector<2x384xf32> to vector<2x380xf32>
    %664 = tpu.concatenate %662, %663 in 1 : vector<2x4xf32>, vector<2x380xf32> -> vector<2x384xf32>
    %cst_256 = arith.constant 0.000000e+00 : f32
    %665 = vector.broadcast %cst_256 : f32 to vector<2x3xf32>
    %666 = vector.extract_strided_slice %661 {offsets = [0, 0], sizes = [2, 381], strides = [1, 1]} : vector<2x384xf32> to vector<2x381xf32>
    %667 = tpu.concatenate %665, %666 in 1 : vector<2x3xf32>, vector<2x381xf32> -> vector<2x384xf32>
    %cst_257 = arith.constant 0.000000e+00 : f32
    %668 = vector.broadcast %cst_257 : f32 to vector<2x2xf32>
    %669 = vector.extract_strided_slice %661 {offsets = [0, 0], sizes = [2, 382], strides = [1, 1]} : vector<2x384xf32> to vector<2x382xf32>
    %670 = tpu.concatenate %668, %669 in 1 : vector<2x2xf32>, vector<2x382xf32> -> vector<2x384xf32>
    %cst_258 = arith.constant 0.000000e+00 : f32
    %671 = vector.broadcast %cst_258 : f32 to vector<2x1xf32>
    %672 = vector.extract_strided_slice %661 {offsets = [0, 0], sizes = [2, 383], strides = [1, 1]} : vector<2x384xf32> to vector<2x383xf32>
    %673 = tpu.concatenate %671, %672 in 1 : vector<2x1xf32>, vector<2x383xf32> -> vector<2x384xf32>
    %674 = vector.extract_strided_slice %661 {offsets = [0, 1], sizes = [2, 383], strides = [1, 1]} : vector<2x384xf32> to vector<2x383xf32>
    %cst_259 = arith.constant 0.000000e+00 : f32
    %675 = vector.broadcast %cst_259 : f32 to vector<2x1xf32>
    %676 = tpu.concatenate %674, %675 in 1 : vector<2x383xf32>, vector<2x1xf32> -> vector<2x384xf32>
    %677 = vector.extract_strided_slice %661 {offsets = [0, 2], sizes = [2, 382], strides = [1, 1]} : vector<2x384xf32> to vector<2x382xf32>
    %cst_260 = arith.constant 0.000000e+00 : f32
    %678 = vector.broadcast %cst_260 : f32 to vector<2x2xf32>
    %679 = tpu.concatenate %677, %678 in 1 : vector<2x382xf32>, vector<2x2xf32> -> vector<2x384xf32>
    %680 = vector.extract_strided_slice %661 {offsets = [0, 3], sizes = [2, 381], strides = [1, 1]} : vector<2x384xf32> to vector<2x381xf32>
    %cst_261 = arith.constant 0.000000e+00 : f32
    %681 = vector.broadcast %cst_261 : f32 to vector<2x3xf32>
    %682 = tpu.concatenate %680, %681 in 1 : vector<2x381xf32>, vector<2x3xf32> -> vector<2x384xf32>
    %683 = vector.extract_strided_slice %661 {offsets = [0, 4], sizes = [2, 380], strides = [1, 1]} : vector<2x384xf32> to vector<2x380xf32>
    %cst_262 = arith.constant 0.000000e+00 : f32
    %684 = vector.broadcast %cst_262 : f32 to vector<2x4xf32>
    %685 = tpu.concatenate %683, %684 in 1 : vector<2x380xf32>, vector<2x4xf32> -> vector<2x384xf32>
    %686 = tpu.concatenate %664, %667, %670, %673, %661, %676, %679, %682, %685 in 0 : vector<2x384xf32>, vector<2x384xf32>, vector<2x384xf32>, vector<2x384xf32>, vector<2x384xf32>, vector<2x384xf32>, vector<2x384xf32>, vector<2x384xf32>, vector<2x384xf32> -> vector<18x384xf32>
    %687 = arith.mulf %686, %28 : vector<18x384xf32>
    %cst_263 = arith.constant dense<0.000000e+00> : vector<7x384xf32>
    %688 = tpu.matmul %2, %687, %cst_263 {dimension_numbers = #tpu.dot_dimension_numbers<[1], [0], [0], [1], [0, 0, 1, 1], [], []>} : vector<7x18xf32>, vector<18x384xf32>, vector<7x384xf32> -> vector<7x384xf32>
    %689 = vector.broadcast %15 : vector<7x1xf32> to vector<7x384xf32>
    %690 = arith.addf %688, %689 : vector<7x384xf32>
    %cst_264 = arith.constant 2.000000e+01 : f32
    %691 = vector.broadcast %cst_264 : f32 to vector<7x384xf32>
    %692 = arith.cmpf ogt, %690, %691 : vector<7x384xf32>
    %cst_265 = arith.constant 2.000000e+01 : f32
    %693 = vector.broadcast %cst_265 : f32 to vector<7x384xf32>
    %694 = arith.minimumf %690, %693 : vector<7x384xf32>
    %695 = math.exp %694 : vector<7x384xf32>
    %cst_266 = arith.constant 1.000000e+00 : f32
    %696 = vector.broadcast %cst_266 : f32 to vector<7x384xf32>
    %697 = arith.addf %696, %695 : vector<7x384xf32>
    %698 = math.log %697 : vector<7x384xf32>
    %699 = arith.select %692, %690, %698 : vector<7x384xi1>, vector<7x384xf32>
    %700 = math.tanh %699 : vector<7x384xf32>
    %701 = arith.mulf %690, %700 : vector<7x384xf32>
    %cst_267 = arith.constant 0.000000e+00 : f32
    %702 = vector.broadcast %cst_267 : f32 to vector<7x64xf32>
    %703 = vector.extract_strided_slice %701 {offsets = [0, 0], sizes = [7, 320], strides = [1, 1]} : vector<7x384xf32> to vector<7x320xf32>
    %704 = tpu.concatenate %702, %703 in 1 : vector<7x64xf32>, vector<7x320xf32> -> vector<7x384xf32>
    %cst_268 = arith.constant 0.000000e+00 : f32
    %705 = vector.broadcast %cst_268 : f32 to vector<7x48xf32>
    %706 = vector.extract_strided_slice %701 {offsets = [0, 0], sizes = [7, 336], strides = [1, 1]} : vector<7x384xf32> to vector<7x336xf32>
    %707 = tpu.concatenate %705, %706 in 1 : vector<7x48xf32>, vector<7x336xf32> -> vector<7x384xf32>
    %cst_269 = arith.constant 0.000000e+00 : f32
    %708 = vector.broadcast %cst_269 : f32 to vector<7x32xf32>
    %709 = vector.extract_strided_slice %701 {offsets = [0, 0], sizes = [7, 352], strides = [1, 1]} : vector<7x384xf32> to vector<7x352xf32>
    %710 = tpu.concatenate %708, %709 in 1 : vector<7x32xf32>, vector<7x352xf32> -> vector<7x384xf32>
    %cst_270 = arith.constant 0.000000e+00 : f32
    %711 = vector.broadcast %cst_270 : f32 to vector<7x16xf32>
    %712 = vector.extract_strided_slice %701 {offsets = [0, 0], sizes = [7, 368], strides = [1, 1]} : vector<7x384xf32> to vector<7x368xf32>
    %713 = tpu.concatenate %711, %712 in 1 : vector<7x16xf32>, vector<7x368xf32> -> vector<7x384xf32>
    %714 = vector.extract_strided_slice %701 {offsets = [0, 16], sizes = [7, 368], strides = [1, 1]} : vector<7x384xf32> to vector<7x368xf32>
    %cst_271 = arith.constant 0.000000e+00 : f32
    %715 = vector.broadcast %cst_271 : f32 to vector<7x16xf32>
    %716 = tpu.concatenate %714, %715 in 1 : vector<7x368xf32>, vector<7x16xf32> -> vector<7x384xf32>
    %717 = vector.extract_strided_slice %701 {offsets = [0, 32], sizes = [7, 352], strides = [1, 1]} : vector<7x384xf32> to vector<7x352xf32>
    %cst_272 = arith.constant 0.000000e+00 : f32
    %718 = vector.broadcast %cst_272 : f32 to vector<7x32xf32>
    %719 = tpu.concatenate %717, %718 in 1 : vector<7x352xf32>, vector<7x32xf32> -> vector<7x384xf32>
    %720 = vector.extract_strided_slice %701 {offsets = [0, 48], sizes = [7, 336], strides = [1, 1]} : vector<7x384xf32> to vector<7x336xf32>
    %cst_273 = arith.constant 0.000000e+00 : f32
    %721 = vector.broadcast %cst_273 : f32 to vector<7x48xf32>
    %722 = tpu.concatenate %720, %721 in 1 : vector<7x336xf32>, vector<7x48xf32> -> vector<7x384xf32>
    %723 = vector.extract_strided_slice %701 {offsets = [0, 64], sizes = [7, 320], strides = [1, 1]} : vector<7x384xf32> to vector<7x320xf32>
    %cst_274 = arith.constant 0.000000e+00 : f32
    %724 = vector.broadcast %cst_274 : f32 to vector<7x64xf32>
    %725 = tpu.concatenate %723, %724 in 1 : vector<7x320xf32>, vector<7x64xf32> -> vector<7x384xf32>
    %726 = tpu.concatenate %704, %707, %710, %713, %701, %716, %719, %722, %725 in 0 : vector<7x384xf32>, vector<7x384xf32>, vector<7x384xf32>, vector<7x384xf32>, vector<7x384xf32>, vector<7x384xf32>, vector<7x384xf32>, vector<7x384xf32>, vector<7x384xf32> -> vector<63x384xf32>
    %727 = arith.mulf %726, %29 : vector<63x384xf32>
    %cst_275 = arith.constant dense<0.000000e+00> : vector<7x384xf32>
    %728 = tpu.matmul %3, %727, %cst_275 {dimension_numbers = #tpu.dot_dimension_numbers<[1], [0], [0], [1], [0, 0, 1, 1], [], []>} : vector<7x63xf32>, vector<63x384xf32>, vector<7x384xf32> -> vector<7x384xf32>
    %729 = vector.broadcast %16 : vector<7x1xf32> to vector<7x384xf32>
    %730 = arith.addf %728, %729 : vector<7x384xf32>
    %cst_276 = arith.constant 2.000000e+01 : f32
    %731 = vector.broadcast %cst_276 : f32 to vector<7x384xf32>
    %732 = arith.cmpf ogt, %730, %731 : vector<7x384xf32>
    %cst_277 = arith.constant 2.000000e+01 : f32
    %733 = vector.broadcast %cst_277 : f32 to vector<7x384xf32>
    %734 = arith.minimumf %730, %733 : vector<7x384xf32>
    %735 = math.exp %734 : vector<7x384xf32>
    %cst_278 = arith.constant 1.000000e+00 : f32
    %736 = vector.broadcast %cst_278 : f32 to vector<7x384xf32>
    %737 = arith.addf %736, %735 : vector<7x384xf32>
    %738 = math.log %737 : vector<7x384xf32>
    %739 = arith.select %732, %730, %738 : vector<7x384xi1>, vector<7x384xf32>
    %740 = math.tanh %739 : vector<7x384xf32>
    %741 = arith.mulf %730, %740 : vector<7x384xf32>
    %cst_279 = arith.constant 0.000000e+00 : f32
    %742 = vector.broadcast %cst_279 : f32 to vector<2x2xf32>
    %743 = vector.extract_strided_slice %621 {offsets = [0, 0], sizes = [2, 382], strides = [1, 1]} : vector<2x384xf32> to vector<2x382xf32>
    %744 = tpu.concatenate %742, %743 in 1 : vector<2x2xf32>, vector<2x382xf32> -> vector<2x384xf32>
    %cst_280 = arith.constant 0.000000e+00 : f32
    %745 = vector.broadcast %cst_280 : f32 to vector<2x1xf32>
    %746 = vector.extract_strided_slice %621 {offsets = [0, 0], sizes = [2, 383], strides = [1, 1]} : vector<2x384xf32> to vector<2x383xf32>
    %747 = tpu.concatenate %745, %746 in 1 : vector<2x1xf32>, vector<2x383xf32> -> vector<2x384xf32>
    %748 = vector.extract_strided_slice %621 {offsets = [0, 1], sizes = [2, 383], strides = [1, 1]} : vector<2x384xf32> to vector<2x383xf32>
    %cst_281 = arith.constant 0.000000e+00 : f32
    %749 = vector.broadcast %cst_281 : f32 to vector<2x1xf32>
    %750 = tpu.concatenate %748, %749 in 1 : vector<2x383xf32>, vector<2x1xf32> -> vector<2x384xf32>
    %751 = vector.extract_strided_slice %621 {offsets = [0, 2], sizes = [2, 382], strides = [1, 1]} : vector<2x384xf32> to vector<2x382xf32>
    %cst_282 = arith.constant 0.000000e+00 : f32
    %752 = vector.broadcast %cst_282 : f32 to vector<2x2xf32>
    %753 = tpu.concatenate %751, %752 in 1 : vector<2x382xf32>, vector<2x2xf32> -> vector<2x384xf32>
    %754 = tpu.concatenate %744, %747, %621, %750, %753 in 0 : vector<2x384xf32>, vector<2x384xf32>, vector<2x384xf32>, vector<2x384xf32>, vector<2x384xf32> -> vector<10x384xf32>
    %755 = arith.mulf %754, %30 : vector<10x384xf32>
    %cst_283 = arith.constant dense<0.000000e+00> : vector<2x384xf32>
    %756 = tpu.matmul %4, %755, %cst_283 {dimension_numbers = #tpu.dot_dimension_numbers<[1], [0], [0], [1], [0, 0, 1, 1], [], []>} : vector<2x10xf32>, vector<10x384xf32>, vector<2x384xf32> -> vector<2x384xf32>
    %757 = vector.broadcast %17 : vector<2x1xf32> to vector<2x384xf32>
    %758 = arith.addf %756, %757 : vector<2x384xf32>
    %cst_284 = arith.constant 2.000000e+01 : f32
    %759 = vector.broadcast %cst_284 : f32 to vector<2x384xf32>
    %760 = arith.cmpf ogt, %758, %759 : vector<2x384xf32>
    %cst_285 = arith.constant 2.000000e+01 : f32
    %761 = vector.broadcast %cst_285 : f32 to vector<2x384xf32>
    %762 = arith.minimumf %758, %761 : vector<2x384xf32>
    %763 = math.exp %762 : vector<2x384xf32>
    %cst_286 = arith.constant 1.000000e+00 : f32
    %764 = vector.broadcast %cst_286 : f32 to vector<2x384xf32>
    %765 = arith.addf %764, %763 : vector<2x384xf32>
    %766 = math.log %765 : vector<2x384xf32>
    %767 = arith.select %760, %758, %766 : vector<2x384xi1>, vector<2x384xf32>
    %768 = math.tanh %767 : vector<2x384xf32>
    %769 = arith.mulf %758, %768 : vector<2x384xf32>
    %cst_287 = arith.constant 0.000000e+00 : f32
    %770 = vector.broadcast %cst_287 : f32 to vector<2x32xf32>
    %771 = vector.extract_strided_slice %769 {offsets = [0, 0], sizes = [2, 352], strides = [1, 1]} : vector<2x384xf32> to vector<2x352xf32>
    %772 = tpu.concatenate %770, %771 in 1 : vector<2x32xf32>, vector<2x352xf32> -> vector<2x384xf32>
    %cst_288 = arith.constant 0.000000e+00 : f32
    %773 = vector.broadcast %cst_288 : f32 to vector<2x16xf32>
    %774 = vector.extract_strided_slice %769 {offsets = [0, 0], sizes = [2, 368], strides = [1, 1]} : vector<2x384xf32> to vector<2x368xf32>
    %775 = tpu.concatenate %773, %774 in 1 : vector<2x16xf32>, vector<2x368xf32> -> vector<2x384xf32>
    %776 = vector.extract_strided_slice %769 {offsets = [0, 16], sizes = [2, 368], strides = [1, 1]} : vector<2x384xf32> to vector<2x368xf32>
    %cst_289 = arith.constant 0.000000e+00 : f32
    %777 = vector.broadcast %cst_289 : f32 to vector<2x16xf32>
    %778 = tpu.concatenate %776, %777 in 1 : vector<2x368xf32>, vector<2x16xf32> -> vector<2x384xf32>
    %779 = vector.extract_strided_slice %769 {offsets = [0, 32], sizes = [2, 352], strides = [1, 1]} : vector<2x384xf32> to vector<2x352xf32>
    %cst_290 = arith.constant 0.000000e+00 : f32
    %780 = vector.broadcast %cst_290 : f32 to vector<2x32xf32>
    %781 = tpu.concatenate %779, %780 in 1 : vector<2x352xf32>, vector<2x32xf32> -> vector<2x384xf32>
    %782 = tpu.concatenate %772, %775, %769, %778, %781 in 0 : vector<2x384xf32>, vector<2x384xf32>, vector<2x384xf32>, vector<2x384xf32>, vector<2x384xf32> -> vector<10x384xf32>
    %783 = arith.mulf %782, %31 : vector<10x384xf32>
    %cst_291 = arith.constant dense<0.000000e+00> : vector<7x384xf32>
    %784 = tpu.matmul %5, %783, %cst_291 {dimension_numbers = #tpu.dot_dimension_numbers<[1], [0], [0], [1], [0, 0, 1, 1], [], []>} : vector<7x10xf32>, vector<10x384xf32>, vector<7x384xf32> -> vector<7x384xf32>
    %785 = vector.broadcast %18 : vector<7x1xf32> to vector<7x384xf32>
    %786 = arith.addf %784, %785 : vector<7x384xf32>
    %cst_292 = arith.constant 2.000000e+01 : f32
    %787 = vector.broadcast %cst_292 : f32 to vector<7x384xf32>
    %788 = arith.cmpf ogt, %786, %787 : vector<7x384xf32>
    %cst_293 = arith.constant 2.000000e+01 : f32
    %789 = vector.broadcast %cst_293 : f32 to vector<7x384xf32>
    %790 = arith.minimumf %786, %789 : vector<7x384xf32>
    %791 = math.exp %790 : vector<7x384xf32>
    %cst_294 = arith.constant 1.000000e+00 : f32
    %792 = vector.broadcast %cst_294 : f32 to vector<7x384xf32>
    %793 = arith.addf %792, %791 : vector<7x384xf32>
    %794 = math.log %793 : vector<7x384xf32>
    %795 = arith.select %788, %786, %794 : vector<7x384xi1>, vector<7x384xf32>
    %796 = math.tanh %795 : vector<7x384xf32>
    %797 = arith.mulf %786, %796 : vector<7x384xf32>
    %798 = tpu.concatenate %741, %797 in 0 : vector<7x384xf32>, vector<7x384xf32> -> vector<14x384xf32>
    %cst_295 = arith.constant dense<0.000000e+00> : vector<2x384xf32>
    %799 = tpu.matmul %6, %798, %cst_295 {dimension_numbers = #tpu.dot_dimension_numbers<[1], [0], [0], [1], [0, 0, 1, 1], [], []>} : vector<2x14xf32>, vector<14x384xf32>, vector<2x384xf32> -> vector<2x384xf32>
    %800 = vector.broadcast %19 : vector<2x1xf32> to vector<2x384xf32>
    %801 = arith.addf %799, %800 : vector<2x384xf32>
    %cst_296 = arith.constant 2.000000e+01 : f32
    %802 = vector.broadcast %cst_296 : f32 to vector<2x384xf32>
    %803 = arith.cmpf ogt, %801, %802 : vector<2x384xf32>
    %cst_297 = arith.constant 2.000000e+01 : f32
    %804 = vector.broadcast %cst_297 : f32 to vector<2x384xf32>
    %805 = arith.minimumf %801, %804 : vector<2x384xf32>
    %806 = math.exp %805 : vector<2x384xf32>
    %cst_298 = arith.constant 1.000000e+00 : f32
    %807 = vector.broadcast %cst_298 : f32 to vector<2x384xf32>
    %808 = arith.addf %807, %806 : vector<2x384xf32>
    %809 = math.log %808 : vector<2x384xf32>
    %810 = arith.select %803, %801, %809 : vector<2x384xi1>, vector<2x384xf32>
    %811 = math.tanh %810 : vector<2x384xf32>
    %812 = arith.mulf %801, %811 : vector<2x384xf32>
    %813 = arith.addf %812, %621 : vector<2x384xf32>
    %cst_299 = arith.constant 0.000000e+00 : f32
    %814 = vector.broadcast %cst_299 : f32 to vector<2x17xf32>
    %815 = vector.extract_strided_slice %813 {offsets = [0, 0], sizes = [2, 367], strides = [1, 1]} : vector<2x384xf32> to vector<2x367xf32>
    %816 = tpu.concatenate %814, %815 in 1 : vector<2x17xf32>, vector<2x367xf32> -> vector<2x384xf32>
    %cst_300 = arith.constant 0.000000e+00 : f32
    %817 = vector.broadcast %cst_300 : f32 to vector<2x16xf32>
    %818 = vector.extract_strided_slice %813 {offsets = [0, 0], sizes = [2, 368], strides = [1, 1]} : vector<2x384xf32> to vector<2x368xf32>
    %819 = tpu.concatenate %817, %818 in 1 : vector<2x16xf32>, vector<2x368xf32> -> vector<2x384xf32>
    %cst_301 = arith.constant 0.000000e+00 : f32
    %820 = vector.broadcast %cst_301 : f32 to vector<2x15xf32>
    %821 = vector.extract_strided_slice %813 {offsets = [0, 0], sizes = [2, 369], strides = [1, 1]} : vector<2x384xf32> to vector<2x369xf32>
    %822 = tpu.concatenate %820, %821 in 1 : vector<2x15xf32>, vector<2x369xf32> -> vector<2x384xf32>
    %cst_302 = arith.constant 0.000000e+00 : f32
    %823 = vector.broadcast %cst_302 : f32 to vector<2x1xf32>
    %824 = vector.extract_strided_slice %813 {offsets = [0, 0], sizes = [2, 383], strides = [1, 1]} : vector<2x384xf32> to vector<2x383xf32>
    %825 = tpu.concatenate %823, %824 in 1 : vector<2x1xf32>, vector<2x383xf32> -> vector<2x384xf32>
    %826 = vector.extract_strided_slice %813 {offsets = [0, 1], sizes = [2, 383], strides = [1, 1]} : vector<2x384xf32> to vector<2x383xf32>
    %cst_303 = arith.constant 0.000000e+00 : f32
    %827 = vector.broadcast %cst_303 : f32 to vector<2x1xf32>
    %828 = tpu.concatenate %826, %827 in 1 : vector<2x383xf32>, vector<2x1xf32> -> vector<2x384xf32>
    %829 = vector.extract_strided_slice %813 {offsets = [0, 15], sizes = [2, 369], strides = [1, 1]} : vector<2x384xf32> to vector<2x369xf32>
    %cst_304 = arith.constant 0.000000e+00 : f32
    %830 = vector.broadcast %cst_304 : f32 to vector<2x15xf32>
    %831 = tpu.concatenate %829, %830 in 1 : vector<2x369xf32>, vector<2x15xf32> -> vector<2x384xf32>
    %832 = vector.extract_strided_slice %813 {offsets = [0, 16], sizes = [2, 368], strides = [1, 1]} : vector<2x384xf32> to vector<2x368xf32>
    %cst_305 = arith.constant 0.000000e+00 : f32
    %833 = vector.broadcast %cst_305 : f32 to vector<2x16xf32>
    %834 = tpu.concatenate %832, %833 in 1 : vector<2x368xf32>, vector<2x16xf32> -> vector<2x384xf32>
    %835 = vector.extract_strided_slice %813 {offsets = [0, 17], sizes = [2, 367], strides = [1, 1]} : vector<2x384xf32> to vector<2x367xf32>
    %cst_306 = arith.constant 0.000000e+00 : f32
    %836 = vector.broadcast %cst_306 : f32 to vector<2x17xf32>
    %837 = tpu.concatenate %835, %836 in 1 : vector<2x367xf32>, vector<2x17xf32> -> vector<2x384xf32>
    %838 = tpu.concatenate %816, %819, %822, %825, %813, %828, %831, %834, %837 in 0 : vector<2x384xf32>, vector<2x384xf32>, vector<2x384xf32>, vector<2x384xf32>, vector<2x384xf32>, vector<2x384xf32>, vector<2x384xf32>, vector<2x384xf32>, vector<2x384xf32> -> vector<18x384xf32>
    %839 = arith.mulf %838, %27 : vector<18x384xf32>
    %cst_307 = arith.constant dense<0.000000e+00> : vector<2x384xf32>
    %840 = tpu.matmul %7, %839, %cst_307 {dimension_numbers = #tpu.dot_dimension_numbers<[1], [0], [0], [1], [0, 0, 1, 1], [], []>} : vector<2x18xf32>, vector<18x384xf32>, vector<2x384xf32> -> vector<2x384xf32>
    %841 = vector.broadcast %20 : vector<2x1xf32> to vector<2x384xf32>
    %842 = arith.addf %840, %841 : vector<2x384xf32>
    %cst_308 = arith.constant 2.000000e+01 : f32
    %843 = vector.broadcast %cst_308 : f32 to vector<2x384xf32>
    %844 = arith.cmpf ogt, %842, %843 : vector<2x384xf32>
    %cst_309 = arith.constant 2.000000e+01 : f32
    %845 = vector.broadcast %cst_309 : f32 to vector<2x384xf32>
    %846 = arith.minimumf %842, %845 : vector<2x384xf32>
    %847 = math.exp %846 : vector<2x384xf32>
    %cst_310 = arith.constant 1.000000e+00 : f32
    %848 = vector.broadcast %cst_310 : f32 to vector<2x384xf32>
    %849 = arith.addf %848, %847 : vector<2x384xf32>
    %850 = math.log %849 : vector<2x384xf32>
    %851 = arith.select %844, %842, %850 : vector<2x384xi1>, vector<2x384xf32>
    %852 = math.tanh %851 : vector<2x384xf32>
    %853 = arith.mulf %842, %852 : vector<2x384xf32>
    %cst_311 = arith.constant 0.000000e+00 : f32
    %854 = vector.broadcast %cst_311 : f32 to vector<2x4xf32>
    %855 = vector.extract_strided_slice %853 {offsets = [0, 0], sizes = [2, 380], strides = [1, 1]} : vector<2x384xf32> to vector<2x380xf32>
    %856 = tpu.concatenate %854, %855 in 1 : vector<2x4xf32>, vector<2x380xf32> -> vector<2x384xf32>
    %cst_312 = arith.constant 0.000000e+00 : f32
    %857 = vector.broadcast %cst_312 : f32 to vector<2x3xf32>
    %858 = vector.extract_strided_slice %853 {offsets = [0, 0], sizes = [2, 381], strides = [1, 1]} : vector<2x384xf32> to vector<2x381xf32>
    %859 = tpu.concatenate %857, %858 in 1 : vector<2x3xf32>, vector<2x381xf32> -> vector<2x384xf32>
    %cst_313 = arith.constant 0.000000e+00 : f32
    %860 = vector.broadcast %cst_313 : f32 to vector<2x2xf32>
    %861 = vector.extract_strided_slice %853 {offsets = [0, 0], sizes = [2, 382], strides = [1, 1]} : vector<2x384xf32> to vector<2x382xf32>
    %862 = tpu.concatenate %860, %861 in 1 : vector<2x2xf32>, vector<2x382xf32> -> vector<2x384xf32>
    %cst_314 = arith.constant 0.000000e+00 : f32
    %863 = vector.broadcast %cst_314 : f32 to vector<2x1xf32>
    %864 = vector.extract_strided_slice %853 {offsets = [0, 0], sizes = [2, 383], strides = [1, 1]} : vector<2x384xf32> to vector<2x383xf32>
    %865 = tpu.concatenate %863, %864 in 1 : vector<2x1xf32>, vector<2x383xf32> -> vector<2x384xf32>
    %866 = vector.extract_strided_slice %853 {offsets = [0, 1], sizes = [2, 383], strides = [1, 1]} : vector<2x384xf32> to vector<2x383xf32>
    %cst_315 = arith.constant 0.000000e+00 : f32
    %867 = vector.broadcast %cst_315 : f32 to vector<2x1xf32>
    %868 = tpu.concatenate %866, %867 in 1 : vector<2x383xf32>, vector<2x1xf32> -> vector<2x384xf32>
    %869 = vector.extract_strided_slice %853 {offsets = [0, 2], sizes = [2, 382], strides = [1, 1]} : vector<2x384xf32> to vector<2x382xf32>
    %cst_316 = arith.constant 0.000000e+00 : f32
    %870 = vector.broadcast %cst_316 : f32 to vector<2x2xf32>
    %871 = tpu.concatenate %869, %870 in 1 : vector<2x382xf32>, vector<2x2xf32> -> vector<2x384xf32>
    %872 = vector.extract_strided_slice %853 {offsets = [0, 3], sizes = [2, 381], strides = [1, 1]} : vector<2x384xf32> to vector<2x381xf32>
    %cst_317 = arith.constant 0.000000e+00 : f32
    %873 = vector.broadcast %cst_317 : f32 to vector<2x3xf32>
    %874 = tpu.concatenate %872, %873 in 1 : vector<2x381xf32>, vector<2x3xf32> -> vector<2x384xf32>
    %875 = vector.extract_strided_slice %853 {offsets = [0, 4], sizes = [2, 380], strides = [1, 1]} : vector<2x384xf32> to vector<2x380xf32>
    %cst_318 = arith.constant 0.000000e+00 : f32
    %876 = vector.broadcast %cst_318 : f32 to vector<2x4xf32>
    %877 = tpu.concatenate %875, %876 in 1 : vector<2x380xf32>, vector<2x4xf32> -> vector<2x384xf32>
    %878 = tpu.concatenate %856, %859, %862, %865, %853, %868, %871, %874, %877 in 0 : vector<2x384xf32>, vector<2x384xf32>, vector<2x384xf32>, vector<2x384xf32>, vector<2x384xf32>, vector<2x384xf32>, vector<2x384xf32>, vector<2x384xf32>, vector<2x384xf32> -> vector<18x384xf32>
    %879 = arith.mulf %878, %28 : vector<18x384xf32>
    %cst_319 = arith.constant dense<0.000000e+00> : vector<7x384xf32>
    %880 = tpu.matmul %8, %879, %cst_319 {dimension_numbers = #tpu.dot_dimension_numbers<[1], [0], [0], [1], [0, 0, 1, 1], [], []>} : vector<7x18xf32>, vector<18x384xf32>, vector<7x384xf32> -> vector<7x384xf32>
    %881 = vector.broadcast %21 : vector<7x1xf32> to vector<7x384xf32>
    %882 = arith.addf %880, %881 : vector<7x384xf32>
    %cst_320 = arith.constant 2.000000e+01 : f32
    %883 = vector.broadcast %cst_320 : f32 to vector<7x384xf32>
    %884 = arith.cmpf ogt, %882, %883 : vector<7x384xf32>
    %cst_321 = arith.constant 2.000000e+01 : f32
    %885 = vector.broadcast %cst_321 : f32 to vector<7x384xf32>
    %886 = arith.minimumf %882, %885 : vector<7x384xf32>
    %887 = math.exp %886 : vector<7x384xf32>
    %cst_322 = arith.constant 1.000000e+00 : f32
    %888 = vector.broadcast %cst_322 : f32 to vector<7x384xf32>
    %889 = arith.addf %888, %887 : vector<7x384xf32>
    %890 = math.log %889 : vector<7x384xf32>
    %891 = arith.select %884, %882, %890 : vector<7x384xi1>, vector<7x384xf32>
    %892 = math.tanh %891 : vector<7x384xf32>
    %893 = arith.mulf %882, %892 : vector<7x384xf32>
    %cst_323 = arith.constant 0.000000e+00 : f32
    %894 = vector.broadcast %cst_323 : f32 to vector<7x64xf32>
    %895 = vector.extract_strided_slice %893 {offsets = [0, 0], sizes = [7, 320], strides = [1, 1]} : vector<7x384xf32> to vector<7x320xf32>
    %896 = tpu.concatenate %894, %895 in 1 : vector<7x64xf32>, vector<7x320xf32> -> vector<7x384xf32>
    %cst_324 = arith.constant 0.000000e+00 : f32
    %897 = vector.broadcast %cst_324 : f32 to vector<7x48xf32>
    %898 = vector.extract_strided_slice %893 {offsets = [0, 0], sizes = [7, 336], strides = [1, 1]} : vector<7x384xf32> to vector<7x336xf32>
    %899 = tpu.concatenate %897, %898 in 1 : vector<7x48xf32>, vector<7x336xf32> -> vector<7x384xf32>
    %cst_325 = arith.constant 0.000000e+00 : f32
    %900 = vector.broadcast %cst_325 : f32 to vector<7x32xf32>
    %901 = vector.extract_strided_slice %893 {offsets = [0, 0], sizes = [7, 352], strides = [1, 1]} : vector<7x384xf32> to vector<7x352xf32>
    %902 = tpu.concatenate %900, %901 in 1 : vector<7x32xf32>, vector<7x352xf32> -> vector<7x384xf32>
    %cst_326 = arith.constant 0.000000e+00 : f32
    %903 = vector.broadcast %cst_326 : f32 to vector<7x16xf32>
    %904 = vector.extract_strided_slice %893 {offsets = [0, 0], sizes = [7, 368], strides = [1, 1]} : vector<7x384xf32> to vector<7x368xf32>
    %905 = tpu.concatenate %903, %904 in 1 : vector<7x16xf32>, vector<7x368xf32> -> vector<7x384xf32>
    %906 = vector.extract_strided_slice %893 {offsets = [0, 16], sizes = [7, 368], strides = [1, 1]} : vector<7x384xf32> to vector<7x368xf32>
    %cst_327 = arith.constant 0.000000e+00 : f32
    %907 = vector.broadcast %cst_327 : f32 to vector<7x16xf32>
    %908 = tpu.concatenate %906, %907 in 1 : vector<7x368xf32>, vector<7x16xf32> -> vector<7x384xf32>
    %909 = vector.extract_strided_slice %893 {offsets = [0, 32], sizes = [7, 352], strides = [1, 1]} : vector<7x384xf32> to vector<7x352xf32>
    %cst_328 = arith.constant 0.000000e+00 : f32
    %910 = vector.broadcast %cst_328 : f32 to vector<7x32xf32>
    %911 = tpu.concatenate %909, %910 in 1 : vector<7x352xf32>, vector<7x32xf32> -> vector<7x384xf32>
    %912 = vector.extract_strided_slice %893 {offsets = [0, 48], sizes = [7, 336], strides = [1, 1]} : vector<7x384xf32> to vector<7x336xf32>
    %cst_329 = arith.constant 0.000000e+00 : f32
    %913 = vector.broadcast %cst_329 : f32 to vector<7x48xf32>
    %914 = tpu.concatenate %912, %913 in 1 : vector<7x336xf32>, vector<7x48xf32> -> vector<7x384xf32>
    %915 = vector.extract_strided_slice %893 {offsets = [0, 64], sizes = [7, 320], strides = [1, 1]} : vector<7x384xf32> to vector<7x320xf32>
    %cst_330 = arith.constant 0.000000e+00 : f32
    %916 = vector.broadcast %cst_330 : f32 to vector<7x64xf32>
    %917 = tpu.concatenate %915, %916 in 1 : vector<7x320xf32>, vector<7x64xf32> -> vector<7x384xf32>
    %918 = tpu.concatenate %896, %899, %902, %905, %893, %908, %911, %914, %917 in 0 : vector<7x384xf32>, vector<7x384xf32>, vector<7x384xf32>, vector<7x384xf32>, vector<7x384xf32>, vector<7x384xf32>, vector<7x384xf32>, vector<7x384xf32>, vector<7x384xf32> -> vector<63x384xf32>
    %919 = arith.mulf %918, %29 : vector<63x384xf32>
    %cst_331 = arith.constant dense<0.000000e+00> : vector<7x384xf32>
    %920 = tpu.matmul %9, %919, %cst_331 {dimension_numbers = #tpu.dot_dimension_numbers<[1], [0], [0], [1], [0, 0, 1, 1], [], []>} : vector<7x63xf32>, vector<63x384xf32>, vector<7x384xf32> -> vector<7x384xf32>
    %921 = vector.broadcast %22 : vector<7x1xf32> to vector<7x384xf32>
    %922 = arith.addf %920, %921 : vector<7x384xf32>
    %cst_332 = arith.constant 2.000000e+01 : f32
    %923 = vector.broadcast %cst_332 : f32 to vector<7x384xf32>
    %924 = arith.cmpf ogt, %922, %923 : vector<7x384xf32>
    %cst_333 = arith.constant 2.000000e+01 : f32
    %925 = vector.broadcast %cst_333 : f32 to vector<7x384xf32>
    %926 = arith.minimumf %922, %925 : vector<7x384xf32>
    %927 = math.exp %926 : vector<7x384xf32>
    %cst_334 = arith.constant 1.000000e+00 : f32
    %928 = vector.broadcast %cst_334 : f32 to vector<7x384xf32>
    %929 = arith.addf %928, %927 : vector<7x384xf32>
    %930 = math.log %929 : vector<7x384xf32>
    %931 = arith.select %924, %922, %930 : vector<7x384xi1>, vector<7x384xf32>
    %932 = math.tanh %931 : vector<7x384xf32>
    %933 = arith.mulf %922, %932 : vector<7x384xf32>
    %cst_335 = arith.constant 0.000000e+00 : f32
    %934 = vector.broadcast %cst_335 : f32 to vector<2x2xf32>
    %935 = vector.extract_strided_slice %813 {offsets = [0, 0], sizes = [2, 382], strides = [1, 1]} : vector<2x384xf32> to vector<2x382xf32>
    %936 = tpu.concatenate %934, %935 in 1 : vector<2x2xf32>, vector<2x382xf32> -> vector<2x384xf32>
    %cst_336 = arith.constant 0.000000e+00 : f32
    %937 = vector.broadcast %cst_336 : f32 to vector<2x1xf32>
    %938 = vector.extract_strided_slice %813 {offsets = [0, 0], sizes = [2, 383], strides = [1, 1]} : vector<2x384xf32> to vector<2x383xf32>
    %939 = tpu.concatenate %937, %938 in 1 : vector<2x1xf32>, vector<2x383xf32> -> vector<2x384xf32>
    %940 = vector.extract_strided_slice %813 {offsets = [0, 1], sizes = [2, 383], strides = [1, 1]} : vector<2x384xf32> to vector<2x383xf32>
    %cst_337 = arith.constant 0.000000e+00 : f32
    %941 = vector.broadcast %cst_337 : f32 to vector<2x1xf32>
    %942 = tpu.concatenate %940, %941 in 1 : vector<2x383xf32>, vector<2x1xf32> -> vector<2x384xf32>
    %943 = vector.extract_strided_slice %813 {offsets = [0, 2], sizes = [2, 382], strides = [1, 1]} : vector<2x384xf32> to vector<2x382xf32>
    %cst_338 = arith.constant 0.000000e+00 : f32
    %944 = vector.broadcast %cst_338 : f32 to vector<2x2xf32>
    %945 = tpu.concatenate %943, %944 in 1 : vector<2x382xf32>, vector<2x2xf32> -> vector<2x384xf32>
    %946 = tpu.concatenate %936, %939, %813, %942, %945 in 0 : vector<2x384xf32>, vector<2x384xf32>, vector<2x384xf32>, vector<2x384xf32>, vector<2x384xf32> -> vector<10x384xf32>
    %947 = arith.mulf %946, %30 : vector<10x384xf32>
    %cst_339 = arith.constant dense<0.000000e+00> : vector<2x384xf32>
    %948 = tpu.matmul %10, %947, %cst_339 {dimension_numbers = #tpu.dot_dimension_numbers<[1], [0], [0], [1], [0, 0, 1, 1], [], []>} : vector<2x10xf32>, vector<10x384xf32>, vector<2x384xf32> -> vector<2x384xf32>
    %949 = vector.broadcast %23 : vector<2x1xf32> to vector<2x384xf32>
    %950 = arith.addf %948, %949 : vector<2x384xf32>
    %cst_340 = arith.constant 2.000000e+01 : f32
    %951 = vector.broadcast %cst_340 : f32 to vector<2x384xf32>
    %952 = arith.cmpf ogt, %950, %951 : vector<2x384xf32>
    %cst_341 = arith.constant 2.000000e+01 : f32
    %953 = vector.broadcast %cst_341 : f32 to vector<2x384xf32>
    %954 = arith.minimumf %950, %953 : vector<2x384xf32>
    %955 = math.exp %954 : vector<2x384xf32>
    %cst_342 = arith.constant 1.000000e+00 : f32
    %956 = vector.broadcast %cst_342 : f32 to vector<2x384xf32>
    %957 = arith.addf %956, %955 : vector<2x384xf32>
    %958 = math.log %957 : vector<2x384xf32>
    %959 = arith.select %952, %950, %958 : vector<2x384xi1>, vector<2x384xf32>
    %960 = math.tanh %959 : vector<2x384xf32>
    %961 = arith.mulf %950, %960 : vector<2x384xf32>
    %cst_343 = arith.constant 0.000000e+00 : f32
    %962 = vector.broadcast %cst_343 : f32 to vector<2x32xf32>
    %963 = vector.extract_strided_slice %961 {offsets = [0, 0], sizes = [2, 352], strides = [1, 1]} : vector<2x384xf32> to vector<2x352xf32>
    %964 = tpu.concatenate %962, %963 in 1 : vector<2x32xf32>, vector<2x352xf32> -> vector<2x384xf32>
    %cst_344 = arith.constant 0.000000e+00 : f32
    %965 = vector.broadcast %cst_344 : f32 to vector<2x16xf32>
    %966 = vector.extract_strided_slice %961 {offsets = [0, 0], sizes = [2, 368], strides = [1, 1]} : vector<2x384xf32> to vector<2x368xf32>
    %967 = tpu.concatenate %965, %966 in 1 : vector<2x16xf32>, vector<2x368xf32> -> vector<2x384xf32>
    %968 = vector.extract_strided_slice %961 {offsets = [0, 16], sizes = [2, 368], strides = [1, 1]} : vector<2x384xf32> to vector<2x368xf32>
    %cst_345 = arith.constant 0.000000e+00 : f32
    %969 = vector.broadcast %cst_345 : f32 to vector<2x16xf32>
    %970 = tpu.concatenate %968, %969 in 1 : vector<2x368xf32>, vector<2x16xf32> -> vector<2x384xf32>
    %971 = vector.extract_strided_slice %961 {offsets = [0, 32], sizes = [2, 352], strides = [1, 1]} : vector<2x384xf32> to vector<2x352xf32>
    %cst_346 = arith.constant 0.000000e+00 : f32
    %972 = vector.broadcast %cst_346 : f32 to vector<2x32xf32>
    %973 = tpu.concatenate %971, %972 in 1 : vector<2x352xf32>, vector<2x32xf32> -> vector<2x384xf32>
    %974 = tpu.concatenate %964, %967, %961, %970, %973 in 0 : vector<2x384xf32>, vector<2x384xf32>, vector<2x384xf32>, vector<2x384xf32>, vector<2x384xf32> -> vector<10x384xf32>
    %975 = arith.mulf %974, %31 : vector<10x384xf32>
    %cst_347 = arith.constant dense<0.000000e+00> : vector<7x384xf32>
    %976 = tpu.matmul %11, %975, %cst_347 {dimension_numbers = #tpu.dot_dimension_numbers<[1], [0], [0], [1], [0, 0, 1, 1], [], []>} : vector<7x10xf32>, vector<10x384xf32>, vector<7x384xf32> -> vector<7x384xf32>
    %977 = vector.broadcast %24 : vector<7x1xf32> to vector<7x384xf32>
    %978 = arith.addf %976, %977 : vector<7x384xf32>
    %cst_348 = arith.constant 2.000000e+01 : f32
    %979 = vector.broadcast %cst_348 : f32 to vector<7x384xf32>
    %980 = arith.cmpf ogt, %978, %979 : vector<7x384xf32>
    %cst_349 = arith.constant 2.000000e+01 : f32
    %981 = vector.broadcast %cst_349 : f32 to vector<7x384xf32>
    %982 = arith.minimumf %978, %981 : vector<7x384xf32>
    %983 = math.exp %982 : vector<7x384xf32>
    %cst_350 = arith.constant 1.000000e+00 : f32
    %984 = vector.broadcast %cst_350 : f32 to vector<7x384xf32>
    %985 = arith.addf %984, %983 : vector<7x384xf32>
    %986 = math.log %985 : vector<7x384xf32>
    %987 = arith.select %980, %978, %986 : vector<7x384xi1>, vector<7x384xf32>
    %988 = math.tanh %987 : vector<7x384xf32>
    %989 = arith.mulf %978, %988 : vector<7x384xf32>
    %990 = tpu.concatenate %933, %989 in 0 : vector<7x384xf32>, vector<7x384xf32> -> vector<14x384xf32>
    %cst_351 = arith.constant dense<0.000000e+00> : vector<2x384xf32>
    %991 = tpu.matmul %12, %990, %cst_351 {dimension_numbers = #tpu.dot_dimension_numbers<[1], [0], [0], [1], [0, 0, 1, 1], [], []>} : vector<2x14xf32>, vector<14x384xf32>, vector<2x384xf32> -> vector<2x384xf32>
    %992 = vector.broadcast %25 : vector<2x1xf32> to vector<2x384xf32>
    %993 = arith.addf %991, %992 : vector<2x384xf32>
    %cst_352 = arith.constant 2.000000e+01 : f32
    %994 = vector.broadcast %cst_352 : f32 to vector<2x384xf32>
    %995 = arith.cmpf ogt, %993, %994 : vector<2x384xf32>
    %cst_353 = arith.constant 2.000000e+01 : f32
    %996 = vector.broadcast %cst_353 : f32 to vector<2x384xf32>
    %997 = arith.minimumf %993, %996 : vector<2x384xf32>
    %998 = math.exp %997 : vector<2x384xf32>
    %cst_354 = arith.constant 1.000000e+00 : f32
    %999 = vector.broadcast %cst_354 : f32 to vector<2x384xf32>
    %1000 = arith.addf %999, %998 : vector<2x384xf32>
    %1001 = math.log %1000 : vector<2x384xf32>
    %1002 = arith.select %995, %993, %1001 : vector<2x384xi1>, vector<2x384xf32>
    %1003 = math.tanh %1002 : vector<2x384xf32>
    %1004 = arith.mulf %993, %1003 : vector<2x384xf32>
    %1005 = arith.addf %1004, %813 : vector<2x384xf32>
    %c1 = arith.constant 1 : index
    %c0_355 = arith.constant 0 : index
    %c0_356 = arith.constant 0 : index
    %1006 = vector.load %arg35[%c1, %c0_355, %c0_356] : memref<2x2x384xf32, #tpu.memory_space<vmem>>, vector<1x2x384xf32>
    %1007 = vector.shape_cast %1006 : vector<1x2x384xf32> to vector<2x384xf32>
    %1008 = vector.shape_cast %1005 : vector<2x384xf32> to vector<1x2x384xf32>
    tpu.vector_store %arg35[%c1, %c0_355, %c0_356], %1008 {strides = array<i32>} : memref<2x2x384xf32, #tpu.memory_space<vmem>>, vector<1x2x384xf32>,
    return
  }
}

</mosaic_0001>

<llo_original>
// kernel: tpu_custom_call.1
$region0: #{tpu_custom_call.1}
  #allocation0 [shape = 'u32[]', space=smem, size = 0x4, offset = 0x4, fixed_abs, tag = 'smem constant byte address 0x4 - core index']
  #allocation1 [shape = 'u32[144,128]{1,0:T(1,128)}', space=vmem, size = 0x12000, scoped, tag = 'internal scratch']
  %s0 = inlined_call_operand.smem [shape: u32[36], index: -1, kind: input, shape index: {}]
  %s1 = sld [smem:[%s0]]
  %s2 = scalar_lea.smem %s0, 1
  %s3 = sld [smem:[%s2]]
  %s4 = scalar_lea.smem %s0, 2
  %s5 = sld [smem:[%s4]]
  %s6 = scalar_lea.smem %s0, 3
  %s7 = sld [smem:[%s6]]
  %s8 = scalar_lea.smem %s0, 4
  %s9 = sld [smem:[%s8]]
  %s10 = scalar_lea.smem %s0, 5
  %s11 = sld [smem:[%s10]]
  %s12 = scalar_lea.smem %s0, 6
  %s13 = sld [smem:[%s12]]
  %s14 = scalar_lea.smem %s0, 7
  %s15 = sld [smem:[%s14]]
  %s16 = scalar_lea.smem %s0, 8
  %s17 = sld [smem:[%s16]]
  %s18 = scalar_lea.smem %s0, 9
  %s19 = sld [smem:[%s18]]
  %s20 = scalar_lea.smem %s0, 10
  %s21 = sld [smem:[%s20]]
  %s22 = scalar_lea.smem %s0, 11
  %s23 = sld [smem:[%s22]]
  %s24 = scalar_lea.smem %s0, 12
  %s25 = sld [smem:[%s24]]
  %s26 = scalar_lea.smem %s0, 13
  %s27 = sld [smem:[%s26]]
  %s28 = scalar_lea.smem %s0, 14
  %s29 = sld [smem:[%s28]]
  %s30 = scalar_lea.smem %s0, 15
  %s31 = sld [smem:[%s30]]
  %s32 = scalar_lea.smem %s0, 16
  %s33 = sld [smem:[%s32]]
  %s34 = scalar_lea.smem %s0, 17
  %s35 = sld [smem:[%s34]]
  %s36 = scalar_lea.smem %s0, 18
  %s37 = sld [smem:[%s36]]
  %s38 = scalar_lea.smem %s0, 19
  %s39 = sld [smem:[%s38]]
  %s40 = scalar_lea.smem %s0, 20
  %s41 = sld [smem:[%s40]]
  %s42 = scalar_lea.smem %s0, 21
  %s43 = sld [smem:[%s42]]
  %s44 = scalar_lea.smem %s0, 22
  %s45 = sld [smem:[%s44]]
  %s46 = scalar_lea.smem %s0, 23
  %s47 = sld [smem:[%s46]]
  %s48 = scalar_lea.smem %s0, 24
  %s49 = sld [smem:[%s48]]
  %s50 = scalar_lea.smem %s0, 25
  %s51 = sld [smem:[%s50]]
  %s52 = scalar_lea.smem %s0, 26
  %s53 = sld [smem:[%s52]]
  %s54 = scalar_lea.smem %s0, 27
  %s55 = sld [smem:[%s54]]
  %s56 = scalar_lea.smem %s0, 28
  %s57 = sld [smem:[%s56]]
  %s58 = scalar_lea.smem %s0, 29
  %s59 = sld [smem:[%s58]]
  %s60 = scalar_lea.smem %s0, 30
  %s61 = sld [smem:[%s60]]
  %s62 = scalar_lea.smem %s0, 31
  %s63 = sld [smem:[%s62]]
  %s64 = scalar_lea.smem %s0, 32
  %s65 = sld [smem:[%s64]]
  %s66 = scalar_lea.smem %s0, 33
  %s67 = sld [smem:[%s66]]
  %s68 = scalar_lea.smem %s0, 34
  %s69 = sld [smem:[%s68]]
  %s70 = scalar_lea.smem %s0, 35
  %s71 = sld [smem:[%s70]]
  %s72 = sld [smem:[#allocation0]]
  $region226: #{tpu_custom_call.1} parent=0
    _
  %s74 = ssub.s32 1, %s72
  %s75 = scalar_select 0, %s74, %s72
  $region1: #{tpu_custom_call.1} parent=0
    #allocation2 [shape = 'u8[1024]{0}', space=vmem, size = 0x400, scoped, tag = 'input window, operand 0, single buffered']
    #allocation3 [shape = 's32[1]{0}', space=sflag, size = 0x4, scoped, tag = 'scoped memory for tpu_custom_call.1']
    #allocation4 [shape = 's32[1]{0}', space=sflag, size = 0x4, scoped, tag = 'scoped memory for tpu_custom_call.1']
    #allocation5 [shape = 'u8[98304]{0}', space=vmem, size = 0x18000, scoped, tag = 'input window, operand 1, single buffered']
    #allocation6 [shape = 's32[1]{0}', space=sflag, size = 0x4, scoped, tag = 'scoped memory for tpu_custom_call.1']
    #allocation7 [shape = 'u8[3072]{0}', space=vmem, size = 0xc00, scoped, tag = 'input window, operand 2, single buffered']
    #allocation8 [shape = 'u8[1024]{0}', space=vmem, size = 0x400, scoped, tag = 'input window, operand 3, single buffered']
    #allocation9 [shape = 's32[1]{0}', space=sflag, size = 0x4, scoped, tag = 'scoped memory for tpu_custom_call.1']
    #allocation10 [shape = 'u8[1024]{0}', space=vmem, size = 0x400, scoped, tag = 'input window, operand 4, single buffered']
    #allocation11 [shape = 'u8[4096]{0}', space=vmem, size = 0x1000, scoped, tag = 'input window, operand 6, single buffered']
    #allocation12 [shape = 's32[1]{0}', space=sflag, size = 0x4, scoped, tag = 'scoped memory for tpu_custom_call.1']
    #allocation13 [shape = 'u8[1024]{0}', space=vmem, size = 0x400, scoped, tag = 'input window, operand 7, single buffered']
    #allocation14 [shape = 'u8[4096]{0}', space=vmem, size = 0x1000, scoped, tag = 'input window, operand 8, single buffered']
    #allocation15 [shape = 's32[1]{0}', space=sflag, size = 0x4, scoped, tag = 'scoped memory for tpu_custom_call.1']
    #allocation16 [shape = 'u8[1024]{0}', space=vmem, size = 0x400, scoped, tag = 'input window, operand 9, single buffered']
    #allocation17 [shape = 'u8[1024]{0}', space=vmem, size = 0x400, scoped, tag = 'input window, operand 10, single buffered']
    #allocation18 [shape = 's32[1]{0}', space=sflag, size = 0x4, scoped, tag = 'scoped memory for tpu_custom_call.1']
    #allocation19 [shape = 'u8[4096]{0}', space=vmem, size = 0x1000, scoped, tag = 'input window, operand 11, single buffered']
    #allocation20 [shape = 'u8[4096]{0}', space=vmem, size = 0x1000, scoped, tag = 'input window, operand 12, single buffered']
    #allocation21 [shape = 's32[1]{0}', space=sflag, size = 0x4, scoped, tag = 'scoped memory for tpu_custom_call.1']
    #allocation22 [shape = 'u8[1024]{0}', space=vmem, size = 0x400, scoped, tag = 'input window, operand 13, single buffered']
    #allocation23 [shape = 'u8[4096]{0}', space=vmem, size = 0x1000, scoped, tag = 'input window, operand 14, single buffered']
    #allocation24 [shape = 's32[1]{0}', space=sflag, size = 0x4, scoped, tag = 'scoped memory for tpu_custom_call.1']
    #allocation25 [shape = 'u8[1024]{0}', space=vmem, size = 0x400, scoped, tag = 'input window, operand 15, single buffered']
    #allocation26 [shape = 'u8[86016]{0}', space=vmem, size = 0x15000, scoped, tag = 'input window, operand 29, single buffered']
    #allocation27 [shape = 's32[1]{0}', space=sflag, size = 0x4, scoped, tag = 'scoped memory for tpu_custom_call.1']
    #allocation28 [shape = 'u8[36864]{0}', space=vmem, size = 0x9000, scoped, tag = 'input window, operand 31, single buffered']
    #allocation29 [shape = 'u8[98304]{0}', space=vmem, size = 0x18000, scoped, tag = 'input window, operand 32, single buffered']
    #allocation30 [shape = 's32[1]{0}', space=sflag, size = 0x4, scoped, tag = 'scoped memory for tpu_custom_call.1']
    #allocation31 [shape = 'u8[24576]{0}', space=vmem, size = 0x6000, scoped, tag = 'input window, operand 34, single buffered']
    #allocation32 [shape = 'u8[6144]{0}', space=vmem, size = 0x1800, scoped, tag = 'output window, operand 0, single buffered']
    %76 = vsyncpa [#allocation3], 0
    %77 = vsyncpa [#allocation6], 0
    %78 = vsyncpa [#allocation9], 0
    %79 = vsyncpa [#allocation12], 0
    %80 = vsyncpa [#allocation15], 0
    %81 = vsyncpa [#allocation18], 0
    %82 = vsyncpa [#allocation21], 0
    %83 = vsyncpa [#allocation24], 0
    %84 = vsyncpa [#allocation27], 0
    %85 = vsyncpa [#allocation30], 0
    %86 = vsyncpa [#allocation4], 0
    // Predicated region
    $region2: #{tpu_custom_call.1} parent=1 // pred_check
      _
    $region3: #{tpu_custom_call.1} parent=1 // pred_check_branch
      %88 = sbr.rel (0) target = $region5
    $region4: #{tpu_custom_call.1} parent=1 // pred_region
      %s90 = ssub.s32 32, 32
      %91 = vsyncadd [#allocation3], %s90
      %s93 = sshll.u32 [#allocation2], 4
      %s94 = int_to_ptr.vmem [resolvable:$true] %s93
      %96 = dma.hbm_to_vmem [thread:$0]  %s1, 32, %s94, [#allocation3]
    $region5: #{tpu_custom_call.1} parent=1 // pred_fallthru
      _
    // Predicated region
    $region6: #{tpu_custom_call.1} parent=1 // pred_check
      _
    $region7: #{tpu_custom_call.1} parent=1 // pred_check_branch
      %98 = sbr.rel (0) target = $region9
    $region8: #{tpu_custom_call.1} parent=1 // pred_region
      %s100 = ssub.s32 3072, 3072
      %101 = vsyncadd [#allocation6], %s100
      %s102 = sshll.u32 [#allocation5], 4
      %s103 = int_to_ptr.vmem [resolvable:$true] %s102
      %108 = dma.hbm_to_vmem [thread:$0]  %s3, 3072, %s103, [#allocation6], 768, 768, 48
    $region9: #{tpu_custom_call.1} parent=1 // pred_fallthru
      _
    // Predicated region
    $region10: #{tpu_custom_call.1} parent=1 // pred_check
      _
    $region11: #{tpu_custom_call.1} parent=1 // pred_check_branch
      %110 = sbr.rel (0) target = $region13
    $region12: #{tpu_custom_call.1} parent=1 // pred_region
      %s112 = ssub.s32 96, 96
      %113 = vsyncadd [#allocation6], %s112
      %s115 = sshll.u32 [#allocation7], 4
      %s116 = int_to_ptr.vmem [resolvable:$true] %s115
      %118 = dma.hbm_to_vmem [thread:$0]  %s5, 96, %s116, [#allocation6]
    $region13: #{tpu_custom_call.1} parent=1 // pred_fallthru
      _
    // Predicated region
    $region14: #{tpu_custom_call.1} parent=1 // pred_check
      _
    $region15: #{tpu_custom_call.1} parent=1 // pred_check_branch
      %120 = sbr.rel (0) target = $region17
    $region16: #{tpu_custom_call.1} parent=1 // pred_region
      %s122 = ssub.s32 32, 32
      %123 = vsyncadd [#allocation9], %s122
      %s125 = sshll.u32 [#allocation8], 4
      %s126 = int_to_ptr.vmem [resolvable:$true] %s125
      %128 = dma.hbm_to_vmem [thread:$0]  %s7, 32, %s126, [#allocation9]
    $region17: #{tpu_custom_call.1} parent=1 // pred_fallthru
      _
    // Predicated region
    $region18: #{tpu_custom_call.1} parent=1 // pred_check
      _
    $region19: #{tpu_custom_call.1} parent=1 // pred_check_branch
      %130 = sbr.rel (0) target = $region21
    $region20: #{tpu_custom_call.1} parent=1 // pred_region
      %s132 = ssub.s32 32, 32
      %133 = vsyncadd [#allocation9], %s132
      %s135 = sshll.u32 [#allocation10], 4
      %s136 = int_to_ptr.vmem [resolvable:$true] %s135
      %138 = dma.hbm_to_vmem [thread:$0]  %s9, 32, %s136, [#allocation9]
    $region21: #{tpu_custom_call.1} parent=1 // pred_fallthru
      _
    // Predicated region
    $region22: #{tpu_custom_call.1} parent=1 // pred_check
      _
    $region23: #{tpu_custom_call.1} parent=1 // pred_check_branch
      %140 = sbr.rel (0) target = $region25
    $region24: #{tpu_custom_call.1} parent=1 // pred_region
      _
    $region25: #{tpu_custom_call.1} parent=1 // pred_fallthru
      _
    // Predicated region
    $region26: #{tpu_custom_call.1} parent=1 // pred_check
      _
    $region27: #{tpu_custom_call.1} parent=1 // pred_check_branch
      %142 = sbr.rel (0) target = $region29
    $region28: #{tpu_custom_call.1} parent=1 // pred_region
      %s144 = ssub.s32 128, 128
      %145 = vsyncadd [#allocation12], %s144
      %s147 = sshll.u32 [#allocation11], 4
      %s148 = int_to_ptr.vmem [resolvable:$true] %s147
      %150 = dma.hbm_to_vmem [thread:$0]  %s13, 128, %s148, [#allocation12]
    $region29: #{tpu_custom_call.1} parent=1 // pred_fallthru
      _
    // Predicated region
    $region30: #{tpu_custom_call.1} parent=1 // pred_check
      _
    $region31: #{tpu_custom_call.1} parent=1 // pred_check_branch
      %152 = sbr.rel (0) target = $region33
    $region32: #{tpu_custom_call.1} parent=1 // pred_region
      %s154 = ssub.s32 32, 32
      %155 = vsyncadd [#allocation12], %s154
      %s157 = sshll.u32 [#allocation13], 4
      %s158 = int_to_ptr.vmem [resolvable:$true] %s157
      %160 = dma.hbm_to_vmem [thread:$0]  %s15, 32, %s158, [#allocation12]
    $region33: #{tpu_custom_call.1} parent=1 // pred_fallthru
      _
    // Predicated region
    $region34: #{tpu_custom_call.1} parent=1 // pred_check
      _
    $region35: #{tpu_custom_call.1} parent=1 // pred_check_branch
      %162 = sbr.rel (0) target = $region37
    $region36: #{tpu_custom_call.1} parent=1 // pred_region
      %s164 = ssub.s32 128, 128
      %165 = vsyncadd [#allocation15], %s164
      %s167 = sshll.u32 [#allocation14], 4
      %s168 = int_to_ptr.vmem [resolvable:$true] %s167
      %170 = dma.hbm_to_vmem [thread:$0]  %s17, 128, %s168, [#allocation15]
    $region37: #{tpu_custom_call.1} parent=1 // pred_fallthru
      _
    // Predicated region
    $region38: #{tpu_custom_call.1} parent=1 // pred_check
      _
    $region39: #{tpu_custom_call.1} parent=1 // pred_check_branch
      %172 = sbr.rel (0) target = $region41
    $region40: #{tpu_custom_call.1} parent=1 // pred_region
      %s174 = ssub.s32 32, 32
      %175 = vsyncadd [#allocation15], %s174
      %s177 = sshll.u32 [#allocation16], 4
      %s178 = int_to_ptr.vmem [resolvable:$true] %s177
      %180 = dma.hbm_to_vmem [thread:$0]  %s19, 32, %s178, [#allocation15]
    $region41: #{tpu_custom_call.1} parent=1 // pred_fallthru
      _
    // Predicated region
    $region42: #{tpu_custom_call.1} parent=1 // pred_check
      _
    $region43: #{tpu_custom_call.1} parent=1 // pred_check_branch
      %182 = sbr.rel (0) target = $region45
    $region44: #{tpu_custom_call.1} parent=1 // pred_region
      %s184 = ssub.s32 32, 32
      %185 = vsyncadd [#allocation18], %s184
      %s187 = sshll.u32 [#allocation17], 4
      %s188 = int_to_ptr.vmem [resolvable:$true] %s187
      %190 = dma.hbm_to_vmem [thread:$0]  %s21, 32, %s188, [#allocation18]
    $region45: #{tpu_custom_call.1} parent=1 // pred_fallthru
      _
    // Predicated region
    $region46: #{tpu_custom_call.1} parent=1 // pred_check
      _
    $region47: #{tpu_custom_call.1} parent=1 // pred_check_branch
      %192 = sbr.rel (0) target = $region49
    $region48: #{tpu_custom_call.1} parent=1 // pred_region
      %s194 = ssub.s32 128, 128
      %195 = vsyncadd [#allocation18], %s194
      %s197 = sshll.u32 [#allocation19], 4
      %s198 = int_to_ptr.vmem [resolvable:$true] %s197
      %200 = dma.hbm_to_vmem [thread:$0]  %s23, 128, %s198, [#allocation18]
    $region49: #{tpu_custom_call.1} parent=1 // pred_fallthru
      _
    // Predicated region
    $region50: #{tpu_custom_call.1} parent=1 // pred_check
      _
    $region51: #{tpu_custom_call.1} parent=1 // pred_check_branch
      %202 = sbr.rel (0) target = $region53
    $region52: #{tpu_custom_call.1} parent=1 // pred_region
      %s204 = ssub.s32 128, 128
      %205 = vsyncadd [#allocation21], %s204
      %s207 = sshll.u32 [#allocation20], 4
      %s208 = int_to_ptr.vmem [resolvable:$true] %s207
      %210 = dma.hbm_to_vmem [thread:$0]  %s25, 128, %s208, [#allocation21]
    $region53: #{tpu_custom_call.1} parent=1 // pred_fallthru
      _
    // Predicated region
    $region54: #{tpu_custom_call.1} parent=1 // pred_check
      _
    $region55: #{tpu_custom_call.1} parent=1 // pred_check_branch
      %212 = sbr.rel (0) target = $region57
    $region56: #{tpu_custom_call.1} parent=1 // pred_region
      %s214 = ssub.s32 32, 32
      %215 = vsyncadd [#allocation21], %s214
      %s217 = sshll.u32 [#allocation22], 4
      %s218 = int_to_ptr.vmem [resolvable:$true] %s217
      %220 = dma.hbm_to_vmem [thread:$0]  %s27, 32, %s218, [#allocation21]
    $region57: #{tpu_custom_call.1} parent=1 // pred_fallthru
      _
    // Predicated region
    $region58: #{tpu_custom_call.1} parent=1 // pred_check
      _
    $region59: #{tpu_custom_call.1} parent=1 // pred_check_branch
      %222 = sbr.rel (0) target = $region61
    $region60: #{tpu_custom_call.1} parent=1 // pred_region
      %s224 = ssub.s32 128, 128
      %225 = vsyncadd [#allocation24], %s224
      %s227 = sshll.u32 [#allocation23], 4
      %s228 = int_to_ptr.vmem [resolvable:$true] %s227
      %230 = dma.hbm_to_vmem [thread:$0]  %s29, 128, %s228, [#allocation24]
    $region61: #{tpu_custom_call.1} parent=1 // pred_fallthru
      _
    // Predicated region
    $region62: #{tpu_custom_call.1} parent=1 // pred_check
      _
    $region63: #{tpu_custom_call.1} parent=1 // pred_check_branch
      %232 = sbr.rel (0) target = $region65
    $region64: #{tpu_custom_call.1} parent=1 // pred_region
      %s234 = ssub.s32 32, 32
      %235 = vsyncadd [#allocation24], %s234
      %s237 = sshll.u32 [#allocation25], 4
      %s238 = int_to_ptr.vmem [resolvable:$true] %s237
      %240 = dma.hbm_to_vmem [thread:$0]  %s31, 32, %s238, [#allocation24]
    $region65: #{tpu_custom_call.1} parent=1 // pred_fallthru
      _
    // Predicated region
    $region66: #{tpu_custom_call.1} parent=1 // pred_check
      _
    $region67: #{tpu_custom_call.1} parent=1 // pred_check_branch
      %242 = sbr.rel (0) target = $region69
    $region68: #{tpu_custom_call.1} parent=1 // pred_region
      _
    $region69: #{tpu_custom_call.1} parent=1 // pred_fallthru
      _
    // Predicated region
    $region70: #{tpu_custom_call.1} parent=1 // pred_check
      _
    $region71: #{tpu_custom_call.1} parent=1 // pred_check_branch
      %244 = sbr.rel (0) target = $region73
    $region72: #{tpu_custom_call.1} parent=1 // pred_region
      _
    $region73: #{tpu_custom_call.1} parent=1 // pred_fallthru
      _
    // Predicated region
    $region74: #{tpu_custom_call.1} parent=1 // pred_check
      _
    $region75: #{tpu_custom_call.1} parent=1 // pred_check_branch
      %246 = sbr.rel (0) target = $region77
    $region76: #{tpu_custom_call.1} parent=1 // pred_region
      _
    $region77: #{tpu_custom_call.1} parent=1 // pred_fallthru
      _
    // Predicated region
    $region78: #{tpu_custom_call.1} parent=1 // pred_check
      _
    $region79: #{tpu_custom_call.1} parent=1 // pred_check_branch
      %248 = sbr.rel (0) target = $region81
    $region80: #{tpu_custom_call.1} parent=1 // pred_region
      _
    $region81: #{tpu_custom_call.1} parent=1 // pred_fallthru
      _
    // Predicated region
    $region82: #{tpu_custom_call.1} parent=1 // pred_check
      _
    $region83: #{tpu_custom_call.1} parent=1 // pred_check_branch
      %250 = sbr.rel (0) target = $region85
    $region84: #{tpu_custom_call.1} parent=1 // pred_region
      _
    $region85: #{tpu_custom_call.1} parent=1 // pred_fallthru
      _
    // Predicated region
    $region86: #{tpu_custom_call.1} parent=1 // pred_check
      _
    $region87: #{tpu_custom_call.1} parent=1 // pred_check_branch
      %252 = sbr.rel (0) target = $region89
    $region88: #{tpu_custom_call.1} parent=1 // pred_region
      _
    $region89: #{tpu_custom_call.1} parent=1 // pred_fallthru
      _
    // Predicated region
    $region90: #{tpu_custom_call.1} parent=1 // pred_check
      _
    $region91: #{tpu_custom_call.1} parent=1 // pred_check_branch
      %254 = sbr.rel (0) target = $region93
    $region92: #{tpu_custom_call.1} parent=1 // pred_region
      _
    $region93: #{tpu_custom_call.1} parent=1 // pred_fallthru
      _
    // Predicated region
    $region94: #{tpu_custom_call.1} parent=1 // pred_check
      _
    $region95: #{tpu_custom_call.1} parent=1 // pred_check_branch
      %256 = sbr.rel (0) target = $region97
    $region96: #{tpu_custom_call.1} parent=1 // pred_region
      _
    $region97: #{tpu_custom_call.1} parent=1 // pred_fallthru
      _
    // Predicated region
    $region98: #{tpu_custom_call.1} parent=1 // pred_check
      _
    $region99: #{tpu_custom_call.1} parent=1 // pred_check_branch
      %258 = sbr.rel (0) target = $region101
    $region100: #{tpu_custom_call.1} parent=1 // pred_region
      _
    $region101: #{tpu_custom_call.1} parent=1 // pred_fallthru
      _
    // Predicated region
    $region102: #{tpu_custom_call.1} parent=1 // pred_check
      _
    $region103: #{tpu_custom_call.1} parent=1 // pred_check_branch
      %260 = sbr.rel (0) target = $region105
    $region104: #{tpu_custom_call.1} parent=1 // pred_region
      _
    $region105: #{tpu_custom_call.1} parent=1 // pred_fallthru
      _
    // Predicated region
    $region106: #{tpu_custom_call.1} parent=1 // pred_check
      _
    $region107: #{tpu_custom_call.1} parent=1 // pred_check_branch
      %262 = sbr.rel (0) target = $region109
    $region108: #{tpu_custom_call.1} parent=1 // pred_region
      _
    $region109: #{tpu_custom_call.1} parent=1 // pred_fallthru
      _
    // Predicated region
    $region110: #{tpu_custom_call.1} parent=1 // pred_check
      _
    $region111: #{tpu_custom_call.1} parent=1 // pred_check_branch
      %264 = sbr.rel (0) target = $region113
    $region112: #{tpu_custom_call.1} parent=1 // pred_region
      _
    $region113: #{tpu_custom_call.1} parent=1 // pred_fallthru
      _
    // Predicated region
    $region114: #{tpu_custom_call.1} parent=1 // pred_check
      _
    $region115: #{tpu_custom_call.1} parent=1 // pred_check_branch
      %266 = sbr.rel (0) target = $region117
    $region116: #{tpu_custom_call.1} parent=1 // pred_region
      _
    $region117: #{tpu_custom_call.1} parent=1 // pred_fallthru
      _
    // Predicated region
    $region118: #{tpu_custom_call.1} parent=1 // pred_check
      _
    $region119: #{tpu_custom_call.1} parent=1 // pred_check_branch
      %268 = sbr.rel (0) target = $region121
    $region120: #{tpu_custom_call.1} parent=1 // pred_region
      %s270 = ssub.s32 2688, 2688
      %271 = vsyncadd [#allocation27], %s270
      %s272 = sshll.u32 [#allocation26], 4
      %s273 = int_to_ptr.vmem [resolvable:$true] %s272
      %278 = dma.hbm_to_vmem [thread:$0]  %s59, 2688, %s273, [#allocation27], 384, 384, 24
    $region121: #{tpu_custom_call.1} parent=1 // pred_fallthru
      _
    // Predicated region
    $region122: #{tpu_custom_call.1} parent=1 // pred_check
      _
    $region123: #{tpu_custom_call.1} parent=1 // pred_check_branch
      %280 = sbr.rel (0) target = $region125
    $region124: #{tpu_custom_call.1} parent=1 // pred_region
      _
    $region125: #{tpu_custom_call.1} parent=1 // pred_fallthru
      _
    // Predicated region
    $region126: #{tpu_custom_call.1} parent=1 // pred_check
      _
    $region127: #{tpu_custom_call.1} parent=1 // pred_check_branch
      %282 = sbr.rel (0) target = $region129
    $region128: #{tpu_custom_call.1} parent=1 // pred_region
      %s284 = ssub.s32 1152, 1152
      %285 = vsyncadd [#allocation27], %s284
      %s286 = sshll.u32 [#allocation28], 4
      %s287 = int_to_ptr.vmem [resolvable:$true] %s286
      %292 = dma.hbm_to_vmem [thread:$0]  %s63, 1152, %s287, [#allocation27], 384, 384, 24
    $region129: #{tpu_custom_call.1} parent=1 // pred_fallthru
      _
    // Predicated region
    $region130: #{tpu_custom_call.1} parent=1 // pred_check
      _
    $region131: #{tpu_custom_call.1} parent=1 // pred_check_branch
      %294 = sbr.rel (0) target = $region133
    $region132: #{tpu_custom_call.1} parent=1 // pred_region
      %s296 = ssub.s32 3072, 3072
      %297 = vsyncadd [#allocation30], %s296
      %s298 = sshll.u32 [#allocation29], 4
      %s299 = int_to_ptr.vmem [resolvable:$true] %s298
      %304 = dma.hbm_to_vmem [thread:$0]  %s65, 3072, %s299, [#allocation30], 384, 384, 24
    $region133: #{tpu_custom_call.1} parent=1 // pred_fallthru
      _
    // Predicated region
    $region134: #{tpu_custom_call.1} parent=1 // pred_check
      _
    $region135: #{tpu_custom_call.1} parent=1 // pred_check_branch
      %306 = sbr.rel (0) target = $region137
    $region136: #{tpu_custom_call.1} parent=1 // pred_region
      _
    $region137: #{tpu_custom_call.1} parent=1 // pred_fallthru
      _
    // Predicated region
    $region138: #{tpu_custom_call.1} parent=1 // pred_check
      _
    $region139: #{tpu_custom_call.1} parent=1 // pred_check_branch
      %308 = sbr.rel (0) target = $region141
    $region140: #{tpu_custom_call.1} parent=1 // pred_region
      %s310 = ssub.s32 768, 768
      %311 = vsyncadd [#allocation30], %s310
      %s312 = sshll.u32 [#allocation31], 4
      %s313 = int_to_ptr.vmem [resolvable:$true] %s312
      %318 = dma.hbm_to_vmem [thread:$0]  %s69, 768, %s313, [#allocation30], 384, 384, 24
    $region141: #{tpu_custom_call.1} parent=1 // pred_fallthru
      _
    // Predicated region
    $region142: #{tpu_custom_call.1} parent=1 // pred_check
      _
    $region143: #{tpu_custom_call.1} parent=1 // pred_check_branch
      %320 = sbr.rel (0) target = $region145
    $region144: #{tpu_custom_call.1} parent=1 // pred_region
      %321 = dma.done [#allocation3], 32
    $region145: #{tpu_custom_call.1} parent=1 // pred_fallthru
      _
    // Predicated region
    $region146: #{tpu_custom_call.1} parent=1 // pred_check
      _
    $region147: #{tpu_custom_call.1} parent=1 // pred_check_branch
      %323 = sbr.rel (0) target = $region149
    $region148: #{tpu_custom_call.1} parent=1 // pred_region
      %324 = dma.done [#allocation6], 3072
    $region149: #{tpu_custom_call.1} parent=1 // pred_fallthru
      _
    // Predicated region
    $region150: #{tpu_custom_call.1} parent=1 // pred_check
      _
    $region151: #{tpu_custom_call.1} parent=1 // pred_check_branch
      %326 = sbr.rel (0) target = $region153
    $region152: #{tpu_custom_call.1} parent=1 // pred_region
      %327 = dma.done [#allocation6], 96
    $region153: #{tpu_custom_call.1} parent=1 // pred_fallthru
      _
    // Predicated region
    $region154: #{tpu_custom_call.1} parent=1 // pred_check
      _
    $region155: #{tpu_custom_call.1} parent=1 // pred_check_branch
      %329 = sbr.rel (0) target = $region157
    $region156: #{tpu_custom_call.1} parent=1 // pred_region
      %330 = dma.done [#allocation9], 32
    $region157: #{tpu_custom_call.1} parent=1 // pred_fallthru
      _
    // Predicated region
    $region158: #{tpu_custom_call.1} parent=1 // pred_check
      _
    $region159: #{tpu_custom_call.1} parent=1 // pred_check_branch
      %332 = sbr.rel (0) target = $region161
    $region160: #{tpu_custom_call.1} parent=1 // pred_region
      %333 = dma.done [#allocation9], 32
    $region161: #{tpu_custom_call.1} parent=1 // pred_fallthru
      _
    // Predicated region
    $region162: #{tpu_custom_call.1} parent=1 // pred_check
      _
    $region163: #{tpu_custom_call.1} parent=1 // pred_check_branch
      %335 = sbr.rel (0) target = $region165
    $region164: #{tpu_custom_call.1} parent=1 // pred_region
      %336 = dma.done [#allocation12], 128
    $region165: #{tpu_custom_call.1} parent=1 // pred_fallthru
      _
    // Predicated region
    $region166: #{tpu_custom_call.1} parent=1 // pred_check
      _
    $region167: #{tpu_custom_call.1} parent=1 // pred_check_branch
      %338 = sbr.rel (0) target = $region169
    $region168: #{tpu_custom_call.1} parent=1 // pred_region
      %339 = dma.done [#allocation12], 32
    $region169: #{tpu_custom_call.1} parent=1 // pred_fallthru
      _
    // Predicated region
    $region170: #{tpu_custom_call.1} parent=1 // pred_check
      _
    $region171: #{tpu_custom_call.1} parent=1 // pred_check_branch
      %341 = sbr.rel (0) target = $region173
    $region172: #{tpu_custom_call.1} parent=1 // pred_region
      %342 = dma.done [#allocation15], 128
    $region173: #{tpu_custom_call.1} parent=1 // pred_fallthru
      _
    // Predicated region
    $region174: #{tpu_custom_call.1} parent=1 // pred_check
      _
    $region175: #{tpu_custom_call.1} parent=1 // pred_check_branch
      %344 = sbr.rel (0) target = $region177
    $region176: #{tpu_custom_call.1} parent=1 // pred_region
      %345 = dma.done [#allocation15], 32
    $region177: #{tpu_custom_call.1} parent=1 // pred_fallthru
      _
    // Predicated region
    $region178: #{tpu_custom_call.1} parent=1 // pred_check
      _
    $region179: #{tpu_custom_call.1} parent=1 // pred_check_branch
      %347 = sbr.rel (0) target = $region181
    $region180: #{tpu_custom_call.1} parent=1 // pred_region
      %348 = dma.done [#allocation18], 32
    $region181: #{tpu_custom_call.1} parent=1 // pred_fallthru
      _
    // Predicated region
    $region182: #{tpu_custom_call.1} parent=1 // pred_check
      _
    $region183: #{tpu_custom_call.1} parent=1 // pred_check_branch
      %350 = sbr.rel (0) target = $region185
    $region184: #{tpu_custom_call.1} parent=1 // pred_region
      %351 = dma.done [#allocation18], 128
    $region185: #{tpu_custom_call.1} parent=1 // pred_fallthru
      _
    // Predicated region
    $region186: #{tpu_custom_call.1} parent=1 // pred_check
      _
    $region187: #{tpu_custom_call.1} parent=1 // pred_check_branch
      %353 = sbr.rel (0) target = $region189
    $region188: #{tpu_custom_call.1} parent=1 // pred_region
      %354 = dma.done [#allocation21], 128
    $region189: #{tpu_custom_call.1} parent=1 // pred_fallthru
      _
    // Predicated region
    $region190: #{tpu_custom_call.1} parent=1 // pred_check
      _
    $region191: #{tpu_custom_call.1} parent=1 // pred_check_branch
      %356 = sbr.rel (0) target = $region193
    $region192: #{tpu_custom_call.1} parent=1 // pred_region
      %357 = dma.done [#allocation21], 32
    $region193: #{tpu_custom_call.1} parent=1 // pred_fallthru
      _
    // Predicated region
    $region194: #{tpu_custom_call.1} parent=1 // pred_check
      _
    $region195: #{tpu_custom_call.1} parent=1 // pred_check_branch
      %359 = sbr.rel (0) target = $region197
    $region196: #{tpu_custom_call.1} parent=1 // pred_region
      %360 = dma.done [#allocation24], 128
    $region197: #{tpu_custom_call.1} parent=1 // pred_fallthru
      _
    // Predicated region
    $region198: #{tpu_custom_call.1} parent=1 // pred_check
      _
    $region199: #{tpu_custom_call.1} parent=1 // pred_check_branch
      %362 = sbr.rel (0) target = $region201
    $region200: #{tpu_custom_call.1} parent=1 // pred_region
      %363 = dma.done [#allocation24], 32
    $region201: #{tpu_custom_call.1} parent=1 // pred_fallthru
      _
    // Predicated region
    $region202: #{tpu_custom_call.1} parent=1 // pred_check
      _
    $region203: #{tpu_custom_call.1} parent=1 // pred_check_branch
      %365 = sbr.rel (0) target = $region205
    $region204: #{tpu_custom_call.1} parent=1 // pred_region
      %366 = dma.done [#allocation27], 2688
    $region205: #{tpu_custom_call.1} parent=1 // pred_fallthru
      _
    // Predicated region
    $region206: #{tpu_custom_call.1} parent=1 // pred_check
      _
    $region207: #{tpu_custom_call.1} parent=1 // pred_check_branch
      %368 = sbr.rel (0) target = $region209
    $region208: #{tpu_custom_call.1} parent=1 // pred_region
      %369 = dma.done [#allocation27], 1152
    $region209: #{tpu_custom_call.1} parent=1 // pred_fallthru
      _
    // Predicated region
    $region210: #{tpu_custom_call.1} parent=1 // pred_check
      _
    $region211: #{tpu_custom_call.1} parent=1 // pred_check_branch
      %371 = sbr.rel (0) target = $region213
    $region212: #{tpu_custom_call.1} parent=1 // pred_region
      %372 = dma.done [#allocation30], 3072
    $region213: #{tpu_custom_call.1} parent=1 // pred_fallthru
      _
    // Predicated region
    $region214: #{tpu_custom_call.1} parent=1 // pred_check
      _
    $region215: #{tpu_custom_call.1} parent=1 // pred_check_branch
      %374 = sbr.rel (0) target = $region217
    $region216: #{tpu_custom_call.1} parent=1 // pred_region
      %375 = dma.done [#allocation30], 768
    $region217: #{tpu_custom_call.1} parent=1 // pred_fallthru
      _
    %v376 = vld [vmem:[#allocation8] sm:$0x3]
    %v377 = vld [vmem:[#allocation10] sm:$0x3]
    %v378 = vld [vmem:[%s11] sm:$0x7f]
    %v379 = vld [vmem:[#allocation11] sm:$0x7f]
    %v380 = vld [vmem:[#allocation13] sm:$0x3]
    %v381 = vld [vmem:[#allocation14] sm:$0x7f]
    %v382 = vld [vmem:[#allocation16] sm:$0x3]
    %v383 = vld [vmem:[#allocation17] sm:$0x3]
    %v384 = vld [vmem:[#allocation19] sm:$0x7f]
    %v385 = vld [vmem:[#allocation20] sm:$0x7f]
    %v386 = vld [vmem:[#allocation22] sm:$0x3]
    %v387 = vld [vmem:[#allocation23] sm:$0x7f]
    %v388 = vld [vmem:[#allocation25] sm:$0x3]
    %v389 = vld [vmem:[%s33] sm:$0x3]
    %v390 = vld [vmem:[%s35] sm:$0x3]
    %v391 = vld [vmem:[%s37] sm:$0x7f]
    %v392 = vld [vmem:[%s39] sm:$0x7f]
    %v393 = vld [vmem:[%s41] sm:$0x3]
    %v394 = vld [vmem:[%s43] sm:$0x7f]
    %v395 = vld [vmem:[%s45] sm:$0x3]
    %v396 = vld [vmem:[%s47] sm:$0x3]
    %v397 = vld [vmem:[%s49] sm:$0x7f]
    %v398 = vld [vmem:[%s51] sm:$0x7f]
    %v399 = vld [vmem:[%s53] sm:$0x3]
    %v400 = vld [vmem:[%s55] sm:$0x7f]
    %v401 = vld [vmem:[%s57] sm:$0x3]
    %v402 = vld [vmem:[#allocation26] sm:$0xff]
    %v403 = vld [vmem:[#allocation26 + $0x8] sm:$0xff]
    %v404 = vld [vmem:[#allocation26 + $0x10] sm:$0xff]
    %v405 = vld [vmem:[#allocation26 + $0x18] sm:$0xff]
    %v406 = vld [vmem:[#allocation26 + $0x20] sm:$0xff]
    %v407 = vld [vmem:[#allocation26 + $0x28] sm:$0xff]
    %v408 = vld [vmem:[#allocation26 + $0x30] sm:$0xff]
    %v409 = vld [vmem:[#allocation26 + $0x38] sm:$0xff]
    %v410 = vld [vmem:[#allocation26 + $0x40] sm:$0xff]
    %v411 = vld [vmem:[#allocation26 + $0x48] sm:$0xff]
    %v412 = vld [vmem:[#allocation26 + $0x50] sm:$0xff]
    %v413 = vld [vmem:[#allocation26 + $0x58] sm:$0xff]
    %v414 = vld [vmem:[#allocation26 + $0x60] sm:$0xff]
    %v415 = vld [vmem:[#allocation26 + $0x68] sm:$0xff]
    %v416 = vld [vmem:[#allocation26 + $0x70] sm:$0xff]
    %v417 = vld [vmem:[#allocation26 + $0x78] sm:$0xff]
    %v418 = vld [vmem:[#allocation26 + $0x80] sm:$0xff]
    %v419 = vld [vmem:[#allocation26 + $0x88] sm:$0xff]
    %v420 = vld [vmem:[#allocation26 + $0x90] sm:$0x3]
    %v421 = vld [vmem:[#allocation26 + $0x98] sm:$0x3]
    %v422 = vld [vmem:[#allocation26 + $0xa0] sm:$0x3]
    %v423 = vld [vmem:[%s61] sm:$0xff]
    %v424 = vld [vmem:[%s61 + $0x8] sm:$0xff]
    %v425 = vld [vmem:[%s61 + $0x10] sm:$0xff]
    %v426 = vld [vmem:[%s61 + $0x18] sm:$0xff]
    %v427 = vld [vmem:[%s61 + $0x20] sm:$0xff]
    %v428 = vld [vmem:[%s61 + $0x28] sm:$0xff]
    %v429 = vld [vmem:[%s61 + $0x30] sm:$0x3]
    %v430 = vld [vmem:[%s61 + $0x38] sm:$0x3]
    %v431 = vld [vmem:[%s61 + $0x40] sm:$0x3]
    %v432 = vld [vmem:[#allocation28] sm:$0xff]
    %v433 = vld [vmem:[#allocation28 + $0x8] sm:$0xff]
    %v434 = vld [vmem:[#allocation28 + $0x10] sm:$0xff]
    %v435 = vld [vmem:[#allocation28 + $0x18] sm:$0xff]
    %v436 = vld [vmem:[#allocation28 + $0x20] sm:$0xff]
    %v437 = vld [vmem:[#allocation28 + $0x28] sm:$0xff]
    %v438 = vld [vmem:[#allocation28 + $0x30] sm:$0x3]
    %v439 = vld [vmem:[#allocation28 + $0x38] sm:$0x3]
    %v440 = vld [vmem:[#allocation28 + $0x40] sm:$0x3]
    %v441 = vld [vmem:[#allocation29] sm:$0xff]
    %v442 = vld [vmem:[#allocation29 + $0x8] sm:$0xff]
    %v443 = vld [vmem:[#allocation29 + $0x10] sm:$0xff]
    %v444 = vld [vmem:[#allocation29 + $0x18] sm:$0xff]
    %v445 = vld [vmem:[#allocation29 + $0x20] sm:$0xff]
    %v446 = vld [vmem:[#allocation29 + $0x28] sm:$0xff]
    %v447 = vld [vmem:[#allocation29 + $0x30] sm:$0xff]
    %v448 = vld [vmem:[#allocation29 + $0x38] sm:$0xff]
    %v449 = vld [vmem:[#allocation29 + $0x40] sm:$0xff]
    %v450 = vld [vmem:[#allocation29 + $0x48] sm:$0xff]
    %v451 = vld [vmem:[#allocation29 + $0x50] sm:$0xff]
    %v452 = vld [vmem:[#allocation29 + $0x58] sm:$0xff]
    %v453 = vld [vmem:[#allocation29 + $0x60] sm:$0xff]
    %v454 = vld [vmem:[#allocation29 + $0x68] sm:$0xff]
    %v455 = vld [vmem:[#allocation29 + $0x70] sm:$0xff]
    %v456 = vld [vmem:[#allocation29 + $0x78] sm:$0xff]
    %v457 = vld [vmem:[#allocation29 + $0x80] sm:$0xff]
    %v458 = vld [vmem:[#allocation29 + $0x88] sm:$0xff]
    %v459 = vld [vmem:[#allocation29 + $0x90] sm:$0xff]
    %v460 = vld [vmem:[#allocation29 + $0x98] sm:$0xff]
    %v461 = vld [vmem:[#allocation29 + $0xa0] sm:$0xff]
    %v462 = vld [vmem:[#allocation29 + $0xa8] sm:$0x7f]
    %v463 = vld [vmem:[#allocation29 + $0xb0] sm:$0x7f]
    %v464 = vld [vmem:[#allocation29 + $0xb8] sm:$0x7f]
    %v465 = vld [vmem:[%s67] sm:$0xff]
    %v466 = vld [vmem:[%s67 + $0x8] sm:$0xff]
    %v467 = vld [vmem:[%s67 + $0x10] sm:$0xff]
    %v468 = vld [vmem:[%s67 + $0x18] sm:$0x3]
    %v469 = vld [vmem:[%s67 + $0x20] sm:$0x3]
    %v470 = vld [vmem:[%s67 + $0x28] sm:$0x3]
    %v471 = vld [vmem:[#allocation31] sm:$0xff]
    %v472 = vld [vmem:[#allocation31 + $0x8] sm:$0xff]
    %v473 = vld [vmem:[#allocation31 + $0x10] sm:$0xff]
    %v474 = vld [vmem:[#allocation31 + $0x18] sm:$0x3]
    %v475 = vld [vmem:[#allocation31 + $0x20] sm:$0x3]
    %v476 = vld [vmem:[#allocation31 + $0x28] sm:$0x3]
    %v477 = vld [vmem:[#allocation2] sm:$0x3]
    %v478 = vld [vmem:[#allocation5] sm:$0xff]
    %v479 = vld [vmem:[#allocation5 + $0x8] sm:$0xff]
    %v480 = vld [vmem:[#allocation5 + $0x10] sm:$0xff]
    %v481 = vld [vmem:[#allocation5 + $0x18] sm:$0xff]
    %v482 = vld [vmem:[#allocation5 + $0x20] sm:$0xff]
    %v483 = vld [vmem:[#allocation5 + $0x28] sm:$0xff]
    %v484 = vld [vmem:[#allocation5 + $0x30] sm:$0xff]
    %v485 = vld [vmem:[#allocation5 + $0x38] sm:$0xff]
    %v486 = vld [vmem:[#allocation5 + $0x40] sm:$0xff]
    %v487 = vld [vmem:[#allocation5 + $0x48] sm:$0xff]
    %v488 = vld [vmem:[#allocation5 + $0x50] sm:$0xff]
    %v489 = vld [vmem:[#allocation5 + $0x58] sm:$0xff]
    %v490 = vld [vmem:[#allocation5 + $0x60] sm:$0xff]
    %v491 = vld [vmem:[#allocation5 + $0x68] sm:$0xff]
    %v492 = vld [vmem:[#allocation5 + $0x70] sm:$0xff]
    %v493 = vld [vmem:[#allocation5 + $0x78] sm:$0xff]
    %v494 = vld [vmem:[#allocation5 + $0x80] sm:$0xff]
    %v495 = vld [vmem:[#allocation5 + $0x88] sm:$0xff]
    %v496 = vld [vmem:[#allocation5 + $0x90] sm:$0xff]
    %v497 = vld [vmem:[#allocation5 + $0x98] sm:$0xff]
    %v498 = vld [vmem:[#allocation5 + $0xa0] sm:$0xff]
    %v499 = vld [vmem:[#allocation5 + $0xa8] sm:$0xff]
    %v500 = vld [vmem:[#allocation5 + $0xb0] sm:$0xff]
    %v501 = vld [vmem:[#allocation5 + $0xb8] sm:$0xff]
    %v502 = vld [vmem:[#allocation7] sm:$0x3f]
    %v504 = vlaneseq
    %v505 = vshrl.u32 %v504, 7
    %v506 = vsub.s32 0, %v505
    %v507 = vrot.slane %v502, %v506
    %v508 = vlaneseq
    %v509 = vshrl.u32 %v508, 7
    %v510 = vsub.s32 1, %v509
    %v511 = vrot.slane %v502, %v510
    %v512 = vlaneseq
    %v513 = vshrl.u32 %v512, 7
    %v514 = vsub.s32 2, %v513
    %v515 = vrot.slane %v502, %v514
    %v516 = vlaneseq
    %v517 = vshrl.u32 %v516, 7
    %v518 = vsub.s32 3, %v517
    %v519 = vrot.slane %v502, %v518
    %v520 = vlaneseq
    %v521 = vshrl.u32 %v520, 7
    %v522 = vsub.s32 4, %v521
    %v523 = vrot.slane %v502, %v522
    %v524 = vlaneseq
    %v525 = vshrl.u32 %v524, 7
    %v526 = vsub.s32 5, %v525
    %v527 = vrot.slane %v502, %v526
    %vm534 = vcmask 261120
    %v536 = vsel %vm534, %v477, 0
    %538 = vmatprep.subr.mxu0 0.0
    %539 = vmatpush1.msra.mxu0 0.0
    %540 = vmatprep.subr.mxu0 0.0
    %541 = vmatpush1.msra.mxu0 0.0
    %542 = vmatprep.subr.mxu0 0.0
    %543 = vmatpush1.msra.mxu0 0.0
    %544 = vmatprep.subr.mxu0 0.0
    %545 = vmatpush1.msra.mxu0 0.0
    %546 = vmatprep.subr.mxu0 0.0
    %547 = vmatpush1.msra.mxu0 0.0
    %548 = vmatprep.subr.mxu0 0.0
    %549 = vmatpush1.msra.mxu0 0.0
    %550 = vmatprep.subr.mxu0 0.0
    %551 = vmatpush1.msra.mxu0 0.0
    %552 = vmatprep.subr.mxu0 0.0
    %553 = vmatpush1.msra.mxu0 0.0
    %554 = vmatprep.subr.mxu0 0.0
    %555 = vmatpush1.msra.mxu0 0.0
    %556 = vmatprep.subr.mxu0 0.0
    %557 = vmatpush1.msra.mxu0 0.0
    %558 = vmatprep.subr.mxu0 0.0
    %559 = vmatpush1.msra.mxu0 0.0
    %560 = vmatprep.subr.mxu0 0.0
    %561 = vmatpush1.msra.mxu0 0.0
    %562 = vmatprep.subr.mxu0 %v497
    %563 = vmatpush1.msra.mxu0 %v496
    %564 = vmatprep.subr.mxu0 %v491
    %565 = vmatpush1.msra.mxu0 %v490
    %566 = vmatprep.subr.mxu0 %v485
    %567 = vmatpush1.msra.mxu0 %v484
    %568 = vmatprep.subr.mxu0 %v479
    %569 = vmatpush1.msra.mxu0 %v478
    %570 = vmatprep.subr.mxu0 0.0
    %571 = vmatpush2.msra.mxu0 0.0
    %572 = vmatprep.subr.mxu0 0.0
    %573 = vmatpush2.msra.mxu0 0.0
    %574 = vmatprep.subr.mxu0 0.0
    %575 = vmatpush2.msra.mxu0 0.0
    %576 = vmatprep.subr.mxu0 0.0
    %577 = vmatpush2.msra.mxu0 0.0
    %578 = vmatprep.subr.mxu0 0.0
    %579 = vmatpush2.msra.mxu0 0.0
    %580 = vmatprep.subr.mxu0 0.0
    %581 = vmatpush2.msra.mxu0 0.0
    %582 = vmatprep.subr.mxu0 0.0
    %583 = vmatpush2.msra.mxu0 0.0
    %584 = vmatprep.subr.mxu0 0.0
    %585 = vmatpush2.msra.mxu0 0.0
    %586 = vmatprep.subr.mxu0 0.0
    %587 = vmatpush2.msra.mxu0 0.0
    %588 = vmatprep.subr.mxu0 0.0
    %589 = vmatpush2.msra.mxu0 0.0
    %590 = vmatprep.subr.mxu0 0.0
    %591 = vmatpush2.msra.mxu0 0.0
    %592 = vmatprep.subr.mxu0 0.0
    %593 = vmatpush2.msra.mxu0 0.0
    %594 = vmatprep.subr.mxu0 0.0
    %595 = vmatpush2.msra.mxu0 0.0
    %596 = vmatprep.subr.mxu0 0.0
    %597 = vmatpush2.msra.mxu0 0.0
    %598 = vmatprep.subr.mxu0 0.0
    %599 = vmatpush2.msra.mxu0 0.0
    %600 = vmatprep.subr.mxu0 0.0
    %601 = vmatpush2.msra.mxu0 0.0
    %602 = vmatprep.mubr.f32.mxu0 0.0
    %603 = vmatmul.mubr.f32.gmra.mxu0 %v536
    %v604 = vpop.f32.mrf.mxu0
    %v605 = vadd.f32 %v507, %v604
    %v606 = vpop.f32.mrf.mxu0
    %v607 = vadd.f32 %v511, %v606
    %608 = vdwg.mxu0
    %609 = vmatprep.subr.mxu0 0.0
    %610 = vmatpush1.msra.mxu0 0.0
    %611 = vmatprep.subr.mxu0 0.0
    %612 = vmatpush1.msra.mxu0 0.0
    %613 = vmatprep.subr.mxu0 0.0
    %614 = vmatpush1.msra.mxu0 0.0
    %615 = vmatprep.subr.mxu0 0.0
    %616 = vmatpush1.msra.mxu0 0.0
    %617 = vmatprep.subr.mxu0 0.0
    %618 = vmatpush1.msra.mxu0 0.0
    %619 = vmatprep.subr.mxu0 0.0
    %620 = vmatpush1.msra.mxu0 0.0
    %621 = vmatprep.subr.mxu0 0.0
    %622 = vmatpush1.msra.mxu0 0.0
    %623 = vmatprep.subr.mxu0 0.0
    %624 = vmatpush1.msra.mxu0 0.0
    %625 = vmatprep.subr.mxu0 0.0
    %626 = vmatpush1.msra.mxu0 0.0
    %627 = vmatprep.subr.mxu0 0.0
    %628 = vmatpush1.msra.mxu0 0.0
    %629 = vmatprep.subr.mxu0 0.0
    %630 = vmatpush1.msra.mxu0 0.0
    %631 = vmatprep.subr.mxu0 0.0
    %632 = vmatpush1.msra.mxu0 0.0
    %633 = vmatprep.subr.mxu0 %v499
    %634 = vmatpush1.msra.mxu0 %v498
    %635 = vmatprep.subr.mxu0 %v493
    %636 = vmatpush1.msra.mxu0 %v492
    %637 = vmatprep.subr.mxu0 %v487
    %638 = vmatpush1.msra.mxu0 %v486
    %639 = vmatprep.subr.mxu0 %v481
    %640 = vmatpush1.msra.mxu0 %v480
    %641 = vmatprep.subr.mxu0 0.0
    %642 = vmatpush2.msra.mxu0 0.0
    %643 = vmatprep.subr.mxu0 0.0
    %644 = vmatpush2.msra.mxu0 0.0
    %645 = vmatprep.subr.mxu0 0.0
    %646 = vmatpush2.msra.mxu0 0.0
    %647 = vmatprep.subr.mxu0 0.0
    %648 = vmatpush2.msra.mxu0 0.0
    %649 = vmatprep.subr.mxu0 0.0
    %650 = vmatpush2.msra.mxu0 0.0
    %651 = vmatprep.subr.mxu0 0.0
    %652 = vmatpush2.msra.mxu0 0.0
    %653 = vmatprep.subr.mxu0 0.0
    %654 = vmatpush2.msra.mxu0 0.0
    %655 = vmatprep.subr.mxu0 0.0
    %656 = vmatpush2.msra.mxu0 0.0
    %657 = vmatprep.subr.mxu0 0.0
    %658 = vmatpush2.msra.mxu0 0.0
    %659 = vmatprep.subr.mxu0 0.0
    %660 = vmatpush2.msra.mxu0 0.0
    %661 = vmatprep.subr.mxu0 0.0
    %662 = vmatpush2.msra.mxu0 0.0
    %663 = vmatprep.subr.mxu0 0.0
    %664 = vmatpush2.msra.mxu0 0.0
    %665 = vmatprep.subr.mxu0 0.0
    %666 = vmatpush2.msra.mxu0 0.0
    %667 = vmatprep.subr.mxu0 0.0
    %668 = vmatpush2.msra.mxu0 0.0
    %669 = vmatprep.subr.mxu0 0.0
    %670 = vmatpush2.msra.mxu0 0.0
    %671 = vmatprep.subr.mxu0 0.0
    %672 = vmatpush2.msra.mxu0 0.0
    %673 = vmatprep.mubr.f32.mxu0 0.0
    %674 = vmatmul.mubr.f32.gmra.mxu0 %v536
    %v675 = vpop.f32.mrf.mxu0
    %v676 = vadd.f32 %v515, %v675
    %v677 = vpop.f32.mrf.mxu0
    %v678 = vadd.f32 %v519, %v677
    %679 = vdwg.mxu0
    %680 = vmatprep.subr.mxu0 0.0
    %681 = vmatpush1.msra.mxu0 0.0
    %682 = vmatprep.subr.mxu0 0.0
    %683 = vmatpush1.msra.mxu0 0.0
    %684 = vmatprep.subr.mxu0 0.0
    %685 = vmatpush1.msra.mxu0 0.0
    %686 = vmatprep.subr.mxu0 0.0
    %687 = vmatpush1.msra.mxu0 0.0
    %688 = vmatprep.subr.mxu0 0.0
    %689 = vmatpush1.msra.mxu0 0.0
    %690 = vmatprep.subr.mxu0 0.0
    %691 = vmatpush1.msra.mxu0 0.0
    %692 = vmatprep.subr.mxu0 0.0
    %693 = vmatpush1.msra.mxu0 0.0
    %694 = vmatprep.subr.mxu0 0.0
    %695 = vmatpush1.msra.mxu0 0.0
    %696 = vmatprep.subr.mxu0 0.0
    %697 = vmatpush1.msra.mxu0 0.0
    %698 = vmatprep.subr.mxu0 0.0
    %699 = vmatpush1.msra.mxu0 0.0
    %700 = vmatprep.subr.mxu0 0.0
    %701 = vmatpush1.msra.mxu0 0.0
    %702 = vmatprep.subr.mxu0 0.0
    %703 = vmatpush1.msra.mxu0 0.0
    %704 = vmatprep.subr.mxu0 %v501
    %705 = vmatpush1.msra.mxu0 %v500
    %706 = vmatprep.subr.mxu0 %v495
    %707 = vmatpush1.msra.mxu0 %v494
    %708 = vmatprep.subr.mxu0 %v489
    %709 = vmatpush1.msra.mxu0 %v488
    %710 = vmatprep.subr.mxu0 %v483
    %711 = vmatpush1.msra.mxu0 %v482
    %712 = vmatprep.subr.mxu0 0.0
    %713 = vmatpush2.msra.mxu0 0.0
    %714 = vmatprep.subr.mxu0 0.0
    %715 = vmatpush2.msra.mxu0 0.0
    %716 = vmatprep.subr.mxu0 0.0
    %717 = vmatpush2.msra.mxu0 0.0
    %718 = vmatprep.subr.mxu0 0.0
    %719 = vmatpush2.msra.mxu0 0.0
    %720 = vmatprep.subr.mxu0 0.0
    %721 = vmatpush2.msra.mxu0 0.0
    %722 = vmatprep.subr.mxu0 0.0
    %723 = vmatpush2.msra.mxu0 0.0
    %724 = vmatprep.subr.mxu0 0.0
    %725 = vmatpush2.msra.mxu0 0.0
    %726 = vmatprep.subr.mxu0 0.0
    %727 = vmatpush2.msra.mxu0 0.0
    %728 = vmatprep.subr.mxu0 0.0
    %729 = vmatpush2.msra.mxu0 0.0
    %730 = vmatprep.subr.mxu0 0.0
    %731 = vmatpush2.msra.mxu0 0.0
    %732 = vmatprep.subr.mxu0 0.0
    %733 = vmatpush2.msra.mxu0 0.0
    %734 = vmatprep.subr.mxu0 0.0
    %735 = vmatpush2.msra.mxu0 0.0
    %736 = vmatprep.subr.mxu0 0.0
    %737 = vmatpush2.msra.mxu0 0.0
    %738 = vmatprep.subr.mxu0 0.0
    %739 = vmatpush2.msra.mxu0 0.0
    %740 = vmatprep.subr.mxu0 0.0
    %741 = vmatpush2.msra.mxu0 0.0
    %742 = vmatprep.subr.mxu0 0.0
    %743 = vmatpush2.msra.mxu0 0.0
    %744 = vmatprep.mubr.f32.mxu0 0.0
    %745 = vmatmul.mubr.f32.gmra.mxu0 %v536
    %v746 = vpop.f32.mrf.mxu0
    %v747 = vadd.f32 %v523, %v746
    %v748 = vpop.f32.mrf.mxu0
    %v749 = vadd.f32 %v527, %v748
    %750 = vdwg.mxu0
    %vm751 = vcmp.gt.f32.partialorder %v605, 20.0
    %vm752 = vcmp.gt.f32.partialorder %v607, 20.0
    %vm753 = vcmp.gt.f32.partialorder %v676, 20.0
    %vm754 = vcmp.gt.f32.partialorder %v678, 20.0
    %vm755 = vcmp.gt.f32.partialorder %v747, 20.0
    %vm756 = vcmp.gt.f32.partialorder %v749, 20.0
    %v757 = vmin.f32 %v605, 20.0
    %v758 = vmin.f32 %v607, 20.0
    %v759 = vmin.f32 %v676, 20.0
    %v760 = vmin.f32 %v678, 20.0
    %v761 = vmin.f32 %v747, 20.0
    %v762 = vmin.f32 %v749, 20.0
    %v763 = vmul.f32 %v757, 1.442695
    %v764 = vpow.pop %v763
    %v765 = vmul.f32 %v758, 1.442695
    %v766 = vpow.pop %v765
    %v767 = vmul.f32 %v759, 1.442695
    %v768 = vpow.pop %v767
    %v769 = vmul.f32 %v760, 1.442695
    %v770 = vpow.pop %v769
    %v771 = vmul.f32 %v761, 1.442695
    %v772 = vpow.pop %v771
    %v773 = vmul.f32 %v762, 1.442695
    %v774 = vpow.pop %v773
    %v775 = vadd.f32 %v764, 1.0
    %v776 = vadd.f32 %v766, 1.0
    %v777 = vadd.f32 %v768, 1.0
    %v778 = vadd.f32 %v770, 1.0
    %v779 = vadd.f32 %v772, 1.0
    %v780 = vadd.f32 %v774, 1.0
    %v781 = vlog2.pop %v775
    %v782 = vmul.f32 %v781, 0.6931472
    %v783 = vlog2.pop %v776
    %v784 = vmul.f32 %v783, 0.6931472
    %v785 = vlog2.pop %v777
    %v786 = vmul.f32 %v785, 0.6931472
    %v787 = vlog2.pop %v778
    %v788 = vmul.f32 %v787, 0.6931472
    %v789 = vlog2.pop %v779
    %v790 = vmul.f32 %v789, 0.6931472
    %v791 = vlog2.pop %v780
    %v792 = vmul.f32 %v791, 0.6931472
    %v793 = vsel %vm751, %v605, %v782
    %v794 = vsel %vm752, %v607, %v784
    %v795 = vsel %vm753, %v676, %v786
    %v796 = vsel %vm754, %v678, %v788
    %v797 = vsel %vm755, %v747, %v790
    %v798 = vsel %vm756, %v749, %v792
    %v799 = vtanh.pop %v793
    %v800 = vtanh.pop %v794
    %v801 = vtanh.pop %v795
    %v802 = vtanh.pop %v796
    %v803 = vtanh.pop %v797
    %v804 = vtanh.pop %v798
    %v805 = vmul.f32 %v605, %v799
    %v806 = vmul.f32 %v607, %v800
    %v807 = vmul.f32 %v676, %v801
    %v808 = vmul.f32 %v678, %v802
    %v809 = vmul.f32 %v747, %v803
    %v810 = vmul.f32 %v749, %v804
    %v814 = vrot.slane %v808, 7
    %v815 = vrot.slane %v809, 7
    %v816 = vrot.slane %v810, 7
    %vm820 = vcmask 1040384
    %v821 = vsel %vm820, %v805, %v814
    %v822 = vsel %vm820, %v806, %v815
    %v823 = vsel %vm820, %v807, %v816
    %827 = vrot.lane.b32.xlu0 %v821, 34
    %v828 = vpop.permute.xlu0 %827
    %829 = vrot.lane.b32.xlu0 %v822, 34
    %v830 = vpop.permute.xlu0 %829
    %831 = vrot.lane.b32.xlu0 %v823, 34
    %v832 = vpop.permute.xlu0 %831
    %vm833 = vcmask 277504
    %v834 = vsel %vm833, %v828, %v830
    %v835 = vsel %vm833, %v830, %v832
    %v839 = vsel %vm833, 0.0, %v828
    %840 = vrot.lane.b32.xlu0 %v821, 33
    %v841 = vpop.permute.xlu0 %840
    %842 = vrot.lane.b32.xlu0 %v822, 33
    %v843 = vpop.permute.xlu0 %842
    %844 = vrot.lane.b32.xlu0 %v823, 33
    %v845 = vpop.permute.xlu0 %844
    %vm846 = vcmask 269312
    %v847 = vsel %vm846, %v841, %v843
    %v848 = vsel %vm846, %v843, %v845
    %v850 = vsel %vm846, 0.0, %v841
    %851 = vrot.lane.b32.xlu0 %v821, 32
    %v852 = vpop.permute.xlu0 %851
    %853 = vrot.lane.b32.xlu0 %v822, 32
    %v854 = vpop.permute.xlu0 %853
    %855 = vrot.lane.b32.xlu0 %v823, 32
    %v856 = vpop.permute.xlu0 %855
    %v857 = vsel %vm534, %v852, %v854
    %v858 = vsel %vm534, %v854, %v856
    %v860 = vsel %vm534, 0.0, %v852
    %861 = vrot.lane.b32.xlu0 %v821, 31
    %v862 = vpop.permute.xlu0 %861
    %863 = vrot.lane.b32.xlu0 %v822, 31
    %v864 = vpop.permute.xlu0 %863
    %865 = vrot.lane.b32.xlu0 %v823, 31
    %v866 = vpop.permute.xlu0 %865
    %vm867 = vcmask 252928
    %v868 = vsel %vm867, %v862, %v864
    %v869 = vsel %vm867, %v864, %v866
    %v871 = vsel %vm867, 0.0, %v862
    %872 = vrot.lane.b32.xlu0 %v821, 30
    %v873 = vpop.permute.xlu0 %872
    %874 = vrot.lane.b32.xlu0 %v822, 30
    %v875 = vpop.permute.xlu0 %874
    %876 = vrot.lane.b32.xlu0 %v823, 30
    %v877 = vpop.permute.xlu0 %876
    %vm878 = vcmask 244736
    %v879 = vsel %vm878, %v873, %v875
    %v880 = vsel %vm878, %v875, %v877
    %v884 = vsel %vm878, 0.0, %v873
    %885 = vrot.lane.b32.xlu0 %v821, 18
    %v886 = vpop.permute.xlu0 %885
    %887 = vrot.lane.b32.xlu0 %v822, 18
    %v888 = vpop.permute.xlu0 %887
    %889 = vrot.lane.b32.xlu0 %v823, 18
    %v890 = vpop.permute.xlu0 %889
    %vm891 = vcmask 146432
    %v892 = vsel %vm891, %v886, %v888
    %v893 = vsel %vm891, %v888, %v890
    %v895 = vsel %vm891, 0.0, %v886
    %896 = vrot.lane.b32.xlu0 %v821, 17
    %v897 = vpop.permute.xlu0 %896
    %898 = vrot.lane.b32.xlu0 %v822, 17
    %v899 = vpop.permute.xlu0 %898
    %900 = vrot.lane.b32.xlu0 %v823, 17
    %v901 = vpop.permute.xlu0 %900
    %vm902 = vcmask 138240
    %v903 = vsel %vm902, %v897, %v899
    %v904 = vsel %vm902, %v899, %v901
    %v906 = vsel %vm902, 0.0, %v897
    %907 = vrot.lane.b32.xlu0 %v821, 16
    %v908 = vpop.permute.xlu0 %907
    %909 = vrot.lane.b32.xlu0 %v822, 16
    %v910 = vpop.permute.xlu0 %909
    %911 = vrot.lane.b32.xlu0 %v823, 16
    %v912 = vpop.permute.xlu0 %911
    %vm913 = vcmask 130048
    %v914 = vsel %vm913, %v908, %v910
    %v915 = vsel %vm913, %v910, %v912
    %v917 = vsel %vm913, 0.0, %v908
    %918 = vrot.lane.b32.xlu0 %v821, 15
    %v919 = vpop.permute.xlu0 %918
    %920 = vrot.lane.b32.xlu0 %v822, 15
    %v921 = vpop.permute.xlu0 %920
    %922 = vrot.lane.b32.xlu0 %v823, 15
    %v923 = vpop.permute.xlu0 %922
    %vm924 = vcmask 121856
    %v925 = vsel %vm924, %v919, %v921
    %v926 = vsel %vm924, %v921, %v923
    %v930 = vsel %vm924, 0.0, %v919
    %931 = vrot.lane.b32.xlu0 %v821, 14
    %v932 = vpop.permute.xlu0 %931
    %933 = vrot.lane.b32.xlu0 %v822, 14
    %v934 = vpop.permute.xlu0 %933
    %935 = vrot.lane.b32.xlu0 %v823, 14
    %v936 = vpop.permute.xlu0 %935
    %vm937 = vcmask 113664
    %v938 = vsel %vm937, %v932, %v934
    %v939 = vsel %vm937, %v934, %v936
    %v941 = vsel %vm937, 0.0, %v932
    %942 = vrot.lane.b32.xlu0 %v821, 2
    %v943 = vpop.permute.xlu0 %942
    %944 = vrot.lane.b32.xlu0 %v822, 2
    %v945 = vpop.permute.xlu0 %944
    %946 = vrot.lane.b32.xlu0 %v823, 2
    %v947 = vpop.permute.xlu0 %946
    %vm948 = vcmask 15360
    %v949 = vsel %vm948, %v943, %v945
    %v950 = vsel %vm948, %v945, %v947
    %v952 = vsel %vm948, 0.0, %v943
    %953 = vrot.lane.b32.xlu0 %v821, 1
    %v954 = vpop.permute.xlu0 %953
    %955 = vrot.lane.b32.xlu0 %v822, 1
    %v956 = vpop.permute.xlu0 %955
    %957 = vrot.lane.b32.xlu0 %v823, 1
    %v958 = vpop.permute.xlu0 %957
    %vm959 = vcmask 7168
    %v960 = vsel %vm959, %v954, %v956
    %v961 = vsel %vm959, %v956, %v958
    %v963 = vsel %vm959, 0.0, %v954
    %964 = vrot.lane.b32.xlu0 %v821, 127
    %v965 = vpop.permute.xlu0 %964
    %966 = vrot.lane.b32.xlu0 %v822, 127
    %v967 = vpop.permute.xlu0 %966
    %968 = vrot.lane.b32.xlu0 %v823, 127
    %v969 = vpop.permute.xlu0 %968
    %vm970 = vcmask 1039360
    %v971 = vsel %vm970, %v965, %v967
    %v972 = vsel %vm970, %v967, %v969
    %v974 = vsel %vm970, %v969, 0.0
    %975 = vrot.lane.b32.xlu0 %v821, 126
    %v976 = vpop.permute.xlu0 %975
    %977 = vrot.lane.b32.xlu0 %v822, 126
    %v978 = vpop.permute.xlu0 %977
    %979 = vrot.lane.b32.xlu0 %v823, 126
    %v980 = vpop.permute.xlu0 %979
    %vm981 = vcmask 1031168
    %v982 = vsel %vm981, %v976, %v978
    %v983 = vsel %vm981, %v978, %v980
    %v985 = vsel %vm981, %v980, 0.0
    %986 = vrot.lane.b32.xlu0 %v821, 114
    %v987 = vpop.permute.xlu0 %986
    %988 = vrot.lane.b32.xlu0 %v822, 114
    %v989 = vpop.permute.xlu0 %988
    %990 = vrot.lane.b32.xlu0 %v823, 114
    %v991 = vpop.permute.xlu0 %990
    %vm992 = vcmask 932864
    %v993 = vsel %vm992, %v987, %v989
    %v994 = vsel %vm992, %v989, %v991
    %v996 = vsel %vm992, %v991, 0.0
    %997 = vrot.lane.b32.xlu0 %v821, 113
    %v998 = vpop.permute.xlu0 %997
    %999 = vrot.lane.b32.xlu0 %v822, 113
    %v1000 = vpop.permute.xlu0 %999
    %1001 = vrot.lane.b32.xlu0 %v823, 113
    %v1002 = vpop.permute.xlu0 %1001
    %vm1003 = vcmask 924672
    %v1004 = vsel %vm1003, %v998, %v1000
    %v1005 = vsel %vm1003, %v1000, %v1002
    %v1009 = vsel %vm1003, %v1002, 0.0
    %1010 = vrot.lane.b32.xlu0 %v821, 112
    %v1011 = vpop.permute.xlu0 %1010
    %1012 = vrot.lane.b32.xlu0 %v822, 112
    %v1013 = vpop.permute.xlu0 %1012
    %1014 = vrot.lane.b32.xlu0 %v823, 112
    %v1015 = vpop.permute.xlu0 %1014
    %vm1016 = vcmask 916480
    %v1017 = vsel %vm1016, %v1011, %v1013
    %v1018 = vsel %vm1016, %v1013, %v1015
    %v1020 = vsel %vm1016, %v1015, 0.0
    %1021 = vrot.lane.b32.xlu0 %v821, 111
    %v1022 = vpop.permute.xlu0 %1021
    %1023 = vrot.lane.b32.xlu0 %v822, 111
    %v1024 = vpop.permute.xlu0 %1023
    %1025 = vrot.lane.b32.xlu0 %v823, 111
    %v1026 = vpop.permute.xlu0 %1025
    %vm1027 = vcmask 908288
    %v1028 = vsel %vm1027, %v1022, %v1024
    %v1029 = vsel %vm1027, %v1024, %v1026
    %v1031 = vsel %vm1027, %v1026, 0.0
    %1032 = vrot.lane.b32.xlu0 %v821, 110
    %v1033 = vpop.permute.xlu0 %1032
    %1034 = vrot.lane.b32.xlu0 %v822, 110
    %v1035 = vpop.permute.xlu0 %1034
    %1036 = vrot.lane.b32.xlu0 %v823, 110
    %v1037 = vpop.permute.xlu0 %1036
    %vm1038 = vcmask 900096
    %v1039 = vsel %vm1038, %v1033, %v1035
    %v1040 = vsel %vm1038, %v1035, %v1037
    %v1042 = vsel %vm1038, %v1037, 0.0
    %1043 = vrot.lane.b32.xlu0 %v821, 98
    %v1044 = vpop.permute.xlu0 %1043
    %1045 = vrot.lane.b32.xlu0 %v822, 98
    %v1046 = vpop.permute.xlu0 %1045
    %1047 = vrot.lane.b32.xlu0 %v823, 98
    %v1048 = vpop.permute.xlu0 %1047
    %vm1049 = vcmask 801792
    %v1050 = vsel %vm1049, %v1044, %v1046
    %v1051 = vsel %vm1049, %v1046, %v1048
    %v1055 = vsel %vm1049, %v1048, 0.0
    %1056 = vrot.lane.b32.xlu0 %v821, 97
    %v1057 = vpop.permute.xlu0 %1056
    %1058 = vrot.lane.b32.xlu0 %v822, 97
    %v1059 = vpop.permute.xlu0 %1058
    %1060 = vrot.lane.b32.xlu0 %v823, 97
    %v1061 = vpop.permute.xlu0 %1060
    %vm1062 = vcmask 793600
    %v1063 = vsel %vm1062, %v1057, %v1059
    %v1064 = vsel %vm1062, %v1059, %v1061
    %v1066 = vsel %vm1062, %v1061, 0.0
    %1067 = vrot.lane.b32.xlu0 %v821, 96
    %v1068 = vpop.permute.xlu0 %1067
    %1069 = vrot.lane.b32.xlu0 %v822, 96
    %v1070 = vpop.permute.xlu0 %1069
    %1071 = vrot.lane.b32.xlu0 %v823, 96
    %v1072 = vpop.permute.xlu0 %1071
    %vm1073 = vcmask 785408
    %v1074 = vsel %vm1073, %v1068, %v1070
    %v1075 = vsel %vm1073, %v1070, %v1072
    %v1077 = vsel %vm1073, %v1072, 0.0
    %1078 = vrot.lane.b32.xlu0 %v821, 95
    %v1079 = vpop.permute.xlu0 %1078
    %1080 = vrot.lane.b32.xlu0 %v822, 95
    %v1081 = vpop.permute.xlu0 %1080
    %1082 = vrot.lane.b32.xlu0 %v823, 95
    %v1083 = vpop.permute.xlu0 %1082
    %vm1084 = vcmask 777216
    %v1085 = vsel %vm1084, %v1079, %v1081
    %v1086 = vsel %vm1084, %v1081, %v1083
    %v1088 = vsel %vm1084, %v1083, 0.0
    %1089 = vrot.lane.b32.xlu0 %v821, 94
    %v1090 = vpop.permute.xlu0 %1089
    %1091 = vrot.lane.b32.xlu0 %v822, 94
    %v1092 = vpop.permute.xlu0 %1091
    %1093 = vrot.lane.b32.xlu0 %v823, 94
    %v1094 = vpop.permute.xlu0 %1093
    %vm1095 = vcmask 769024
    %v1096 = vsel %vm1095, %v1090, %v1092
    %v1097 = vsel %vm1095, %v1092, %v1094
    %v1101 = vsel %vm1095, %v1094, 0.0
    %v1103 = vrot.slane %v850, 6
    %v1104 = vrot.slane %v847, 6
    %v1105 = vrot.slane %v848, 6
    %v1110 = vrot.slane %v860, 4
    %v1111 = vrot.slane %v857, 4
    %v1112 = vrot.slane %v858, 4
    %v1117 = vrot.slane %v871, 2
    %v1118 = vrot.slane %v868, 2
    %v1119 = vrot.slane %v869, 2
    %v1124 = vrot.slane %v895, 6
    %v1125 = vrot.slane %v892, 6
    %v1126 = vrot.slane %v893, 6
    %v1131 = vrot.slane %v906, 4
    %v1132 = vrot.slane %v903, 4
    %v1133 = vrot.slane %v904, 4
    %v1138 = vrot.slane %v917, 2
    %v1139 = vrot.slane %v914, 2
    %v1140 = vrot.slane %v915, 2
    %v1145 = vrot.slane %v941, 6
    %v1146 = vrot.slane %v938, 6
    %v1147 = vrot.slane %v939, 6
    %v1152 = vrot.slane %v952, 4
    %v1153 = vrot.slane %v949, 4
    %v1154 = vrot.slane %v950, 4
    %v1159 = vrot.slane %v963, 2
    %v1160 = vrot.slane %v960, 2
    %v1161 = vrot.slane %v961, 2
    %v1166 = vrot.slane %v971, 6
    %v1167 = vrot.slane %v972, 6
    %v1168 = vrot.slane %v974, 6
    %v1173 = vrot.slane %v982, 4
    %v1174 = vrot.slane %v983, 4
    %v1175 = vrot.slane %v985, 4
    %v1180 = vrot.slane %v993, 2
    %v1181 = vrot.slane %v994, 2
    %v1182 = vrot.slane %v996, 2
    %vm1186 = vcmask 1041408
    %v1187 = vsel %vm1186, %v839, %v1103
    %v1188 = vsel %vm1186, %v834, %v1104
    %v1189 = vsel %vm1186, %v835, %v1105
    %vm1190 = vcmask 1043456
    %v1191 = vsel %vm1190, %v1187, %v1110
    %v1192 = vsel %vm1190, %v1188, %v1111
    %v1193 = vsel %vm1190, %v1189, %v1112
    %vm1194 = vcmask 1045504
    %v1195 = vsel %vm1194, %v1191, %v1117
    %v1196 = vsel %vm1194, %v1192, %v1118
    %v1197 = vsel %vm1194, %v1193, %v1119
    %v1198 = vsel %vm1186, %v884, %v1124
    %v1199 = vsel %vm1186, %v879, %v1125
    %v1200 = vsel %vm1186, %v880, %v1126
    %v1201 = vsel %vm1190, %v1198, %v1131
    %v1202 = vsel %vm1190, %v1199, %v1132
    %v1203 = vsel %vm1190, %v1200, %v1133
    %v1204 = vsel %vm1194, %v1201, %v1138
    %v1205 = vsel %vm1194, %v1202, %v1139
    %v1206 = vsel %vm1194, %v1203, %v1140
    %v1207 = vsel %vm1186, %v930, %v1145
    %v1208 = vsel %vm1186, %v925, %v1146
    %v1209 = vsel %vm1186, %v926, %v1147
    %v1210 = vsel %vm1190, %v1207, %v1152
    %v1211 = vsel %vm1190, %v1208, %v1153
    %v1212 = vsel %vm1190, %v1209, %v1154
    %v1213 = vsel %vm1194, %v1210, %v1159
    %v1214 = vsel %vm1194, %v1211, %v1160
    %v1215 = vsel %vm1194, %v1212, %v1161
    %v1216 = vsel %vm1186, %v821, %v1166
    %v1217 = vsel %vm1186, %v822, %v1167
    %v1218 = vsel %vm1186, %v823, %v1168
    %v1219 = vsel %vm1190, %v1216, %v1173
    %v1220 = vsel %vm1190, %v1217, %v1174
    %v1221 = vsel %vm1190, %v1218, %v1175
    %v1222 = vsel %vm1194, %v1219, %v1180
    %v1223 = vsel %vm1194, %v1220, %v1181
    %v1224 = vsel %vm1194, %v1221, %v1182
    %v1226 = vrot.slane %v1017, 6
    %v1227 = vrot.slane %v1018, 6
    %v1228 = vrot.slane %v1020, 6
    %v1233 = vrot.slane %v1028, 4
    %v1234 = vrot.slane %v1029, 4
    %v1235 = vrot.slane %v1031, 4
    %v1240 = vrot.slane %v1039, 2
    %v1241 = vrot.slane %v1040, 2
    %v1242 = vrot.slane %v1042, 2
    %v1247 = vrot.slane %v1063, 6
    %v1248 = vrot.slane %v1064, 6
    %v1249 = vrot.slane %v1066, 6
    %v1254 = vrot.slane %v1074, 4
    %v1255 = vrot.slane %v1075, 4
    %v1256 = vrot.slane %v1077, 4
    %v1261 = vrot.slane %v1085, 2
    %v1262 = vrot.slane %v1086, 2
    %v1263 = vrot.slane %v1088, 2
    %v1267 = vsel %vm1186, %v1004, %v1226
    %v1268 = vsel %vm1186, %v1005, %v1227
    %v1269 = vsel %vm1186, %v1009, %v1228
    %v1270 = vsel %vm1190, %v1267, %v1233
    %v1271 = vsel %vm1190, %v1268, %v1234
    %v1272 = vsel %vm1190, %v1269, %v1235
    %v1273 = vsel %vm1194, %v1270, %v1240
    %v1274 = vsel %vm1194, %v1271, %v1241
    %v1275 = vsel %vm1194, %v1272, %v1242
    %v1276 = vsel %vm1186, %v1050, %v1247
    %v1277 = vsel %vm1186, %v1051, %v1248
    %v1278 = vsel %vm1186, %v1055, %v1249
    %v1279 = vsel %vm1190, %v1276, %v1254
    %v1280 = vsel %vm1190, %v1277, %v1255
    %v1281 = vsel %vm1190, %v1278, %v1256
    %v1282 = vsel %vm1194, %v1279, %v1261
    %v1283 = vsel %vm1194, %v1280, %v1262
    %v1284 = vsel %vm1194, %v1281, %v1263
    %v1285 = vmul.f32 %v1195, %v402
    %v1286 = vmul.f32 %v1196, %v403
    %v1287 = vmul.f32 %v1197, %v404
    %v1288 = vmul.f32 %v1204, %v405
    %v1289 = vmul.f32 %v1205, %v406
    %v1290 = vmul.f32 %v1206, %v407
    %v1291 = vmul.f32 %v1213, %v408
    %v1292 = vmul.f32 %v1214, %v409
    %v1293 = vmul.f32 %v1215, %v410
    %v1294 = vmul.f32 %v1222, %v411
    %v1295 = vmul.f32 %v1223, %v412
    %v1296 = vmul.f32 %v1224, %v413
    %v1297 = vmul.f32 %v1273, %v414
    %v1298 = vmul.f32 %v1274, %v415
    %v1299 = vmul.f32 %v1275, %v416
    %v1300 = vmul.f32 %v1282, %v417
    %v1301 = vmul.f32 %v1283, %v418
    %v1302 = vmul.f32 %v1284, %v419
    %v1303 = vmul.f32 %v1096, %v420
    %v1304 = vmul.f32 %v1097, %v421
    %v1305 = vmul.f32 %v1101, %v422
    %1307 = vset.pattern.permute.xlu0 0
    %1308 = vperm.xlu0 %1307, %v389
    %v1309 = vpop.permute.xlu0 %1308
    %vm1311 = vcmask 408576
    %v1313 = vsel %vm1311, %v376, 0
    %v1316 = vsel %vm1186, %v1303, 0
    %v1319 = vsel %vm1186, %v1304, 0
    %v1322 = vsel %vm1186, %v1305, 0
    %1324 = vmatprep.subr.mxu0 0.0
    %1325 = vmatpush1.msra.mxu0 0.0
    %1326 = vmatprep.subr.mxu0 0.0
    %1327 = vmatpush1.msra.mxu0 0.0
    %1328 = vmatprep.subr.mxu0 0.0
    %1329 = vmatpush1.msra.mxu0 0.0
    %1330 = vmatprep.subr.mxu0 0.0
    %1331 = vmatpush1.msra.mxu0 0.0
    %1332 = vmatprep.subr.mxu0 0.0
    %1333 = vmatpush1.msra.mxu0 0.0
    %1334 = vmatprep.subr.mxu0 0.0
    %1335 = vmatpush1.msra.mxu0 0.0
    %1336 = vmatprep.subr.mxu0 0.0
    %1337 = vmatpush1.msra.mxu0 0.0
    %1338 = vmatprep.subr.mxu0 0.0
    %1339 = vmatpush1.msra.mxu0 0.0
    %1340 = vmatprep.subr.mxu0 0.0
    %1341 = vmatpush1.msra.mxu0 0.0
    %1342 = vmatprep.subr.mxu0 %v1319
    %1343 = vmatpush1.msra.mxu0 %v1316
    %1344 = vmatprep.subr.mxu0 %v1301
    %1345 = vmatpush1.msra.mxu0 %v1300
    %1346 = vmatprep.subr.mxu0 %v1298
    %1347 = vmatpush1.msra.mxu0 %v1297
    %1348 = vmatprep.subr.mxu0 %v1295
    %1349 = vmatpush1.msra.mxu0 %v1294
    %1350 = vmatprep.subr.mxu0 %v1292
    %1351 = vmatpush1.msra.mxu0 %v1291
    %1352 = vmatprep.subr.mxu0 %v1289
    %1353 = vmatpush1.msra.mxu0 %v1288
    %1354 = vmatprep.subr.mxu0 %v1286
    %1355 = vmatpush1.msra.mxu0 %v1285
    %1356 = vmatprep.subr.mxu0 0.0
    %1357 = vmatpush2.msra.mxu0 0.0
    %1358 = vmatprep.subr.mxu0 0.0
    %1359 = vmatpush2.msra.mxu0 0.0
    %1360 = vmatprep.subr.mxu0 0.0
    %1361 = vmatpush2.msra.mxu0 0.0
    %1362 = vmatprep.subr.mxu0 0.0
    %1363 = vmatpush2.msra.mxu0 0.0
    %1364 = vmatprep.subr.mxu0 0.0
    %1365 = vmatpush2.msra.mxu0 0.0
    %1366 = vmatprep.subr.mxu0 0.0
    %1367 = vmatpush2.msra.mxu0 0.0
    %1368 = vmatprep.subr.mxu0 0.0
    %1369 = vmatpush2.msra.mxu0 0.0
    %1370 = vmatprep.subr.mxu0 0.0
    %1371 = vmatpush2.msra.mxu0 0.0
    %1372 = vmatprep.subr.mxu0 0.0
    %1373 = vmatpush2.msra.mxu0 0.0
    %1374 = vmatprep.subr.mxu0 0.0
    %1375 = vmatpush2.msra.mxu0 0.0
    %1376 = vmatprep.subr.mxu0 0.0
    %1377 = vmatpush2.msra.mxu0 0.0
    %1378 = vmatprep.subr.mxu0 0.0
    %1379 = vmatpush2.msra.mxu0 0.0
    %1380 = vmatprep.subr.mxu0 0.0
    %1381 = vmatpush2.msra.mxu0 0.0
    %1382 = vmatprep.subr.mxu0 0.0
    %1383 = vmatpush2.msra.mxu0 0.0
    %1384 = vmatprep.subr.mxu0 0.0
    %1385 = vmatpush2.msra.mxu0 0.0
    %1386 = vmatprep.subr.mxu0 0.0
    %1387 = vmatpush2.msra.mxu0 0.0
    %1388 = vmatprep.mubr.f32.mxu0 0.0
    %1389 = vmatmul.mubr.f32.gmra.mxu0 %v1313
    %v1390 = vpop.f32.mrf.mxu0
    %v1391 = vadd.f32 %v1309, %v1390
    %v1392 = vpop.f32.mrf.mxu0
    %v1393 = vadd.f32 %v1309, %v1392
    %1394 = vdwg.mxu0
    %1395 = vmatprep.subr.mxu0 0.0
    %1396 = vmatpush1.msra.mxu0 0.0
    %1397 = vmatprep.subr.mxu0 0.0
    %1398 = vmatpush1.msra.mxu0 0.0
    %1399 = vmatprep.subr.mxu0 0.0
    %1400 = vmatpush1.msra.mxu0 0.0
    %1401 = vmatprep.subr.mxu0 0.0
    %1402 = vmatpush1.msra.mxu0 0.0
    %1403 = vmatprep.subr.mxu0 0.0
    %1404 = vmatpush1.msra.mxu0 0.0
    %1405 = vmatprep.subr.mxu0 0.0
    %1406 = vmatpush1.msra.mxu0 0.0
    %1407 = vmatprep.subr.mxu0 0.0
    %1408 = vmatpush1.msra.mxu0 0.0
    %1409 = vmatprep.subr.mxu0 0.0
    %1410 = vmatpush1.msra.mxu0 0.0
    %1411 = vmatprep.subr.mxu0 0.0
    %1412 = vmatpush1.msra.mxu0 0.0
    %1413 = vmatprep.subr.mxu0 0.0
    %1414 = vmatpush1.msra.mxu0 %v1322
    %1415 = vmatprep.subr.mxu0 0.0
    %1416 = vmatpush1.msra.mxu0 %v1302
    %1417 = vmatprep.subr.mxu0 0.0
    %1418 = vmatpush1.msra.mxu0 %v1299
    %1419 = vmatprep.subr.mxu0 0.0
    %1420 = vmatpush1.msra.mxu0 %v1296
    %1421 = vmatprep.subr.mxu0 0.0
    %1422 = vmatpush1.msra.mxu0 %v1293
    %1423 = vmatprep.subr.mxu0 0.0
    %1424 = vmatpush1.msra.mxu0 %v1290
    %1425 = vmatprep.subr.mxu0 0.0
    %1426 = vmatpush1.msra.mxu0 %v1287
    %1427 = vmatprep.subr.mxu0 0.0
    %1428 = vmatpush2.msra.mxu0 0.0
    %1429 = vmatprep.subr.mxu0 0.0
    %1430 = vmatpush2.msra.mxu0 0.0
    %1431 = vmatprep.subr.mxu0 0.0
    %1432 = vmatpush2.msra.mxu0 0.0
    %1433 = vmatprep.subr.mxu0 0.0
    %1434 = vmatpush2.msra.mxu0 0.0
    %1435 = vmatprep.subr.mxu0 0.0
    %1436 = vmatpush2.msra.mxu0 0.0
    %1437 = vmatprep.subr.mxu0 0.0
    %1438 = vmatpush2.msra.mxu0 0.0
    %1439 = vmatprep.subr.mxu0 0.0
    %1440 = vmatpush2.msra.mxu0 0.0
    %1441 = vmatprep.subr.mxu0 0.0
    %1442 = vmatpush2.msra.mxu0 0.0
    %1443 = vmatprep.subr.mxu0 0.0
    %1444 = vmatpush2.msra.mxu0 0.0
    %1445 = vmatprep.subr.mxu0 0.0
    %1446 = vmatpush2.msra.mxu0 0.0
    %1447 = vmatprep.subr.mxu0 0.0
    %1448 = vmatpush2.msra.mxu0 0.0
    %1449 = vmatprep.subr.mxu0 0.0
    %1450 = vmatpush2.msra.mxu0 0.0
    %1451 = vmatprep.subr.mxu0 0.0
    %1452 = vmatpush2.msra.mxu0 0.0
    %1453 = vmatprep.subr.mxu0 0.0
    %1454 = vmatpush2.msra.mxu0 0.0
    %1455 = vmatprep.subr.mxu0 0.0
    %1456 = vmatpush2.msra.mxu0 0.0
    %1457 = vmatprep.subr.mxu0 0.0
    %1458 = vmatpush2.msra.mxu0 0.0
    %1459 = vmatprep.mubr.f32.mxu0 0.0
    %1460 = vmatmul.mubr.f32.gmra.mxu0 %v1313
    %v1461 = vpop.f32.mrf.mxu0
    %v1462 = vadd.f32 %v1309, %v1461
    %v1463 = vpop.f32.mrf.mxu0
    %1464 = vdwg.mxu0
    %vm1465 = vcmp.gt.f32.partialorder %v1391, 20.0
    %vm1466 = vcmp.gt.f32.partialorder %v1393, 20.0
    %vm1467 = vcmp.gt.f32.partialorder %v1462, 20.0
    %v1468 = vmin.f32 %v1391, 20.0
    %v1469 = vmin.f32 %v1393, 20.0
    %v1470 = vmin.f32 %v1462, 20.0
    %v1471 = vmul.f32 %v1468, 1.442695
    %v1472 = vpow.pop %v1471
    %v1473 = vmul.f32 %v1469, 1.442695
    %v1474 = vpow.pop %v1473
    %v1475 = vmul.f32 %v1470, 1.442695
    %v1476 = vpow.pop %v1475
    %v1477 = vadd.f32 %v1472, 1.0
    %v1478 = vadd.f32 %v1474, 1.0
    %v1479 = vadd.f32 %v1476, 1.0
    %v1480 = vlog2.pop %v1477
    %v1481 = vmul.f32 %v1480, 0.6931472
    %v1482 = vlog2.pop %v1478
    %v1483 = vmul.f32 %v1482, 0.6931472
    %v1484 = vlog2.pop %v1479
    %v1485 = vmul.f32 %v1484, 0.6931472
    %v1486 = vsel %vm1465, %v1391, %v1481
    %v1487 = vsel %vm1466, %v1393, %v1483
    %v1488 = vsel %vm1467, %v1462, %v1485
    %v1489 = vtanh.pop %v1486
    %v1490 = vtanh.pop %v1487
    %v1491 = vtanh.pop %v1488
    %v1492 = vmul.f32 %v1391, %v1489
    %v1493 = vmul.f32 %v1393, %v1490
    %v1494 = vmul.f32 %v1462, %v1491
    %1498 = vrot.lane.b32.xlu0 %v1492, 17
    %v1499 = vpop.permute.xlu0 %1498
    %1500 = vrot.lane.b32.xlu0 %v1493, 17
    %v1501 = vpop.permute.xlu0 %1500
    %1502 = vrot.lane.b32.xlu0 %v1494, 17
    %v1503 = vpop.permute.xlu0 %1502
    %v1504 = vsel %vm902, %v1499, %v1501
    %v1505 = vsel %vm902, %v1501, %v1503
    %v1509 = vsel %vm902, 0.0, %v1499
    %1510 = vrot.lane.b32.xlu0 %v1492, 16
    %v1511 = vpop.permute.xlu0 %1510
    %1512 = vrot.lane.b32.xlu0 %v1493, 16
    %v1513 = vpop.permute.xlu0 %1512
    %1514 = vrot.lane.b32.xlu0 %v1494, 16
    %v1515 = vpop.permute.xlu0 %1514
    %v1516 = vsel %vm913, %v1511, %v1513
    %v1517 = vsel %vm913, %v1513, %v1515
    %v1519 = vsel %vm913, 0.0, %v1511
    %1520 = vrot.lane.b32.xlu0 %v1492, 15
    %v1521 = vpop.permute.xlu0 %1520
    %1522 = vrot.lane.b32.xlu0 %v1493, 15
    %v1523 = vpop.permute.xlu0 %1522
    %1524 = vrot.lane.b32.xlu0 %v1494, 15
    %v1525 = vpop.permute.xlu0 %1524
    %v1526 = vsel %vm924, %v1521, %v1523
    %v1527 = vsel %vm924, %v1523, %v1525
    %v1529 = vsel %vm924, 0.0, %v1521
    %1530 = vrot.lane.b32.xlu0 %v1492, 1
    %v1531 = vpop.permute.xlu0 %1530
    %1532 = vrot.lane.b32.xlu0 %v1493, 1
    %v1533 = vpop.permute.xlu0 %1532
    %1534 = vrot.lane.b32.xlu0 %v1494, 1
    %v1535 = vpop.permute.xlu0 %1534
    %v1536 = vsel %vm959, %v1531, %v1533
    %v1537 = vsel %vm959, %v1533, %v1535
    %v1539 = vsel %vm959, 0.0, %v1531
    %1540 = vrot.lane.b32.xlu0 %v1492, 127
    %v1541 = vpop.permute.xlu0 %1540
    %1542 = vrot.lane.b32.xlu0 %v1493, 127
    %v1543 = vpop.permute.xlu0 %1542
    %1544 = vrot.lane.b32.xlu0 %v1494, 127
    %v1545 = vpop.permute.xlu0 %1544
    %v1546 = vsel %vm970, %v1541, %v1543
    %v1547 = vsel %vm970, %v1543, %v1545
    %v1549 = vsel %vm970, %v1545, 0.0
    %1550 = vrot.lane.b32.xlu0 %v1492, 113
    %v1551 = vpop.permute.xlu0 %1550
    %1552 = vrot.lane.b32.xlu0 %v1493, 113
    %v1553 = vpop.permute.xlu0 %1552
    %1554 = vrot.lane.b32.xlu0 %v1494, 113
    %v1555 = vpop.permute.xlu0 %1554
    %v1556 = vsel %vm1003, %v1551, %v1553
    %v1557 = vsel %vm1003, %v1553, %v1555
    %v1559 = vsel %vm1003, %v1555, 0.0
    %1560 = vrot.lane.b32.xlu0 %v1492, 112
    %v1561 = vpop.permute.xlu0 %1560
    %1562 = vrot.lane.b32.xlu0 %v1493, 112
    %v1563 = vpop.permute.xlu0 %1562
    %1564 = vrot.lane.b32.xlu0 %v1494, 112
    %v1565 = vpop.permute.xlu0 %1564
    %v1566 = vsel %vm1016, %v1561, %v1563
    %v1567 = vsel %vm1016, %v1563, %v1565
    %v1569 = vsel %vm1016, %v1565, 0.0
    %1570 = vrot.lane.b32.xlu0 %v1492, 111
    %v1571 = vpop.permute.xlu0 %1570
    %1572 = vrot.lane.b32.xlu0 %v1493, 111
    %v1573 = vpop.permute.xlu0 %1572
    %1574 = vrot.lane.b32.xlu0 %v1494, 111
    %v1575 = vpop.permute.xlu0 %1574
    %v1576 = vsel %vm1027, %v1571, %v1573
    %v1577 = vsel %vm1027, %v1573, %v1575
    %v1581 = vsel %vm1027, %v1575, 0.0
    %v1583 = vrot.slane %v1519, 6
    %v1584 = vrot.slane %v1516, 6
    %v1585 = vrot.slane %v1517, 6
    %v1590 = vrot.slane %v1529, 4
    %v1591 = vrot.slane %v1526, 4
    %v1592 = vrot.slane %v1527, 4
    %v1597 = vrot.slane %v1539, 2
    %v1598 = vrot.slane %v1536, 2
    %v1599 = vrot.slane %v1537, 2
    %v1604 = vrot.slane %v1546, 6
    %v1605 = vrot.slane %v1547, 6
    %v1606 = vrot.slane %v1549, 6
    %v1611 = vrot.slane %v1556, 4
    %v1612 = vrot.slane %v1557, 4
    %v1613 = vrot.slane %v1559, 4
    %v1618 = vrot.slane %v1566, 2
    %v1619 = vrot.slane %v1567, 2
    %v1620 = vrot.slane %v1569, 2
    %v1624 = vsel %vm1186, %v1509, %v1583
    %v1625 = vsel %vm1186, %v1504, %v1584
    %v1626 = vsel %vm1186, %v1505, %v1585
    %v1627 = vsel %vm1190, %v1624, %v1590
    %v1628 = vsel %vm1190, %v1625, %v1591
    %v1629 = vsel %vm1190, %v1626, %v1592
    %v1630 = vsel %vm1194, %v1627, %v1597
    %v1631 = vsel %vm1194, %v1628, %v1598
    %v1632 = vsel %vm1194, %v1629, %v1599
    %v1633 = vsel %vm1186, %v1492, %v1604
    %v1634 = vsel %vm1186, %v1493, %v1605
    %v1635 = vsel %vm1186, %v1494, %v1606
    %v1636 = vsel %vm1190, %v1633, %v1611
    %v1637 = vsel %vm1190, %v1634, %v1612
    %v1638 = vsel %vm1190, %v1635, %v1613
    %v1639 = vsel %vm1194, %v1636, %v1618
    %v1640 = vsel %vm1194, %v1637, %v1619
    %v1641 = vsel %vm1194, %v1638, %v1620
    %v1642 = vmul.f32 %v1630, %v423
    %v1643 = vmul.f32 %v1631, %v424
    %v1644 = vmul.f32 %v1632, %v425
    %v1645 = vmul.f32 %v1639, %v426
    %v1646 = vmul.f32 %v1640, %v427
    %v1647 = vmul.f32 %v1641, %v428
    %v1648 = vmul.f32 %v1576, %v429
    %v1649 = vmul.f32 %v1577, %v430
    %v1650 = vmul.f32 %v1581, %v431
    %1652 = vset.pattern.permute.xlu0 0
    %1653 = vperm.xlu0 %1652, %v390
    %v1654 = vpop.permute.xlu0 %1653
    %v1657 = vsel %vm891, %v377, 0
    %v1660 = vsel %vm1186, %v1648, 0
    %v1663 = vsel %vm1186, %v1649, 0
    %v1666 = vsel %vm1186, %v1650, 0
    %1668 = vmatprep.subr.mxu0 0.0
    %1669 = vmatpush1.msra.mxu0 0.0
    %1670 = vmatprep.subr.mxu0 0.0
    %1671 = vmatpush1.msra.mxu0 0.0
    %1672 = vmatprep.subr.mxu0 0.0
    %1673 = vmatpush1.msra.mxu0 0.0
    %1674 = vmatprep.subr.mxu0 0.0
    %1675 = vmatpush1.msra.mxu0 0.0
    %1676 = vmatprep.subr.mxu0 0.0
    %1677 = vmatpush1.msra.mxu0 0.0
    %1678 = vmatprep.subr.mxu0 0.0
    %1679 = vmatpush1.msra.mxu0 0.0
    %1680 = vmatprep.subr.mxu0 0.0
    %1681 = vmatpush1.msra.mxu0 0.0
    %1682 = vmatprep.subr.mxu0 0.0
    %1683 = vmatpush1.msra.mxu0 0.0
    %1684 = vmatprep.subr.mxu0 0.0
    %1685 = vmatpush1.msra.mxu0 0.0
    %1686 = vmatprep.subr.mxu0 0.0
    %1687 = vmatpush1.msra.mxu0 0.0
    %1688 = vmatprep.subr.mxu0 0.0
    %1689 = vmatpush1.msra.mxu0 0.0
    %1690 = vmatprep.subr.mxu0 0.0
    %1691 = vmatpush1.msra.mxu0 0.0
    %1692 = vmatprep.subr.mxu0 0.0
    %1693 = vmatpush1.msra.mxu0 0.0
    %1694 = vmatprep.subr.mxu0 %v1663
    %1695 = vmatpush1.msra.mxu0 %v1660
    %1696 = vmatprep.subr.mxu0 %v1646
    %1697 = vmatpush1.msra.mxu0 %v1645
    %1698 = vmatprep.subr.mxu0 %v1643
    %1699 = vmatpush1.msra.mxu0 %v1642
    %1700 = vmatprep.subr.mxu0 0.0
    %1701 = vmatpush2.msra.mxu0 0.0
    %1702 = vmatprep.subr.mxu0 0.0
    %1703 = vmatpush2.msra.mxu0 0.0
    %1704 = vmatprep.subr.mxu0 0.0
    %1705 = vmatpush2.msra.mxu0 0.0
    %1706 = vmatprep.subr.mxu0 0.0
    %1707 = vmatpush2.msra.mxu0 0.0
    %1708 = vmatprep.subr.mxu0 0.0
    %1709 = vmatpush2.msra.mxu0 0.0
    %1710 = vmatprep.subr.mxu0 0.0
    %1711 = vmatpush2.msra.mxu0 0.0
    %1712 = vmatprep.subr.mxu0 0.0
    %1713 = vmatpush2.msra.mxu0 0.0
    %1714 = vmatprep.subr.mxu0 0.0
    %1715 = vmatpush2.msra.mxu0 0.0
    %1716 = vmatprep.subr.mxu0 0.0
    %1717 = vmatpush2.msra.mxu0 0.0
    %1718 = vmatprep.subr.mxu0 0.0
    %1719 = vmatpush2.msra.mxu0 0.0
    %1720 = vmatprep.subr.mxu0 0.0
    %1721 = vmatpush2.msra.mxu0 0.0
    %1722 = vmatprep.subr.mxu0 0.0
    %1723 = vmatpush2.msra.mxu0 0.0
    %1724 = vmatprep.subr.mxu0 0.0
    %1725 = vmatpush2.msra.mxu0 0.0
    %1726 = vmatprep.subr.mxu0 0.0
    %1727 = vmatpush2.msra.mxu0 0.0
    %1728 = vmatprep.subr.mxu0 0.0
    %1729 = vmatpush2.msra.mxu0 0.0
    %1730 = vmatprep.subr.mxu0 0.0
    %1731 = vmatpush2.msra.mxu0 0.0
    %1732 = vmatprep.mubr.f32.mxu0 0.0
    %1733 = vmatmul.mubr.f32.gmra.mxu0 %v1657
    %v1734 = vpop.f32.mrf.mxu0
    %v1735 = vadd.f32 %v1654, %v1734
    %v1736 = vpop.f32.mrf.mxu0
    %v1737 = vadd.f32 %v1654, %v1736
    %1738 = vdwg.mxu0
    %1739 = vmatprep.subr.mxu0 0.0
    %1740 = vmatpush1.msra.mxu0 0.0
    %1741 = vmatprep.subr.mxu0 0.0
    %1742 = vmatpush1.msra.mxu0 0.0
    %1743 = vmatprep.subr.mxu0 0.0
    %1744 = vmatpush1.msra.mxu0 0.0
    %1745 = vmatprep.subr.mxu0 0.0
    %1746 = vmatpush1.msra.mxu0 0.0
    %1747 = vmatprep.subr.mxu0 0.0
    %1748 = vmatpush1.msra.mxu0 0.0
    %1749 = vmatprep.subr.mxu0 0.0
    %1750 = vmatpush1.msra.mxu0 0.0
    %1751 = vmatprep.subr.mxu0 0.0
    %1752 = vmatpush1.msra.mxu0 0.0
    %1753 = vmatprep.subr.mxu0 0.0
    %1754 = vmatpush1.msra.mxu0 0.0
    %1755 = vmatprep.subr.mxu0 0.0
    %1756 = vmatpush1.msra.mxu0 0.0
    %1757 = vmatprep.subr.mxu0 0.0
    %1758 = vmatpush1.msra.mxu0 0.0
    %1759 = vmatprep.subr.mxu0 0.0
    %1760 = vmatpush1.msra.mxu0 0.0
    %1761 = vmatprep.subr.mxu0 0.0
    %1762 = vmatpush1.msra.mxu0 0.0
    %1763 = vmatprep.subr.mxu0 0.0
    %1764 = vmatpush1.msra.mxu0 0.0
    %1765 = vmatprep.subr.mxu0 0.0
    %1766 = vmatpush1.msra.mxu0 %v1666
    %1767 = vmatprep.subr.mxu0 0.0
    %1768 = vmatpush1.msra.mxu0 %v1647
    %1769 = vmatprep.subr.mxu0 0.0
    %1770 = vmatpush1.msra.mxu0 %v1644
    %1771 = vmatprep.subr.mxu0 0.0
    %1772 = vmatpush2.msra.mxu0 0.0
    %1773 = vmatprep.subr.mxu0 0.0
    %1774 = vmatpush2.msra.mxu0 0.0
    %1775 = vmatprep.subr.mxu0 0.0
    %1776 = vmatpush2.msra.mxu0 0.0
    %1777 = vmatprep.subr.mxu0 0.0
    %1778 = vmatpush2.msra.mxu0 0.0
    %1779 = vmatprep.subr.mxu0 0.0
    %1780 = vmatpush2.msra.mxu0 0.0
    %1781 = vmatprep.subr.mxu0 0.0
    %1782 = vmatpush2.msra.mxu0 0.0
    %1783 = vmatprep.subr.mxu0 0.0
    %1784 = vmatpush2.msra.mxu0 0.0
    %1785 = vmatprep.subr.mxu0 0.0
    %1786 = vmatpush2.msra.mxu0 0.0
    %1787 = vmatprep.subr.mxu0 0.0
    %1788 = vmatpush2.msra.mxu0 0.0
    %1789 = vmatprep.subr.mxu0 0.0
    %1790 = vmatpush2.msra.mxu0 0.0
    %1791 = vmatprep.subr.mxu0 0.0
    %1792 = vmatpush2.msra.mxu0 0.0
    %1793 = vmatprep.subr.mxu0 0.0
    %1794 = vmatpush2.msra.mxu0 0.0
    %1795 = vmatprep.subr.mxu0 0.0
    %1796 = vmatpush2.msra.mxu0 0.0
    %1797 = vmatprep.subr.mxu0 0.0
    %1798 = vmatpush2.msra.mxu0 0.0
    %1799 = vmatprep.subr.mxu0 0.0
    %1800 = vmatpush2.msra.mxu0 0.0
    %1801 = vmatprep.subr.mxu0 0.0
    %1802 = vmatpush2.msra.mxu0 0.0
    %1803 = vmatprep.mubr.f32.mxu0 0.0
    %1804 = vmatmul.mubr.f32.gmra.mxu0 %v1657
    %v1805 = vpop.f32.mrf.mxu0
    %v1806 = vadd.f32 %v1654, %v1805
    %v1807 = vpop.f32.mrf.mxu0
    %1808 = vdwg.mxu0
    %vm1809 = vcmp.gt.f32.partialorder %v1735, 20.0
    %vm1810 = vcmp.gt.f32.partialorder %v1737, 20.0
    %vm1811 = vcmp.gt.f32.partialorder %v1806, 20.0
    %v1812 = vmin.f32 %v1735, 20.0
    %v1813 = vmin.f32 %v1737, 20.0
    %v1814 = vmin.f32 %v1806, 20.0
    %v1815 = vmul.f32 %v1812, 1.442695
    %v1816 = vpow.pop %v1815
    %v1817 = vmul.f32 %v1813, 1.442695
    %v1818 = vpow.pop %v1817
    %v1819 = vmul.f32 %v1814, 1.442695
    %v1820 = vpow.pop %v1819
    %v1821 = vadd.f32 %v1816, 1.0
    %v1822 = vadd.f32 %v1818, 1.0
    %v1823 = vadd.f32 %v1820, 1.0
    %v1824 = vlog2.pop %v1821
    %v1825 = vmul.f32 %v1824, 0.6931472
    %v1826 = vlog2.pop %v1822
    %v1827 = vmul.f32 %v1826, 0.6931472
    %v1828 = vlog2.pop %v1823
    %v1829 = vmul.f32 %v1828, 0.6931472
    %v1830 = vsel %vm1809, %v1735, %v1825
    %v1831 = vsel %vm1810, %v1737, %v1827
    %v1832 = vsel %vm1811, %v1806, %v1829
    %v1833 = vtanh.pop %v1830
    %v1834 = vtanh.pop %v1831
    %v1835 = vtanh.pop %v1832
    %v1836 = vmul.f32 %v1735, %v1833
    %v1837 = vmul.f32 %v1737, %v1834
    %v1838 = vmul.f32 %v1806, %v1835
    %1842 = vrot.lane.b32.xlu0 %v1836, 4
    %v1843 = vpop.permute.xlu0 %1842
    %1844 = vrot.lane.b32.xlu0 %v1837, 4
    %v1845 = vpop.permute.xlu0 %1844
    %1846 = vrot.lane.b32.xlu0 %v1838, 4
    %v1847 = vpop.permute.xlu0 %1846
    %vm1848 = vcmask 31744
    %v1849 = vsel %vm1848, %v1843, %v1845
    %v1850 = vsel %vm1848, %v1845, %v1847
    %v1854 = vsel %vm1848, 0.0, %v1843
    %1855 = vrot.lane.b32.xlu0 %v1836, 3
    %v1856 = vpop.permute.xlu0 %1855
    %1857 = vrot.lane.b32.xlu0 %v1837, 3
    %v1858 = vpop.permute.xlu0 %1857
    %1859 = vrot.lane.b32.xlu0 %v1838, 3
    %v1860 = vpop.permute.xlu0 %1859
    %vm1861 = vcmask 23552
    %v1862 = vsel %vm1861, %v1856, %v1858
    %v1863 = vsel %vm1861, %v1858, %v1860
    %v1865 = vsel %vm1861, 0.0, %v1856
    %1866 = vrot.lane.b32.xlu0 %v1836, 2
    %v1867 = vpop.permute.xlu0 %1866
    %1868 = vrot.lane.b32.xlu0 %v1837, 2
    %v1869 = vpop.permute.xlu0 %1868
    %1870 = vrot.lane.b32.xlu0 %v1838, 2
    %v1871 = vpop.permute.xlu0 %1870
    %v1872 = vsel %vm948, %v1867, %v1869
    %v1873 = vsel %vm948, %v1869, %v1871
    %v1875 = vsel %vm948, 0.0, %v1867
    %1876 = vrot.lane.b32.xlu0 %v1836, 1
    %v1877 = vpop.permute.xlu0 %1876
    %1878 = vrot.lane.b32.xlu0 %v1837, 1
    %v1879 = vpop.permute.xlu0 %1878
    %1880 = vrot.lane.b32.xlu0 %v1838, 1
    %v1881 = vpop.permute.xlu0 %1880
    %v1882 = vsel %vm959, %v1877, %v1879
    %v1883 = vsel %vm959, %v1879, %v1881
    %v1885 = vsel %vm959, 0.0, %v1877
    %1886 = vrot.lane.b32.xlu0 %v1836, 127
    %v1887 = vpop.permute.xlu0 %1886
    %1888 = vrot.lane.b32.xlu0 %v1837, 127
    %v1889 = vpop.permute.xlu0 %1888
    %1890 = vrot.lane.b32.xlu0 %v1838, 127
    %v1891 = vpop.permute.xlu0 %1890
    %v1892 = vsel %vm970, %v1887, %v1889
    %v1893 = vsel %vm970, %v1889, %v1891
    %v1895 = vsel %vm970, %v1891, 0.0
    %1896 = vrot.lane.b32.xlu0 %v1836, 126
    %v1897 = vpop.permute.xlu0 %1896
    %1898 = vrot.lane.b32.xlu0 %v1837, 126
    %v1899 = vpop.permute.xlu0 %1898
    %1900 = vrot.lane.b32.xlu0 %v1838, 126
    %v1901 = vpop.permute.xlu0 %1900
    %v1902 = vsel %vm981, %v1897, %v1899
    %v1903 = vsel %vm981, %v1899, %v1901
    %v1905 = vsel %vm981, %v1901, 0.0
    %1906 = vrot.lane.b32.xlu0 %v1836, 125
    %v1907 = vpop.permute.xlu0 %1906
    %1908 = vrot.lane.b32.xlu0 %v1837, 125
    %v1909 = vpop.permute.xlu0 %1908
    %1910 = vrot.lane.b32.xlu0 %v1838, 125
    %v1911 = vpop.permute.xlu0 %1910
    %vm1912 = vcmask 1022976
    %v1913 = vsel %vm1912, %v1907, %v1909
    %v1914 = vsel %vm1912, %v1909, %v1911
    %v1916 = vsel %vm1912, %v1911, 0.0
    %1917 = vrot.lane.b32.xlu0 %v1836, 124
    %v1918 = vpop.permute.xlu0 %1917
    %1919 = vrot.lane.b32.xlu0 %v1837, 124
    %v1920 = vpop.permute.xlu0 %1919
    %1921 = vrot.lane.b32.xlu0 %v1838, 124
    %v1922 = vpop.permute.xlu0 %1921
    %vm1923 = vcmask 1014784
    %v1924 = vsel %vm1923, %v1918, %v1920
    %v1925 = vsel %vm1923, %v1920, %v1922
    %v1929 = vsel %vm1923, %v1922, 0.0
    %v1931 = vrot.slane %v1865, 6
    %v1932 = vrot.slane %v1862, 6
    %v1933 = vrot.slane %v1863, 6
    %v1938 = vrot.slane %v1875, 4
    %v1939 = vrot.slane %v1872, 4
    %v1940 = vrot.slane %v1873, 4
    %v1945 = vrot.slane %v1885, 2
    %v1946 = vrot.slane %v1882, 2
    %v1947 = vrot.slane %v1883, 2
    %v1952 = vrot.slane %v1892, 6
    %v1953 = vrot.slane %v1893, 6
    %v1954 = vrot.slane %v1895, 6
    %v1959 = vrot.slane %v1902, 4
    %v1960 = vrot.slane %v1903, 4
    %v1961 = vrot.slane %v1905, 4
    %v1966 = vrot.slane %v1913, 2
    %v1967 = vrot.slane %v1914, 2
    %v1968 = vrot.slane %v1916, 2
    %v1972 = vsel %vm1186, %v1854, %v1931
    %v1973 = vsel %vm1186, %v1849, %v1932
    %v1974 = vsel %vm1186, %v1850, %v1933
    %v1975 = vsel %vm1190, %v1972, %v1938
    %v1976 = vsel %vm1190, %v1973, %v1939
    %v1977 = vsel %vm1190, %v1974, %v1940
    %v1978 = vsel %vm1194, %v1975, %v1945
    %v1979 = vsel %vm1194, %v1976, %v1946
    %v1980 = vsel %vm1194, %v1977, %v1947
    %v1981 = vsel %vm1186, %v1836, %v1952
    %v1982 = vsel %vm1186, %v1837, %v1953
    %v1983 = vsel %vm1186, %v1838, %v1954
    %v1984 = vsel %vm1190, %v1981, %v1959
    %v1985 = vsel %vm1190, %v1982, %v1960
    %v1986 = vsel %vm1190, %v1983, %v1961
    %v1987 = vsel %vm1194, %v1984, %v1966
    %v1988 = vsel %vm1194, %v1985, %v1967
    %v1989 = vsel %vm1194, %v1986, %v1968
    %v1990 = vmul.f32 %v1978, %v432
    %v1991 = vmul.f32 %v1979, %v433
    %v1992 = vmul.f32 %v1980, %v434
    %v1993 = vmul.f32 %v1987, %v435
    %v1994 = vmul.f32 %v1988, %v436
    %v1995 = vmul.f32 %v1989, %v437
    %v1996 = vmul.f32 %v1924, %v438
    %v1997 = vmul.f32 %v1925, %v439
    %v1998 = vmul.f32 %v1929, %v440
    %2000 = vset.pattern.permute.xlu0 0
    %2001 = vperm.xlu0 %2000, %v391
    %v2002 = vpop.permute.xlu0 %2001
    %v2005 = vsel %vm891, %v378, 0
    %v2008 = vsel %vm1186, %v1996, 0
    %v2011 = vsel %vm1186, %v1997, 0
    %v2014 = vsel %vm1186, %v1998, 0
    %2016 = vmatprep.subr.mxu0 0.0
    %2017 = vmatpush1.msra.mxu0 0.0
    %2018 = vmatprep.subr.mxu0 0.0
    %2019 = vmatpush1.msra.mxu0 0.0
    %2020 = vmatprep.subr.mxu0 0.0
    %2021 = vmatpush1.msra.mxu0 0.0
    %2022 = vmatprep.subr.mxu0 0.0
    %2023 = vmatpush1.msra.mxu0 0.0
    %2024 = vmatprep.subr.mxu0 0.0
    %2025 = vmatpush1.msra.mxu0 0.0
    %2026 = vmatprep.subr.mxu0 0.0
    %2027 = vmatpush1.msra.mxu0 0.0
    %2028 = vmatprep.subr.mxu0 0.0
    %2029 = vmatpush1.msra.mxu0 0.0
    %2030 = vmatprep.subr.mxu0 0.0
    %2031 = vmatpush1.msra.mxu0 0.0
    %2032 = vmatprep.subr.mxu0 0.0
    %2033 = vmatpush1.msra.mxu0 0.0
    %2034 = vmatprep.subr.mxu0 0.0
    %2035 = vmatpush1.msra.mxu0 0.0
    %2036 = vmatprep.subr.mxu0 0.0
    %2037 = vmatpush1.msra.mxu0 0.0
    %2038 = vmatprep.subr.mxu0 0.0
    %2039 = vmatpush1.msra.mxu0 0.0
    %2040 = vmatprep.subr.mxu0 0.0
    %2041 = vmatpush1.msra.mxu0 0.0
    %2042 = vmatprep.subr.mxu0 %v2011
    %2043 = vmatpush1.msra.mxu0 %v2008
    %2044 = vmatprep.subr.mxu0 %v1994
    %2045 = vmatpush1.msra.mxu0 %v1993
    %2046 = vmatprep.subr.mxu0 %v1991
    %2047 = vmatpush1.msra.mxu0 %v1990
    %2048 = vmatprep.subr.mxu0 0.0
    %2049 = vmatpush2.msra.mxu0 0.0
    %2050 = vmatprep.subr.mxu0 0.0
    %2051 = vmatpush2.msra.mxu0 0.0
    %2052 = vmatprep.subr.mxu0 0.0
    %2053 = vmatpush2.msra.mxu0 0.0
    %2054 = vmatprep.subr.mxu0 0.0
    %2055 = vmatpush2.msra.mxu0 0.0
    %2056 = vmatprep.subr.mxu0 0.0
    %2057 = vmatpush2.msra.mxu0 0.0
    %2058 = vmatprep.subr.mxu0 0.0
    %2059 = vmatpush2.msra.mxu0 0.0
    %2060 = vmatprep.subr.mxu0 0.0
    %2061 = vmatpush2.msra.mxu0 0.0
    %2062 = vmatprep.subr.mxu0 0.0
    %2063 = vmatpush2.msra.mxu0 0.0
    %2064 = vmatprep.subr.mxu0 0.0
    %2065 = vmatpush2.msra.mxu0 0.0
    %2066 = vmatprep.subr.mxu0 0.0
    %2067 = vmatpush2.msra.mxu0 0.0
    %2068 = vmatprep.subr.mxu0 0.0
    %2069 = vmatpush2.msra.mxu0 0.0
    %2070 = vmatprep.subr.mxu0 0.0
    %2071 = vmatpush2.msra.mxu0 0.0
    %2072 = vmatprep.subr.mxu0 0.0
    %2073 = vmatpush2.msra.mxu0 0.0
    %2074 = vmatprep.subr.mxu0 0.0
    %2075 = vmatpush2.msra.mxu0 0.0
    %2076 = vmatprep.subr.mxu0 0.0
    %2077 = vmatpush2.msra.mxu0 0.0
    %2078 = vmatprep.subr.mxu0 0.0
    %2079 = vmatpush2.msra.mxu0 0.0
    %2080 = vmatprep.mubr.f32.mxu0 0.0
    %2081 = vmatmul.mubr.f32.gmra.mxu0 %v2005
    %v2082 = vpop.f32.mrf.mxu0
    %v2083 = vadd.f32 %v2002, %v2082
    %v2084 = vpop.f32.mrf.mxu0
    %v2085 = vadd.f32 %v2002, %v2084
    %2086 = vdwg.mxu0
    %2087 = vmatprep.subr.mxu0 0.0
    %2088 = vmatpush1.msra.mxu0 0.0
    %2089 = vmatprep.subr.mxu0 0.0
    %2090 = vmatpush1.msra.mxu0 0.0
    %2091 = vmatprep.subr.mxu0 0.0
    %2092 = vmatpush1.msra.mxu0 0.0
    %2093 = vmatprep.subr.mxu0 0.0
    %2094 = vmatpush1.msra.mxu0 0.0
    %2095 = vmatprep.subr.mxu0 0.0
    %2096 = vmatpush1.msra.mxu0 0.0
    %2097 = vmatprep.subr.mxu0 0.0
    %2098 = vmatpush1.msra.mxu0 0.0
    %2099 = vmatprep.subr.mxu0 0.0
    %2100 = vmatpush1.msra.mxu0 0.0
    %2101 = vmatprep.subr.mxu0 0.0
    %2102 = vmatpush1.msra.mxu0 0.0
    %2103 = vmatprep.subr.mxu0 0.0
    %2104 = vmatpush1.msra.mxu0 0.0
    %2105 = vmatprep.subr.mxu0 0.0
    %2106 = vmatpush1.msra.mxu0 0.0
    %2107 = vmatprep.subr.mxu0 0.0
    %2108 = vmatpush1.msra.mxu0 0.0
    %2109 = vmatprep.subr.mxu0 0.0
    %2110 = vmatpush1.msra.mxu0 0.0
    %2111 = vmatprep.subr.mxu0 0.0
    %2112 = vmatpush1.msra.mxu0 0.0
    %2113 = vmatprep.subr.mxu0 0.0
    %2114 = vmatpush1.msra.mxu0 %v2014
    %2115 = vmatprep.subr.mxu0 0.0
    %2116 = vmatpush1.msra.mxu0 %v1995
    %2117 = vmatprep.subr.mxu0 0.0
    %2118 = vmatpush1.msra.mxu0 %v1992
    %2119 = vmatprep.subr.mxu0 0.0
    %2120 = vmatpush2.msra.mxu0 0.0
    %2121 = vmatprep.subr.mxu0 0.0
    %2122 = vmatpush2.msra.mxu0 0.0
    %2123 = vmatprep.subr.mxu0 0.0
    %2124 = vmatpush2.msra.mxu0 0.0
    %2125 = vmatprep.subr.mxu0 0.0
    %2126 = vmatpush2.msra.mxu0 0.0
    %2127 = vmatprep.subr.mxu0 0.0
    %2128 = vmatpush2.msra.mxu0 0.0
    %2129 = vmatprep.subr.mxu0 0.0
    %2130 = vmatpush2.msra.mxu0 0.0
    %2131 = vmatprep.subr.mxu0 0.0
    %2132 = vmatpush2.msra.mxu0 0.0
    %2133 = vmatprep.subr.mxu0 0.0
    %2134 = vmatpush2.msra.mxu0 0.0
    %2135 = vmatprep.subr.mxu0 0.0
    %2136 = vmatpush2.msra.mxu0 0.0
    %2137 = vmatprep.subr.mxu0 0.0
    %2138 = vmatpush2.msra.mxu0 0.0
    %2139 = vmatprep.subr.mxu0 0.0
    %2140 = vmatpush2.msra.mxu0 0.0
    %2141 = vmatprep.subr.mxu0 0.0
    %2142 = vmatpush2.msra.mxu0 0.0
    %2143 = vmatprep.subr.mxu0 0.0
    %2144 = vmatpush2.msra.mxu0 0.0
    %2145 = vmatprep.subr.mxu0 0.0
    %2146 = vmatpush2.msra.mxu0 0.0
    %2147 = vmatprep.subr.mxu0 0.0
    %2148 = vmatpush2.msra.mxu0 0.0
    %2149 = vmatprep.subr.mxu0 0.0
    %2150 = vmatpush2.msra.mxu0 0.0
    %2151 = vmatprep.mubr.f32.mxu0 0.0
    %2152 = vmatmul.mubr.f32.gmra.mxu0 %v2005
    %v2153 = vpop.f32.mrf.mxu0
    %v2154 = vadd.f32 %v2002, %v2153
    %v2155 = vpop.f32.mrf.mxu0
    %2156 = vdwg.mxu0
    %vm2157 = vcmp.gt.f32.partialorder %v2083, 20.0
    %vm2158 = vcmp.gt.f32.partialorder %v2085, 20.0
    %vm2159 = vcmp.gt.f32.partialorder %v2154, 20.0
    %v2160 = vmin.f32 %v2083, 20.0
    %v2161 = vmin.f32 %v2085, 20.0
    %v2162 = vmin.f32 %v2154, 20.0
    %v2163 = vmul.f32 %v2160, 1.442695
    %v2164 = vpow.pop %v2163
    %v2165 = vmul.f32 %v2161, 1.442695
    %v2166 = vpow.pop %v2165
    %v2167 = vmul.f32 %v2162, 1.442695
    %v2168 = vpow.pop %v2167
    %v2169 = vadd.f32 %v2164, 1.0
    %v2170 = vadd.f32 %v2166, 1.0
    %v2171 = vadd.f32 %v2168, 1.0
    %v2172 = vlog2.pop %v2169
    %v2173 = vmul.f32 %v2172, 0.6931472
    %v2174 = vlog2.pop %v2170
    %v2175 = vmul.f32 %v2174, 0.6931472
    %v2176 = vlog2.pop %v2171
    %v2177 = vmul.f32 %v2176, 0.6931472
    %v2178 = vsel %vm2157, %v2083, %v2173
    %v2179 = vsel %vm2158, %v2085, %v2175
    %v2180 = vsel %vm2159, %v2154, %v2177
    %v2181 = vtanh.pop %v2178
    %v2182 = vtanh.pop %v2179
    %v2183 = vtanh.pop %v2180
    %v2184 = vmul.f32 %v2083, %v2181
    %v2185 = vmul.f32 %v2085, %v2182
    %v2186 = vmul.f32 %v2154, %v2183
    %2190 = vrot.lane.b32.xlu0 %v2184, 64
    %v2191 = vpop.permute.xlu0 %2190
    %2192 = vrot.lane.b32.xlu0 %v2185, 64
    %v2193 = vpop.permute.xlu0 %2192
    %2194 = vrot.lane.b32.xlu0 %v2186, 64
    %v2195 = vpop.permute.xlu0 %2194
    %vm2196 = vcmask 523264
    %v2197 = vsel %vm2196, %v2191, %v2193
    %v2198 = vsel %vm2196, %v2193, %v2195
    %v2202 = vsel %vm2196, 0.0, %v2191
    %2203 = vrot.lane.b32.xlu0 %v2184, 48
    %v2204 = vpop.permute.xlu0 %2203
    %2205 = vrot.lane.b32.xlu0 %v2185, 48
    %v2206 = vpop.permute.xlu0 %2205
    %2207 = vrot.lane.b32.xlu0 %v2186, 48
    %v2208 = vpop.permute.xlu0 %2207
    %vm2209 = vcmask 392192
    %v2210 = vsel %vm2209, %v2204, %v2206
    %v2211 = vsel %vm2209, %v2206, %v2208
    %v2213 = vsel %vm2209, 0.0, %v2204
    %2214 = vrot.lane.b32.xlu0 %v2184, 32
    %v2215 = vpop.permute.xlu0 %2214
    %2216 = vrot.lane.b32.xlu0 %v2185, 32
    %v2217 = vpop.permute.xlu0 %2216
    %2218 = vrot.lane.b32.xlu0 %v2186, 32
    %v2219 = vpop.permute.xlu0 %2218
    %v2220 = vsel %vm534, %v2215, %v2217
    %v2221 = vsel %vm534, %v2217, %v2219
    %v2223 = vsel %vm534, 0.0, %v2215
    %2224 = vrot.lane.b32.xlu0 %v2184, 16
    %v2225 = vpop.permute.xlu0 %2224
    %2226 = vrot.lane.b32.xlu0 %v2185, 16
    %v2227 = vpop.permute.xlu0 %2226
    %2228 = vrot.lane.b32.xlu0 %v2186, 16
    %v2229 = vpop.permute.xlu0 %2228
    %v2230 = vsel %vm913, %v2225, %v2227
    %v2231 = vsel %vm913, %v2227, %v2229
    %v2233 = vsel %vm913, 0.0, %v2225
    %2234 = vrot.lane.b32.xlu0 %v2184, 112
    %v2235 = vpop.permute.xlu0 %2234
    %2236 = vrot.lane.b32.xlu0 %v2185, 112
    %v2237 = vpop.permute.xlu0 %2236
    %2238 = vrot.lane.b32.xlu0 %v2186, 112
    %v2239 = vpop.permute.xlu0 %2238
    %v2240 = vsel %vm1016, %v2235, %v2237
    %v2241 = vsel %vm1016, %v2237, %v2239
    %v2243 = vsel %vm1016, %v2239, 0.0
    %2244 = vrot.lane.b32.xlu0 %v2184, 96
    %v2245 = vpop.permute.xlu0 %2244
    %2246 = vrot.lane.b32.xlu0 %v2185, 96
    %v2247 = vpop.permute.xlu0 %2246
    %2248 = vrot.lane.b32.xlu0 %v2186, 96
    %v2249 = vpop.permute.xlu0 %2248
    %v2250 = vsel %vm1073, %v2245, %v2247
    %v2251 = vsel %vm1073, %v2247, %v2249
    %v2253 = vsel %vm1073, %v2249, 0.0
    %2254 = vrot.lane.b32.xlu0 %v2184, 80
    %v2255 = vpop.permute.xlu0 %2254
    %2256 = vrot.lane.b32.xlu0 %v2185, 80
    %v2257 = vpop.permute.xlu0 %2256
    %2258 = vrot.lane.b32.xlu0 %v2186, 80
    %v2259 = vpop.permute.xlu0 %2258
    %vm2260 = vcmask 654336
    %v2261 = vsel %vm2260, %v2255, %v2257
    %v2262 = vsel %vm2260, %v2257, %v2259
    %v2264 = vsel %vm2260, %v2259, 0.0
    %v2266 = vsel %vm2196, %v2195, 0.0
    %v2268 = vrot.slane %v2213, 1
    %v2269 = vrot.slane %v2210, 1
    %v2270 = vrot.slane %v2211, 1
    %v2275 = vrot.slane %v2223, 2
    %v2276 = vrot.slane %v2220, 2
    %v2277 = vrot.slane %v2221, 2
    %v2282 = vrot.slane %v2233, 3
    %v2283 = vrot.slane %v2230, 3
    %v2284 = vrot.slane %v2231, 3
    %v2288 = vrot.slane %v2184, 4
    %v2289 = vrot.slane %v2185, 4
    %v2290 = vrot.slane %v2186, 4
    %v2295 = vrot.slane %v2240, 5
    %v2296 = vrot.slane %v2241, 5
    %v2297 = vrot.slane %v2243, 5
    %v2302 = vrot.slane %v2250, 6
    %v2303 = vrot.slane %v2251, 6
    %v2304 = vrot.slane %v2253, 6
    %v2309 = vrot.slane %v2261, 7
    %v2310 = vrot.slane %v2262, 7
    %v2311 = vrot.slane %v2264, 7
    %vm2315 = vcmask 1046528
    %v2316 = vsel %vm2315, %v2202, %v2268
    %v2317 = vsel %vm2315, %v2197, %v2269
    %v2318 = vsel %vm2315, %v2198, %v2270
    %v2319 = vsel %vm1194, %v2268, %v2275
    %v2320 = vsel %vm1194, %v2269, %v2276
    %v2321 = vsel %vm1194, %v2270, %v2277
    %vm2322 = vcmask 1044480
    %v2323 = vsel %vm2322, %v2275, %v2282
    %v2324 = vsel %vm2322, %v2276, %v2283
    %v2325 = vsel %vm2322, %v2277, %v2284
    %v2326 = vsel %vm1190, %v2282, %v2288
    %v2327 = vsel %vm1190, %v2283, %v2289
    %v2328 = vsel %vm1190, %v2284, %v2290
    %vm2329 = vcmask 1042432
    %v2330 = vsel %vm2329, %v2288, %v2295
    %v2331 = vsel %vm2329, %v2289, %v2296
    %v2332 = vsel %vm2329, %v2290, %v2297
    %v2333 = vsel %vm1186, %v2295, %v2302
    %v2334 = vsel %vm1186, %v2296, %v2303
    %v2335 = vsel %vm1186, %v2297, %v2304
    %v2336 = vsel %vm820, %v2302, %v2309
    %v2337 = vsel %vm820, %v2303, %v2310
    %v2338 = vsel %vm820, %v2304, %v2311
    %v2339 = vmul.f32 %v2316, %v441
    %v2340 = vmul.f32 %v2317, %v442
    %v2341 = vmul.f32 %v2318, %v443
    %v2342 = vmul.f32 %v2319, %v444
    %v2343 = vmul.f32 %v2320, %v445
    %v2344 = vmul.f32 %v2321, %v446
    %v2345 = vmul.f32 %v2323, %v447
    %v2346 = vmul.f32 %v2324, %v448
    %v2347 = vmul.f32 %v2325, %v449
    %v2348 = vmul.f32 %v2326, %v450
    %v2349 = vmul.f32 %v2327, %v451
    %v2350 = vmul.f32 %v2328, %v452
    %v2351 = vmul.f32 %v2330, %v453
    %v2352 = vmul.f32 %v2331, %v454
    %v2353 = vmul.f32 %v2332, %v455
    %v2354 = vmul.f32 %v2333, %v456
    %v2355 = vmul.f32 %v2334, %v457
    %v2356 = vmul.f32 %v2335, %v458
    %v2357 = vmul.f32 %v2336, %v459
    %v2358 = vmul.f32 %v2337, %v460
    %v2359 = vmul.f32 %v2338, %v461
    %v2360 = vmul.f32 %v2197, %v462
    %v2361 = vmul.f32 %v2198, %v463
    %v2362 = vmul.f32 %v2266, %v464
    %2364 = vset.pattern.permute.xlu0 0
    %2365 = vperm.xlu0 %2364, %v392
    %v2366 = vpop.permute.xlu0 %2365
    %vm2368 = vcmask 515072
    %v2370 = vsel %vm2368, %v379, 0
    %v2373 = vsel %vm2315, %v2360, 0
    %v2376 = vsel %vm2315, %v2361, 0
    %v2379 = vsel %vm2315, %v2362, 0
    %2381 = vmatprep.subr.mxu0 0.0
    %2382 = vmatpush1.msra.mxu0 0.0
    %2383 = vmatprep.subr.mxu0 0.0
    %2384 = vmatpush1.msra.mxu0 0.0
    %2385 = vmatprep.subr.mxu0 0.0
    %2386 = vmatpush1.msra.mxu0 0.0
    %2387 = vmatprep.subr.mxu0 0.0
    %2388 = vmatpush1.msra.mxu0 0.0
    %2389 = vmatprep.subr.mxu0 0.0
    %2390 = vmatpush1.msra.mxu0 0.0
    %2391 = vmatprep.subr.mxu0 0.0
    %2392 = vmatpush1.msra.mxu0 0.0
    %2393 = vmatprep.subr.mxu0 0.0
    %2394 = vmatpush1.msra.mxu0 0.0
    %2395 = vmatprep.subr.mxu0 0.0
    %2396 = vmatpush1.msra.mxu0 0.0
    %2397 = vmatprep.subr.mxu0 %v2376
    %2398 = vmatpush1.msra.mxu0 %v2373
    %2399 = vmatprep.subr.mxu0 %v2358
    %2400 = vmatpush1.msra.mxu0 %v2357
    %2401 = vmatprep.subr.mxu0 %v2355
    %2402 = vmatpush1.msra.mxu0 %v2354
    %2403 = vmatprep.subr.mxu0 %v2352
    %2404 = vmatpush1.msra.mxu0 %v2351
    %2405 = vmatprep.subr.mxu0 %v2349
    %2406 = vmatpush1.msra.mxu0 %v2348
    %2407 = vmatprep.subr.mxu0 %v2346
    %2408 = vmatpush1.msra.mxu0 %v2345
    %2409 = vmatprep.subr.mxu0 %v2343
    %2410 = vmatpush1.msra.mxu0 %v2342
    %2411 = vmatprep.subr.mxu0 %v2340
    %2412 = vmatpush1.msra.mxu0 %v2339
    %2413 = vmatprep.subr.mxu0 0.0
    %2414 = vmatpush2.msra.mxu0 0.0
    %2415 = vmatprep.subr.mxu0 0.0
    %2416 = vmatpush2.msra.mxu0 0.0
    %2417 = vmatprep.subr.mxu0 0.0
    %2418 = vmatpush2.msra.mxu0 0.0
    %2419 = vmatprep.subr.mxu0 0.0
    %2420 = vmatpush2.msra.mxu0 0.0
    %2421 = vmatprep.subr.mxu0 0.0
    %2422 = vmatpush2.msra.mxu0 0.0
    %2423 = vmatprep.subr.mxu0 0.0
    %2424 = vmatpush2.msra.mxu0 0.0
    %2425 = vmatprep.subr.mxu0 0.0
    %2426 = vmatpush2.msra.mxu0 0.0
    %2427 = vmatprep.subr.mxu0 0.0
    %2428 = vmatpush2.msra.mxu0 0.0
    %2429 = vmatprep.subr.mxu0 0.0
    %2430 = vmatpush2.msra.mxu0 0.0
    %2431 = vmatprep.subr.mxu0 0.0
    %2432 = vmatpush2.msra.mxu0 0.0
    %2433 = vmatprep.subr.mxu0 0.0
    %2434 = vmatpush2.msra.mxu0 0.0
    %2435 = vmatprep.subr.mxu0 0.0
    %2436 = vmatpush2.msra.mxu0 0.0
    %2437 = vmatprep.subr.mxu0 0.0
    %2438 = vmatpush2.msra.mxu0 0.0
    %2439 = vmatprep.subr.mxu0 0.0
    %2440 = vmatpush2.msra.mxu0 0.0
    %2441 = vmatprep.subr.mxu0 0.0
    %2442 = vmatpush2.msra.mxu0 0.0
    %2443 = vmatprep.subr.mxu0 0.0
    %2444 = vmatpush2.msra.mxu0 0.0
    %2445 = vmatprep.mubr.f32.mxu0 0.0
    %2446 = vmatmul.mubr.f32.gmra.mxu0 %v2370
    %v2447 = vpop.f32.mrf.mxu0
    %v2448 = vadd.f32 %v2366, %v2447
    %v2449 = vpop.f32.mrf.mxu0
    %v2450 = vadd.f32 %v2366, %v2449
    %2451 = vdwg.mxu0
    %2452 = vmatprep.subr.mxu0 0.0
    %2453 = vmatpush1.msra.mxu0 0.0
    %2454 = vmatprep.subr.mxu0 0.0
    %2455 = vmatpush1.msra.mxu0 0.0
    %2456 = vmatprep.subr.mxu0 0.0
    %2457 = vmatpush1.msra.mxu0 0.0
    %2458 = vmatprep.subr.mxu0 0.0
    %2459 = vmatpush1.msra.mxu0 0.0
    %2460 = vmatprep.subr.mxu0 0.0
    %2461 = vmatpush1.msra.mxu0 0.0
    %2462 = vmatprep.subr.mxu0 0.0
    %2463 = vmatpush1.msra.mxu0 0.0
    %2464 = vmatprep.subr.mxu0 0.0
    %2465 = vmatpush1.msra.mxu0 0.0
    %2466 = vmatprep.subr.mxu0 0.0
    %2467 = vmatpush1.msra.mxu0 0.0
    %2468 = vmatprep.subr.mxu0 0.0
    %2469 = vmatpush1.msra.mxu0 %v2379
    %2470 = vmatprep.subr.mxu0 0.0
    %2471 = vmatpush1.msra.mxu0 %v2359
    %2472 = vmatprep.subr.mxu0 0.0
    %2473 = vmatpush1.msra.mxu0 %v2356
    %2474 = vmatprep.subr.mxu0 0.0
    %2475 = vmatpush1.msra.mxu0 %v2353
    %2476 = vmatprep.subr.mxu0 0.0
    %2477 = vmatpush1.msra.mxu0 %v2350
    %2478 = vmatprep.subr.mxu0 0.0
    %2479 = vmatpush1.msra.mxu0 %v2347
    %2480 = vmatprep.subr.mxu0 0.0
    %2481 = vmatpush1.msra.mxu0 %v2344
    %2482 = vmatprep.subr.mxu0 0.0
    %2483 = vmatpush1.msra.mxu0 %v2341
    %2484 = vmatprep.subr.mxu0 0.0
    %2485 = vmatpush2.msra.mxu0 0.0
    %2486 = vmatprep.subr.mxu0 0.0
    %2487 = vmatpush2.msra.mxu0 0.0
    %2488 = vmatprep.subr.mxu0 0.0
    %2489 = vmatpush2.msra.mxu0 0.0
    %2490 = vmatprep.subr.mxu0 0.0
    %2491 = vmatpush2.msra.mxu0 0.0
    %2492 = vmatprep.subr.mxu0 0.0
    %2493 = vmatpush2.msra.mxu0 0.0
    %2494 = vmatprep.subr.mxu0 0.0
    %2495 = vmatpush2.msra.mxu0 0.0
    %2496 = vmatprep.subr.mxu0 0.0
    %2497 = vmatpush2.msra.mxu0 0.0
    %2498 = vmatprep.subr.mxu0 0.0
    %2499 = vmatpush2.msra.mxu0 0.0
    %2500 = vmatprep.subr.mxu0 0.0
    %2501 = vmatpush2.msra.mxu0 0.0
    %2502 = vmatprep.subr.mxu0 0.0
    %2503 = vmatpush2.msra.mxu0 0.0
    %2504 = vmatprep.subr.mxu0 0.0
    %2505 = vmatpush2.msra.mxu0 0.0
    %2506 = vmatprep.subr.mxu0 0.0
    %2507 = vmatpush2.msra.mxu0 0.0
    %2508 = vmatprep.subr.mxu0 0.0
    %2509 = vmatpush2.msra.mxu0 0.0
    %2510 = vmatprep.subr.mxu0 0.0
    %2511 = vmatpush2.msra.mxu0 0.0
    %2512 = vmatprep.subr.mxu0 0.0
    %2513 = vmatpush2.msra.mxu0 0.0
    %2514 = vmatprep.subr.mxu0 0.0
    %2515 = vmatpush2.msra.mxu0 0.0
    %2516 = vmatprep.mubr.f32.mxu0 0.0
    %2517 = vmatmul.mubr.f32.gmra.mxu0 %v2370
    %v2518 = vpop.f32.mrf.mxu0
    %v2519 = vadd.f32 %v2366, %v2518
    %v2520 = vpop.f32.mrf.mxu0
    %2521 = vdwg.mxu0
    %vm2522 = vcmp.gt.f32.partialorder %v2448, 20.0
    %vm2523 = vcmp.gt.f32.partialorder %v2450, 20.0
    %vm2524 = vcmp.gt.f32.partialorder %v2519, 20.0
    %v2525 = vmin.f32 %v2448, 20.0
    %v2526 = vmin.f32 %v2450, 20.0
    %v2527 = vmin.f32 %v2519, 20.0
    %v2528 = vmul.f32 %v2525, 1.442695
    %v2529 = vpow.pop %v2528
    %v2530 = vmul.f32 %v2526, 1.442695
    %v2531 = vpow.pop %v2530
    %v2532 = vmul.f32 %v2527, 1.442695
    %v2533 = vpow.pop %v2532
    %v2534 = vadd.f32 %v2529, 1.0
    %v2535 = vadd.f32 %v2531, 1.0
    %v2536 = vadd.f32 %v2533, 1.0
    %v2537 = vlog2.pop %v2534
    %v2538 = vmul.f32 %v2537, 0.6931472
    %v2539 = vlog2.pop %v2535
    %v2540 = vmul.f32 %v2539, 0.6931472
    %v2541 = vlog2.pop %v2536
    %v2542 = vmul.f32 %v2541, 0.6931472
    %v2543 = vsel %vm2522, %v2448, %v2538
    %v2544 = vsel %vm2523, %v2450, %v2540
    %v2545 = vsel %vm2524, %v2519, %v2542
    %v2546 = vtanh.pop %v2543
    %v2547 = vtanh.pop %v2544
    %v2548 = vtanh.pop %v2545
    %v2549 = vmul.f32 %v2448, %v2546
    %v2550 = vmul.f32 %v2450, %v2547
    %v2551 = vmul.f32 %v2519, %v2548
    %2552 = vrot.lane.b32.xlu0 %v1492, 2
    %v2553 = vpop.permute.xlu0 %2552
    %2554 = vrot.lane.b32.xlu0 %v1493, 2
    %v2555 = vpop.permute.xlu0 %2554
    %2556 = vrot.lane.b32.xlu0 %v1494, 2
    %v2557 = vpop.permute.xlu0 %2556
    %v2558 = vsel %vm948, %v2553, %v2555
    %v2559 = vsel %vm948, %v2555, %v2557
    %v2563 = vsel %vm948, 0.0, %v2553
    %2564 = vrot.lane.b32.xlu0 %v1492, 126
    %v2565 = vpop.permute.xlu0 %2564
    %2566 = vrot.lane.b32.xlu0 %v1493, 126
    %v2567 = vpop.permute.xlu0 %2566
    %2568 = vrot.lane.b32.xlu0 %v1494, 126
    %v2569 = vpop.permute.xlu0 %2568
    %v2570 = vsel %vm981, %v2565, %v2567
    %v2571 = vsel %vm981, %v2567, %v2569
    %v2575 = vsel %vm981, %v2569, 0.0
    %v2576 = vrot.slane %v1539, 6
    %v2577 = vrot.slane %v1536, 6
    %v2578 = vrot.slane %v1537, 6
    %v2582 = vrot.slane %v1492, 4
    %v2583 = vrot.slane %v1493, 4
    %v2584 = vrot.slane %v1494, 4
    %v2588 = vrot.slane %v1546, 2
    %v2589 = vrot.slane %v1547, 2
    %v2590 = vrot.slane %v1549, 2
    %v2594 = vsel %vm1186, %v2563, %v2576
    %v2595 = vsel %vm1186, %v2558, %v2577
    %v2596 = vsel %vm1186, %v2559, %v2578
    %v2597 = vsel %vm1190, %v2594, %v2582
    %v2598 = vsel %vm1190, %v2595, %v2583
    %v2599 = vsel %vm1190, %v2596, %v2584
    %v2600 = vsel %vm1194, %v2597, %v2588
    %v2601 = vsel %vm1194, %v2598, %v2589
    %v2602 = vsel %vm1194, %v2599, %v2590
    %v2603 = vmul.f32 %v2600, %v465
    %v2604 = vmul.f32 %v2601, %v466
    %v2605 = vmul.f32 %v2602, %v467
    %v2606 = vmul.f32 %v2570, %v468
    %v2607 = vmul.f32 %v2571, %v469
    %v2608 = vmul.f32 %v2575, %v470
    %2610 = vset.pattern.permute.xlu0 0
    %2611 = vperm.xlu0 %2610, %v393
    %v2612 = vpop.permute.xlu0 %2611
    %vm2614 = vcmask 80896
    %v2616 = vsel %vm2614, %v380, 0
    %v2619 = vsel %vm1186, %v2606, 0
    %v2622 = vsel %vm1186, %v2607, 0
    %v2625 = vsel %vm1186, %v2608, 0
    %2627 = vmatprep.subr.mxu0 0.0
    %2628 = vmatpush1.msra.mxu0 0.0
    %2629 = vmatprep.subr.mxu0 0.0
    %2630 = vmatpush1.msra.mxu0 0.0
    %2631 = vmatprep.subr.mxu0 0.0
    %2632 = vmatpush1.msra.mxu0 0.0
    %2633 = vmatprep.subr.mxu0 0.0
    %2634 = vmatpush1.msra.mxu0 0.0
    %2635 = vmatprep.subr.mxu0 0.0
    %2636 = vmatpush1.msra.mxu0 0.0
    %2637 = vmatprep.subr.mxu0 0.0
    %2638 = vmatpush1.msra.mxu0 0.0
    %2639 = vmatprep.subr.mxu0 0.0
    %2640 = vmatpush1.msra.mxu0 0.0
    %2641 = vmatprep.subr.mxu0 0.0
    %2642 = vmatpush1.msra.mxu0 0.0
    %2643 = vmatprep.subr.mxu0 0.0
    %2644 = vmatpush1.msra.mxu0 0.0
    %2645 = vmatprep.subr.mxu0 0.0
    %2646 = vmatpush1.msra.mxu0 0.0
    %2647 = vmatprep.subr.mxu0 0.0
    %2648 = vmatpush1.msra.mxu0 0.0
    %2649 = vmatprep.subr.mxu0 0.0
    %2650 = vmatpush1.msra.mxu0 0.0
    %2651 = vmatprep.subr.mxu0 0.0
    %2652 = vmatpush1.msra.mxu0 0.0
    %2653 = vmatprep.subr.mxu0 0.0
    %2654 = vmatpush1.msra.mxu0 0.0
    %2655 = vmatprep.subr.mxu0 %v2622
    %2656 = vmatpush1.msra.mxu0 %v2619
    %2657 = vmatprep.subr.mxu0 %v2604
    %2658 = vmatpush1.msra.mxu0 %v2603
    %2659 = vmatprep.subr.mxu0 0.0
    %2660 = vmatpush2.msra.mxu0 0.0
    %2661 = vmatprep.subr.mxu0 0.0
    %2662 = vmatpush2.msra.mxu0 0.0
    %2663 = vmatprep.subr.mxu0 0.0
    %2664 = vmatpush2.msra.mxu0 0.0
    %2665 = vmatprep.subr.mxu0 0.0
    %2666 = vmatpush2.msra.mxu0 0.0
    %2667 = vmatprep.subr.mxu0 0.0
    %2668 = vmatpush2.msra.mxu0 0.0
    %2669 = vmatprep.subr.mxu0 0.0
    %2670 = vmatpush2.msra.mxu0 0.0
    %2671 = vmatprep.subr.mxu0 0.0
    %2672 = vmatpush2.msra.mxu0 0.0
    %2673 = vmatprep.subr.mxu0 0.0
    %2674 = vmatpush2.msra.mxu0 0.0
    %2675 = vmatprep.subr.mxu0 0.0
    %2676 = vmatpush2.msra.mxu0 0.0
    %2677 = vmatprep.subr.mxu0 0.0
    %2678 = vmatpush2.msra.mxu0 0.0
    %2679 = vmatprep.subr.mxu0 0.0
    %2680 = vmatpush2.msra.mxu0 0.0
    %2681 = vmatprep.subr.mxu0 0.0
    %2682 = vmatpush2.msra.mxu0 0.0
    %2683 = vmatprep.subr.mxu0 0.0
    %2684 = vmatpush2.msra.mxu0 0.0
    %2685 = vmatprep.subr.mxu0 0.0
    %2686 = vmatpush2.msra.mxu0 0.0
    %2687 = vmatprep.subr.mxu0 0.0
    %2688 = vmatpush2.msra.mxu0 0.0
    %2689 = vmatprep.subr.mxu0 0.0
    %2690 = vmatpush2.msra.mxu0 0.0
    %2691 = vmatprep.mubr.f32.mxu0 0.0
    %2692 = vmatmul.mubr.f32.gmra.mxu0 %v2616
    %v2693 = vpop.f32.mrf.mxu0
    %v2694 = vadd.f32 %v2612, %v2693
    %v2695 = vpop.f32.mrf.mxu0
    %v2696 = vadd.f32 %v2612, %v2695
    %2697 = vdwg.mxu0
    %2698 = vmatprep.subr.mxu0 0.0
    %2699 = vmatpush1.msra.mxu0 0.0
    %2700 = vmatprep.subr.mxu0 0.0
    %2701 = vmatpush1.msra.mxu0 0.0
    %2702 = vmatprep.subr.mxu0 0.0
    %2703 = vmatpush1.msra.mxu0 0.0
    %2704 = vmatprep.subr.mxu0 0.0
    %2705 = vmatpush1.msra.mxu0 0.0
    %2706 = vmatprep.subr.mxu0 0.0
    %2707 = vmatpush1.msra.mxu0 0.0
    %2708 = vmatprep.subr.mxu0 0.0
    %2709 = vmatpush1.msra.mxu0 0.0
    %2710 = vmatprep.subr.mxu0 0.0
    %2711 = vmatpush1.msra.mxu0 0.0
    %2712 = vmatprep.subr.mxu0 0.0
    %2713 = vmatpush1.msra.mxu0 0.0
    %2714 = vmatprep.subr.mxu0 0.0
    %2715 = vmatpush1.msra.mxu0 0.0
    %2716 = vmatprep.subr.mxu0 0.0
    %2717 = vmatpush1.msra.mxu0 0.0
    %2718 = vmatprep.subr.mxu0 0.0
    %2719 = vmatpush1.msra.mxu0 0.0
    %2720 = vmatprep.subr.mxu0 0.0
    %2721 = vmatpush1.msra.mxu0 0.0
    %2722 = vmatprep.subr.mxu0 0.0
    %2723 = vmatpush1.msra.mxu0 0.0
    %2724 = vmatprep.subr.mxu0 0.0
    %2725 = vmatpush1.msra.mxu0 0.0
    %2726 = vmatprep.subr.mxu0 0.0
    %2727 = vmatpush1.msra.mxu0 %v2625
    %2728 = vmatprep.subr.mxu0 0.0
    %2729 = vmatpush1.msra.mxu0 %v2605
    %2730 = vmatprep.subr.mxu0 0.0
    %2731 = vmatpush2.msra.mxu0 0.0
    %2732 = vmatprep.subr.mxu0 0.0
    %2733 = vmatpush2.msra.mxu0 0.0
    %2734 = vmatprep.subr.mxu0 0.0
    %2735 = vmatpush2.msra.mxu0 0.0
    %2736 = vmatprep.subr.mxu0 0.0
    %2737 = vmatpush2.msra.mxu0 0.0
    %2738 = vmatprep.subr.mxu0 0.0
    %2739 = vmatpush2.msra.mxu0 0.0
    %2740 = vmatprep.subr.mxu0 0.0
    %2741 = vmatpush2.msra.mxu0 0.0
    %2742 = vmatprep.subr.mxu0 0.0
    %2743 = vmatpush2.msra.mxu0 0.0
    %2744 = vmatprep.subr.mxu0 0.0
    %2745 = vmatpush2.msra.mxu0 0.0
    %2746 = vmatprep.subr.mxu0 0.0
    %2747 = vmatpush2.msra.mxu0 0.0
    %2748 = vmatprep.subr.mxu0 0.0
    %2749 = vmatpush2.msra.mxu0 0.0
    %2750 = vmatprep.subr.mxu0 0.0
    %2751 = vmatpush2.msra.mxu0 0.0
    %2752 = vmatprep.subr.mxu0 0.0
    %2753 = vmatpush2.msra.mxu0 0.0
    %2754 = vmatprep.subr.mxu0 0.0
    %2755 = vmatpush2.msra.mxu0 0.0
    %2756 = vmatprep.subr.mxu0 0.0
    %2757 = vmatpush2.msra.mxu0 0.0
    %2758 = vmatprep.subr.mxu0 0.0
    %2759 = vmatpush2.msra.mxu0 0.0
    %2760 = vmatprep.subr.mxu0 0.0
    %2761 = vmatpush2.msra.mxu0 0.0
    %2762 = vmatprep.mubr.f32.mxu0 0.0
    %2763 = vmatmul.mubr.f32.gmra.mxu0 %v2616
    %v2764 = vpop.f32.mrf.mxu0
    %v2765 = vadd.f32 %v2612, %v2764
    %v2766 = vpop.f32.mrf.mxu0
    %2767 = vdwg.mxu0
    %vm2768 = vcmp.gt.f32.partialorder %v2694, 20.0
    %vm2769 = vcmp.gt.f32.partialorder %v2696, 20.0
    %vm2770 = vcmp.gt.f32.partialorder %v2765, 20.0
    %v2771 = vmin.f32 %v2694, 20.0
    %v2772 = vmin.f32 %v2696, 20.0
    %v2773 = vmin.f32 %v2765, 20.0
    %v2774 = vmul.f32 %v2771, 1.442695
    %v2775 = vpow.pop %v2774
    %v2776 = vmul.f32 %v2772, 1.442695
    %v2777 = vpow.pop %v2776
    %v2778 = vmul.f32 %v2773, 1.442695
    %v2779 = vpow.pop %v2778
    %v2780 = vadd.f32 %v2775, 1.0
    %v2781 = vadd.f32 %v2777, 1.0
    %v2782 = vadd.f32 %v2779, 1.0
    %v2783 = vlog2.pop %v2780
    %v2784 = vmul.f32 %v2783, 0.6931472
    %v2785 = vlog2.pop %v2781
    %v2786 = vmul.f32 %v2785, 0.6931472
    %v2787 = vlog2.pop %v2782
    %v2788 = vmul.f32 %v2787, 0.6931472
    %v2789 = vsel %vm2768, %v2694, %v2784
    %v2790 = vsel %vm2769, %v2696, %v2786
    %v2791 = vsel %vm2770, %v2765, %v2788
    %v2792 = vtanh.pop %v2789
    %v2793 = vtanh.pop %v2790
    %v2794 = vtanh.pop %v2791
    %v2795 = vmul.f32 %v2694, %v2792
    %v2796 = vmul.f32 %v2696, %v2793
    %v2797 = vmul.f32 %v2765, %v2794
    %2801 = vrot.lane.b32.xlu0 %v2795, 32
    %v2802 = vpop.permute.xlu0 %2801
    %2803 = vrot.lane.b32.xlu0 %v2796, 32
    %v2804 = vpop.permute.xlu0 %2803
    %2805 = vrot.lane.b32.xlu0 %v2797, 32
    %v2806 = vpop.permute.xlu0 %2805
    %v2807 = vsel %vm534, %v2802, %v2804
    %v2808 = vsel %vm534, %v2804, %v2806
    %v2812 = vsel %vm534, 0.0, %v2802
    %2813 = vrot.lane.b32.xlu0 %v2795, 16
    %v2814 = vpop.permute.xlu0 %2813
    %2815 = vrot.lane.b32.xlu0 %v2796, 16
    %v2816 = vpop.permute.xlu0 %2815
    %2817 = vrot.lane.b32.xlu0 %v2797, 16
    %v2818 = vpop.permute.xlu0 %2817
    %v2819 = vsel %vm913, %v2814, %v2816
    %v2820 = vsel %vm913, %v2816, %v2818
    %v2822 = vsel %vm913, 0.0, %v2814
    %2823 = vrot.lane.b32.xlu0 %v2795, 112
    %v2824 = vpop.permute.xlu0 %2823
    %2825 = vrot.lane.b32.xlu0 %v2796, 112
    %v2826 = vpop.permute.xlu0 %2825
    %2827 = vrot.lane.b32.xlu0 %v2797, 112
    %v2828 = vpop.permute.xlu0 %2827
    %v2829 = vsel %vm1016, %v2824, %v2826
    %v2830 = vsel %vm1016, %v2826, %v2828
    %v2832 = vsel %vm1016, %v2828, 0.0
    %2833 = vrot.lane.b32.xlu0 %v2795, 96
    %v2834 = vpop.permute.xlu0 %2833
    %2835 = vrot.lane.b32.xlu0 %v2796, 96
    %v2836 = vpop.permute.xlu0 %2835
    %2837 = vrot.lane.b32.xlu0 %v2797, 96
    %v2838 = vpop.permute.xlu0 %2837
    %v2839 = vsel %vm1073, %v2834, %v2836
    %v2840 = vsel %vm1073, %v2836, %v2838
    %v2844 = vsel %vm1073, %v2838, 0.0
    %v2846 = vrot.slane %v2822, 6
    %v2847 = vrot.slane %v2819, 6
    %v2848 = vrot.slane %v2820, 6
    %v2852 = vrot.slane %v2795, 4
    %v2853 = vrot.slane %v2796, 4
    %v2854 = vrot.slane %v2797, 4
    %v2859 = vrot.slane %v2829, 2
    %v2860 = vrot.slane %v2830, 2
    %v2861 = vrot.slane %v2832, 2
    %v2865 = vsel %vm1186, %v2812, %v2846
    %v2866 = vsel %vm1186, %v2807, %v2847
    %v2867 = vsel %vm1186, %v2808, %v2848
    %v2868 = vsel %vm1190, %v2865, %v2852
    %v2869 = vsel %vm1190, %v2866, %v2853
    %v2870 = vsel %vm1190, %v2867, %v2854
    %v2871 = vsel %vm1194, %v2868, %v2859
    %v2872 = vsel %vm1194, %v2869, %v2860
    %v2873 = vsel %vm1194, %v2870, %v2861
    %v2874 = vmul.f32 %v2871, %v471
    %v2875 = vmul.f32 %v2872, %v472
    %v2876 = vmul.f32 %v2873, %v473
    %v2877 = vmul.f32 %v2839, %v474
    %v2878 = vmul.f32 %v2840, %v475
    %v2879 = vmul.f32 %v2844, %v476
    %2881 = vset.pattern.permute.xlu0 0
    %2882 = vperm.xlu0 %2881, %v394
    %v2883 = vpop.permute.xlu0 %2882
    %v2886 = vsel %vm2614, %v381, 0
    %v2889 = vsel %vm1186, %v2877, 0
    %v2892 = vsel %vm1186, %v2878, 0
    %v2895 = vsel %vm1186, %v2879, 0
    %2897 = vmatprep.subr.mxu0 0.0
    %2898 = vmatpush1.msra.mxu0 0.0
    %2899 = vmatprep.subr.mxu0 0.0
    %2900 = vmatpush1.msra.mxu0 0.0
    %2901 = vmatprep.subr.mxu0 0.0
    %2902 = vmatpush1.msra.mxu0 0.0
    %2903 = vmatprep.subr.mxu0 0.0
    %2904 = vmatpush1.msra.mxu0 0.0
    %2905 = vmatprep.subr.mxu0 0.0
    %2906 = vmatpush1.msra.mxu0 0.0
    %2907 = vmatprep.subr.mxu0 0.0
    %2908 = vmatpush1.msra.mxu0 0.0
    %2909 = vmatprep.subr.mxu0 0.0
    %2910 = vmatpush1.msra.mxu0 0.0
    %2911 = vmatprep.subr.mxu0 0.0
    %2912 = vmatpush1.msra.mxu0 0.0
    %2913 = vmatprep.subr.mxu0 0.0
    %2914 = vmatpush1.msra.mxu0 0.0
    %2915 = vmatprep.subr.mxu0 0.0
    %2916 = vmatpush1.msra.mxu0 0.0
    %2917 = vmatprep.subr.mxu0 0.0
    %2918 = vmatpush1.msra.mxu0 0.0
    %2919 = vmatprep.subr.mxu0 0.0
    %2920 = vmatpush1.msra.mxu0 0.0
    %2921 = vmatprep.subr.mxu0 0.0
    %2922 = vmatpush1.msra.mxu0 0.0
    %2923 = vmatprep.subr.mxu0 0.0
    %2924 = vmatpush1.msra.mxu0 0.0
    %2925 = vmatprep.subr.mxu0 %v2892
    %2926 = vmatpush1.msra.mxu0 %v2889
    %2927 = vmatprep.subr.mxu0 %v2875
    %2928 = vmatpush1.msra.mxu0 %v2874
    %2929 = vmatprep.subr.mxu0 0.0
    %2930 = vmatpush2.msra.mxu0 0.0
    %2931 = vmatprep.subr.mxu0 0.0
    %2932 = vmatpush2.msra.mxu0 0.0
    %2933 = vmatprep.subr.mxu0 0.0
    %2934 = vmatpush2.msra.mxu0 0.0
    %2935 = vmatprep.subr.mxu0 0.0
    %2936 = vmatpush2.msra.mxu0 0.0
    %2937 = vmatprep.subr.mxu0 0.0
    %2938 = vmatpush2.msra.mxu0 0.0
    %2939 = vmatprep.subr.mxu0 0.0
    %2940 = vmatpush2.msra.mxu0 0.0
    %2941 = vmatprep.subr.mxu0 0.0
    %2942 = vmatpush2.msra.mxu0 0.0
    %2943 = vmatprep.subr.mxu0 0.0
    %2944 = vmatpush2.msra.mxu0 0.0
    %2945 = vmatprep.subr.mxu0 0.0
    %2946 = vmatpush2.msra.mxu0 0.0
    %2947 = vmatprep.subr.mxu0 0.0
    %2948 = vmatpush2.msra.mxu0 0.0
    %2949 = vmatprep.subr.mxu0 0.0
    %2950 = vmatpush2.msra.mxu0 0.0
    %2951 = vmatprep.subr.mxu0 0.0
    %2952 = vmatpush2.msra.mxu0 0.0
    %2953 = vmatprep.subr.mxu0 0.0
    %2954 = vmatpush2.msra.mxu0 0.0
    %2955 = vmatprep.subr.mxu0 0.0
    %2956 = vmatpush2.msra.mxu0 0.0
    %2957 = vmatprep.subr.mxu0 0.0
    %2958 = vmatpush2.msra.mxu0 0.0
    %2959 = vmatprep.subr.mxu0 0.0
    %2960 = vmatpush2.msra.mxu0 0.0
    %2961 = vmatprep.mubr.f32.mxu0 0.0
    %2962 = vmatmul.mubr.f32.gmra.mxu0 %v2886
    %v2963 = vpop.f32.mrf.mxu0
    %v2964 = vadd.f32 %v2883, %v2963
    %v2965 = vpop.f32.mrf.mxu0
    %v2966 = vadd.f32 %v2883, %v2965
    %2967 = vdwg.mxu0
    %2968 = vmatprep.subr.mxu0 0.0
    %2969 = vmatpush1.msra.mxu0 0.0
    %2970 = vmatprep.subr.mxu0 0.0
    %2971 = vmatpush1.msra.mxu0 0.0
    %2972 = vmatprep.subr.mxu0 0.0
    %2973 = vmatpush1.msra.mxu0 0.0
    %2974 = vmatprep.subr.mxu0 0.0
    %2975 = vmatpush1.msra.mxu0 0.0
    %2976 = vmatprep.subr.mxu0 0.0
    %2977 = vmatpush1.msra.mxu0 0.0
    %2978 = vmatprep.subr.mxu0 0.0
    %2979 = vmatpush1.msra.mxu0 0.0
    %2980 = vmatprep.subr.mxu0 0.0
    %2981 = vmatpush1.msra.mxu0 0.0
    %2982 = vmatprep.subr.mxu0 0.0
    %2983 = vmatpush1.msra.mxu0 0.0
    %2984 = vmatprep.subr.mxu0 0.0
    %2985 = vmatpush1.msra.mxu0 0.0
    %2986 = vmatprep.subr.mxu0 0.0
    %2987 = vmatpush1.msra.mxu0 0.0
    %2988 = vmatprep.subr.mxu0 0.0
    %2989 = vmatpush1.msra.mxu0 0.0
    %2990 = vmatprep.subr.mxu0 0.0
    %2991 = vmatpush1.msra.mxu0 0.0
    %2992 = vmatprep.subr.mxu0 0.0
    %2993 = vmatpush1.msra.mxu0 0.0
    %2994 = vmatprep.subr.mxu0 0.0
    %2995 = vmatpush1.msra.mxu0 0.0
    %2996 = vmatprep.subr.mxu0 0.0
    %2997 = vmatpush1.msra.mxu0 %v2895
    %2998 = vmatprep.subr.mxu0 0.0
    %2999 = vmatpush1.msra.mxu0 %v2876
    %3000 = vmatprep.subr.mxu0 0.0
    %3001 = vmatpush2.msra.mxu0 0.0
    %3002 = vmatprep.subr.mxu0 0.0
    %3003 = vmatpush2.msra.mxu0 0.0
    %3004 = vmatprep.subr.mxu0 0.0
    %3005 = vmatpush2.msra.mxu0 0.0
    %3006 = vmatprep.subr.mxu0 0.0
    %3007 = vmatpush2.msra.mxu0 0.0
    %3008 = vmatprep.subr.mxu0 0.0
    %3009 = vmatpush2.msra.mxu0 0.0
    %3010 = vmatprep.subr.mxu0 0.0
    %3011 = vmatpush2.msra.mxu0 0.0
    %3012 = vmatprep.subr.mxu0 0.0
    %3013 = vmatpush2.msra.mxu0 0.0
    %3014 = vmatprep.subr.mxu0 0.0
    %3015 = vmatpush2.msra.mxu0 0.0
    %3016 = vmatprep.subr.mxu0 0.0
    %3017 = vmatpush2.msra.mxu0 0.0
    %3018 = vmatprep.subr.mxu0 0.0
    %3019 = vmatpush2.msra.mxu0 0.0
    %3020 = vmatprep.subr.mxu0 0.0
    %3021 = vmatpush2.msra.mxu0 0.0
    %3022 = vmatprep.subr.mxu0 0.0
    %3023 = vmatpush2.msra.mxu0 0.0
    %3024 = vmatprep.subr.mxu0 0.0
    %3025 = vmatpush2.msra.mxu0 0.0
    %3026 = vmatprep.subr.mxu0 0.0
    %3027 = vmatpush2.msra.mxu0 0.0
    %3028 = vmatprep.subr.mxu0 0.0
    %3029 = vmatpush2.msra.mxu0 0.0
    %3030 = vmatprep.subr.mxu0 0.0
    %3031 = vmatpush2.msra.mxu0 0.0
    %3032 = vmatprep.mubr.f32.mxu0 0.0
    %3033 = vmatmul.mubr.f32.gmra.mxu0 %v2886
    %v3034 = vpop.f32.mrf.mxu0
    %v3035 = vadd.f32 %v2883, %v3034
    %v3036 = vpop.f32.mrf.mxu0
    %3037 = vdwg.mxu0
    %vm3038 = vcmp.gt.f32.partialorder %v2964, 20.0
    %vm3039 = vcmp.gt.f32.partialorder %v2966, 20.0
    %vm3040 = vcmp.gt.f32.partialorder %v3035, 20.0
    %v3041 = vmin.f32 %v2964, 20.0
    %v3042 = vmin.f32 %v2966, 20.0
    %v3043 = vmin.f32 %v3035, 20.0
    %v3044 = vmul.f32 %v3041, 1.442695
    %v3045 = vpow.pop %v3044
    %v3046 = vmul.f32 %v3042, 1.442695
    %v3047 = vpow.pop %v3046
    %v3048 = vmul.f32 %v3043, 1.442695
    %v3049 = vpow.pop %v3048
    %v3050 = vadd.f32 %v3045, 1.0
    %v3051 = vadd.f32 %v3047, 1.0
    %v3052 = vadd.f32 %v3049, 1.0
    %v3053 = vlog2.pop %v3050
    %v3054 = vmul.f32 %v3053, 0.6931472
    %v3055 = vlog2.pop %v3051
    %v3056 = vmul.f32 %v3055, 0.6931472
    %v3057 = vlog2.pop %v3052
    %v3058 = vmul.f32 %v3057, 0.6931472
    %v3059 = vsel %vm3038, %v2964, %v3054
    %v3060 = vsel %vm3039, %v2966, %v3056
    %v3061 = vsel %vm3040, %v3035, %v3058
    %v3062 = vtanh.pop %v3059
    %v3063 = vtanh.pop %v3060
    %v3064 = vtanh.pop %v3061
    %v3065 = vmul.f32 %v2964, %v3062
    %v3066 = vmul.f32 %v2966, %v3063
    %v3067 = vmul.f32 %v3035, %v3064
    %v3071 = vrot.slane %v3065, 1
    %v3072 = vrot.slane %v3066, 1
    %v3073 = vrot.slane %v3067, 1
    %v3077 = vsel %vm2315, %v2549, %v3071
    %v3078 = vsel %vm2315, %v2550, %v3072
    %v3079 = vsel %vm2315, %v2551, %v3073
    %3081 = vset.pattern.permute.xlu0 0
    %3082 = vperm.xlu0 %3081, %v395
    %v3083 = vpop.permute.xlu0 %3082
    %v3086 = vsel %vm937, %v382, 0
    %v3088 = vsel %vm1194, %v3071, 0
    %v3090 = vsel %vm1194, %v3072, 0
    %v3092 = vsel %vm1194, %v3073, 0
    %3094 = vmatprep.subr.mxu0 0.0
    %3095 = vmatpush1.msra.mxu0 0.0
    %3096 = vmatprep.subr.mxu0 0.0
    %3097 = vmatpush1.msra.mxu0 0.0
    %3098 = vmatprep.subr.mxu0 0.0
    %3099 = vmatpush1.msra.mxu0 0.0
    %3100 = vmatprep.subr.mxu0 0.0
    %3101 = vmatpush1.msra.mxu0 0.0
    %3102 = vmatprep.subr.mxu0 0.0
    %3103 = vmatpush1.msra.mxu0 0.0
    %3104 = vmatprep.subr.mxu0 0.0
    %3105 = vmatpush1.msra.mxu0 0.0
    %3106 = vmatprep.subr.mxu0 0.0
    %3107 = vmatpush1.msra.mxu0 0.0
    %3108 = vmatprep.subr.mxu0 0.0
    %3109 = vmatpush1.msra.mxu0 0.0
    %3110 = vmatprep.subr.mxu0 0.0
    %3111 = vmatpush1.msra.mxu0 0.0
    %3112 = vmatprep.subr.mxu0 0.0
    %3113 = vmatpush1.msra.mxu0 0.0
    %3114 = vmatprep.subr.mxu0 0.0
    %3115 = vmatpush1.msra.mxu0 0.0
    %3116 = vmatprep.subr.mxu0 0.0
    %3117 = vmatpush1.msra.mxu0 0.0
    %3118 = vmatprep.subr.mxu0 0.0
    %3119 = vmatpush1.msra.mxu0 0.0
    %3120 = vmatprep.subr.mxu0 0.0
    %3121 = vmatpush1.msra.mxu0 0.0
    %3122 = vmatprep.subr.mxu0 %v3090
    %3123 = vmatpush1.msra.mxu0 %v3088
    %3124 = vmatprep.subr.mxu0 %v3078
    %3125 = vmatpush1.msra.mxu0 %v3077
    %3126 = vmatprep.subr.mxu0 0.0
    %3127 = vmatpush2.msra.mxu0 0.0
    %3128 = vmatprep.subr.mxu0 0.0
    %3129 = vmatpush2.msra.mxu0 0.0
    %3130 = vmatprep.subr.mxu0 0.0
    %3131 = vmatpush2.msra.mxu0 0.0
    %3132 = vmatprep.subr.mxu0 0.0
    %3133 = vmatpush2.msra.mxu0 0.0
    %3134 = vmatprep.subr.mxu0 0.0
    %3135 = vmatpush2.msra.mxu0 0.0
    %3136 = vmatprep.subr.mxu0 0.0
    %3137 = vmatpush2.msra.mxu0 0.0
    %3138 = vmatprep.subr.mxu0 0.0
    %3139 = vmatpush2.msra.mxu0 0.0
    %3140 = vmatprep.subr.mxu0 0.0
    %3141 = vmatpush2.msra.mxu0 0.0
    %3142 = vmatprep.subr.mxu0 0.0
    %3143 = vmatpush2.msra.mxu0 0.0
    %3144 = vmatprep.subr.mxu0 0.0
    %3145 = vmatpush2.msra.mxu0 0.0
    %3146 = vmatprep.subr.mxu0 0.0
    %3147 = vmatpush2.msra.mxu0 0.0
    %3148 = vmatprep.subr.mxu0 0.0
    %3149 = vmatpush2.msra.mxu0 0.0
    %3150 = vmatprep.subr.mxu0 0.0
    %3151 = vmatpush2.msra.mxu0 0.0
    %3152 = vmatprep.subr.mxu0 0.0
    %3153 = vmatpush2.msra.mxu0 0.0
    %3154 = vmatprep.subr.mxu0 0.0
    %3155 = vmatpush2.msra.mxu0 0.0
    %3156 = vmatprep.subr.mxu0 0.0
    %3157 = vmatpush2.msra.mxu0 0.0
    %3158 = vmatprep.mubr.f32.mxu0 0.0
    %3159 = vmatmul.mubr.f32.gmra.mxu0 %v3086
    %v3160 = vpop.f32.mrf.mxu0
    %v3161 = vadd.f32 %v3083, %v3160
    %v3162 = vpop.f32.mrf.mxu0
    %v3163 = vadd.f32 %v3083, %v3162
    %3164 = vdwg.mxu0
    %3165 = vmatprep.subr.mxu0 0.0
    %3166 = vmatpush1.msra.mxu0 0.0
    %3167 = vmatprep.subr.mxu0 0.0
    %3168 = vmatpush1.msra.mxu0 0.0
    %3169 = vmatprep.subr.mxu0 0.0
    %3170 = vmatpush1.msra.mxu0 0.0
    %3171 = vmatprep.subr.mxu0 0.0
    %3172 = vmatpush1.msra.mxu0 0.0
    %3173 = vmatprep.subr.mxu0 0.0
    %3174 = vmatpush1.msra.mxu0 0.0
    %3175 = vmatprep.subr.mxu0 0.0
    %3176 = vmatpush1.msra.mxu0 0.0
    %3177 = vmatprep.subr.mxu0 0.0
    %3178 = vmatpush1.msra.mxu0 0.0
    %3179 = vmatprep.subr.mxu0 0.0
    %3180 = vmatpush1.msra.mxu0 0.0
    %3181 = vmatprep.subr.mxu0 0.0
    %3182 = vmatpush1.msra.mxu0 0.0
    %3183 = vmatprep.subr.mxu0 0.0
    %3184 = vmatpush1.msra.mxu0 0.0
    %3185 = vmatprep.subr.mxu0 0.0
    %3186 = vmatpush1.msra.mxu0 0.0
    %3187 = vmatprep.subr.mxu0 0.0
    %3188 = vmatpush1.msra.mxu0 0.0
    %3189 = vmatprep.subr.mxu0 0.0
    %3190 = vmatpush1.msra.mxu0 0.0
    %3191 = vmatprep.subr.mxu0 0.0
    %3192 = vmatpush1.msra.mxu0 0.0
    %3193 = vmatprep.subr.mxu0 0.0
    %3194 = vmatpush1.msra.mxu0 %v3092
    %3195 = vmatprep.subr.mxu0 0.0
    %3196 = vmatpush1.msra.mxu0 %v3079
    %3197 = vmatprep.subr.mxu0 0.0
    %3198 = vmatpush2.msra.mxu0 0.0
    %3199 = vmatprep.subr.mxu0 0.0
    %3200 = vmatpush2.msra.mxu0 0.0
    %3201 = vmatprep.subr.mxu0 0.0
    %3202 = vmatpush2.msra.mxu0 0.0
    %3203 = vmatprep.subr.mxu0 0.0
    %3204 = vmatpush2.msra.mxu0 0.0
    %3205 = vmatprep.subr.mxu0 0.0
    %3206 = vmatpush2.msra.mxu0 0.0
    %3207 = vmatprep.subr.mxu0 0.0
    %3208 = vmatpush2.msra.mxu0 0.0
    %3209 = vmatprep.subr.mxu0 0.0
    %3210 = vmatpush2.msra.mxu0 0.0
    %3211 = vmatprep.subr.mxu0 0.0
    %3212 = vmatpush2.msra.mxu0 0.0
    %3213 = vmatprep.subr.mxu0 0.0
    %3214 = vmatpush2.msra.mxu0 0.0
    %3215 = vmatprep.subr.mxu0 0.0
    %3216 = vmatpush2.msra.mxu0 0.0
    %3217 = vmatprep.subr.mxu0 0.0
    %3218 = vmatpush2.msra.mxu0 0.0
    %3219 = vmatprep.subr.mxu0 0.0
    %3220 = vmatpush2.msra.mxu0 0.0
    %3221 = vmatprep.subr.mxu0 0.0
    %3222 = vmatpush2.msra.mxu0 0.0
    %3223 = vmatprep.subr.mxu0 0.0
    %3224 = vmatpush2.msra.mxu0 0.0
    %3225 = vmatprep.subr.mxu0 0.0
    %3226 = vmatpush2.msra.mxu0 0.0
    %3227 = vmatprep.subr.mxu0 0.0
    %3228 = vmatpush2.msra.mxu0 0.0
    %3229 = vmatprep.mubr.f32.mxu0 0.0
    %3230 = vmatmul.mubr.f32.gmra.mxu0 %v3086
    %v3231 = vpop.f32.mrf.mxu0
    %v3232 = vadd.f32 %v3083, %v3231
    %v3233 = vpop.f32.mrf.mxu0
    %3234 = vdwg.mxu0
    %vm3235 = vcmp.gt.f32.partialorder %v3161, 20.0
    %vm3236 = vcmp.gt.f32.partialorder %v3163, 20.0
    %vm3237 = vcmp.gt.f32.partialorder %v3232, 20.0
    %v3238 = vmin.f32 %v3161, 20.0
    %v3239 = vmin.f32 %v3163, 20.0
    %v3240 = vmin.f32 %v3232, 20.0
    %v3241 = vmul.f32 %v3238, 1.442695
    %v3242 = vpow.pop %v3241
    %v3243 = vmul.f32 %v3239, 1.442695
    %v3244 = vpow.pop %v3243
    %v3245 = vmul.f32 %v3240, 1.442695
    %v3246 = vpow.pop %v3245
    %v3247 = vadd.f32 %v3242, 1.0
    %v3248 = vadd.f32 %v3244, 1.0
    %v3249 = vadd.f32 %v3246, 1.0
    %v3250 = vlog2.pop %v3247
    %v3251 = vmul.f32 %v3250, 0.6931472
    %v3252 = vlog2.pop %v3248
    %v3253 = vmul.f32 %v3252, 0.6931472
    %v3254 = vlog2.pop %v3249
    %v3255 = vmul.f32 %v3254, 0.6931472
    %v3256 = vsel %vm3235, %v3161, %v3251
    %v3257 = vsel %vm3236, %v3163, %v3253
    %v3258 = vsel %vm3237, %v3232, %v3255
    %v3259 = vtanh.pop %v3256
    %v3260 = vtanh.pop %v3257
    %v3261 = vtanh.pop %v3258
    %v3262 = vmul.f32 %v3161, %v3259
    %v3263 = vmul.f32 %v3163, %v3260
    %v3264 = vmul.f32 %v3232, %v3261
    %v3265 = vadd.f32 %v3262, %v1492
    %v3266 = vadd.f32 %v3263, %v1493
    %v3267 = vadd.f32 %v3264, %v1494
    %3271 = vrot.lane.b32.xlu0 %v3265, 17
    %v3272 = vpop.permute.xlu0 %3271
    %3273 = vrot.lane.b32.xlu0 %v3266, 17
    %v3274 = vpop.permute.xlu0 %3273
    %3275 = vrot.lane.b32.xlu0 %v3267, 17
    %v3276 = vpop.permute.xlu0 %3275
    %v3277 = vsel %vm902, %v3272, %v3274
    %v3278 = vsel %vm902, %v3274, %v3276
    %v3282 = vsel %vm902, 0.0, %v3272
    %3283 = vrot.lane.b32.xlu0 %v3265, 16
    %v3284 = vpop.permute.xlu0 %3283
    %3285 = vrot.lane.b32.xlu0 %v3266, 16
    %v3286 = vpop.permute.xlu0 %3285
    %3287 = vrot.lane.b32.xlu0 %v3267, 16
    %v3288 = vpop.permute.xlu0 %3287
    %v3289 = vsel %vm913, %v3284, %v3286
    %v3290 = vsel %vm913, %v3286, %v3288
    %v3292 = vsel %vm913, 0.0, %v3284
    %3293 = vrot.lane.b32.xlu0 %v3265, 15
    %v3294 = vpop.permute.xlu0 %3293
    %3295 = vrot.lane.b32.xlu0 %v3266, 15
    %v3296 = vpop.permute.xlu0 %3295
    %3297 = vrot.lane.b32.xlu0 %v3267, 15
    %v3298 = vpop.permute.xlu0 %3297
    %v3299 = vsel %vm924, %v3294, %v3296
    %v3300 = vsel %vm924, %v3296, %v3298
    %v3302 = vsel %vm924, 0.0, %v3294
    %3303 = vrot.lane.b32.xlu0 %v3265, 1
    %v3304 = vpop.permute.xlu0 %3303
    %3305 = vrot.lane.b32.xlu0 %v3266, 1
    %v3306 = vpop.permute.xlu0 %3305
    %3307 = vrot.lane.b32.xlu0 %v3267, 1
    %v3308 = vpop.permute.xlu0 %3307
    %v3309 = vsel %vm959, %v3304, %v3306
    %v3310 = vsel %vm959, %v3306, %v3308
    %v3312 = vsel %vm959, 0.0, %v3304
    %3313 = vrot.lane.b32.xlu0 %v3265, 127
    %v3314 = vpop.permute.xlu0 %3313
    %3315 = vrot.lane.b32.xlu0 %v3266, 127
    %v3316 = vpop.permute.xlu0 %3315
    %3317 = vrot.lane.b32.xlu0 %v3267, 127
    %v3318 = vpop.permute.xlu0 %3317
    %v3319 = vsel %vm970, %v3314, %v3316
    %v3320 = vsel %vm970, %v3316, %v3318
    %v3322 = vsel %vm970, %v3318, 0.0
    %3323 = vrot.lane.b32.xlu0 %v3265, 113
    %v3324 = vpop.permute.xlu0 %3323
    %3325 = vrot.lane.b32.xlu0 %v3266, 113
    %v3326 = vpop.permute.xlu0 %3325
    %3327 = vrot.lane.b32.xlu0 %v3267, 113
    %v3328 = vpop.permute.xlu0 %3327
    %v3329 = vsel %vm1003, %v3324, %v3326
    %v3330 = vsel %vm1003, %v3326, %v3328
    %v3332 = vsel %vm1003, %v3328, 0.0
    %3333 = vrot.lane.b32.xlu0 %v3265, 112
    %v3334 = vpop.permute.xlu0 %3333
    %3335 = vrot.lane.b32.xlu0 %v3266, 112
    %v3336 = vpop.permute.xlu0 %3335
    %3337 = vrot.lane.b32.xlu0 %v3267, 112
    %v3338 = vpop.permute.xlu0 %3337
    %v3339 = vsel %vm1016, %v3334, %v3336
    %v3340 = vsel %vm1016, %v3336, %v3338
    %v3342 = vsel %vm1016, %v3338, 0.0
    %3343 = vrot.lane.b32.xlu0 %v3265, 111
    %v3344 = vpop.permute.xlu0 %3343
    %3345 = vrot.lane.b32.xlu0 %v3266, 111
    %v3346 = vpop.permute.xlu0 %3345
    %3347 = vrot.lane.b32.xlu0 %v3267, 111
    %v3348 = vpop.permute.xlu0 %3347
    %v3349 = vsel %vm1027, %v3344, %v3346
    %v3350 = vsel %vm1027, %v3346, %v3348
    %v3354 = vsel %vm1027, %v3348, 0.0
    %v3356 = vrot.slane %v3292, 6
    %v3357 = vrot.slane %v3289, 6
    %v3358 = vrot.slane %v3290, 6
    %v3363 = vrot.slane %v3302, 4
    %v3364 = vrot.slane %v3299, 4
    %v3365 = vrot.slane %v3300, 4
    %v3370 = vrot.slane %v3312, 2
    %v3371 = vrot.slane %v3309, 2
    %v3372 = vrot.slane %v3310, 2
    %v3377 = vrot.slane %v3319, 6
    %v3378 = vrot.slane %v3320, 6
    %v3379 = vrot.slane %v3322, 6
    %v3384 = vrot.slane %v3329, 4
    %v3385 = vrot.slane %v3330, 4
    %v3386 = vrot.slane %v3332, 4
    %v3391 = vrot.slane %v3339, 2
    %v3392 = vrot.slane %v3340, 2
    %v3393 = vrot.slane %v3342, 2
    %v3397 = vsel %vm1186, %v3282, %v3356
    %v3398 = vsel %vm1186, %v3277, %v3357
    %v3399 = vsel %vm1186, %v3278, %v3358
    %v3400 = vsel %vm1190, %v3397, %v3363
    %v3401 = vsel %vm1190, %v3398, %v3364
    %v3402 = vsel %vm1190, %v3399, %v3365
    %v3403 = vsel %vm1194, %v3400, %v3370
    %v3404 = vsel %vm1194, %v3401, %v3371
    %v3405 = vsel %vm1194, %v3402, %v3372
    %v3406 = vsel %vm1186, %v3265, %v3377
    %v3407 = vsel %vm1186, %v3266, %v3378
    %v3408 = vsel %vm1186, %v3267, %v3379
    %v3409 = vsel %vm1190, %v3406, %v3384
    %v3410 = vsel %vm1190, %v3407, %v3385
    %v3411 = vsel %vm1190, %v3408, %v3386
    %v3412 = vsel %vm1194, %v3409, %v3391
    %v3413 = vsel %vm1194, %v3410, %v3392
    %v3414 = vsel %vm1194, %v3411, %v3393
    %v3415 = vmul.f32 %v3403, %v423
    %v3416 = vmul.f32 %v3404, %v424
    %v3417 = vmul.f32 %v3405, %v425
    %v3418 = vmul.f32 %v3412, %v426
    %v3419 = vmul.f32 %v3413, %v427
    %v3420 = vmul.f32 %v3414, %v428
    %v3421 = vmul.f32 %v3349, %v429
    %v3422 = vmul.f32 %v3350, %v430
    %v3423 = vmul.f32 %v3354, %v431
    %3425 = vset.pattern.permute.xlu0 0
    %3426 = vperm.xlu0 %3425, %v396
    %v3427 = vpop.permute.xlu0 %3426
    %v3430 = vsel %vm891, %v383, 0
    %v3433 = vsel %vm1186, %v3421, 0
    %v3436 = vsel %vm1186, %v3422, 0
    %v3439 = vsel %vm1186, %v3423, 0
    %3441 = vmatprep.subr.mxu0 0.0
    %3442 = vmatpush1.msra.mxu0 0.0
    %3443 = vmatprep.subr.mxu0 0.0
    %3444 = vmatpush1.msra.mxu0 0.0
    %3445 = vmatprep.subr.mxu0 0.0
    %3446 = vmatpush1.msra.mxu0 0.0
    %3447 = vmatprep.subr.mxu0 0.0
    %3448 = vmatpush1.msra.mxu0 0.0
    %3449 = vmatprep.subr.mxu0 0.0
    %3450 = vmatpush1.msra.mxu0 0.0
    %3451 = vmatprep.subr.mxu0 0.0
    %3452 = vmatpush1.msra.mxu0 0.0
    %3453 = vmatprep.subr.mxu0 0.0
    %3454 = vmatpush1.msra.mxu0 0.0
    %3455 = vmatprep.subr.mxu0 0.0
    %3456 = vmatpush1.msra.mxu0 0.0
    %3457 = vmatprep.subr.mxu0 0.0
    %3458 = vmatpush1.msra.mxu0 0.0
    %3459 = vmatprep.subr.mxu0 0.0
    %3460 = vmatpush1.msra.mxu0 0.0
    %3461 = vmatprep.subr.mxu0 0.0
    %3462 = vmatpush1.msra.mxu0 0.0
    %3463 = vmatprep.subr.mxu0 0.0
    %3464 = vmatpush1.msra.mxu0 0.0
    %3465 = vmatprep.subr.mxu0 0.0
    %3466 = vmatpush1.msra.mxu0 0.0
    %3467 = vmatprep.subr.mxu0 %v3436
    %3468 = vmatpush1.msra.mxu0 %v3433
    %3469 = vmatprep.subr.mxu0 %v3419
    %3470 = vmatpush1.msra.mxu0 %v3418
    %3471 = vmatprep.subr.mxu0 %v3416
    %3472 = vmatpush1.msra.mxu0 %v3415
    %3473 = vmatprep.subr.mxu0 0.0
    %3474 = vmatpush2.msra.mxu0 0.0
    %3475 = vmatprep.subr.mxu0 0.0
    %3476 = vmatpush2.msra.mxu0 0.0
    %3477 = vmatprep.subr.mxu0 0.0
    %3478 = vmatpush2.msra.mxu0 0.0
    %3479 = vmatprep.subr.mxu0 0.0
    %3480 = vmatpush2.msra.mxu0 0.0
    %3481 = vmatprep.subr.mxu0 0.0
    %3482 = vmatpush2.msra.mxu0 0.0
    %3483 = vmatprep.subr.mxu0 0.0
    %3484 = vmatpush2.msra.mxu0 0.0
    %3485 = vmatprep.subr.mxu0 0.0
    %3486 = vmatpush2.msra.mxu0 0.0
    %3487 = vmatprep.subr.mxu0 0.0
    %3488 = vmatpush2.msra.mxu0 0.0
    %3489 = vmatprep.subr.mxu0 0.0
    %3490 = vmatpush2.msra.mxu0 0.0
    %3491 = vmatprep.subr.mxu0 0.0
    %3492 = vmatpush2.msra.mxu0 0.0
    %3493 = vmatprep.subr.mxu0 0.0
    %3494 = vmatpush2.msra.mxu0 0.0
    %3495 = vmatprep.subr.mxu0 0.0
    %3496 = vmatpush2.msra.mxu0 0.0
    %3497 = vmatprep.subr.mxu0 0.0
    %3498 = vmatpush2.msra.mxu0 0.0
    %3499 = vmatprep.subr.mxu0 0.0
    %3500 = vmatpush2.msra.mxu0 0.0
    %3501 = vmatprep.subr.mxu0 0.0
    %3502 = vmatpush2.msra.mxu0 0.0
    %3503 = vmatprep.subr.mxu0 0.0
    %3504 = vmatpush2.msra.mxu0 0.0
    %3505 = vmatprep.mubr.f32.mxu0 0.0
    %3506 = vmatmul.mubr.f32.gmra.mxu0 %v3430
    %v3507 = vpop.f32.mrf.mxu0
    %v3508 = vadd.f32 %v3427, %v3507
    %v3509 = vpop.f32.mrf.mxu0
    %v3510 = vadd.f32 %v3427, %v3509
    %3511 = vdwg.mxu0
    %3512 = vmatprep.subr.mxu0 0.0
    %3513 = vmatpush1.msra.mxu0 0.0
    %3514 = vmatprep.subr.mxu0 0.0
    %3515 = vmatpush1.msra.mxu0 0.0
    %3516 = vmatprep.subr.mxu0 0.0
    %3517 = vmatpush1.msra.mxu0 0.0
    %3518 = vmatprep.subr.mxu0 0.0
    %3519 = vmatpush1.msra.mxu0 0.0
    %3520 = vmatprep.subr.mxu0 0.0
    %3521 = vmatpush1.msra.mxu0 0.0
    %3522 = vmatprep.subr.mxu0 0.0
    %3523 = vmatpush1.msra.mxu0 0.0
    %3524 = vmatprep.subr.mxu0 0.0
    %3525 = vmatpush1.msra.mxu0 0.0
    %3526 = vmatprep.subr.mxu0 0.0
    %3527 = vmatpush1.msra.mxu0 0.0
    %3528 = vmatprep.subr.mxu0 0.0
    %3529 = vmatpush1.msra.mxu0 0.0
    %3530 = vmatprep.subr.mxu0 0.0
    %3531 = vmatpush1.msra.mxu0 0.0
    %3532 = vmatprep.subr.mxu0 0.0
    %3533 = vmatpush1.msra.mxu0 0.0
    %3534 = vmatprep.subr.mxu0 0.0
    %3535 = vmatpush1.msra.mxu0 0.0
    %3536 = vmatprep.subr.mxu0 0.0
    %3537 = vmatpush1.msra.mxu0 0.0
    %3538 = vmatprep.subr.mxu0 0.0
    %3539 = vmatpush1.msra.mxu0 %v3439
    %3540 = vmatprep.subr.mxu0 0.0
    %3541 = vmatpush1.msra.mxu0 %v3420
    %3542 = vmatprep.subr.mxu0 0.0
    %3543 = vmatpush1.msra.mxu0 %v3417
    %3544 = vmatprep.subr.mxu0 0.0
    %3545 = vmatpush2.msra.mxu0 0.0
    %3546 = vmatprep.subr.mxu0 0.0
    %3547 = vmatpush2.msra.mxu0 0.0
    %3548 = vmatprep.subr.mxu0 0.0
    %3549 = vmatpush2.msra.mxu0 0.0
    %3550 = vmatprep.subr.mxu0 0.0
    %3551 = vmatpush2.msra.mxu0 0.0
    %3552 = vmatprep.subr.mxu0 0.0
    %3553 = vmatpush2.msra.mxu0 0.0
    %3554 = vmatprep.subr.mxu0 0.0
    %3555 = vmatpush2.msra.mxu0 0.0
    %3556 = vmatprep.subr.mxu0 0.0
    %3557 = vmatpush2.msra.mxu0 0.0
    %3558 = vmatprep.subr.mxu0 0.0
    %3559 = vmatpush2.msra.mxu0 0.0
    %3560 = vmatprep.subr.mxu0 0.0
    %3561 = vmatpush2.msra.mxu0 0.0
    %3562 = vmatprep.subr.mxu0 0.0
    %3563 = vmatpush2.msra.mxu0 0.0
    %3564 = vmatprep.subr.mxu0 0.0
    %3565 = vmatpush2.msra.mxu0 0.0
    %3566 = vmatprep.subr.mxu0 0.0
    %3567 = vmatpush2.msra.mxu0 0.0
    %3568 = vmatprep.subr.mxu0 0.0
    %3569 = vmatpush2.msra.mxu0 0.0
    %3570 = vmatprep.subr.mxu0 0.0
    %3571 = vmatpush2.msra.mxu0 0.0
    %3572 = vmatprep.subr.mxu0 0.0
    %3573 = vmatpush2.msra.mxu0 0.0
    %3574 = vmatprep.subr.mxu0 0.0
    %3575 = vmatpush2.msra.mxu0 0.0
    %3576 = vmatprep.mubr.f32.mxu0 0.0
    %3577 = vmatmul.mubr.f32.gmra.mxu0 %v3430
    %v3578 = vpop.f32.mrf.mxu0
    %v3579 = vadd.f32 %v3427, %v3578
    %v3580 = vpop.f32.mrf.mxu0
    %3581 = vdwg.mxu0
    %vm3582 = vcmp.gt.f32.partialorder %v3508, 20.0
    %vm3583 = vcmp.gt.f32.partialorder %v3510, 20.0
    %vm3584 = vcmp.gt.f32.partialorder %v3579, 20.0
    %v3585 = vmin.f32 %v3508, 20.0
    %v3586 = vmin.f32 %v3510, 20.0
    %v3587 = vmin.f32 %v3579, 20.0
    %v3588 = vmul.f32 %v3585, 1.442695
    %v3589 = vpow.pop %v3588
    %v3590 = vmul.f32 %v3586, 1.442695
    %v3591 = vpow.pop %v3590
    %v3592 = vmul.f32 %v3587, 1.442695
    %v3593 = vpow.pop %v3592
    %v3594 = vadd.f32 %v3589, 1.0
    %v3595 = vadd.f32 %v3591, 1.0
    %v3596 = vadd.f32 %v3593, 1.0
    %v3597 = vlog2.pop %v3594
    %v3598 = vmul.f32 %v3597, 0.6931472
    %v3599 = vlog2.pop %v3595
    %v3600 = vmul.f32 %v3599, 0.6931472
    %v3601 = vlog2.pop %v3596
    %v3602 = vmul.f32 %v3601, 0.6931472
    %v3603 = vsel %vm3582, %v3508, %v3598
    %v3604 = vsel %vm3583, %v3510, %v3600
    %v3605 = vsel %vm3584, %v3579, %v3602
    %v3606 = vtanh.pop %v3603
    %v3607 = vtanh.pop %v3604
    %v3608 = vtanh.pop %v3605
    %v3609 = vmul.f32 %v3508, %v3606
    %v3610 = vmul.f32 %v3510, %v3607
    %v3611 = vmul.f32 %v3579, %v3608
    %3615 = vrot.lane.b32.xlu0 %v3609, 4
    %v3616 = vpop.permute.xlu0 %3615
    %3617 = vrot.lane.b32.xlu0 %v3610, 4
    %v3618 = vpop.permute.xlu0 %3617
    %3619 = vrot.lane.b32.xlu0 %v3611, 4
    %v3620 = vpop.permute.xlu0 %3619
    %v3621 = vsel %vm1848, %v3616, %v3618
    %v3622 = vsel %vm1848, %v3618, %v3620
    %v3626 = vsel %vm1848, 0.0, %v3616
    %3627 = vrot.lane.b32.xlu0 %v3609, 3
    %v3628 = vpop.permute.xlu0 %3627
    %3629 = vrot.lane.b32.xlu0 %v3610, 3
    %v3630 = vpop.permute.xlu0 %3629
    %3631 = vrot.lane.b32.xlu0 %v3611, 3
    %v3632 = vpop.permute.xlu0 %3631
    %v3633 = vsel %vm1861, %v3628, %v3630
    %v3634 = vsel %vm1861, %v3630, %v3632
    %v3636 = vsel %vm1861, 0.0, %v3628
    %3637 = vrot.lane.b32.xlu0 %v3609, 2
    %v3638 = vpop.permute.xlu0 %3637
    %3639 = vrot.lane.b32.xlu0 %v3610, 2
    %v3640 = vpop.permute.xlu0 %3639
    %3641 = vrot.lane.b32.xlu0 %v3611, 2
    %v3642 = vpop.permute.xlu0 %3641
    %v3643 = vsel %vm948, %v3638, %v3640
    %v3644 = vsel %vm948, %v3640, %v3642
    %v3646 = vsel %vm948, 0.0, %v3638
    %3647 = vrot.lane.b32.xlu0 %v3609, 1
    %v3648 = vpop.permute.xlu0 %3647
    %3649 = vrot.lane.b32.xlu0 %v3610, 1
    %v3650 = vpop.permute.xlu0 %3649
    %3651 = vrot.lane.b32.xlu0 %v3611, 1
    %v3652 = vpop.permute.xlu0 %3651
    %v3653 = vsel %vm959, %v3648, %v3650
    %v3654 = vsel %vm959, %v3650, %v3652
    %v3656 = vsel %vm959, 0.0, %v3648
    %3657 = vrot.lane.b32.xlu0 %v3609, 127
    %v3658 = vpop.permute.xlu0 %3657
    %3659 = vrot.lane.b32.xlu0 %v3610, 127
    %v3660 = vpop.permute.xlu0 %3659
    %3661 = vrot.lane.b32.xlu0 %v3611, 127
    %v3662 = vpop.permute.xlu0 %3661
    %v3663 = vsel %vm970, %v3658, %v3660
    %v3664 = vsel %vm970, %v3660, %v3662
    %v3666 = vsel %vm970, %v3662, 0.0
    %3667 = vrot.lane.b32.xlu0 %v3609, 126
    %v3668 = vpop.permute.xlu0 %3667
    %3669 = vrot.lane.b32.xlu0 %v3610, 126
    %v3670 = vpop.permute.xlu0 %3669
    %3671 = vrot.lane.b32.xlu0 %v3611, 126
    %v3672 = vpop.permute.xlu0 %3671
    %v3673 = vsel %vm981, %v3668, %v3670
    %v3674 = vsel %vm981, %v3670, %v3672
    %v3676 = vsel %vm981, %v3672, 0.0
    %3677 = vrot.lane.b32.xlu0 %v3609, 125
    %v3678 = vpop.permute.xlu0 %3677
    %3679 = vrot.lane.b32.xlu0 %v3610, 125
    %v3680 = vpop.permute.xlu0 %3679
    %3681 = vrot.lane.b32.xlu0 %v3611, 125
    %v3682 = vpop.permute.xlu0 %3681
    %v3683 = vsel %vm1912, %v3678, %v3680
    %v3684 = vsel %vm1912, %v3680, %v3682
    %v3686 = vsel %vm1912, %v3682, 0.0
    %3687 = vrot.lane.b32.xlu0 %v3609, 124
    %v3688 = vpop.permute.xlu0 %3687
    %3689 = vrot.lane.b32.xlu0 %v3610, 124
    %v3690 = vpop.permute.xlu0 %3689
    %3691 = vrot.lane.b32.xlu0 %v3611, 124
    %v3692 = vpop.permute.xlu0 %3691
    %v3693 = vsel %vm1923, %v3688, %v3690
    %v3694 = vsel %vm1923, %v3690, %v3692
    %v3698 = vsel %vm1923, %v3692, 0.0
    %v3700 = vrot.slane %v3636, 6
    %v3701 = vrot.slane %v3633, 6
    %v3702 = vrot.slane %v3634, 6
    %v3707 = vrot.slane %v3646, 4
    %v3708 = vrot.slane %v3643, 4
    %v3709 = vrot.slane %v3644, 4
    %v3714 = vrot.slane %v3656, 2
    %v3715 = vrot.slane %v3653, 2
    %v3716 = vrot.slane %v3654, 2
    %v3721 = vrot.slane %v3663, 6
    %v3722 = vrot.slane %v3664, 6
    %v3723 = vrot.slane %v3666, 6
    %v3728 = vrot.slane %v3673, 4
    %v3729 = vrot.slane %v3674, 4
    %v3730 = vrot.slane %v3676, 4
    %v3735 = vrot.slane %v3683, 2
    %v3736 = vrot.slane %v3684, 2
    %v3737 = vrot.slane %v3686, 2
    %v3741 = vsel %vm1186, %v3626, %v3700
    %v3742 = vsel %vm1186, %v3621, %v3701
    %v3743 = vsel %vm1186, %v3622, %v3702
    %v3744 = vsel %vm1190, %v3741, %v3707
    %v3745 = vsel %vm1190, %v3742, %v3708
    %v3746 = vsel %vm1190, %v3743, %v3709
    %v3747 = vsel %vm1194, %v3744, %v3714
    %v3748 = vsel %vm1194, %v3745, %v3715
    %v3749 = vsel %vm1194, %v3746, %v3716
    %v3750 = vsel %vm1186, %v3609, %v3721
    %v3751 = vsel %vm1186, %v3610, %v3722
    %v3752 = vsel %vm1186, %v3611, %v3723
    %v3753 = vsel %vm1190, %v3750, %v3728
    %v3754 = vsel %vm1190, %v3751, %v3729
    %v3755 = vsel %vm1190, %v3752, %v3730
    %v3756 = vsel %vm1194, %v3753, %v3735
    %v3757 = vsel %vm1194, %v3754, %v3736
    %v3758 = vsel %vm1194, %v3755, %v3737
    %v3759 = vmul.f32 %v3747, %v432
    %v3760 = vmul.f32 %v3748, %v433
    %v3761 = vmul.f32 %v3749, %v434
    %v3762 = vmul.f32 %v3756, %v435
    %v3763 = vmul.f32 %v3757, %v436
    %v3764 = vmul.f32 %v3758, %v437
    %v3765 = vmul.f32 %v3693, %v438
    %v3766 = vmul.f32 %v3694, %v439
    %v3767 = vmul.f32 %v3698, %v440
    %3769 = vset.pattern.permute.xlu0 0
    %3770 = vperm.xlu0 %3769, %v397
    %v3771 = vpop.permute.xlu0 %3770
    %v3774 = vsel %vm891, %v384, 0
    %v3777 = vsel %vm1186, %v3765, 0
    %v3780 = vsel %vm1186, %v3766, 0
    %v3783 = vsel %vm1186, %v3767, 0
    %3785 = vmatprep.subr.mxu0 0.0
    %3786 = vmatpush1.msra.mxu0 0.0
    %3787 = vmatprep.subr.mxu0 0.0
    %3788 = vmatpush1.msra.mxu0 0.0
    %3789 = vmatprep.subr.mxu0 0.0
    %3790 = vmatpush1.msra.mxu0 0.0
    %3791 = vmatprep.subr.mxu0 0.0
    %3792 = vmatpush1.msra.mxu0 0.0
    %3793 = vmatprep.subr.mxu0 0.0
    %3794 = vmatpush1.msra.mxu0 0.0
    %3795 = vmatprep.subr.mxu0 0.0
    %3796 = vmatpush1.msra.mxu0 0.0
    %3797 = vmatprep.subr.mxu0 0.0
    %3798 = vmatpush1.msra.mxu0 0.0
    %3799 = vmatprep.subr.mxu0 0.0
    %3800 = vmatpush1.msra.mxu0 0.0
    %3801 = vmatprep.subr.mxu0 0.0
    %3802 = vmatpush1.msra.mxu0 0.0
    %3803 = vmatprep.subr.mxu0 0.0
    %3804 = vmatpush1.msra.mxu0 0.0
    %3805 = vmatprep.subr.mxu0 0.0
    %3806 = vmatpush1.msra.mxu0 0.0
    %3807 = vmatprep.subr.mxu0 0.0
    %3808 = vmatpush1.msra.mxu0 0.0
    %3809 = vmatprep.subr.mxu0 0.0
    %3810 = vmatpush1.msra.mxu0 0.0
    %3811 = vmatprep.subr.mxu0 %v3780
    %3812 = vmatpush1.msra.mxu0 %v3777
    %3813 = vmatprep.subr.mxu0 %v3763
    %3814 = vmatpush1.msra.mxu0 %v3762
    %3815 = vmatprep.subr.mxu0 %v3760
    %3816 = vmatpush1.msra.mxu0 %v3759
    %3817 = vmatprep.subr.mxu0 0.0
    %3818 = vmatpush2.msra.mxu0 0.0
    %3819 = vmatprep.subr.mxu0 0.0
    %3820 = vmatpush2.msra.mxu0 0.0
    %3821 = vmatprep.subr.mxu0 0.0
    %3822 = vmatpush2.msra.mxu0 0.0
    %3823 = vmatprep.subr.mxu0 0.0
    %3824 = vmatpush2.msra.mxu0 0.0
    %3825 = vmatprep.subr.mxu0 0.0
    %3826 = vmatpush2.msra.mxu0 0.0
    %3827 = vmatprep.subr.mxu0 0.0
    %3828 = vmatpush2.msra.mxu0 0.0
    %3829 = vmatprep.subr.mxu0 0.0
    %3830 = vmatpush2.msra.mxu0 0.0
    %3831 = vmatprep.subr.mxu0 0.0
    %3832 = vmatpush2.msra.mxu0 0.0
    %3833 = vmatprep.subr.mxu0 0.0
    %3834 = vmatpush2.msra.mxu0 0.0
    %3835 = vmatprep.subr.mxu0 0.0
    %3836 = vmatpush2.msra.mxu0 0.0
    %3837 = vmatprep.subr.mxu0 0.0
    %3838 = vmatpush2.msra.mxu0 0.0
    %3839 = vmatprep.subr.mxu0 0.0
    %3840 = vmatpush2.msra.mxu0 0.0
    %3841 = vmatprep.subr.mxu0 0.0
    %3842 = vmatpush2.msra.mxu0 0.0
    %3843 = vmatprep.subr.mxu0 0.0
    %3844 = vmatpush2.msra.mxu0 0.0
    %3845 = vmatprep.subr.mxu0 0.0
    %3846 = vmatpush2.msra.mxu0 0.0
    %3847 = vmatprep.subr.mxu0 0.0
    %3848 = vmatpush2.msra.mxu0 0.0
    %3849 = vmatprep.mubr.f32.mxu0 0.0
    %3850 = vmatmul.mubr.f32.gmra.mxu0 %v3774
    %v3851 = vpop.f32.mrf.mxu0
    %v3852 = vadd.f32 %v3771, %v3851
    %v3853 = vpop.f32.mrf.mxu0
    %v3854 = vadd.f32 %v3771, %v3853
    %3855 = vdwg.mxu0
    %3856 = vmatprep.subr.mxu0 0.0
    %3857 = vmatpush1.msra.mxu0 0.0
    %3858 = vmatprep.subr.mxu0 0.0
    %3859 = vmatpush1.msra.mxu0 0.0
    %3860 = vmatprep.subr.mxu0 0.0
    %3861 = vmatpush1.msra.mxu0 0.0
    %3862 = vmatprep.subr.mxu0 0.0
    %3863 = vmatpush1.msra.mxu0 0.0
    %3864 = vmatprep.subr.mxu0 0.0
    %3865 = vmatpush1.msra.mxu0 0.0
    %3866 = vmatprep.subr.mxu0 0.0
    %3867 = vmatpush1.msra.mxu0 0.0
    %3868 = vmatprep.subr.mxu0 0.0
    %3869 = vmatpush1.msra.mxu0 0.0
    %3870 = vmatprep.subr.mxu0 0.0
    %3871 = vmatpush1.msra.mxu0 0.0
    %3872 = vmatprep.subr.mxu0 0.0
    %3873 = vmatpush1.msra.mxu0 0.0
    %3874 = vmatprep.subr.mxu0 0.0
    %3875 = vmatpush1.msra.mxu0 0.0
    %3876 = vmatprep.subr.mxu0 0.0
    %3877 = vmatpush1.msra.mxu0 0.0
    %3878 = vmatprep.subr.mxu0 0.0
    %3879 = vmatpush1.msra.mxu0 0.0
    %3880 = vmatprep.subr.mxu0 0.0
    %3881 = vmatpush1.msra.mxu0 0.0
    %3882 = vmatprep.subr.mxu0 0.0
    %3883 = vmatpush1.msra.mxu0 %v3783
    %3884 = vmatprep.subr.mxu0 0.0
    %3885 = vmatpush1.msra.mxu0 %v3764
    %3886 = vmatprep.subr.mxu0 0.0
    %3887 = vmatpush1.msra.mxu0 %v3761
    %3888 = vmatprep.subr.mxu0 0.0
    %3889 = vmatpush2.msra.mxu0 0.0
    %3890 = vmatprep.subr.mxu0 0.0
    %3891 = vmatpush2.msra.mxu0 0.0
    %3892 = vmatprep.subr.mxu0 0.0
    %3893 = vmatpush2.msra.mxu0 0.0
    %3894 = vmatprep.subr.mxu0 0.0
    %3895 = vmatpush2.msra.mxu0 0.0
    %3896 = vmatprep.subr.mxu0 0.0
    %3897 = vmatpush2.msra.mxu0 0.0
    %3898 = vmatprep.subr.mxu0 0.0
    %3899 = vmatpush2.msra.mxu0 0.0
    %3900 = vmatprep.subr.mxu0 0.0
    %3901 = vmatpush2.msra.mxu0 0.0
    %3902 = vmatprep.subr.mxu0 0.0
    %3903 = vmatpush2.msra.mxu0 0.0
    %3904 = vmatprep.subr.mxu0 0.0
    %3905 = vmatpush2.msra.mxu0 0.0
    %3906 = vmatprep.subr.mxu0 0.0
    %3907 = vmatpush2.msra.mxu0 0.0
    %3908 = vmatprep.subr.mxu0 0.0
    %3909 = vmatpush2.msra.mxu0 0.0
    %3910 = vmatprep.subr.mxu0 0.0
    %3911 = vmatpush2.msra.mxu0 0.0
    %3912 = vmatprep.subr.mxu0 0.0
    %3913 = vmatpush2.msra.mxu0 0.0
    %3914 = vmatprep.subr.mxu0 0.0
    %3915 = vmatpush2.msra.mxu0 0.0
    %3916 = vmatprep.subr.mxu0 0.0
    %3917 = vmatpush2.msra.mxu0 0.0
    %3918 = vmatprep.subr.mxu0 0.0
    %3919 = vmatpush2.msra.mxu0 0.0
    %3920 = vmatprep.mubr.f32.mxu0 0.0
    %3921 = vmatmul.mubr.f32.gmra.mxu0 %v3774
    %v3922 = vpop.f32.mrf.mxu0
    %v3923 = vadd.f32 %v3771, %v3922
    %v3924 = vpop.f32.mrf.mxu0
    %3925 = vdwg.mxu0
    %vm3926 = vcmp.gt.f32.partialorder %v3852, 20.0
    %vm3927 = vcmp.gt.f32.partialorder %v3854, 20.0
    %vm3928 = vcmp.gt.f32.partialorder %v3923, 20.0
    %v3929 = vmin.f32 %v3852, 20.0
    %v3930 = vmin.f32 %v3854, 20.0
    %v3931 = vmin.f32 %v3923, 20.0
    %v3932 = vmul.f32 %v3929, 1.442695
    %v3933 = vpow.pop %v3932
    %v3934 = vmul.f32 %v3930, 1.442695
    %v3935 = vpow.pop %v3934
    %v3936 = vmul.f32 %v3931, 1.442695
    %v3937 = vpow.pop %v3936
    %v3938 = vadd.f32 %v3933, 1.0
    %v3939 = vadd.f32 %v3935, 1.0
    %v3940 = vadd.f32 %v3937, 1.0
    %v3941 = vlog2.pop %v3938
    %v3942 = vmul.f32 %v3941, 0.6931472
    %v3943 = vlog2.pop %v3939
    %v3944 = vmul.f32 %v3943, 0.6931472
    %v3945 = vlog2.pop %v3940
    %v3946 = vmul.f32 %v3945, 0.6931472
    %v3947 = vsel %vm3926, %v3852, %v3942
    %v3948 = vsel %vm3927, %v3854, %v3944
    %v3949 = vsel %vm3928, %v3923, %v3946
    %v3950 = vtanh.pop %v3947
    %v3951 = vtanh.pop %v3948
    %v3952 = vtanh.pop %v3949
    %v3953 = vmul.f32 %v3852, %v3950
    %v3954 = vmul.f32 %v3854, %v3951
    %v3955 = vmul.f32 %v3923, %v3952
    %3959 = vrot.lane.b32.xlu0 %v3953, 64
    %v3960 = vpop.permute.xlu0 %3959
    %3961 = vrot.lane.b32.xlu0 %v3954, 64
    %v3962 = vpop.permute.xlu0 %3961
    %3963 = vrot.lane.b32.xlu0 %v3955, 64
    %v3964 = vpop.permute.xlu0 %3963
    %v3965 = vsel %vm2196, %v3960, %v3962
    %v3966 = vsel %vm2196, %v3962, %v3964
    %v3970 = vsel %vm2196, 0.0, %v3960
    %3971 = vrot.lane.b32.xlu0 %v3953, 48
    %v3972 = vpop.permute.xlu0 %3971
    %3973 = vrot.lane.b32.xlu0 %v3954, 48
    %v3974 = vpop.permute.xlu0 %3973
    %3975 = vrot.lane.b32.xlu0 %v3955, 48
    %v3976 = vpop.permute.xlu0 %3975
    %v3977 = vsel %vm2209, %v3972, %v3974
    %v3978 = vsel %vm2209, %v3974, %v3976
    %v3980 = vsel %vm2209, 0.0, %v3972
    %3981 = vrot.lane.b32.xlu0 %v3953, 32
    %v3982 = vpop.permute.xlu0 %3981
    %3983 = vrot.lane.b32.xlu0 %v3954, 32
    %v3984 = vpop.permute.xlu0 %3983
    %3985 = vrot.lane.b32.xlu0 %v3955, 32
    %v3986 = vpop.permute.xlu0 %3985
    %v3987 = vsel %vm534, %v3982, %v3984
    %v3988 = vsel %vm534, %v3984, %v3986
    %v3990 = vsel %vm534, 0.0, %v3982
    %3991 = vrot.lane.b32.xlu0 %v3953, 16
    %v3992 = vpop.permute.xlu0 %3991
    %3993 = vrot.lane.b32.xlu0 %v3954, 16
    %v3994 = vpop.permute.xlu0 %3993
    %3995 = vrot.lane.b32.xlu0 %v3955, 16
    %v3996 = vpop.permute.xlu0 %3995
    %v3997 = vsel %vm913, %v3992, %v3994
    %v3998 = vsel %vm913, %v3994, %v3996
    %v4000 = vsel %vm913, 0.0, %v3992
    %4001 = vrot.lane.b32.xlu0 %v3953, 112
    %v4002 = vpop.permute.xlu0 %4001
    %4003 = vrot.lane.b32.xlu0 %v3954, 112
    %v4004 = vpop.permute.xlu0 %4003
    %4005 = vrot.lane.b32.xlu0 %v3955, 112
    %v4006 = vpop.permute.xlu0 %4005
    %v4007 = vsel %vm1016, %v4002, %v4004
    %v4008 = vsel %vm1016, %v4004, %v4006
    %v4010 = vsel %vm1016, %v4006, 0.0
    %4011 = vrot.lane.b32.xlu0 %v3953, 96
    %v4012 = vpop.permute.xlu0 %4011
    %4013 = vrot.lane.b32.xlu0 %v3954, 96
    %v4014 = vpop.permute.xlu0 %4013
    %4015 = vrot.lane.b32.xlu0 %v3955, 96
    %v4016 = vpop.permute.xlu0 %4015
    %v4017 = vsel %vm1073, %v4012, %v4014
    %v4018 = vsel %vm1073, %v4014, %v4016
    %v4020 = vsel %vm1073, %v4016, 0.0
    %4021 = vrot.lane.b32.xlu0 %v3953, 80
    %v4022 = vpop.permute.xlu0 %4021
    %4023 = vrot.lane.b32.xlu0 %v3954, 80
    %v4024 = vpop.permute.xlu0 %4023
    %4025 = vrot.lane.b32.xlu0 %v3955, 80
    %v4026 = vpop.permute.xlu0 %4025
    %v4027 = vsel %vm2260, %v4022, %v4024
    %v4028 = vsel %vm2260, %v4024, %v4026
    %v4030 = vsel %vm2260, %v4026, 0.0
    %v4032 = vsel %vm2196, %v3964, 0.0
    %v4034 = vrot.slane %v3980, 1
    %v4035 = vrot.slane %v3977, 1
    %v4036 = vrot.slane %v3978, 1
    %v4041 = vrot.slane %v3990, 2
    %v4042 = vrot.slane %v3987, 2
    %v4043 = vrot.slane %v3988, 2
    %v4048 = vrot.slane %v4000, 3
    %v4049 = vrot.slane %v3997, 3
    %v4050 = vrot.slane %v3998, 3
    %v4054 = vrot.slane %v3953, 4
    %v4055 = vrot.slane %v3954, 4
    %v4056 = vrot.slane %v3955, 4
    %v4061 = vrot.slane %v4007, 5
    %v4062 = vrot.slane %v4008, 5
    %v4063 = vrot.slane %v4010, 5
    %v4068 = vrot.slane %v4017, 6
    %v4069 = vrot.slane %v4018, 6
    %v4070 = vrot.slane %v4020, 6
    %v4075 = vrot.slane %v4027, 7
    %v4076 = vrot.slane %v4028, 7
    %v4077 = vrot.slane %v4030, 7
    %v4081 = vsel %vm2315, %v3970, %v4034
    %v4082 = vsel %vm2315, %v3965, %v4035
    %v4083 = vsel %vm2315, %v3966, %v4036
    %v4084 = vsel %vm1194, %v4034, %v4041
    %v4085 = vsel %vm1194, %v4035, %v4042
    %v4086 = vsel %vm1194, %v4036, %v4043
    %v4087 = vsel %vm2322, %v4041, %v4048
    %v4088 = vsel %vm2322, %v4042, %v4049
    %v4089 = vsel %vm2322, %v4043, %v4050
    %v4090 = vsel %vm1190, %v4048, %v4054
    %v4091 = vsel %vm1190, %v4049, %v4055
    %v4092 = vsel %vm1190, %v4050, %v4056
    %v4093 = vsel %vm2329, %v4054, %v4061
    %v4094 = vsel %vm2329, %v4055, %v4062
    %v4095 = vsel %vm2329, %v4056, %v4063
    %v4096 = vsel %vm1186, %v4061, %v4068
    %v4097 = vsel %vm1186, %v4062, %v4069
    %v4098 = vsel %vm1186, %v4063, %v4070
    %v4099 = vsel %vm820, %v4068, %v4075
    %v4100 = vsel %vm820, %v4069, %v4076
    %v4101 = vsel %vm820, %v4070, %v4077
    %v4102 = vmul.f32 %v4081, %v441
    %v4103 = vmul.f32 %v4082, %v442
    %v4104 = vmul.f32 %v4083, %v443
    %v4105 = vmul.f32 %v4084, %v444
    %v4106 = vmul.f32 %v4085, %v445
    %v4107 = vmul.f32 %v4086, %v446
    %v4108 = vmul.f32 %v4087, %v447
    %v4109 = vmul.f32 %v4088, %v448
    %v4110 = vmul.f32 %v4089, %v449
    %v4111 = vmul.f32 %v4090, %v450
    %v4112 = vmul.f32 %v4091, %v451
    %v4113 = vmul.f32 %v4092, %v452
    %v4114 = vmul.f32 %v4093, %v453
    %v4115 = vmul.f32 %v4094, %v454
    %v4116 = vmul.f32 %v4095, %v455
    %v4117 = vmul.f32 %v4096, %v456
    %v4118 = vmul.f32 %v4097, %v457
    %v4119 = vmul.f32 %v4098, %v458
    %v4120 = vmul.f32 %v4099, %v459
    %v4121 = vmul.f32 %v4100, %v460
    %v4122 = vmul.f32 %v4101, %v461
    %v4123 = vmul.f32 %v3965, %v462
    %v4124 = vmul.f32 %v3966, %v463
    %v4125 = vmul.f32 %v4032, %v464
    %4127 = vset.pattern.permute.xlu0 0
    %4128 = vperm.xlu0 %4127, %v398
    %v4129 = vpop.permute.xlu0 %4128
    %v4132 = vsel %vm2368, %v385, 0
    %v4135 = vsel %vm2315, %v4123, 0
    %v4138 = vsel %vm2315, %v4124, 0
    %v4141 = vsel %vm2315, %v4125, 0
    %4143 = vmatprep.subr.mxu0 0.0
    %4144 = vmatpush1.msra.mxu0 0.0
    %4145 = vmatprep.subr.mxu0 0.0
    %4146 = vmatpush1.msra.mxu0 0.0
    %4147 = vmatprep.subr.mxu0 0.0
    %4148 = vmatpush1.msra.mxu0 0.0
    %4149 = vmatprep.subr.mxu0 0.0
    %4150 = vmatpush1.msra.mxu0 0.0
    %4151 = vmatprep.subr.mxu0 0.0
    %4152 = vmatpush1.msra.mxu0 0.0
    %4153 = vmatprep.subr.mxu0 0.0
    %4154 = vmatpush1.msra.mxu0 0.0
    %4155 = vmatprep.subr.mxu0 0.0
    %4156 = vmatpush1.msra.mxu0 0.0
    %4157 = vmatprep.subr.mxu0 0.0
    %4158 = vmatpush1.msra.mxu0 0.0
    %4159 = vmatprep.subr.mxu0 %v4138
    %4160 = vmatpush1.msra.mxu0 %v4135
    %4161 = vmatprep.subr.mxu0 %v4121
    %4162 = vmatpush1.msra.mxu0 %v4120
    %4163 = vmatprep.subr.mxu0 %v4118
    %4164 = vmatpush1.msra.mxu0 %v4117
    %4165 = vmatprep.subr.mxu0 %v4115
    %4166 = vmatpush1.msra.mxu0 %v4114
    %4167 = vmatprep.subr.mxu0 %v4112
    %4168 = vmatpush1.msra.mxu0 %v4111
    %4169 = vmatprep.subr.mxu0 %v4109
    %4170 = vmatpush1.msra.mxu0 %v4108
    %4171 = vmatprep.subr.mxu0 %v4106
    %4172 = vmatpush1.msra.mxu0 %v4105
    %4173 = vmatprep.subr.mxu0 %v4103
    %4174 = vmatpush1.msra.mxu0 %v4102
    %4175 = vmatprep.subr.mxu0 0.0
    %4176 = vmatpush2.msra.mxu0 0.0
    %4177 = vmatprep.subr.mxu0 0.0
    %4178 = vmatpush2.msra.mxu0 0.0
    %4179 = vmatprep.subr.mxu0 0.0
    %4180 = vmatpush2.msra.mxu0 0.0
    %4181 = vmatprep.subr.mxu0 0.0
    %4182 = vmatpush2.msra.mxu0 0.0
    %4183 = vmatprep.subr.mxu0 0.0
    %4184 = vmatpush2.msra.mxu0 0.0
    %4185 = vmatprep.subr.mxu0 0.0
    %4186 = vmatpush2.msra.mxu0 0.0
    %4187 = vmatprep.subr.mxu0 0.0
    %4188 = vmatpush2.msra.mxu0 0.0
    %4189 = vmatprep.subr.mxu0 0.0
    %4190 = vmatpush2.msra.mxu0 0.0
    %4191 = vmatprep.subr.mxu0 0.0
    %4192 = vmatpush2.msra.mxu0 0.0
    %4193 = vmatprep.subr.mxu0 0.0
    %4194 = vmatpush2.msra.mxu0 0.0
    %4195 = vmatprep.subr.mxu0 0.0
    %4196 = vmatpush2.msra.mxu0 0.0
    %4197 = vmatprep.subr.mxu0 0.0
    %4198 = vmatpush2.msra.mxu0 0.0
    %4199 = vmatprep.subr.mxu0 0.0
    %4200 = vmatpush2.msra.mxu0 0.0
    %4201 = vmatprep.subr.mxu0 0.0
    %4202 = vmatpush2.msra.mxu0 0.0
    %4203 = vmatprep.subr.mxu0 0.0
    %4204 = vmatpush2.msra.mxu0 0.0
    %4205 = vmatprep.subr.mxu0 0.0
    %4206 = vmatpush2.msra.mxu0 0.0
    %4207 = vmatprep.mubr.f32.mxu0 0.0
    %4208 = vmatmul.mubr.f32.gmra.mxu0 %v4132
    %v4209 = vpop.f32.mrf.mxu0
    %v4210 = vadd.f32 %v4129, %v4209
    %v4211 = vpop.f32.mrf.mxu0
    %v4212 = vadd.f32 %v4129, %v4211
    %4213 = vdwg.mxu0
    %4214 = vmatprep.subr.mxu0 0.0
    %4215 = vmatpush1.msra.mxu0 0.0
    %4216 = vmatprep.subr.mxu0 0.0
    %4217 = vmatpush1.msra.mxu0 0.0
    %4218 = vmatprep.subr.mxu0 0.0
    %4219 = vmatpush1.msra.mxu0 0.0
    %4220 = vmatprep.subr.mxu0 0.0
    %4221 = vmatpush1.msra.mxu0 0.0
    %4222 = vmatprep.subr.mxu0 0.0
    %4223 = vmatpush1.msra.mxu0 0.0
    %4224 = vmatprep.subr.mxu0 0.0
    %4225 = vmatpush1.msra.mxu0 0.0
    %4226 = vmatprep.subr.mxu0 0.0
    %4227 = vmatpush1.msra.mxu0 0.0
    %4228 = vmatprep.subr.mxu0 0.0
    %4229 = vmatpush1.msra.mxu0 0.0
    %4230 = vmatprep.subr.mxu0 0.0
    %4231 = vmatpush1.msra.mxu0 %v4141
    %4232 = vmatprep.subr.mxu0 0.0
    %4233 = vmatpush1.msra.mxu0 %v4122
    %4234 = vmatprep.subr.mxu0 0.0
    %4235 = vmatpush1.msra.mxu0 %v4119
    %4236 = vmatprep.subr.mxu0 0.0
    %4237 = vmatpush1.msra.mxu0 %v4116
    %4238 = vmatprep.subr.mxu0 0.0
    %4239 = vmatpush1.msra.mxu0 %v4113
    %4240 = vmatprep.subr.mxu0 0.0
    %4241 = vmatpush1.msra.mxu0 %v4110
    %4242 = vmatprep.subr.mxu0 0.0
    %4243 = vmatpush1.msra.mxu0 %v4107
    %4244 = vmatprep.subr.mxu0 0.0
    %4245 = vmatpush1.msra.mxu0 %v4104
    %4246 = vmatprep.subr.mxu0 0.0
    %4247 = vmatpush2.msra.mxu0 0.0
    %4248 = vmatprep.subr.mxu0 0.0
    %4249 = vmatpush2.msra.mxu0 0.0
    %4250 = vmatprep.subr.mxu0 0.0
    %4251 = vmatpush2.msra.mxu0 0.0
    %4252 = vmatprep.subr.mxu0 0.0
    %4253 = vmatpush2.msra.mxu0 0.0
    %4254 = vmatprep.subr.mxu0 0.0
    %4255 = vmatpush2.msra.mxu0 0.0
    %4256 = vmatprep.subr.mxu0 0.0
    %4257 = vmatpush2.msra.mxu0 0.0
    %4258 = vmatprep.subr.mxu0 0.0
    %4259 = vmatpush2.msra.mxu0 0.0
    %4260 = vmatprep.subr.mxu0 0.0
    %4261 = vmatpush2.msra.mxu0 0.0
    %4262 = vmatprep.subr.mxu0 0.0
    %4263 = vmatpush2.msra.mxu0 0.0
    %4264 = vmatprep.subr.mxu0 0.0
    %4265 = vmatpush2.msra.mxu0 0.0
    %4266 = vmatprep.subr.mxu0 0.0
    %4267 = vmatpush2.msra.mxu0 0.0
    %4268 = vmatprep.subr.mxu0 0.0
    %4269 = vmatpush2.msra.mxu0 0.0
    %4270 = vmatprep.subr.mxu0 0.0
    %4271 = vmatpush2.msra.mxu0 0.0
    %4272 = vmatprep.subr.mxu0 0.0
    %4273 = vmatpush2.msra.mxu0 0.0
    %4274 = vmatprep.subr.mxu0 0.0
    %4275 = vmatpush2.msra.mxu0 0.0
    %4276 = vmatprep.subr.mxu0 0.0
    %4277 = vmatpush2.msra.mxu0 0.0
    %4278 = vmatprep.mubr.f32.mxu0 0.0
    %4279 = vmatmul.mubr.f32.gmra.mxu0 %v4132
    %v4280 = vpop.f32.mrf.mxu0
    %v4281 = vadd.f32 %v4129, %v4280
    %v4282 = vpop.f32.mrf.mxu0
    %4283 = vdwg.mxu0
    %vm4284 = vcmp.gt.f32.partialorder %v4210, 20.0
    %vm4285 = vcmp.gt.f32.partialorder %v4212, 20.0
    %vm4286 = vcmp.gt.f32.partialorder %v4281, 20.0
    %v4287 = vmin.f32 %v4210, 20.0
    %v4288 = vmin.f32 %v4212, 20.0
    %v4289 = vmin.f32 %v4281, 20.0
    %v4290 = vmul.f32 %v4287, 1.442695
    %v4291 = vpow.pop %v4290
    %v4292 = vmul.f32 %v4288, 1.442695
    %v4293 = vpow.pop %v4292
    %v4294 = vmul.f32 %v4289, 1.442695
    %v4295 = vpow.pop %v4294
    %v4296 = vadd.f32 %v4291, 1.0
    %v4297 = vadd.f32 %v4293, 1.0
    %v4298 = vadd.f32 %v4295, 1.0
    %v4299 = vlog2.pop %v4296
    %v4300 = vmul.f32 %v4299, 0.6931472
    %v4301 = vlog2.pop %v4297
    %v4302 = vmul.f32 %v4301, 0.6931472
    %v4303 = vlog2.pop %v4298
    %v4304 = vmul.f32 %v4303, 0.6931472
    %v4305 = vsel %vm4284, %v4210, %v4300
    %v4306 = vsel %vm4285, %v4212, %v4302
    %v4307 = vsel %vm4286, %v4281, %v4304
    %v4308 = vtanh.pop %v4305
    %v4309 = vtanh.pop %v4306
    %v4310 = vtanh.pop %v4307
    %v4311 = vmul.f32 %v4210, %v4308
    %v4312 = vmul.f32 %v4212, %v4309
    %v4313 = vmul.f32 %v4281, %v4310
    %4314 = vrot.lane.b32.xlu0 %v3265, 2
    %v4315 = vpop.permute.xlu0 %4314
    %4316 = vrot.lane.b32.xlu0 %v3266, 2
    %v4317 = vpop.permute.xlu0 %4316
    %4318 = vrot.lane.b32.xlu0 %v3267, 2
    %v4319 = vpop.permute.xlu0 %4318
    %v4320 = vsel %vm948, %v4315, %v4317
    %v4321 = vsel %vm948, %v4317, %v4319
    %v4325 = vsel %vm948, 0.0, %v4315
    %4326 = vrot.lane.b32.xlu0 %v3265, 126
    %v4327 = vpop.permute.xlu0 %4326
    %4328 = vrot.lane.b32.xlu0 %v3266, 126
    %v4329 = vpop.permute.xlu0 %4328
    %4330 = vrot.lane.b32.xlu0 %v3267, 126
    %v4331 = vpop.permute.xlu0 %4330
    %v4332 = vsel %vm981, %v4327, %v4329
    %v4333 = vsel %vm981, %v4329, %v4331
    %v4337 = vsel %vm981, %v4331, 0.0
    %v4338 = vrot.slane %v3312, 6
    %v4339 = vrot.slane %v3309, 6
    %v4340 = vrot.slane %v3310, 6
    %v4344 = vrot.slane %v3265, 4
    %v4345 = vrot.slane %v3266, 4
    %v4346 = vrot.slane %v3267, 4
    %v4350 = vrot.slane %v3319, 2
    %v4351 = vrot.slane %v3320, 2
    %v4352 = vrot.slane %v3322, 2
    %v4356 = vsel %vm1186, %v4325, %v4338
    %v4357 = vsel %vm1186, %v4320, %v4339
    %v4358 = vsel %vm1186, %v4321, %v4340
    %v4359 = vsel %vm1190, %v4356, %v4344
    %v4360 = vsel %vm1190, %v4357, %v4345
    %v4361 = vsel %vm1190, %v4358, %v4346
    %v4362 = vsel %vm1194, %v4359, %v4350
    %v4363 = vsel %vm1194, %v4360, %v4351
    %v4364 = vsel %vm1194, %v4361, %v4352
    %v4365 = vmul.f32 %v4362, %v465
    %v4366 = vmul.f32 %v4363, %v466
    %v4367 = vmul.f32 %v4364, %v467
    %v4368 = vmul.f32 %v4332, %v468
    %v4369 = vmul.f32 %v4333, %v469
    %v4370 = vmul.f32 %v4337, %v470
    %4372 = vset.pattern.permute.xlu0 0
    %4373 = vperm.xlu0 %4372, %v399
    %v4374 = vpop.permute.xlu0 %4373
    %v4377 = vsel %vm2614, %v386, 0
    %v4380 = vsel %vm1186, %v4368, 0
    %v4383 = vsel %vm1186, %v4369, 0
    %v4386 = vsel %vm1186, %v4370, 0
    %4388 = vmatprep.subr.mxu0 0.0
    %4389 = vmatpush1.msra.mxu0 0.0
    %4390 = vmatprep.subr.mxu0 0.0
    %4391 = vmatpush1.msra.mxu0 0.0
    %4392 = vmatprep.subr.mxu0 0.0
    %4393 = vmatpush1.msra.mxu0 0.0
    %4394 = vmatprep.subr.mxu0 0.0
    %4395 = vmatpush1.msra.mxu0 0.0
    %4396 = vmatprep.subr.mxu0 0.0
    %4397 = vmatpush1.msra.mxu0 0.0
    %4398 = vmatprep.subr.mxu0 0.0
    %4399 = vmatpush1.msra.mxu0 0.0
    %4400 = vmatprep.subr.mxu0 0.0
    %4401 = vmatpush1.msra.mxu0 0.0
    %4402 = vmatprep.subr.mxu0 0.0
    %4403 = vmatpush1.msra.mxu0 0.0
    %4404 = vmatprep.subr.mxu0 0.0
    %4405 = vmatpush1.msra.mxu0 0.0
    %4406 = vmatprep.subr.mxu0 0.0
    %4407 = vmatpush1.msra.mxu0 0.0
    %4408 = vmatprep.subr.mxu0 0.0
    %4409 = vmatpush1.msra.mxu0 0.0
    %4410 = vmatprep.subr.mxu0 0.0
    %4411 = vmatpush1.msra.mxu0 0.0
    %4412 = vmatprep.subr.mxu0 0.0
    %4413 = vmatpush1.msra.mxu0 0.0
    %4414 = vmatprep.subr.mxu0 0.0
    %4415 = vmatpush1.msra.mxu0 0.0
    %4416 = vmatprep.subr.mxu0 %v4383
    %4417 = vmatpush1.msra.mxu0 %v4380
    %4418 = vmatprep.subr.mxu0 %v4366
    %4419 = vmatpush1.msra.mxu0 %v4365
    %4420 = vmatprep.subr.mxu0 0.0
    %4421 = vmatpush2.msra.mxu0 0.0
    %4422 = vmatprep.subr.mxu0 0.0
    %4423 = vmatpush2.msra.mxu0 0.0
    %4424 = vmatprep.subr.mxu0 0.0
    %4425 = vmatpush2.msra.mxu0 0.0
    %4426 = vmatprep.subr.mxu0 0.0
    %4427 = vmatpush2.msra.mxu0 0.0
    %4428 = vmatprep.subr.mxu0 0.0
    %4429 = vmatpush2.msra.mxu0 0.0
    %4430 = vmatprep.subr.mxu0 0.0
    %4431 = vmatpush2.msra.mxu0 0.0
    %4432 = vmatprep.subr.mxu0 0.0
    %4433 = vmatpush2.msra.mxu0 0.0
    %4434 = vmatprep.subr.mxu0 0.0
    %4435 = vmatpush2.msra.mxu0 0.0
    %4436 = vmatprep.subr.mxu0 0.0
    %4437 = vmatpush2.msra.mxu0 0.0
    %4438 = vmatprep.subr.mxu0 0.0
    %4439 = vmatpush2.msra.mxu0 0.0
    %4440 = vmatprep.subr.mxu0 0.0
    %4441 = vmatpush2.msra.mxu0 0.0
    %4442 = vmatprep.subr.mxu0 0.0
    %4443 = vmatpush2.msra.mxu0 0.0
    %4444 = vmatprep.subr.mxu0 0.0
    %4445 = vmatpush2.msra.mxu0 0.0
    %4446 = vmatprep.subr.mxu0 0.0
    %4447 = vmatpush2.msra.mxu0 0.0
    %4448 = vmatprep.subr.mxu0 0.0
    %4449 = vmatpush2.msra.mxu0 0.0
    %4450 = vmatprep.subr.mxu0 0.0
    %4451 = vmatpush2.msra.mxu0 0.0
    %4452 = vmatprep.mubr.f32.mxu0 0.0
    %4453 = vmatmul.mubr.f32.gmra.mxu0 %v4377
    %v4454 = vpop.f32.mrf.mxu0
    %v4455 = vadd.f32 %v4374, %v4454
    %v4456 = vpop.f32.mrf.mxu0
    %v4457 = vadd.f32 %v4374, %v4456
    %4458 = vdwg.mxu0
    %4459 = vmatprep.subr.mxu0 0.0
    %4460 = vmatpush1.msra.mxu0 0.0
    %4461 = vmatprep.subr.mxu0 0.0
    %4462 = vmatpush1.msra.mxu0 0.0
    %4463 = vmatprep.subr.mxu0 0.0
    %4464 = vmatpush1.msra.mxu0 0.0
    %4465 = vmatprep.subr.mxu0 0.0
    %4466 = vmatpush1.msra.mxu0 0.0
    %4467 = vmatprep.subr.mxu0 0.0
    %4468 = vmatpush1.msra.mxu0 0.0
    %4469 = vmatprep.subr.mxu0 0.0
    %4470 = vmatpush1.msra.mxu0 0.0
    %4471 = vmatprep.subr.mxu0 0.0
    %4472 = vmatpush1.msra.mxu0 0.0
    %4473 = vmatprep.subr.mxu0 0.0
    %4474 = vmatpush1.msra.mxu0 0.0
    %4475 = vmatprep.subr.mxu0 0.0
    %4476 = vmatpush1.msra.mxu0 0.0
    %4477 = vmatprep.subr.mxu0 0.0
    %4478 = vmatpush1.msra.mxu0 0.0
    %4479 = vmatprep.subr.mxu0 0.0
    %4480 = vmatpush1.msra.mxu0 0.0
    %4481 = vmatprep.subr.mxu0 0.0
    %4482 = vmatpush1.msra.mxu0 0.0
    %4483 = vmatprep.subr.mxu0 0.0
    %4484 = vmatpush1.msra.mxu0 0.0
    %4485 = vmatprep.subr.mxu0 0.0
    %4486 = vmatpush1.msra.mxu0 0.0
    %4487 = vmatprep.subr.mxu0 0.0
    %4488 = vmatpush1.msra.mxu0 %v4386
    %4489 = vmatprep.subr.mxu0 0.0
    %4490 = vmatpush1.msra.mxu0 %v4367
    %4491 = vmatprep.subr.mxu0 0.0
    %4492 = vmatpush2.msra.mxu0 0.0
    %4493 = vmatprep.subr.mxu0 0.0
    %4494 = vmatpush2.msra.mxu0 0.0
    %4495 = vmatprep.subr.mxu0 0.0
    %4496 = vmatpush2.msra.mxu0 0.0
    %4497 = vmatprep.subr.mxu0 0.0
    %4498 = vmatpush2.msra.mxu0 0.0
    %4499 = vmatprep.subr.mxu0 0.0
    %4500 = vmatpush2.msra.mxu0 0.0
    %4501 = vmatprep.subr.mxu0 0.0
    %4502 = vmatpush2.msra.mxu0 0.0
    %4503 = vmatprep.subr.mxu0 0.0
    %4504 = vmatpush2.msra.mxu0 0.0
    %4505 = vmatprep.subr.mxu0 0.0
    %4506 = vmatpush2.msra.mxu0 0.0
    %4507 = vmatprep.subr.mxu0 0.0
    %4508 = vmatpush2.msra.mxu0 0.0
    %4509 = vmatprep.subr.mxu0 0.0
    %4510 = vmatpush2.msra.mxu0 0.0
    %4511 = vmatprep.subr.mxu0 0.0
    %4512 = vmatpush2.msra.mxu0 0.0
    %4513 = vmatprep.subr.mxu0 0.0
    %4514 = vmatpush2.msra.mxu0 0.0
    %4515 = vmatprep.subr.mxu0 0.0
    %4516 = vmatpush2.msra.mxu0 0.0
    %4517 = vmatprep.subr.mxu0 0.0
    %4518 = vmatpush2.msra.mxu0 0.0
    %4519 = vmatprep.subr.mxu0 0.0
    %4520 = vmatpush2.msra.mxu0 0.0
    %4521 = vmatprep.subr.mxu0 0.0
    %4522 = vmatpush2.msra.mxu0 0.0
    %4523 = vmatprep.mubr.f32.mxu0 0.0
    %4524 = vmatmul.mubr.f32.gmra.mxu0 %v4377
    %v4525 = vpop.f32.mrf.mxu0
    %v4526 = vadd.f32 %v4374, %v4525
    %v4527 = vpop.f32.mrf.mxu0
    %4528 = vdwg.mxu0
    %vm4529 = vcmp.gt.f32.partialorder %v4455, 20.0
    %vm4530 = vcmp.gt.f32.partialorder %v4457, 20.0
    %vm4531 = vcmp.gt.f32.partialorder %v4526, 20.0
    %v4532 = vmin.f32 %v4455, 20.0
    %v4533 = vmin.f32 %v4457, 20.0
    %v4534 = vmin.f32 %v4526, 20.0
    %v4535 = vmul.f32 %v4532, 1.442695
    %v4536 = vpow.pop %v4535
    %v4537 = vmul.f32 %v4533, 1.442695
    %v4538 = vpow.pop %v4537
    %v4539 = vmul.f32 %v4534, 1.442695
    %v4540 = vpow.pop %v4539
    %v4541 = vadd.f32 %v4536, 1.0
    %v4542 = vadd.f32 %v4538, 1.0
    %v4543 = vadd.f32 %v4540, 1.0
    %v4544 = vlog2.pop %v4541
    %v4545 = vmul.f32 %v4544, 0.6931472
    %v4546 = vlog2.pop %v4542
    %v4547 = vmul.f32 %v4546, 0.6931472
    %v4548 = vlog2.pop %v4543
    %v4549 = vmul.f32 %v4548, 0.6931472
    %v4550 = vsel %vm4529, %v4455, %v4545
    %v4551 = vsel %vm4530, %v4457, %v4547
    %v4552 = vsel %vm4531, %v4526, %v4549
    %v4553 = vtanh.pop %v4550
    %v4554 = vtanh.pop %v4551
    %v4555 = vtanh.pop %v4552
    %v4556 = vmul.f32 %v4455, %v4553
    %v4557 = vmul.f32 %v4457, %v4554
    %v4558 = vmul.f32 %v4526, %v4555
    %4562 = vrot.lane.b32.xlu0 %v4556, 32
    %v4563 = vpop.permute.xlu0 %4562
    %4564 = vrot.lane.b32.xlu0 %v4557, 32
    %v4565 = vpop.permute.xlu0 %4564
    %4566 = vrot.lane.b32.xlu0 %v4558, 32
    %v4567 = vpop.permute.xlu0 %4566
    %v4568 = vsel %vm534, %v4563, %v4565
    %v4569 = vsel %vm534, %v4565, %v4567
    %v4573 = vsel %vm534, 0.0, %v4563
    %4574 = vrot.lane.b32.xlu0 %v4556, 16
    %v4575 = vpop.permute.xlu0 %4574
    %4576 = vrot.lane.b32.xlu0 %v4557, 16
    %v4577 = vpop.permute.xlu0 %4576
    %4578 = vrot.lane.b32.xlu0 %v4558, 16
    %v4579 = vpop.permute.xlu0 %4578
    %v4580 = vsel %vm913, %v4575, %v4577
    %v4581 = vsel %vm913, %v4577, %v4579
    %v4583 = vsel %vm913, 0.0, %v4575
    %4584 = vrot.lane.b32.xlu0 %v4556, 112
    %v4585 = vpop.permute.xlu0 %4584
    %4586 = vrot.lane.b32.xlu0 %v4557, 112
    %v4587 = vpop.permute.xlu0 %4586
    %4588 = vrot.lane.b32.xlu0 %v4558, 112
    %v4589 = vpop.permute.xlu0 %4588
    %v4590 = vsel %vm1016, %v4585, %v4587
    %v4591 = vsel %vm1016, %v4587, %v4589
    %v4593 = vsel %vm1016, %v4589, 0.0
    %4594 = vrot.lane.b32.xlu0 %v4556, 96
    %v4595 = vpop.permute.xlu0 %4594
    %4596 = vrot.lane.b32.xlu0 %v4557, 96
    %v4597 = vpop.permute.xlu0 %4596
    %4598 = vrot.lane.b32.xlu0 %v4558, 96
    %v4599 = vpop.permute.xlu0 %4598
    %v4600 = vsel %vm1073, %v4595, %v4597
    %v4601 = vsel %vm1073, %v4597, %v4599
    %v4605 = vsel %vm1073, %v4599, 0.0
    %v4607 = vrot.slane %v4583, 6
    %v4608 = vrot.slane %v4580, 6
    %v4609 = vrot.slane %v4581, 6
    %v4613 = vrot.slane %v4556, 4
    %v4614 = vrot.slane %v4557, 4
    %v4615 = vrot.slane %v4558, 4
    %v4620 = vrot.slane %v4590, 2
    %v4621 = vrot.slane %v4591, 2
    %v4622 = vrot.slane %v4593, 2
    %v4626 = vsel %vm1186, %v4573, %v4607
    %v4627 = vsel %vm1186, %v4568, %v4608
    %v4628 = vsel %vm1186, %v4569, %v4609
    %v4629 = vsel %vm1190, %v4626, %v4613
    %v4630 = vsel %vm1190, %v4627, %v4614
    %v4631 = vsel %vm1190, %v4628, %v4615
    %v4632 = vsel %vm1194, %v4629, %v4620
    %v4633 = vsel %vm1194, %v4630, %v4621
    %v4634 = vsel %vm1194, %v4631, %v4622
    %v4635 = vmul.f32 %v4632, %v471
    %v4636 = vmul.f32 %v4633, %v472
    %v4637 = vmul.f32 %v4634, %v473
    %v4638 = vmul.f32 %v4600, %v474
    %v4639 = vmul.f32 %v4601, %v475
    %v4640 = vmul.f32 %v4605, %v476
    %4642 = vset.pattern.permute.xlu0 0
    %4643 = vperm.xlu0 %4642, %v400
    %v4644 = vpop.permute.xlu0 %4643
    %v4647 = vsel %vm2614, %v387, 0
    %v4650 = vsel %vm1186, %v4638, 0
    %v4653 = vsel %vm1186, %v4639, 0
    %v4656 = vsel %vm1186, %v4640, 0
    %4658 = vmatprep.subr.mxu0 0.0
    %4659 = vmatpush1.msra.mxu0 0.0
    %4660 = vmatprep.subr.mxu0 0.0
    %4661 = vmatpush1.msra.mxu0 0.0
    %4662 = vmatprep.subr.mxu0 0.0
    %4663 = vmatpush1.msra.mxu0 0.0
    %4664 = vmatprep.subr.mxu0 0.0
    %4665 = vmatpush1.msra.mxu0 0.0
    %4666 = vmatprep.subr.mxu0 0.0
    %4667 = vmatpush1.msra.mxu0 0.0
    %4668 = vmatprep.subr.mxu0 0.0
    %4669 = vmatpush1.msra.mxu0 0.0
    %4670 = vmatprep.subr.mxu0 0.0
    %4671 = vmatpush1.msra.mxu0 0.0
    %4672 = vmatprep.subr.mxu0 0.0
    %4673 = vmatpush1.msra.mxu0 0.0
    %4674 = vmatprep.subr.mxu0 0.0
    %4675 = vmatpush1.msra.mxu0 0.0
    %4676 = vmatprep.subr.mxu0 0.0
    %4677 = vmatpush1.msra.mxu0 0.0
    %4678 = vmatprep.subr.mxu0 0.0
    %4679 = vmatpush1.msra.mxu0 0.0
    %4680 = vmatprep.subr.mxu0 0.0
    %4681 = vmatpush1.msra.mxu0 0.0
    %4682 = vmatprep.subr.mxu0 0.0
    %4683 = vmatpush1.msra.mxu0 0.0
    %4684 = vmatprep.subr.mxu0 0.0
    %4685 = vmatpush1.msra.mxu0 0.0
    %4686 = vmatprep.subr.mxu0 %v4653
    %4687 = vmatpush1.msra.mxu0 %v4650
    %4688 = vmatprep.subr.mxu0 %v4636
    %4689 = vmatpush1.msra.mxu0 %v4635
    %4690 = vmatprep.subr.mxu0 0.0
    %4691 = vmatpush2.msra.mxu0 0.0
    %4692 = vmatprep.subr.mxu0 0.0
    %4693 = vmatpush2.msra.mxu0 0.0
    %4694 = vmatprep.subr.mxu0 0.0
    %4695 = vmatpush2.msra.mxu0 0.0
    %4696 = vmatprep.subr.mxu0 0.0
    %4697 = vmatpush2.msra.mxu0 0.0
    %4698 = vmatprep.subr.mxu0 0.0
    %4699 = vmatpush2.msra.mxu0 0.0
    %4700 = vmatprep.subr.mxu0 0.0
    %4701 = vmatpush2.msra.mxu0 0.0
    %4702 = vmatprep.subr.mxu0 0.0
    %4703 = vmatpush2.msra.mxu0 0.0
    %4704 = vmatprep.subr.mxu0 0.0
    %4705 = vmatpush2.msra.mxu0 0.0
    %4706 = vmatprep.subr.mxu0 0.0
    %4707 = vmatpush2.msra.mxu0 0.0
    %4708 = vmatprep.subr.mxu0 0.0
    %4709 = vmatpush2.msra.mxu0 0.0
    %4710 = vmatprep.subr.mxu0 0.0
    %4711 = vmatpush2.msra.mxu0 0.0
    %4712 = vmatprep.subr.mxu0 0.0
    %4713 = vmatpush2.msra.mxu0 0.0
    %4714 = vmatprep.subr.mxu0 0.0
    %4715 = vmatpush2.msra.mxu0 0.0
    %4716 = vmatprep.subr.mxu0 0.0
    %4717 = vmatpush2.msra.mxu0 0.0
    %4718 = vmatprep.subr.mxu0 0.0
    %4719 = vmatpush2.msra.mxu0 0.0
    %4720 = vmatprep.subr.mxu0 0.0
    %4721 = vmatpush2.msra.mxu0 0.0
    %4722 = vmatprep.mubr.f32.mxu0 0.0
    %4723 = vmatmul.mubr.f32.gmra.mxu0 %v4647
    %v4724 = vpop.f32.mrf.mxu0
    %v4725 = vadd.f32 %v4644, %v4724
    %v4726 = vpop.f32.mrf.mxu0
    %v4727 = vadd.f32 %v4644, %v4726
    %4728 = vdwg.mxu0
    %4729 = vmatprep.subr.mxu0 0.0
    %4730 = vmatpush1.msra.mxu0 0.0
    %4731 = vmatprep.subr.mxu0 0.0
    %4732 = vmatpush1.msra.mxu0 0.0
    %4733 = vmatprep.subr.mxu0 0.0
    %4734 = vmatpush1.msra.mxu0 0.0
    %4735 = vmatprep.subr.mxu0 0.0
    %4736 = vmatpush1.msra.mxu0 0.0
    %4737 = vmatprep.subr.mxu0 0.0
    %4738 = vmatpush1.msra.mxu0 0.0
    %4739 = vmatprep.subr.mxu0 0.0
    %4740 = vmatpush1.msra.mxu0 0.0
    %4741 = vmatprep.subr.mxu0 0.0
    %4742 = vmatpush1.msra.mxu0 0.0
    %4743 = vmatprep.subr.mxu0 0.0
    %4744 = vmatpush1.msra.mxu0 0.0
    %4745 = vmatprep.subr.mxu0 0.0
    %4746 = vmatpush1.msra.mxu0 0.0
    %4747 = vmatprep.subr.mxu0 0.0
    %4748 = vmatpush1.msra.mxu0 0.0
    %4749 = vmatprep.subr.mxu0 0.0
    %4750 = vmatpush1.msra.mxu0 0.0
    %4751 = vmatprep.subr.mxu0 0.0
    %4752 = vmatpush1.msra.mxu0 0.0
    %4753 = vmatprep.subr.mxu0 0.0
    %4754 = vmatpush1.msra.mxu0 0.0
    %4755 = vmatprep.subr.mxu0 0.0
    %4756 = vmatpush1.msra.mxu0 0.0
    %4757 = vmatprep.subr.mxu0 0.0
    %4758 = vmatpush1.msra.mxu0 %v4656
    %4759 = vmatprep.subr.mxu0 0.0
    %4760 = vmatpush1.msra.mxu0 %v4637
    %4761 = vmatprep.subr.mxu0 0.0
    %4762 = vmatpush2.msra.mxu0 0.0
    %4763 = vmatprep.subr.mxu0 0.0
    %4764 = vmatpush2.msra.mxu0 0.0
    %4765 = vmatprep.subr.mxu0 0.0
    %4766 = vmatpush2.msra.mxu0 0.0
    %4767 = vmatprep.subr.mxu0 0.0
    %4768 = vmatpush2.msra.mxu0 0.0
    %4769 = vmatprep.subr.mxu0 0.0
    %4770 = vmatpush2.msra.mxu0 0.0
    %4771 = vmatprep.subr.mxu0 0.0
    %4772 = vmatpush2.msra.mxu0 0.0
    %4773 = vmatprep.subr.mxu0 0.0
    %4774 = vmatpush2.msra.mxu0 0.0
    %4775 = vmatprep.subr.mxu0 0.0
    %4776 = vmatpush2.msra.mxu0 0.0
    %4777 = vmatprep.subr.mxu0 0.0
    %4778 = vmatpush2.msra.mxu0 0.0
    %4779 = vmatprep.subr.mxu0 0.0
    %4780 = vmatpush2.msra.mxu0 0.0
    %4781 = vmatprep.subr.mxu0 0.0
    %4782 = vmatpush2.msra.mxu0 0.0
    %4783 = vmatprep.subr.mxu0 0.0
    %4784 = vmatpush2.msra.mxu0 0.0
    %4785 = vmatprep.subr.mxu0 0.0
    %4786 = vmatpush2.msra.mxu0 0.0
    %4787 = vmatprep.subr.mxu0 0.0
    %4788 = vmatpush2.msra.mxu0 0.0
    %4789 = vmatprep.subr.mxu0 0.0
    %4790 = vmatpush2.msra.mxu0 0.0
    %4791 = vmatprep.subr.mxu0 0.0
    %4792 = vmatpush2.msra.mxu0 0.0
    %4793 = vmatprep.mubr.f32.mxu0 0.0
    %4794 = vmatmul.mubr.f32.gmra.mxu0 %v4647
    %v4795 = vpop.f32.mrf.mxu0
    %v4796 = vadd.f32 %v4644, %v4795
    %v4797 = vpop.f32.mrf.mxu0
    %4798 = vdwg.mxu0
    %vm4799 = vcmp.gt.f32.partialorder %v4725, 20.0
    %vm4800 = vcmp.gt.f32.partialorder %v4727, 20.0
    %vm4801 = vcmp.gt.f32.partialorder %v4796, 20.0
    %v4802 = vmin.f32 %v4725, 20.0
    %v4803 = vmin.f32 %v4727, 20.0
    %v4804 = vmin.f32 %v4796, 20.0
    %v4805 = vmul.f32 %v4802, 1.442695
    %v4806 = vpow.pop %v4805
    %v4807 = vmul.f32 %v4803, 1.442695
    %v4808 = vpow.pop %v4807
    %v4809 = vmul.f32 %v4804, 1.442695
    %v4810 = vpow.pop %v4809
    %v4811 = vadd.f32 %v4806, 1.0
    %v4812 = vadd.f32 %v4808, 1.0
    %v4813 = vadd.f32 %v4810, 1.0
    %v4814 = vlog2.pop %v4811
    %v4815 = vmul.f32 %v4814, 0.6931472
    %v4816 = vlog2.pop %v4812
    %v4817 = vmul.f32 %v4816, 0.6931472
    %v4818 = vlog2.pop %v4813
    %v4819 = vmul.f32 %v4818, 0.6931472
    %v4820 = vsel %vm4799, %v4725, %v4815
    %v4821 = vsel %vm4800, %v4727, %v4817
    %v4822 = vsel %vm4801, %v4796, %v4819
    %v4823 = vtanh.pop %v4820
    %v4824 = vtanh.pop %v4821
    %v4825 = vtanh.pop %v4822
    %v4826 = vmul.f32 %v4725, %v4823
    %v4827 = vmul.f32 %v4727, %v4824
    %v4828 = vmul.f32 %v4796, %v4825
    %v4832 = vrot.slane %v4826, 1
    %v4833 = vrot.slane %v4827, 1
    %v4834 = vrot.slane %v4828, 1
    %v4838 = vsel %vm2315, %v4311, %v4832
    %v4839 = vsel %vm2315, %v4312, %v4833
    %v4840 = vsel %vm2315, %v4313, %v4834
    %4842 = vset.pattern.permute.xlu0 0
    %4843 = vperm.xlu0 %4842, %v401
    %v4844 = vpop.permute.xlu0 %4843
    %v4847 = vsel %vm937, %v388, 0
    %v4849 = vsel %vm1194, %v4832, 0
    %v4851 = vsel %vm1194, %v4833, 0
    %v4853 = vsel %vm1194, %v4834, 0
    %4855 = vmatprep.subr.mxu0 0.0
    %4856 = vmatpush1.msra.mxu0 0.0
    %4857 = vmatprep.subr.mxu0 0.0
    %4858 = vmatpush1.msra.mxu0 0.0
    %4859 = vmatprep.subr.mxu0 0.0
    %4860 = vmatpush1.msra.mxu0 0.0
    %4861 = vmatprep.subr.mxu0 0.0
    %4862 = vmatpush1.msra.mxu0 0.0
    %4863 = vmatprep.subr.mxu0 0.0
    %4864 = vmatpush1.msra.mxu0 0.0
    %4865 = vmatprep.subr.mxu0 0.0
    %4866 = vmatpush1.msra.mxu0 0.0
    %4867 = vmatprep.subr.mxu0 0.0
    %4868 = vmatpush1.msra.mxu0 0.0
    %4869 = vmatprep.subr.mxu0 0.0
    %4870 = vmatpush1.msra.mxu0 0.0
    %4871 = vmatprep.subr.mxu0 0.0
    %4872 = vmatpush1.msra.mxu0 0.0
    %4873 = vmatprep.subr.mxu0 0.0
    %4874 = vmatpush1.msra.mxu0 0.0
    %4875 = vmatprep.subr.mxu0 0.0
    %4876 = vmatpush1.msra.mxu0 0.0
    %4877 = vmatprep.subr.mxu0 0.0
    %4878 = vmatpush1.msra.mxu0 0.0
    %4879 = vmatprep.subr.mxu0 0.0
    %4880 = vmatpush1.msra.mxu0 0.0
    %4881 = vmatprep.subr.mxu0 0.0
    %4882 = vmatpush1.msra.mxu0 0.0
    %4883 = vmatprep.subr.mxu0 %v4851
    %4884 = vmatpush1.msra.mxu0 %v4849
    %4885 = vmatprep.subr.mxu0 %v4839
    %4886 = vmatpush1.msra.mxu0 %v4838
    %4887 = vmatprep.subr.mxu0 0.0
    %4888 = vmatpush2.msra.mxu0 0.0
    %4889 = vmatprep.subr.mxu0 0.0
    %4890 = vmatpush2.msra.mxu0 0.0
    %4891 = vmatprep.subr.mxu0 0.0
    %4892 = vmatpush2.msra.mxu0 0.0
    %4893 = vmatprep.subr.mxu0 0.0
    %4894 = vmatpush2.msra.mxu0 0.0
    %4895 = vmatprep.subr.mxu0 0.0
    %4896 = vmatpush2.msra.mxu0 0.0
    %4897 = vmatprep.subr.mxu0 0.0
    %4898 = vmatpush2.msra.mxu0 0.0
    %4899 = vmatprep.subr.mxu0 0.0
    %4900 = vmatpush2.msra.mxu0 0.0
    %4901 = vmatprep.subr.mxu0 0.0
    %4902 = vmatpush2.msra.mxu0 0.0
    %4903 = vmatprep.subr.mxu0 0.0
    %4904 = vmatpush2.msra.mxu0 0.0
    %4905 = vmatprep.subr.mxu0 0.0
    %4906 = vmatpush2.msra.mxu0 0.0
    %4907 = vmatprep.subr.mxu0 0.0
    %4908 = vmatpush2.msra.mxu0 0.0
    %4909 = vmatprep.subr.mxu0 0.0
    %4910 = vmatpush2.msra.mxu0 0.0
    %4911 = vmatprep.subr.mxu0 0.0
    %4912 = vmatpush2.msra.mxu0 0.0
    %4913 = vmatprep.subr.mxu0 0.0
    %4914 = vmatpush2.msra.mxu0 0.0
    %4915 = vmatprep.subr.mxu0 0.0
    %4916 = vmatpush2.msra.mxu0 0.0
    %4917 = vmatprep.subr.mxu0 0.0
    %4918 = vmatpush2.msra.mxu0 0.0
    %4919 = vmatprep.mubr.f32.mxu0 0.0
    %4920 = vmatmul.mubr.f32.gmra.mxu0 %v4847
    %v4921 = vpop.f32.mrf.mxu0
    %v4922 = vadd.f32 %v4844, %v4921
    %v4923 = vpop.f32.mrf.mxu0
    %v4924 = vadd.f32 %v4844, %v4923
    %4925 = vdwg.mxu0
    %4926 = vmatprep.subr.mxu0 0.0
    %4927 = vmatpush1.msra.mxu0 0.0
    %4928 = vmatprep.subr.mxu0 0.0
    %4929 = vmatpush1.msra.mxu0 0.0
    %4930 = vmatprep.subr.mxu0 0.0
    %4931 = vmatpush1.msra.mxu0 0.0
    %4932 = vmatprep.subr.mxu0 0.0
    %4933 = vmatpush1.msra.mxu0 0.0
    %4934 = vmatprep.subr.mxu0 0.0
    %4935 = vmatpush1.msra.mxu0 0.0
    %4936 = vmatprep.subr.mxu0 0.0
    %4937 = vmatpush1.msra.mxu0 0.0
    %4938 = vmatprep.subr.mxu0 0.0
    %4939 = vmatpush1.msra.mxu0 0.0
    %4940 = vmatprep.subr.mxu0 0.0
    %4941 = vmatpush1.msra.mxu0 0.0
    %4942 = vmatprep.subr.mxu0 0.0
    %4943 = vmatpush1.msra.mxu0 0.0
    %4944 = vmatprep.subr.mxu0 0.0
    %4945 = vmatpush1.msra.mxu0 0.0
    %4946 = vmatprep.subr.mxu0 0.0
    %4947 = vmatpush1.msra.mxu0 0.0
    %4948 = vmatprep.subr.mxu0 0.0
    %4949 = vmatpush1.msra.mxu0 0.0
    %4950 = vmatprep.subr.mxu0 0.0
    %4951 = vmatpush1.msra.mxu0 0.0
    %4952 = vmatprep.subr.mxu0 0.0
    %4953 = vmatpush1.msra.mxu0 0.0
    %4954 = vmatprep.subr.mxu0 0.0
    %4955 = vmatpush1.msra.mxu0 %v4853
    %4956 = vmatprep.subr.mxu0 0.0
    %4957 = vmatpush1.msra.mxu0 %v4840
    %4958 = vmatprep.subr.mxu0 0.0
    %4959 = vmatpush2.msra.mxu0 0.0
    %4960 = vmatprep.subr.mxu0 0.0
    %4961 = vmatpush2.msra.mxu0 0.0
    %4962 = vmatprep.subr.mxu0 0.0
    %4963 = vmatpush2.msra.mxu0 0.0
    %4964 = vmatprep.subr.mxu0 0.0
    %4965 = vmatpush2.msra.mxu0 0.0
    %4966 = vmatprep.subr.mxu0 0.0
    %4967 = vmatpush2.msra.mxu0 0.0
    %4968 = vmatprep.subr.mxu0 0.0
    %4969 = vmatpush2.msra.mxu0 0.0
    %4970 = vmatprep.subr.mxu0 0.0
    %4971 = vmatpush2.msra.mxu0 0.0
    %4972 = vmatprep.subr.mxu0 0.0
    %4973 = vmatpush2.msra.mxu0 0.0
    %4974 = vmatprep.subr.mxu0 0.0
    %4975 = vmatpush2.msra.mxu0 0.0
    %4976 = vmatprep.subr.mxu0 0.0
    %4977 = vmatpush2.msra.mxu0 0.0
    %4978 = vmatprep.subr.mxu0 0.0
    %4979 = vmatpush2.msra.mxu0 0.0
    %4980 = vmatprep.subr.mxu0 0.0
    %4981 = vmatpush2.msra.mxu0 0.0
    %4982 = vmatprep.subr.mxu0 0.0
    %4983 = vmatpush2.msra.mxu0 0.0
    %4984 = vmatprep.subr.mxu0 0.0
    %4985 = vmatpush2.msra.mxu0 0.0
    %4986 = vmatprep.subr.mxu0 0.0
    %4987 = vmatpush2.msra.mxu0 0.0
    %4988 = vmatprep.subr.mxu0 0.0
    %4989 = vmatpush2.msra.mxu0 0.0
    %4990 = vmatprep.mubr.f32.mxu0 0.0
    %4991 = vmatmul.mubr.f32.gmra.mxu0 %v4847
    %v4992 = vpop.f32.mrf.mxu0
    %v4993 = vadd.f32 %v4844, %v4992
    %v4994 = vpop.f32.mrf.mxu0
    %4995 = vdwg.mxu0
    %vm4996 = vcmp.gt.f32.partialorder %v4922, 20.0
    %vm4997 = vcmp.gt.f32.partialorder %v4924, 20.0
    %vm4998 = vcmp.gt.f32.partialorder %v4993, 20.0
    %v4999 = vmin.f32 %v4922, 20.0
    %v5000 = vmin.f32 %v4924, 20.0
    %v5001 = vmin.f32 %v4993, 20.0
    %v5002 = vmul.f32 %v4999, 1.442695
    %v5003 = vpow.pop %v5002
    %v5004 = vmul.f32 %v5000, 1.442695
    %v5005 = vpow.pop %v5004
    %v5006 = vmul.f32 %v5001, 1.442695
    %v5007 = vpow.pop %v5006
    %v5008 = vadd.f32 %v5003, 1.0
    %v5009 = vadd.f32 %v5005, 1.0
    %v5010 = vadd.f32 %v5007, 1.0
    %v5011 = vlog2.pop %v5008
    %v5012 = vmul.f32 %v5011, 0.6931472
    %v5013 = vlog2.pop %v5009
    %v5014 = vmul.f32 %v5013, 0.6931472
    %v5015 = vlog2.pop %v5010
    %v5016 = vmul.f32 %v5015, 0.6931472
    %v5017 = vsel %vm4996, %v4922, %v5012
    %v5018 = vsel %vm4997, %v4924, %v5014
    %v5019 = vsel %vm4998, %v4993, %v5016
    %v5020 = vtanh.pop %v5017
    %v5021 = vtanh.pop %v5018
    %v5022 = vtanh.pop %v5019
    %v5023 = vmul.f32 %v4922, %v5020
    %v5024 = vmul.f32 %v4924, %v5021
    %v5025 = vmul.f32 %v4993, %v5022
    %v5026 = vadd.f32 %v5023, %v3265
    %v5027 = vadd.f32 %v5024, %v3266
    %v5028 = vadd.f32 %v5025, %v3267
    %v5032 = vcombine.low %v5026, %v5027
    %v5034 = vunpack.c.l.s4 1983009808
    %v5035 = vunpack.c.0.s8 %v5034
    %v5036 = vlaneseq
    %v5037 = vshrl.u32 %v5036, 7
    %v5038 = vsub.s32 %v5035, %v5037
    %v5039 = vrot.slane %v5032, %v5038
    %v5041 = vunpack.c.l.s4 1983009808
    %v5042 = vunpack.c.0.s8 %v5041
    %v5043 = vlaneseq
    %v5044 = vshrl.u32 %v5043, 7
    %v5045 = vsub.s32 %v5042, %v5044
    %v5046 = vrot.slane %v5028, %v5045
    %v5047 = vcombine.low %v5039, %v5046
    %5049 = vst [vmem:[#allocation32] sm:$0x3f] %v5047
    %v5053 = vrot.slane %v805, 1
    %v5054 = vrot.slane %v806, 1
    %v5055 = vrot.slane %v807, 1
    %v5059 = vsel %vm820, %v5053, %v808
    %v5060 = vsel %vm820, %v5054, %v809
    %v5061 = vsel %vm820, %v5055, %v810
    %5065 = vrot.lane.b32.xlu0 %v5059, 34
    %v5066 = vpop.permute.xlu0 %5065
    %5067 = vrot.lane.b32.xlu0 %v5060, 34
    %v5068 = vpop.permute.xlu0 %5067
    %5069 = vrot.lane.b32.xlu0 %v5061, 34
    %v5070 = vpop.permute.xlu0 %5069
    %v5071 = vsel %vm833, %v5066, %v5068
    %v5072 = vsel %vm833, %v5068, %v5070
    %v5076 = vsel %vm833, 0.0, %v5066
    %5077 = vrot.lane.b32.xlu0 %v5059, 33
    %v5078 = vpop.permute.xlu0 %5077
    %5079 = vrot.lane.b32.xlu0 %v5060, 33
    %v5080 = vpop.permute.xlu0 %5079
    %5081 = vrot.lane.b32.xlu0 %v5061, 33
    %v5082 = vpop.permute.xlu0 %5081
    %v5083 = vsel %vm846, %v5078, %v5080
    %v5084 = vsel %vm846, %v5080, %v5082
    %v5086 = vsel %vm846, 0.0, %v5078
    %5087 = vrot.lane.b32.xlu0 %v5059, 32
    %v5088 = vpop.permute.xlu0 %5087
    %5089 = vrot.lane.b32.xlu0 %v5060, 32
    %v5090 = vpop.permute.xlu0 %5089
    %5091 = vrot.lane.b32.xlu0 %v5061, 32
    %v5092 = vpop.permute.xlu0 %5091
    %v5093 = vsel %vm534, %v5088, %v5090
    %v5094 = vsel %vm534, %v5090, %v5092
    %v5096 = vsel %vm534, 0.0, %v5088
    %5097 = vrot.lane.b32.xlu0 %v5059, 31
    %v5098 = vpop.permute.xlu0 %5097
    %5099 = vrot.lane.b32.xlu0 %v5060, 31
    %v5100 = vpop.permute.xlu0 %5099
    %5101 = vrot.lane.b32.xlu0 %v5061, 31
    %v5102 = vpop.permute.xlu0 %5101
    %v5103 = vsel %vm867, %v5098, %v5100
    %v5104 = vsel %vm867, %v5100, %v5102
    %v5106 = vsel %vm867, 0.0, %v5098
    %5107 = vrot.lane.b32.xlu0 %v5059, 30
    %v5108 = vpop.permute.xlu0 %5107
    %5109 = vrot.lane.b32.xlu0 %v5060, 30
    %v5110 = vpop.permute.xlu0 %5109
    %5111 = vrot.lane.b32.xlu0 %v5061, 30
    %v5112 = vpop.permute.xlu0 %5111
    %v5113 = vsel %vm878, %v5108, %v5110
    %v5114 = vsel %vm878, %v5110, %v5112
    %v5118 = vsel %vm878, 0.0, %v5108
    %5119 = vrot.lane.b32.xlu0 %v5059, 18
    %v5120 = vpop.permute.xlu0 %5119
    %5121 = vrot.lane.b32.xlu0 %v5060, 18
    %v5122 = vpop.permute.xlu0 %5121
    %5123 = vrot.lane.b32.xlu0 %v5061, 18
    %v5124 = vpop.permute.xlu0 %5123
    %v5125 = vsel %vm891, %v5120, %v5122
    %v5126 = vsel %vm891, %v5122, %v5124
    %v5128 = vsel %vm891, 0.0, %v5120
    %5129 = vrot.lane.b32.xlu0 %v5059, 17
    %v5130 = vpop.permute.xlu0 %5129
    %5131 = vrot.lane.b32.xlu0 %v5060, 17
    %v5132 = vpop.permute.xlu0 %5131
    %5133 = vrot.lane.b32.xlu0 %v5061, 17
    %v5134 = vpop.permute.xlu0 %5133
    %v5135 = vsel %vm902, %v5130, %v5132
    %v5136 = vsel %vm902, %v5132, %v5134
    %v5138 = vsel %vm902, 0.0, %v5130
    %5139 = vrot.lane.b32.xlu0 %v5059, 16
    %v5140 = vpop.permute.xlu0 %5139
    %5141 = vrot.lane.b32.xlu0 %v5060, 16
    %v5142 = vpop.permute.xlu0 %5141
    %5143 = vrot.lane.b32.xlu0 %v5061, 16
    %v5144 = vpop.permute.xlu0 %5143
    %v5145 = vsel %vm913, %v5140, %v5142
    %v5146 = vsel %vm913, %v5142, %v5144
    %v5148 = vsel %vm913, 0.0, %v5140
    %5149 = vrot.lane.b32.xlu0 %v5059, 15
    %v5150 = vpop.permute.xlu0 %5149
    %5151 = vrot.lane.b32.xlu0 %v5060, 15
    %v5152 = vpop.permute.xlu0 %5151
    %5153 = vrot.lane.b32.xlu0 %v5061, 15
    %v5154 = vpop.permute.xlu0 %5153
    %v5155 = vsel %vm924, %v5150, %v5152
    %v5156 = vsel %vm924, %v5152, %v5154
    %v5160 = vsel %vm924, 0.0, %v5150
    %5161 = vrot.lane.b32.xlu0 %v5059, 14
    %v5162 = vpop.permute.xlu0 %5161
    %5163 = vrot.lane.b32.xlu0 %v5060, 14
    %v5164 = vpop.permute.xlu0 %5163
    %5165 = vrot.lane.b32.xlu0 %v5061, 14
    %v5166 = vpop.permute.xlu0 %5165
    %v5167 = vsel %vm937, %v5162, %v5164
    %v5168 = vsel %vm937, %v5164, %v5166
    %v5170 = vsel %vm937, 0.0, %v5162
    %5171 = vrot.lane.b32.xlu0 %v5059, 2
    %v5172 = vpop.permute.xlu0 %5171
    %5173 = vrot.lane.b32.xlu0 %v5060, 2
    %v5174 = vpop.permute.xlu0 %5173
    %5175 = vrot.lane.b32.xlu0 %v5061, 2
    %v5176 = vpop.permute.xlu0 %5175
    %v5177 = vsel %vm948, %v5172, %v5174
    %v5178 = vsel %vm948, %v5174, %v5176
    %v5180 = vsel %vm948, 0.0, %v5172
    %5181 = vrot.lane.b32.xlu0 %v5059, 1
    %v5182 = vpop.permute.xlu0 %5181
    %5183 = vrot.lane.b32.xlu0 %v5060, 1
    %v5184 = vpop.permute.xlu0 %5183
    %5185 = vrot.lane.b32.xlu0 %v5061, 1
    %v5186 = vpop.permute.xlu0 %5185
    %v5187 = vsel %vm959, %v5182, %v5184
    %v5188 = vsel %vm959, %v5184, %v5186
    %v5190 = vsel %vm959, 0.0, %v5182
    %5191 = vrot.lane.b32.xlu0 %v5059, 127
    %v5192 = vpop.permute.xlu0 %5191
    %5193 = vrot.lane.b32.xlu0 %v5060, 127
    %v5194 = vpop.permute.xlu0 %5193
    %5195 = vrot.lane.b32.xlu0 %v5061, 127
    %v5196 = vpop.permute.xlu0 %5195
    %v5197 = vsel %vm970, %v5192, %v5194
    %v5198 = vsel %vm970, %v5194, %v5196
    %v5200 = vsel %vm970, %v5196, 0.0
    %5201 = vrot.lane.b32.xlu0 %v5059, 126
    %v5202 = vpop.permute.xlu0 %5201
    %5203 = vrot.lane.b32.xlu0 %v5060, 126
    %v5204 = vpop.permute.xlu0 %5203
    %5205 = vrot.lane.b32.xlu0 %v5061, 126
    %v5206 = vpop.permute.xlu0 %5205
    %v5207 = vsel %vm981, %v5202, %v5204
    %v5208 = vsel %vm981, %v5204, %v5206
    %v5210 = vsel %vm981, %v5206, 0.0
    %5211 = vrot.lane.b32.xlu0 %v5059, 114
    %v5212 = vpop.permute.xlu0 %5211
    %5213 = vrot.lane.b32.xlu0 %v5060, 114
    %v5214 = vpop.permute.xlu0 %5213
    %5215 = vrot.lane.b32.xlu0 %v5061, 114
    %v5216 = vpop.permute.xlu0 %5215
    %v5217 = vsel %vm992, %v5212, %v5214
    %v5218 = vsel %vm992, %v5214, %v5216
    %v5220 = vsel %vm992, %v5216, 0.0
    %5221 = vrot.lane.b32.xlu0 %v5059, 113
    %v5222 = vpop.permute.xlu0 %5221
    %5223 = vrot.lane.b32.xlu0 %v5060, 113
    %v5224 = vpop.permute.xlu0 %5223
    %5225 = vrot.lane.b32.xlu0 %v5061, 113
    %v5226 = vpop.permute.xlu0 %5225
    %v5227 = vsel %vm1003, %v5222, %v5224
    %v5228 = vsel %vm1003, %v5224, %v5226
    %v5232 = vsel %vm1003, %v5226, 0.0
    %5233 = vrot.lane.b32.xlu0 %v5059, 112
    %v5234 = vpop.permute.xlu0 %5233
    %5235 = vrot.lane.b32.xlu0 %v5060, 112
    %v5236 = vpop.permute.xlu0 %5235
    %5237 = vrot.lane.b32.xlu0 %v5061, 112
    %v5238 = vpop.permute.xlu0 %5237
    %v5239 = vsel %vm1016, %v5234, %v5236
    %v5240 = vsel %vm1016, %v5236, %v5238
    %v5242 = vsel %vm1016, %v5238, 0.0
    %5243 = vrot.lane.b32.xlu0 %v5059, 111
    %v5244 = vpop.permute.xlu0 %5243
    %5245 = vrot.lane.b32.xlu0 %v5060, 111
    %v5246 = vpop.permute.xlu0 %5245
    %5247 = vrot.lane.b32.xlu0 %v5061, 111
    %v5248 = vpop.permute.xlu0 %5247
    %v5249 = vsel %vm1027, %v5244, %v5246
    %v5250 = vsel %vm1027, %v5246, %v5248
    %v5252 = vsel %vm1027, %v5248, 0.0
    %5253 = vrot.lane.b32.xlu0 %v5059, 110
    %v5254 = vpop.permute.xlu0 %5253
    %5255 = vrot.lane.b32.xlu0 %v5060, 110
    %v5256 = vpop.permute.xlu0 %5255
    %5257 = vrot.lane.b32.xlu0 %v5061, 110
    %v5258 = vpop.permute.xlu0 %5257
    %v5259 = vsel %vm1038, %v5254, %v5256
    %v5260 = vsel %vm1038, %v5256, %v5258
    %v5262 = vsel %vm1038, %v5258, 0.0
    %5263 = vrot.lane.b32.xlu0 %v5059, 98
    %v5264 = vpop.permute.xlu0 %5263
    %5265 = vrot.lane.b32.xlu0 %v5060, 98
    %v5266 = vpop.permute.xlu0 %5265
    %5267 = vrot.lane.b32.xlu0 %v5061, 98
    %v5268 = vpop.permute.xlu0 %5267
    %v5269 = vsel %vm1049, %v5264, %v5266
    %v5270 = vsel %vm1049, %v5266, %v5268
    %v5274 = vsel %vm1049, %v5268, 0.0
    %5275 = vrot.lane.b32.xlu0 %v5059, 97
    %v5276 = vpop.permute.xlu0 %5275
    %5277 = vrot.lane.b32.xlu0 %v5060, 97
    %v5278 = vpop.permute.xlu0 %5277
    %5279 = vrot.lane.b32.xlu0 %v5061, 97
    %v5280 = vpop.permute.xlu0 %5279
    %v5281 = vsel %vm1062, %v5276, %v5278
    %v5282 = vsel %vm1062, %v5278, %v5280
    %v5284 = vsel %vm1062, %v5280, 0.0
    %5285 = vrot.lane.b32.xlu0 %v5059, 96
    %v5286 = vpop.permute.xlu0 %5285
    %5287 = vrot.lane.b32.xlu0 %v5060, 96
    %v5288 = vpop.permute.xlu0 %5287
    %5289 = vrot.lane.b32.xlu0 %v5061, 96
    %v5290 = vpop.permute.xlu0 %5289
    %v5291 = vsel %vm1073, %v5286, %v5288
    %v5292 = vsel %vm1073, %v5288, %v5290
    %v5294 = vsel %vm1073, %v5290, 0.0
    %5295 = vrot.lane.b32.xlu0 %v5059, 95
    %v5296 = vpop.permute.xlu0 %5295
    %5297 = vrot.lane.b32.xlu0 %v5060, 95
    %v5298 = vpop.permute.xlu0 %5297
    %5299 = vrot.lane.b32.xlu0 %v5061, 95
    %v5300 = vpop.permute.xlu0 %5299
    %v5301 = vsel %vm1084, %v5296, %v5298
    %v5302 = vsel %vm1084, %v5298, %v5300
    %v5304 = vsel %vm1084, %v5300, 0.0
    %5305 = vrot.lane.b32.xlu0 %v5059, 94
    %v5306 = vpop.permute.xlu0 %5305
    %5307 = vrot.lane.b32.xlu0 %v5060, 94
    %v5308 = vpop.permute.xlu0 %5307
    %5309 = vrot.lane.b32.xlu0 %v5061, 94
    %v5310 = vpop.permute.xlu0 %5309
    %v5311 = vsel %vm1095, %v5306, %v5308
    %v5312 = vsel %vm1095, %v5308, %v5310
    %v5316 = vsel %vm1095, %v5310, 0.0
    %v5318 = vrot.slane %v5086, 6
    %v5319 = vrot.slane %v5083, 6
    %v5320 = vrot.slane %v5084, 6
    %v5325 = vrot.slane %v5096, 4
    %v5326 = vrot.slane %v5093, 4
    %v5327 = vrot.slane %v5094, 4
    %v5332 = vrot.slane %v5106, 2
    %v5333 = vrot.slane %v5103, 2
    %v5334 = vrot.slane %v5104, 2
    %v5339 = vrot.slane %v5128, 6
    %v5340 = vrot.slane %v5125, 6
    %v5341 = vrot.slane %v5126, 6
    %v5346 = vrot.slane %v5138, 4
    %v5347 = vrot.slane %v5135, 4
    %v5348 = vrot.slane %v5136, 4
    %v5353 = vrot.slane %v5148, 2
    %v5354 = vrot.slane %v5145, 2
    %v5355 = vrot.slane %v5146, 2
    %v5360 = vrot.slane %v5170, 6
    %v5361 = vrot.slane %v5167, 6
    %v5362 = vrot.slane %v5168, 6
    %v5367 = vrot.slane %v5180, 4
    %v5368 = vrot.slane %v5177, 4
    %v5369 = vrot.slane %v5178, 4
    %v5374 = vrot.slane %v5190, 2
    %v5375 = vrot.slane %v5187, 2
    %v5376 = vrot.slane %v5188, 2
    %v5381 = vrot.slane %v5197, 6
    %v5382 = vrot.slane %v5198, 6
    %v5383 = vrot.slane %v5200, 6
    %v5388 = vrot.slane %v5207, 4
    %v5389 = vrot.slane %v5208, 4
    %v5390 = vrot.slane %v5210, 4
    %v5395 = vrot.slane %v5217, 2
    %v5396 = vrot.slane %v5218, 2
    %v5397 = vrot.slane %v5220, 2
    %v5401 = vsel %vm1186, %v5076, %v5318
    %v5402 = vsel %vm1186, %v5071, %v5319
    %v5403 = vsel %vm1186, %v5072, %v5320
    %v5404 = vsel %vm1190, %v5401, %v5325
    %v5405 = vsel %vm1190, %v5402, %v5326
    %v5406 = vsel %vm1190, %v5403, %v5327
    %v5407 = vsel %vm1194, %v5404, %v5332
    %v5408 = vsel %vm1194, %v5405, %v5333
    %v5409 = vsel %vm1194, %v5406, %v5334
    %v5410 = vsel %vm1186, %v5118, %v5339
    %v5411 = vsel %vm1186, %v5113, %v5340
    %v5412 = vsel %vm1186, %v5114, %v5341
    %v5413 = vsel %vm1190, %v5410, %v5346
    %v5414 = vsel %vm1190, %v5411, %v5347
    %v5415 = vsel %vm1190, %v5412, %v5348
    %v5416 = vsel %vm1194, %v5413, %v5353
    %v5417 = vsel %vm1194, %v5414, %v5354
    %v5418 = vsel %vm1194, %v5415, %v5355
    %v5419 = vsel %vm1186, %v5160, %v5360
    %v5420 = vsel %vm1186, %v5155, %v5361
    %v5421 = vsel %vm1186, %v5156, %v5362
    %v5422 = vsel %vm1190, %v5419, %v5367
    %v5423 = vsel %vm1190, %v5420, %v5368
    %v5424 = vsel %vm1190, %v5421, %v5369
    %v5425 = vsel %vm1194, %v5422, %v5374
    %v5426 = vsel %vm1194, %v5423, %v5375
    %v5427 = vsel %vm1194, %v5424, %v5376
    %v5428 = vsel %vm1186, %v5059, %v5381
    %v5429 = vsel %vm1186, %v5060, %v5382
    %v5430 = vsel %vm1186, %v5061, %v5383
    %v5431 = vsel %vm1190, %v5428, %v5388
    %v5432 = vsel %vm1190, %v5429, %v5389
    %v5433 = vsel %vm1190, %v5430, %v5390
    %v5434 = vsel %vm1194, %v5431, %v5395
    %v5435 = vsel %vm1194, %v5432, %v5396
    %v5436 = vsel %vm1194, %v5433, %v5397
    %v5438 = vrot.slane %v5239, 6
    %v5439 = vrot.slane %v5240, 6
    %v5440 = vrot.slane %v5242, 6
    %v5445 = vrot.slane %v5249, 4
    %v5446 = vrot.slane %v5250, 4
    %v5447 = vrot.slane %v5252, 4
    %v5452 = vrot.slane %v5259, 2
    %v5453 = vrot.slane %v5260, 2
    %v5454 = vrot.slane %v5262, 2
    %v5459 = vrot.slane %v5281, 6
    %v5460 = vrot.slane %v5282, 6
    %v5461 = vrot.slane %v5284, 6
    %v5466 = vrot.slane %v5291, 4
    %v5467 = vrot.slane %v5292, 4
    %v5468 = vrot.slane %v5294, 4
    %v5473 = vrot.slane %v5301, 2
    %v5474 = vrot.slane %v5302, 2
    %v5475 = vrot.slane %v5304, 2
    %v5479 = vsel %vm1186, %v5227, %v5438
    %v5480 = vsel %vm1186, %v5228, %v5439
    %v5481 = vsel %vm1186, %v5232, %v5440
    %v5482 = vsel %vm1190, %v5479, %v5445
    %v5483 = vsel %vm1190, %v5480, %v5446
    %v5484 = vsel %vm1190, %v5481, %v5447
    %v5485 = vsel %vm1194, %v5482, %v5452
    %v5486 = vsel %vm1194, %v5483, %v5453
    %v5487 = vsel %vm1194, %v5484, %v5454
    %v5488 = vsel %vm1186, %v5269, %v5459
    %v5489 = vsel %vm1186, %v5270, %v5460
    %v5490 = vsel %vm1186, %v5274, %v5461
    %v5491 = vsel %vm1190, %v5488, %v5466
    %v5492 = vsel %vm1190, %v5489, %v5467
    %v5493 = vsel %vm1190, %v5490, %v5468
    %v5494 = vsel %vm1194, %v5491, %v5473
    %v5495 = vsel %vm1194, %v5492, %v5474
    %v5496 = vsel %vm1194, %v5493, %v5475
    %v5497 = vmul.f32 %v5407, %v402
    %v5498 = vmul.f32 %v5408, %v403
    %v5499 = vmul.f32 %v5409, %v404
    %v5500 = vmul.f32 %v5416, %v405
    %v5501 = vmul.f32 %v5417, %v406
    %v5502 = vmul.f32 %v5418, %v407
    %v5503 = vmul.f32 %v5425, %v408
    %v5504 = vmul.f32 %v5426, %v409
    %v5505 = vmul.f32 %v5427, %v410
    %v5506 = vmul.f32 %v5434, %v411
    %v5507 = vmul.f32 %v5435, %v412
    %v5508 = vmul.f32 %v5436, %v413
    %v5509 = vmul.f32 %v5485, %v414
    %v5510 = vmul.f32 %v5486, %v415
    %v5511 = vmul.f32 %v5487, %v416
    %v5512 = vmul.f32 %v5494, %v417
    %v5513 = vmul.f32 %v5495, %v418
    %v5514 = vmul.f32 %v5496, %v419
    %v5515 = vmul.f32 %v5311, %v420
    %v5516 = vmul.f32 %v5312, %v421
    %v5517 = vmul.f32 %v5316, %v422
    %v5519 = vsel %vm1186, %v5515, 0
    %v5522 = vsel %vm1186, %v5516, 0
    %v5525 = vsel %vm1186, %v5517, 0
    %5527 = vmatprep.subr.mxu0 0.0
    %5528 = vmatpush1.msra.mxu0 0.0
    %5529 = vmatprep.subr.mxu0 0.0
    %5530 = vmatpush1.msra.mxu0 0.0
    %5531 = vmatprep.subr.mxu0 0.0
    %5532 = vmatpush1.msra.mxu0 0.0
    %5533 = vmatprep.subr.mxu0 0.0
    %5534 = vmatpush1.msra.mxu0 0.0
    %5535 = vmatprep.subr.mxu0 0.0
    %5536 = vmatpush1.msra.mxu0 0.0
    %5537 = vmatprep.subr.mxu0 0.0
    %5538 = vmatpush1.msra.mxu0 0.0
    %5539 = vmatprep.subr.mxu0 0.0
    %5540 = vmatpush1.msra.mxu0 0.0
    %5541 = vmatprep.subr.mxu0 0.0
    %5542 = vmatpush1.msra.mxu0 0.0
    %5543 = vmatprep.subr.mxu0 0.0
    %5544 = vmatpush1.msra.mxu0 0.0
    %5545 = vmatprep.subr.mxu0 %v5522
    %5546 = vmatpush1.msra.mxu0 %v5519
    %5547 = vmatprep.subr.mxu0 %v5513
    %5548 = vmatpush1.msra.mxu0 %v5512
    %5549 = vmatprep.subr.mxu0 %v5510
    %5550 = vmatpush1.msra.mxu0 %v5509
    %5551 = vmatprep.subr.mxu0 %v5507
    %5552 = vmatpush1.msra.mxu0 %v5506
    %5553 = vmatprep.subr.mxu0 %v5504
    %5554 = vmatpush1.msra.mxu0 %v5503
    %5555 = vmatprep.subr.mxu0 %v5501
    %5556 = vmatpush1.msra.mxu0 %v5500
    %5557 = vmatprep.subr.mxu0 %v5498
    %5558 = vmatpush1.msra.mxu0 %v5497
    %5559 = vmatprep.subr.mxu0 0.0
    %5560 = vmatpush2.msra.mxu0 0.0
    %5561 = vmatprep.subr.mxu0 0.0
    %5562 = vmatpush2.msra.mxu0 0.0
    %5563 = vmatprep.subr.mxu0 0.0
    %5564 = vmatpush2.msra.mxu0 0.0
    %5565 = vmatprep.subr.mxu0 0.0
    %5566 = vmatpush2.msra.mxu0 0.0
    %5567 = vmatprep.subr.mxu0 0.0
    %5568 = vmatpush2.msra.mxu0 0.0
    %5569 = vmatprep.subr.mxu0 0.0
    %5570 = vmatpush2.msra.mxu0 0.0
    %5571 = vmatprep.subr.mxu0 0.0
    %5572 = vmatpush2.msra.mxu0 0.0
    %5573 = vmatprep.subr.mxu0 0.0
    %5574 = vmatpush2.msra.mxu0 0.0
    %5575 = vmatprep.subr.mxu0 0.0
    %5576 = vmatpush2.msra.mxu0 0.0
    %5577 = vmatprep.subr.mxu0 0.0
    %5578 = vmatpush2.msra.mxu0 0.0
    %5579 = vmatprep.subr.mxu0 0.0
    %5580 = vmatpush2.msra.mxu0 0.0
    %5581 = vmatprep.subr.mxu0 0.0
    %5582 = vmatpush2.msra.mxu0 0.0
    %5583 = vmatprep.subr.mxu0 0.0
    %5584 = vmatpush2.msra.mxu0 0.0
    %5585 = vmatprep.subr.mxu0 0.0
    %5586 = vmatpush2.msra.mxu0 0.0
    %5587 = vmatprep.subr.mxu0 0.0
    %5588 = vmatpush2.msra.mxu0 0.0
    %5589 = vmatprep.subr.mxu0 0.0
    %5590 = vmatpush2.msra.mxu0 0.0
    %5591 = vmatprep.mubr.f32.mxu0 0.0
    %5592 = vmatmul.mubr.f32.gmra.mxu0 %v1313
    %v5593 = vpop.f32.mrf.mxu0
    %v5594 = vadd.f32 %v1309, %v5593
    %v5595 = vpop.f32.mrf.mxu0
    %v5596 = vadd.f32 %v1309, %v5595
    %5597 = vdwg.mxu0
    %5598 = vmatprep.subr.mxu0 0.0
    %5599 = vmatpush1.msra.mxu0 0.0
    %5600 = vmatprep.subr.mxu0 0.0
    %5601 = vmatpush1.msra.mxu0 0.0
    %5602 = vmatprep.subr.mxu0 0.0
    %5603 = vmatpush1.msra.mxu0 0.0
    %5604 = vmatprep.subr.mxu0 0.0
    %5605 = vmatpush1.msra.mxu0 0.0
    %5606 = vmatprep.subr.mxu0 0.0
    %5607 = vmatpush1.msra.mxu0 0.0
    %5608 = vmatprep.subr.mxu0 0.0
    %5609 = vmatpush1.msra.mxu0 0.0
    %5610 = vmatprep.subr.mxu0 0.0
    %5611 = vmatpush1.msra.mxu0 0.0
    %5612 = vmatprep.subr.mxu0 0.0
    %5613 = vmatpush1.msra.mxu0 0.0
    %5614 = vmatprep.subr.mxu0 0.0
    %5615 = vmatpush1.msra.mxu0 0.0
    %5616 = vmatprep.subr.mxu0 0.0
    %5617 = vmatpush1.msra.mxu0 %v5525
    %5618 = vmatprep.subr.mxu0 0.0
    %5619 = vmatpush1.msra.mxu0 %v5514
    %5620 = vmatprep.subr.mxu0 0.0
    %5621 = vmatpush1.msra.mxu0 %v5511
    %5622 = vmatprep.subr.mxu0 0.0
    %5623 = vmatpush1.msra.mxu0 %v5508
    %5624 = vmatprep.subr.mxu0 0.0
    %5625 = vmatpush1.msra.mxu0 %v5505
    %5626 = vmatprep.subr.mxu0 0.0
    %5627 = vmatpush1.msra.mxu0 %v5502
    %5628 = vmatprep.subr.mxu0 0.0
    %5629 = vmatpush1.msra.mxu0 %v5499
    %5630 = vmatprep.subr.mxu0 0.0
    %5631 = vmatpush2.msra.mxu0 0.0
    %5632 = vmatprep.subr.mxu0 0.0
    %5633 = vmatpush2.msra.mxu0 0.0
    %5634 = vmatprep.subr.mxu0 0.0
    %5635 = vmatpush2.msra.mxu0 0.0
    %5636 = vmatprep.subr.mxu0 0.0
    %5637 = vmatpush2.msra.mxu0 0.0
    %5638 = vmatprep.subr.mxu0 0.0
    %5639 = vmatpush2.msra.mxu0 0.0
    %5640 = vmatprep.subr.mxu0 0.0
    %5641 = vmatpush2.msra.mxu0 0.0
    %5642 = vmatprep.subr.mxu0 0.0
    %5643 = vmatpush2.msra.mxu0 0.0
    %5644 = vmatprep.subr.mxu0 0.0
    %5645 = vmatpush2.msra.mxu0 0.0
    %5646 = vmatprep.subr.mxu0 0.0
    %5647 = vmatpush2.msra.mxu0 0.0
    %5648 = vmatprep.subr.mxu0 0.0
    %5649 = vmatpush2.msra.mxu0 0.0
    %5650 = vmatprep.subr.mxu0 0.0
    %5651 = vmatpush2.msra.mxu0 0.0
    %5652 = vmatprep.subr.mxu0 0.0
    %5653 = vmatpush2.msra.mxu0 0.0
    %5654 = vmatprep.subr.mxu0 0.0
    %5655 = vmatpush2.msra.mxu0 0.0
    %5656 = vmatprep.subr.mxu0 0.0
    %5657 = vmatpush2.msra.mxu0 0.0
    %5658 = vmatprep.subr.mxu0 0.0
    %5659 = vmatpush2.msra.mxu0 0.0
    %5660 = vmatprep.subr.mxu0 0.0
    %5661 = vmatpush2.msra.mxu0 0.0
    %5662 = vmatprep.mubr.f32.mxu0 0.0
    %5663 = vmatmul.mubr.f32.gmra.mxu0 %v1313
    %v5664 = vpop.f32.mrf.mxu0
    %v5665 = vadd.f32 %v1309, %v5664
    %v5666 = vpop.f32.mrf.mxu0
    %5667 = vdwg.mxu0
    %vm5668 = vcmp.gt.f32.partialorder %v5594, 20.0
    %vm5669 = vcmp.gt.f32.partialorder %v5596, 20.0
    %vm5670 = vcmp.gt.f32.partialorder %v5665, 20.0
    %v5671 = vmin.f32 %v5594, 20.0
    %v5672 = vmin.f32 %v5596, 20.0
    %v5673 = vmin.f32 %v5665, 20.0
    %v5674 = vmul.f32 %v5671, 1.442695
    %v5675 = vpow.pop %v5674
    %v5676 = vmul.f32 %v5672, 1.442695
    %v5677 = vpow.pop %v5676
    %v5678 = vmul.f32 %v5673, 1.442695
    %v5679 = vpow.pop %v5678
    %v5680 = vadd.f32 %v5675, 1.0
    %v5681 = vadd.f32 %v5677, 1.0
    %v5682 = vadd.f32 %v5679, 1.0
    %v5683 = vlog2.pop %v5680
    %v5684 = vmul.f32 %v5683, 0.6931472
    %v5685 = vlog2.pop %v5681
    %v5686 = vmul.f32 %v5685, 0.6931472
    %v5687 = vlog2.pop %v5682
    %v5688 = vmul.f32 %v5687, 0.6931472
    %v5689 = vsel %vm5668, %v5594, %v5684
    %v5690 = vsel %vm5669, %v5596, %v5686
    %v5691 = vsel %vm5670, %v5665, %v5688
    %v5692 = vtanh.pop %v5689
    %v5693 = vtanh.pop %v5690
    %v5694 = vtanh.pop %v5691
    %v5695 = vmul.f32 %v5594, %v5692
    %v5696 = vmul.f32 %v5596, %v5693
    %v5697 = vmul.f32 %v5665, %v5694
    %5701 = vrot.lane.b32.xlu0 %v5695, 17
    %v5702 = vpop.permute.xlu0 %5701
    %5703 = vrot.lane.b32.xlu0 %v5696, 17
    %v5704 = vpop.permute.xlu0 %5703
    %5705 = vrot.lane.b32.xlu0 %v5697, 17
    %v5706 = vpop.permute.xlu0 %5705
    %v5707 = vsel %vm902, %v5702, %v5704
    %v5708 = vsel %vm902, %v5704, %v5706
    %v5712 = vsel %vm902, 0.0, %v5702
    %5713 = vrot.lane.b32.xlu0 %v5695, 16
    %v5714 = vpop.permute.xlu0 %5713
    %5715 = vrot.lane.b32.xlu0 %v5696, 16
    %v5716 = vpop.permute.xlu0 %5715
    %5717 = vrot.lane.b32.xlu0 %v5697, 16
    %v5718 = vpop.permute.xlu0 %5717
    %v5719 = vsel %vm913, %v5714, %v5716
    %v5720 = vsel %vm913, %v5716, %v5718
    %v5722 = vsel %vm913, 0.0, %v5714
    %5723 = vrot.lane.b32.xlu0 %v5695, 15
    %v5724 = vpop.permute.xlu0 %5723
    %5725 = vrot.lane.b32.xlu0 %v5696, 15
    %v5726 = vpop.permute.xlu0 %5725
    %5727 = vrot.lane.b32.xlu0 %v5697, 15
    %v5728 = vpop.permute.xlu0 %5727
    %v5729 = vsel %vm924, %v5724, %v5726
    %v5730 = vsel %vm924, %v5726, %v5728
    %v5732 = vsel %vm924, 0.0, %v5724
    %5733 = vrot.lane.b32.xlu0 %v5695, 1
    %v5734 = vpop.permute.xlu0 %5733
    %5735 = vrot.lane.b32.xlu0 %v5696, 1
    %v5736 = vpop.permute.xlu0 %5735
    %5737 = vrot.lane.b32.xlu0 %v5697, 1
    %v5738 = vpop.permute.xlu0 %5737
    %v5739 = vsel %vm959, %v5734, %v5736
    %v5740 = vsel %vm959, %v5736, %v5738
    %v5742 = vsel %vm959, 0.0, %v5734
    %5743 = vrot.lane.b32.xlu0 %v5695, 127
    %v5744 = vpop.permute.xlu0 %5743
    %5745 = vrot.lane.b32.xlu0 %v5696, 127
    %v5746 = vpop.permute.xlu0 %5745
    %5747 = vrot.lane.b32.xlu0 %v5697, 127
    %v5748 = vpop.permute.xlu0 %5747
    %v5749 = vsel %vm970, %v5744, %v5746
    %v5750 = vsel %vm970, %v5746, %v5748
    %v5752 = vsel %vm970, %v5748, 0.0
    %5753 = vrot.lane.b32.xlu0 %v5695, 113
    %v5754 = vpop.permute.xlu0 %5753
    %5755 = vrot.lane.b32.xlu0 %v5696, 113
    %v5756 = vpop.permute.xlu0 %5755
    %5757 = vrot.lane.b32.xlu0 %v5697, 113
    %v5758 = vpop.permute.xlu0 %5757
    %v5759 = vsel %vm1003, %v5754, %v5756
    %v5760 = vsel %vm1003, %v5756, %v5758
    %v5762 = vsel %vm1003, %v5758, 0.0
    %5763 = vrot.lane.b32.xlu0 %v5695, 112
    %v5764 = vpop.permute.xlu0 %5763
    %5765 = vrot.lane.b32.xlu0 %v5696, 112
    %v5766 = vpop.permute.xlu0 %5765
    %5767 = vrot.lane.b32.xlu0 %v5697, 112
    %v5768 = vpop.permute.xlu0 %5767
    %v5769 = vsel %vm1016, %v5764, %v5766
    %v5770 = vsel %vm1016, %v5766, %v5768
    %v5772 = vsel %vm1016, %v5768, 0.0
    %5773 = vrot.lane.b32.xlu0 %v5695, 111
    %v5774 = vpop.permute.xlu0 %5773
    %5775 = vrot.lane.b32.xlu0 %v5696, 111
    %v5776 = vpop.permute.xlu0 %5775
    %5777 = vrot.lane.b32.xlu0 %v5697, 111
    %v5778 = vpop.permute.xlu0 %5777
    %v5779 = vsel %vm1027, %v5774, %v5776
    %v5780 = vsel %vm1027, %v5776, %v5778
    %v5784 = vsel %vm1027, %v5778, 0.0
    %v5786 = vrot.slane %v5722, 6
    %v5787 = vrot.slane %v5719, 6
    %v5788 = vrot.slane %v5720, 6
    %v5793 = vrot.slane %v5732, 4
    %v5794 = vrot.slane %v5729, 4
    %v5795 = vrot.slane %v5730, 4
    %v5800 = vrot.slane %v5742, 2
    %v5801 = vrot.slane %v5739, 2
    %v5802 = vrot.slane %v5740, 2
    %v5807 = vrot.slane %v5749, 6
    %v5808 = vrot.slane %v5750, 6
    %v5809 = vrot.slane %v5752, 6
    %v5814 = vrot.slane %v5759, 4
    %v5815 = vrot.slane %v5760, 4
    %v5816 = vrot.slane %v5762, 4
    %v5821 = vrot.slane %v5769, 2
    %v5822 = vrot.slane %v5770, 2
    %v5823 = vrot.slane %v5772, 2
    %v5827 = vsel %vm1186, %v5712, %v5786
    %v5828 = vsel %vm1186, %v5707, %v5787
    %v5829 = vsel %vm1186, %v5708, %v5788
    %v5830 = vsel %vm1190, %v5827, %v5793
    %v5831 = vsel %vm1190, %v5828, %v5794
    %v5832 = vsel %vm1190, %v5829, %v5795
    %v5833 = vsel %vm1194, %v5830, %v5800
    %v5834 = vsel %vm1194, %v5831, %v5801
    %v5835 = vsel %vm1194, %v5832, %v5802
    %v5836 = vsel %vm1186, %v5695, %v5807
    %v5837 = vsel %vm1186, %v5696, %v5808
    %v5838 = vsel %vm1186, %v5697, %v5809
    %v5839 = vsel %vm1190, %v5836, %v5814
    %v5840 = vsel %vm1190, %v5837, %v5815
    %v5841 = vsel %vm1190, %v5838, %v5816
    %v5842 = vsel %vm1194, %v5839, %v5821
    %v5843 = vsel %vm1194, %v5840, %v5822
    %v5844 = vsel %vm1194, %v5841, %v5823
    %v5845 = vmul.f32 %v5833, %v423
    %v5846 = vmul.f32 %v5834, %v424
    %v5847 = vmul.f32 %v5835, %v425
    %v5848 = vmul.f32 %v5842, %v426
    %v5849 = vmul.f32 %v5843, %v427
    %v5850 = vmul.f32 %v5844, %v428
    %v5851 = vmul.f32 %v5779, %v429
    %v5852 = vmul.f32 %v5780, %v430
    %v5853 = vmul.f32 %v5784, %v431
    %v5855 = vsel %vm1186, %v5851, 0
    %v5858 = vsel %vm1186, %v5852, 0
    %v5861 = vsel %vm1186, %v5853, 0
    %5863 = vmatprep.subr.mxu0 0.0
    %5864 = vmatpush1.msra.mxu0 0.0
    %5865 = vmatprep.subr.mxu0 0.0
    %5866 = vmatpush1.msra.mxu0 0.0
    %5867 = vmatprep.subr.mxu0 0.0
    %5868 = vmatpush1.msra.mxu0 0.0
    %5869 = vmatprep.subr.mxu0 0.0
    %5870 = vmatpush1.msra.mxu0 0.0
    %5871 = vmatprep.subr.mxu0 0.0
    %5872 = vmatpush1.msra.mxu0 0.0
    %5873 = vmatprep.subr.mxu0 0.0
    %5874 = vmatpush1.msra.mxu0 0.0
    %5875 = vmatprep.subr.mxu0 0.0
    %5876 = vmatpush1.msra.mxu0 0.0
    %5877 = vmatprep.subr.mxu0 0.0
    %5878 = vmatpush1.msra.mxu0 0.0
    %5879 = vmatprep.subr.mxu0 0.0
    %5880 = vmatpush1.msra.mxu0 0.0
    %5881 = vmatprep.subr.mxu0 0.0
    %5882 = vmatpush1.msra.mxu0 0.0
    %5883 = vmatprep.subr.mxu0 0.0
    %5884 = vmatpush1.msra.mxu0 0.0
    %5885 = vmatprep.subr.mxu0 0.0
    %5886 = vmatpush1.msra.mxu0 0.0
    %5887 = vmatprep.subr.mxu0 0.0
    %5888 = vmatpush1.msra.mxu0 0.0
    %5889 = vmatprep.subr.mxu0 %v5858
    %5890 = vmatpush1.msra.mxu0 %v5855
    %5891 = vmatprep.subr.mxu0 %v5849
    %5892 = vmatpush1.msra.mxu0 %v5848
    %5893 = vmatprep.subr.mxu0 %v5846
    %5894 = vmatpush1.msra.mxu0 %v5845
    %5895 = vmatprep.subr.mxu0 0.0
    %5896 = vmatpush2.msra.mxu0 0.0
    %5897 = vmatprep.subr.mxu0 0.0
    %5898 = vmatpush2.msra.mxu0 0.0
    %5899 = vmatprep.subr.mxu0 0.0
    %5900 = vmatpush2.msra.mxu0 0.0
    %5901 = vmatprep.subr.mxu0 0.0
    %5902 = vmatpush2.msra.mxu0 0.0
    %5903 = vmatprep.subr.mxu0 0.0
    %5904 = vmatpush2.msra.mxu0 0.0
    %5905 = vmatprep.subr.mxu0 0.0
    %5906 = vmatpush2.msra.mxu0 0.0
    %5907 = vmatprep.subr.mxu0 0.0
    %5908 = vmatpush2.msra.mxu0 0.0
    %5909 = vmatprep.subr.mxu0 0.0
    %5910 = vmatpush2.msra.mxu0 0.0
    %5911 = vmatprep.subr.mxu0 0.0
    %5912 = vmatpush2.msra.mxu0 0.0
    %5913 = vmatprep.subr.mxu0 0.0
    %5914 = vmatpush2.msra.mxu0 0.0
    %5915 = vmatprep.subr.mxu0 0.0
    %5916 = vmatpush2.msra.mxu0 0.0
    %5917 = vmatprep.subr.mxu0 0.0
    %5918 = vmatpush2.msra.mxu0 0.0
    %5919 = vmatprep.subr.mxu0 0.0
    %5920 = vmatpush2.msra.mxu0 0.0
    %5921 = vmatprep.subr.mxu0 0.0
    %5922 = vmatpush2.msra.mxu0 0.0
    %5923 = vmatprep.subr.mxu0 0.0
    %5924 = vmatpush2.msra.mxu0 0.0
    %5925 = vmatprep.subr.mxu0 0.0
    %5926 = vmatpush2.msra.mxu0 0.0
    %5927 = vmatprep.mubr.f32.mxu0 0.0
    %5928 = vmatmul.mubr.f32.gmra.mxu0 %v1657
    %v5929 = vpop.f32.mrf.mxu0
    %v5930 = vadd.f32 %v1654, %v5929
    %v5931 = vpop.f32.mrf.mxu0
    %v5932 = vadd.f32 %v1654, %v5931
    %5933 = vdwg.mxu0
    %5934 = vmatprep.subr.mxu0 0.0
    %5935 = vmatpush1.msra.mxu0 0.0
    %5936 = vmatprep.subr.mxu0 0.0
    %5937 = vmatpush1.msra.mxu0 0.0
    %5938 = vmatprep.subr.mxu0 0.0
    %5939 = vmatpush1.msra.mxu0 0.0
    %5940 = vmatprep.subr.mxu0 0.0
    %5941 = vmatpush1.msra.mxu0 0.0
    %5942 = vmatprep.subr.mxu0 0.0
    %5943 = vmatpush1.msra.mxu0 0.0
    %5944 = vmatprep.subr.mxu0 0.0
    %5945 = vmatpush1.msra.mxu0 0.0
    %5946 = vmatprep.subr.mxu0 0.0
    %5947 = vmatpush1.msra.mxu0 0.0
    %5948 = vmatprep.subr.mxu0 0.0
    %5949 = vmatpush1.msra.mxu0 0.0
    %5950 = vmatprep.subr.mxu0 0.0
    %5951 = vmatpush1.msra.mxu0 0.0
    %5952 = vmatprep.subr.mxu0 0.0
    %5953 = vmatpush1.msra.mxu0 0.0
    %5954 = vmatprep.subr.mxu0 0.0
    %5955 = vmatpush1.msra.mxu0 0.0
    %5956 = vmatprep.subr.mxu0 0.0
    %5957 = vmatpush1.msra.mxu0 0.0
    %5958 = vmatprep.subr.mxu0 0.0
    %5959 = vmatpush1.msra.mxu0 0.0
    %5960 = vmatprep.subr.mxu0 0.0
    %5961 = vmatpush1.msra.mxu0 %v5861
    %5962 = vmatprep.subr.mxu0 0.0
    %5963 = vmatpush1.msra.mxu0 %v5850
    %5964 = vmatprep.subr.mxu0 0.0
    %5965 = vmatpush1.msra.mxu0 %v5847
    %5966 = vmatprep.subr.mxu0 0.0
    %5967 = vmatpush2.msra.mxu0 0.0
    %5968 = vmatprep.subr.mxu0 0.0
    %5969 = vmatpush2.msra.mxu0 0.0
    %5970 = vmatprep.subr.mxu0 0.0
    %5971 = vmatpush2.msra.mxu0 0.0
    %5972 = vmatprep.subr.mxu0 0.0
    %5973 = vmatpush2.msra.mxu0 0.0
    %5974 = vmatprep.subr.mxu0 0.0
    %5975 = vmatpush2.msra.mxu0 0.0
    %5976 = vmatprep.subr.mxu0 0.0
    %5977 = vmatpush2.msra.mxu0 0.0
    %5978 = vmatprep.subr.mxu0 0.0
    %5979 = vmatpush2.msra.mxu0 0.0
    %5980 = vmatprep.subr.mxu0 0.0
    %5981 = vmatpush2.msra.mxu0 0.0
    %5982 = vmatprep.subr.mxu0 0.0
    %5983 = vmatpush2.msra.mxu0 0.0
    %5984 = vmatprep.subr.mxu0 0.0
    %5985 = vmatpush2.msra.mxu0 0.0
    %5986 = vmatprep.subr.mxu0 0.0
    %5987 = vmatpush2.msra.mxu0 0.0
    %5988 = vmatprep.subr.mxu0 0.0
    %5989 = vmatpush2.msra.mxu0 0.0
    %5990 = vmatprep.subr.mxu0 0.0
    %5991 = vmatpush2.msra.mxu0 0.0
    %5992 = vmatprep.subr.mxu0 0.0
    %5993 = vmatpush2.msra.mxu0 0.0
    %5994 = vmatprep.subr.mxu0 0.0
    %5995 = vmatpush2.msra.mxu0 0.0
    %5996 = vmatprep.subr.mxu0 0.0
    %5997 = vmatpush2.msra.mxu0 0.0
    %5998 = vmatprep.mubr.f32.mxu0 0.0
    %5999 = vmatmul.mubr.f32.gmra.mxu0 %v1657
    %v6000 = vpop.f32.mrf.mxu0
    %v6001 = vadd.f32 %v1654, %v6000
    %v6002 = vpop.f32.mrf.mxu0
    %6003 = vdwg.mxu0
    %vm6004 = vcmp.gt.f32.partialorder %v5930, 20.0
    %vm6005 = vcmp.gt.f32.partialorder %v5932, 20.0
    %vm6006 = vcmp.gt.f32.partialorder %v6001, 20.0
    %v6007 = vmin.f32 %v5930, 20.0
    %v6008 = vmin.f32 %v5932, 20.0
    %v6009 = vmin.f32 %v6001, 20.0
    %v6010 = vmul.f32 %v6007, 1.442695
    %v6011 = vpow.pop %v6010
    %v6012 = vmul.f32 %v6008, 1.442695
    %v6013 = vpow.pop %v6012
    %v6014 = vmul.f32 %v6009, 1.442695
    %v6015 = vpow.pop %v6014
    %v6016 = vadd.f32 %v6011, 1.0
    %v6017 = vadd.f32 %v6013, 1.0
    %v6018 = vadd.f32 %v6015, 1.0
    %v6019 = vlog2.pop %v6016
    %v6020 = vmul.f32 %v6019, 0.6931472
    %v6021 = vlog2.pop %v6017
    %v6022 = vmul.f32 %v6021, 0.6931472
    %v6023 = vlog2.pop %v6018
    %v6024 = vmul.f32 %v6023, 0.6931472
    %v6025 = vsel %vm6004, %v5930, %v6020
    %v6026 = vsel %vm6005, %v5932, %v6022
    %v6027 = vsel %vm6006, %v6001, %v6024
    %v6028 = vtanh.pop %v6025
    %v6029 = vtanh.pop %v6026
    %v6030 = vtanh.pop %v6027
    %v6031 = vmul.f32 %v5930, %v6028
    %v6032 = vmul.f32 %v5932, %v6029
    %v6033 = vmul.f32 %v6001, %v6030
    %6037 = vrot.lane.b32.xlu0 %v6031, 4
    %v6038 = vpop.permute.xlu0 %6037
    %6039 = vrot.lane.b32.xlu0 %v6032, 4
    %v6040 = vpop.permute.xlu0 %6039
    %6041 = vrot.lane.b32.xlu0 %v6033, 4
    %v6042 = vpop.permute.xlu0 %6041
    %v6043 = vsel %vm1848, %v6038, %v6040
    %v6044 = vsel %vm1848, %v6040, %v6042
    %v6048 = vsel %vm1848, 0.0, %v6038
    %6049 = vrot.lane.b32.xlu0 %v6031, 3
    %v6050 = vpop.permute.xlu0 %6049
    %6051 = vrot.lane.b32.xlu0 %v6032, 3
    %v6052 = vpop.permute.xlu0 %6051
    %6053 = vrot.lane.b32.xlu0 %v6033, 3
    %v6054 = vpop.permute.xlu0 %6053
    %v6055 = vsel %vm1861, %v6050, %v6052
    %v6056 = vsel %vm1861, %v6052, %v6054
    %v6058 = vsel %vm1861, 0.0, %v6050
    %6059 = vrot.lane.b32.xlu0 %v6031, 2
    %v6060 = vpop.permute.xlu0 %6059
    %6061 = vrot.lane.b32.xlu0 %v6032, 2
    %v6062 = vpop.permute.xlu0 %6061
    %6063 = vrot.lane.b32.xlu0 %v6033, 2
    %v6064 = vpop.permute.xlu0 %6063
    %v6065 = vsel %vm948, %v6060, %v6062
    %v6066 = vsel %vm948, %v6062, %v6064
    %v6068 = vsel %vm948, 0.0, %v6060
    %6069 = vrot.lane.b32.xlu0 %v6031, 1
    %v6070 = vpop.permute.xlu0 %6069
    %6071 = vrot.lane.b32.xlu0 %v6032, 1
    %v6072 = vpop.permute.xlu0 %6071
    %6073 = vrot.lane.b32.xlu0 %v6033, 1
    %v6074 = vpop.permute.xlu0 %6073
    %v6075 = vsel %vm959, %v6070, %v6072
    %v6076 = vsel %vm959, %v6072, %v6074
    %v6078 = vsel %vm959, 0.0, %v6070
    %6079 = vrot.lane.b32.xlu0 %v6031, 127
    %v6080 = vpop.permute.xlu0 %6079
    %6081 = vrot.lane.b32.xlu0 %v6032, 127
    %v6082 = vpop.permute.xlu0 %6081
    %6083 = vrot.lane.b32.xlu0 %v6033, 127
    %v6084 = vpop.permute.xlu0 %6083
    %v6085 = vsel %vm970, %v6080, %v6082
    %v6086 = vsel %vm970, %v6082, %v6084
    %v6088 = vsel %vm970, %v6084, 0.0
    %6089 = vrot.lane.b32.xlu0 %v6031, 126
    %v6090 = vpop.permute.xlu0 %6089
    %6091 = vrot.lane.b32.xlu0 %v6032, 126
    %v6092 = vpop.permute.xlu0 %6091
    %6093 = vrot.lane.b32.xlu0 %v6033, 126
    %v6094 = vpop.permute.xlu0 %6093
    %v6095 = vsel %vm981, %v6090, %v6092
    %v6096 = vsel %vm981, %v6092, %v6094
    %v6098 = vsel %vm981, %v6094, 0.0
    %6099 = vrot.lane.b32.xlu0 %v6031, 125
    %v6100 = vpop.permute.xlu0 %6099
    %6101 = vrot.lane.b32.xlu0 %v6032, 125
    %v6102 = vpop.permute.xlu0 %6101
    %6103 = vrot.lane.b32.xlu0 %v6033, 125
    %v6104 = vpop.permute.xlu0 %6103
    %v6105 = vsel %vm1912, %v6100, %v6102
    %v6106 = vsel %vm1912, %v6102, %v6104
    %v6108 = vsel %vm1912, %v6104, 0.0
    %6109 = vrot.lane.b32.xlu0 %v6031, 124
    %v6110 = vpop.permute.xlu0 %6109
    %6111 = vrot.lane.b32.xlu0 %v6032, 124
    %v6112 = vpop.permute.xlu0 %6111
    %6113 = vrot.lane.b32.xlu0 %v6033, 124
    %v6114 = vpop.permute.xlu0 %6113
    %v6115 = vsel %vm1923, %v6110, %v6112
    %v6116 = vsel %vm1923, %v6112, %v6114
    %v6120 = vsel %vm1923, %v6114, 0.0
    %v6122 = vrot.slane %v6058, 6
    %v6123 = vrot.slane %v6055, 6
    %v6124 = vrot.slane %v6056, 6
    %v6129 = vrot.slane %v6068, 4
    %v6130 = vrot.slane %v6065, 4
    %v6131 = vrot.slane %v6066, 4
    %v6136 = vrot.slane %v6078, 2
    %v6137 = vrot.slane %v6075, 2
    %v6138 = vrot.slane %v6076, 2
    %v6143 = vrot.slane %v6085, 6
    %v6144 = vrot.slane %v6086, 6
    %v6145 = vrot.slane %v6088, 6
    %v6150 = vrot.slane %v6095, 4
    %v6151 = vrot.slane %v6096, 4
    %v6152 = vrot.slane %v6098, 4
    %v6157 = vrot.slane %v6105, 2
    %v6158 = vrot.slane %v6106, 2
    %v6159 = vrot.slane %v6108, 2
    %v6163 = vsel %vm1186, %v6048, %v6122
    %v6164 = vsel %vm1186, %v6043, %v6123
    %v6165 = vsel %vm1186, %v6044, %v6124
    %v6166 = vsel %vm1190, %v6163, %v6129
    %v6167 = vsel %vm1190, %v6164, %v6130
    %v6168 = vsel %vm1190, %v6165, %v6131
    %v6169 = vsel %vm1194, %v6166, %v6136
    %v6170 = vsel %vm1194, %v6167, %v6137
    %v6171 = vsel %vm1194, %v6168, %v6138
    %v6172 = vsel %vm1186, %v6031, %v6143
    %v6173 = vsel %vm1186, %v6032, %v6144
    %v6174 = vsel %vm1186, %v6033, %v6145
    %v6175 = vsel %vm1190, %v6172, %v6150
    %v6176 = vsel %vm1190, %v6173, %v6151
    %v6177 = vsel %vm1190, %v6174, %v6152
    %v6178 = vsel %vm1194, %v6175, %v6157
    %v6179 = vsel %vm1194, %v6176, %v6158
    %v6180 = vsel %vm1194, %v6177, %v6159
    %v6181 = vmul.f32 %v6169, %v432
    %v6182 = vmul.f32 %v6170, %v433
    %v6183 = vmul.f32 %v6171, %v434
    %v6184 = vmul.f32 %v6178, %v435
    %v6185 = vmul.f32 %v6179, %v436
    %v6186 = vmul.f32 %v6180, %v437
    %v6187 = vmul.f32 %v6115, %v438
    %v6188 = vmul.f32 %v6116, %v439
    %v6189 = vmul.f32 %v6120, %v440
    %v6191 = vsel %vm1186, %v6187, 0
    %v6194 = vsel %vm1186, %v6188, 0
    %v6197 = vsel %vm1186, %v6189, 0
    %6199 = vmatprep.subr.mxu0 0.0
    %6200 = vmatpush1.msra.mxu0 0.0
    %6201 = vmatprep.subr.mxu0 0.0
    %6202 = vmatpush1.msra.mxu0 0.0
    %6203 = vmatprep.subr.mxu0 0.0
    %6204 = vmatpush1.msra.mxu0 0.0
    %6205 = vmatprep.subr.mxu0 0.0
    %6206 = vmatpush1.msra.mxu0 0.0
    %6207 = vmatprep.subr.mxu0 0.0
    %6208 = vmatpush1.msra.mxu0 0.0
    %6209 = vmatprep.subr.mxu0 0.0
    %6210 = vmatpush1.msra.mxu0 0.0
    %6211 = vmatprep.subr.mxu0 0.0
    %6212 = vmatpush1.msra.mxu0 0.0
    %6213 = vmatprep.subr.mxu0 0.0
    %6214 = vmatpush1.msra.mxu0 0.0
    %6215 = vmatprep.subr.mxu0 0.0
    %6216 = vmatpush1.msra.mxu0 0.0
    %6217 = vmatprep.subr.mxu0 0.0
    %6218 = vmatpush1.msra.mxu0 0.0
    %6219 = vmatprep.subr.mxu0 0.0
    %6220 = vmatpush1.msra.mxu0 0.0
    %6221 = vmatprep.subr.mxu0 0.0
    %6222 = vmatpush1.msra.mxu0 0.0
    %6223 = vmatprep.subr.mxu0 0.0
    %6224 = vmatpush1.msra.mxu0 0.0
    %6225 = vmatprep.subr.mxu0 %v6194
    %6226 = vmatpush1.msra.mxu0 %v6191
    %6227 = vmatprep.subr.mxu0 %v6185
    %6228 = vmatpush1.msra.mxu0 %v6184
    %6229 = vmatprep.subr.mxu0 %v6182
    %6230 = vmatpush1.msra.mxu0 %v6181
    %6231 = vmatprep.subr.mxu0 0.0
    %6232 = vmatpush2.msra.mxu0 0.0
    %6233 = vmatprep.subr.mxu0 0.0
    %6234 = vmatpush2.msra.mxu0 0.0
    %6235 = vmatprep.subr.mxu0 0.0
    %6236 = vmatpush2.msra.mxu0 0.0
    %6237 = vmatprep.subr.mxu0 0.0
    %6238 = vmatpush2.msra.mxu0 0.0
    %6239 = vmatprep.subr.mxu0 0.0
    %6240 = vmatpush2.msra.mxu0 0.0
    %6241 = vmatprep.subr.mxu0 0.0
    %6242 = vmatpush2.msra.mxu0 0.0
    %6243 = vmatprep.subr.mxu0 0.0
    %6244 = vmatpush2.msra.mxu0 0.0
    %6245 = vmatprep.subr.mxu0 0.0
    %6246 = vmatpush2.msra.mxu0 0.0
    %6247 = vmatprep.subr.mxu0 0.0
    %6248 = vmatpush2.msra.mxu0 0.0
    %6249 = vmatprep.subr.mxu0 0.0
    %6250 = vmatpush2.msra.mxu0 0.0
    %6251 = vmatprep.subr.mxu0 0.0
    %6252 = vmatpush2.msra.mxu0 0.0
    %6253 = vmatprep.subr.mxu0 0.0
    %6254 = vmatpush2.msra.mxu0 0.0
    %6255 = vmatprep.subr.mxu0 0.0
    %6256 = vmatpush2.msra.mxu0 0.0
    %6257 = vmatprep.subr.mxu0 0.0
    %6258 = vmatpush2.msra.mxu0 0.0
    %6259 = vmatprep.subr.mxu0 0.0
    %6260 = vmatpush2.msra.mxu0 0.0
    %6261 = vmatprep.subr.mxu0 0.0
    %6262 = vmatpush2.msra.mxu0 0.0
    %6263 = vmatprep.mubr.f32.mxu0 0.0
    %6264 = vmatmul.mubr.f32.gmra.mxu0 %v2005
    %v6265 = vpop.f32.mrf.mxu0
    %v6266 = vadd.f32 %v2002, %v6265
    %v6267 = vpop.f32.mrf.mxu0
    %v6268 = vadd.f32 %v2002, %v6267
    %6269 = vdwg.mxu0
    %6270 = vmatprep.subr.mxu0 0.0
    %6271 = vmatpush1.msra.mxu0 0.0
    %6272 = vmatprep.subr.mxu0 0.0
    %6273 = vmatpush1.msra.mxu0 0.0
    %6274 = vmatprep.subr.mxu0 0.0
    %6275 = vmatpush1.msra.mxu0 0.0
    %6276 = vmatprep.subr.mxu0 0.0
    %6277 = vmatpush1.msra.mxu0 0.0
    %6278 = vmatprep.subr.mxu0 0.0
    %6279 = vmatpush1.msra.mxu0 0.0
    %6280 = vmatprep.subr.mxu0 0.0
    %6281 = vmatpush1.msra.mxu0 0.0
    %6282 = vmatprep.subr.mxu0 0.0
    %6283 = vmatpush1.msra.mxu0 0.0
    %6284 = vmatprep.subr.mxu0 0.0
    %6285 = vmatpush1.msra.mxu0 0.0
    %6286 = vmatprep.subr.mxu0 0.0
    %6287 = vmatpush1.msra.mxu0 0.0
    %6288 = vmatprep.subr.mxu0 0.0
    %6289 = vmatpush1.msra.mxu0 0.0
    %6290 = vmatprep.subr.mxu0 0.0
    %6291 = vmatpush1.msra.mxu0 0.0
    %6292 = vmatprep.subr.mxu0 0.0
    %6293 = vmatpush1.msra.mxu0 0.0
    %6294 = vmatprep.subr.mxu0 0.0
    %6295 = vmatpush1.msra.mxu0 0.0
    %6296 = vmatprep.subr.mxu0 0.0
    %6297 = vmatpush1.msra.mxu0 %v6197
    %6298 = vmatprep.subr.mxu0 0.0
    %6299 = vmatpush1.msra.mxu0 %v6186
    %6300 = vmatprep.subr.mxu0 0.0
    %6301 = vmatpush1.msra.mxu0 %v6183
    %6302 = vmatprep.subr.mxu0 0.0
    %6303 = vmatpush2.msra.mxu0 0.0
    %6304 = vmatprep.subr.mxu0 0.0
    %6305 = vmatpush2.msra.mxu0 0.0
    %6306 = vmatprep.subr.mxu0 0.0
    %6307 = vmatpush2.msra.mxu0 0.0
    %6308 = vmatprep.subr.mxu0 0.0
    %6309 = vmatpush2.msra.mxu0 0.0
    %6310 = vmatprep.subr.mxu0 0.0
    %6311 = vmatpush2.msra.mxu0 0.0
    %6312 = vmatprep.subr.mxu0 0.0
    %6313 = vmatpush2.msra.mxu0 0.0
    %6314 = vmatprep.subr.mxu0 0.0
    %6315 = vmatpush2.msra.mxu0 0.0
    %6316 = vmatprep.subr.mxu0 0.0
    %6317 = vmatpush2.msra.mxu0 0.0
    %6318 = vmatprep.subr.mxu0 0.0
    %6319 = vmatpush2.msra.mxu0 0.0
    %6320 = vmatprep.subr.mxu0 0.0
    %6321 = vmatpush2.msra.mxu0 0.0
    %6322 = vmatprep.subr.mxu0 0.0
    %6323 = vmatpush2.msra.mxu0 0.0
    %6324 = vmatprep.subr.mxu0 0.0
    %6325 = vmatpush2.msra.mxu0 0.0
    %6326 = vmatprep.subr.mxu0 0.0
    %6327 = vmatpush2.msra.mxu0 0.0
    %6328 = vmatprep.subr.mxu0 0.0
    %6329 = vmatpush2.msra.mxu0 0.0
    %6330 = vmatprep.subr.mxu0 0.0
    %6331 = vmatpush2.msra.mxu0 0.0
    %6332 = vmatprep.subr.mxu0 0.0
    %6333 = vmatpush2.msra.mxu0 0.0
    %6334 = vmatprep.mubr.f32.mxu0 0.0
    %6335 = vmatmul.mubr.f32.gmra.mxu0 %v2005
    %v6336 = vpop.f32.mrf.mxu0
    %v6337 = vadd.f32 %v2002, %v6336
    %v6338 = vpop.f32.mrf.mxu0
    %6339 = vdwg.mxu0
    %vm6340 = vcmp.gt.f32.partialorder %v6266, 20.0
    %vm6341 = vcmp.gt.f32.partialorder %v6268, 20.0
    %vm6342 = vcmp.gt.f32.partialorder %v6337, 20.0
    %v6343 = vmin.f32 %v6266, 20.0
    %v6344 = vmin.f32 %v6268, 20.0
    %v6345 = vmin.f32 %v6337, 20.0
    %v6346 = vmul.f32 %v6343, 1.442695
    %v6347 = vpow.pop %v6346
    %v6348 = vmul.f32 %v6344, 1.442695
    %v6349 = vpow.pop %v6348
    %v6350 = vmul.f32 %v6345, 1.442695
    %v6351 = vpow.pop %v6350
    %v6352 = vadd.f32 %v6347, 1.0
    %v6353 = vadd.f32 %v6349, 1.0
    %v6354 = vadd.f32 %v6351, 1.0
    %v6355 = vlog2.pop %v6352
    %v6356 = vmul.f32 %v6355, 0.6931472
    %v6357 = vlog2.pop %v6353
    %v6358 = vmul.f32 %v6357, 0.6931472
    %v6359 = vlog2.pop %v6354
    %v6360 = vmul.f32 %v6359, 0.6931472
    %v6361 = vsel %vm6340, %v6266, %v6356
    %v6362 = vsel %vm6341, %v6268, %v6358
    %v6363 = vsel %vm6342, %v6337, %v6360
    %v6364 = vtanh.pop %v6361
    %v6365 = vtanh.pop %v6362
    %v6366 = vtanh.pop %v6363
    %v6367 = vmul.f32 %v6266, %v6364
    %v6368 = vmul.f32 %v6268, %v6365
    %v6369 = vmul.f32 %v6337, %v6366
    %6373 = vrot.lane.b32.xlu0 %v6367, 64
    %v6374 = vpop.permute.xlu0 %6373
    %6375 = vrot.lane.b32.xlu0 %v6368, 64
    %v6376 = vpop.permute.xlu0 %6375
    %6377 = vrot.lane.b32.xlu0 %v6369, 64
    %v6378 = vpop.permute.xlu0 %6377
    %v6379 = vsel %vm2196, %v6374, %v6376
    %v6380 = vsel %vm2196, %v6376, %v6378
    %v6384 = vsel %vm2196, 0.0, %v6374
    %6385 = vrot.lane.b32.xlu0 %v6367, 48
    %v6386 = vpop.permute.xlu0 %6385
    %6387 = vrot.lane.b32.xlu0 %v6368, 48
    %v6388 = vpop.permute.xlu0 %6387
    %6389 = vrot.lane.b32.xlu0 %v6369, 48
    %v6390 = vpop.permute.xlu0 %6389
    %v6391 = vsel %vm2209, %v6386, %v6388
    %v6392 = vsel %vm2209, %v6388, %v6390
    %v6394 = vsel %vm2209, 0.0, %v6386
    %6395 = vrot.lane.b32.xlu0 %v6367, 32
    %v6396 = vpop.permute.xlu0 %6395
    %6397 = vrot.lane.b32.xlu0 %v6368, 32
    %v6398 = vpop.permute.xlu0 %6397
    %6399 = vrot.lane.b32.xlu0 %v6369, 32
    %v6400 = vpop.permute.xlu0 %6399
    %v6401 = vsel %vm534, %v6396, %v6398
    %v6402 = vsel %vm534, %v6398, %v6400
    %v6404 = vsel %vm534, 0.0, %v6396
    %6405 = vrot.lane.b32.xlu0 %v6367, 16
    %v6406 = vpop.permute.xlu0 %6405
    %6407 = vrot.lane.b32.xlu0 %v6368, 16
    %v6408 = vpop.permute.xlu0 %6407
    %6409 = vrot.lane.b32.xlu0 %v6369, 16
    %v6410 = vpop.permute.xlu0 %6409
    %v6411 = vsel %vm913, %v6406, %v6408
    %v6412 = vsel %vm913, %v6408, %v6410
    %v6414 = vsel %vm913, 0.0, %v6406
    %6415 = vrot.lane.b32.xlu0 %v6367, 112
    %v6416 = vpop.permute.xlu0 %6415
    %6417 = vrot.lane.b32.xlu0 %v6368, 112
    %v6418 = vpop.permute.xlu0 %6417
    %6419 = vrot.lane.b32.xlu0 %v6369, 112
    %v6420 = vpop.permute.xlu0 %6419
    %v6421 = vsel %vm1016, %v6416, %v6418
    %v6422 = vsel %vm1016, %v6418, %v6420
    %v6424 = vsel %vm1016, %v6420, 0.0
    %6425 = vrot.lane.b32.xlu0 %v6367, 96
    %v6426 = vpop.permute.xlu0 %6425
    %6427 = vrot.lane.b32.xlu0 %v6368, 96
    %v6428 = vpop.permute.xlu0 %6427
    %6429 = vrot.lane.b32.xlu0 %v6369, 96
    %v6430 = vpop.permute.xlu0 %6429
    %v6431 = vsel %vm1073, %v6426, %v6428
    %v6432 = vsel %vm1073, %v6428, %v6430
    %v6434 = vsel %vm1073, %v6430, 0.0
    %6435 = vrot.lane.b32.xlu0 %v6367, 80
    %v6436 = vpop.permute.xlu0 %6435
    %6437 = vrot.lane.b32.xlu0 %v6368, 80
    %v6438 = vpop.permute.xlu0 %6437
    %6439 = vrot.lane.b32.xlu0 %v6369, 80
    %v6440 = vpop.permute.xlu0 %6439
    %v6441 = vsel %vm2260, %v6436, %v6438
    %v6442 = vsel %vm2260, %v6438, %v6440
    %v6444 = vsel %vm2260, %v6440, 0.0
    %v6446 = vsel %vm2196, %v6378, 0.0
    %v6448 = vrot.slane %v6394, 1
    %v6449 = vrot.slane %v6391, 1
    %v6450 = vrot.slane %v6392, 1
    %v6455 = vrot.slane %v6404, 2
    %v6456 = vrot.slane %v6401, 2
    %v6457 = vrot.slane %v6402, 2
    %v6462 = vrot.slane %v6414, 3
    %v6463 = vrot.slane %v6411, 3
    %v6464 = vrot.slane %v6412, 3
    %v6468 = vrot.slane %v6367, 4
    %v6469 = vrot.slane %v6368, 4
    %v6470 = vrot.slane %v6369, 4
    %v6475 = vrot.slane %v6421, 5
    %v6476 = vrot.slane %v6422, 5
    %v6477 = vrot.slane %v6424, 5
    %v6482 = vrot.slane %v6431, 6
    %v6483 = vrot.slane %v6432, 6
    %v6484 = vrot.slane %v6434, 6
    %v6489 = vrot.slane %v6441, 7
    %v6490 = vrot.slane %v6442, 7
    %v6491 = vrot.slane %v6444, 7
    %v6495 = vsel %vm2315, %v6384, %v6448
    %v6496 = vsel %vm2315, %v6379, %v6449
    %v6497 = vsel %vm2315, %v6380, %v6450
    %v6498 = vsel %vm1194, %v6448, %v6455
    %v6499 = vsel %vm1194, %v6449, %v6456
    %v6500 = vsel %vm1194, %v6450, %v6457
    %v6501 = vsel %vm2322, %v6455, %v6462
    %v6502 = vsel %vm2322, %v6456, %v6463
    %v6503 = vsel %vm2322, %v6457, %v6464
    %v6504 = vsel %vm1190, %v6462, %v6468
    %v6505 = vsel %vm1190, %v6463, %v6469
    %v6506 = vsel %vm1190, %v6464, %v6470
    %v6507 = vsel %vm2329, %v6468, %v6475
    %v6508 = vsel %vm2329, %v6469, %v6476
    %v6509 = vsel %vm2329, %v6470, %v6477
    %v6510 = vsel %vm1186, %v6475, %v6482
    %v6511 = vsel %vm1186, %v6476, %v6483
    %v6512 = vsel %vm1186, %v6477, %v6484
    %v6513 = vsel %vm820, %v6482, %v6489
    %v6514 = vsel %vm820, %v6483, %v6490
    %v6515 = vsel %vm820, %v6484, %v6491
    %v6516 = vmul.f32 %v6495, %v441
    %v6517 = vmul.f32 %v6496, %v442
    %v6518 = vmul.f32 %v6497, %v443
    %v6519 = vmul.f32 %v6498, %v444
    %v6520 = vmul.f32 %v6499, %v445
    %v6521 = vmul.f32 %v6500, %v446
    %v6522 = vmul.f32 %v6501, %v447
    %v6523 = vmul.f32 %v6502, %v448
    %v6524 = vmul.f32 %v6503, %v449
    %v6525 = vmul.f32 %v6504, %v450
    %v6526 = vmul.f32 %v6505, %v451
    %v6527 = vmul.f32 %v6506, %v452
    %v6528 = vmul.f32 %v6507, %v453
    %v6529 = vmul.f32 %v6508, %v454
    %v6530 = vmul.f32 %v6509, %v455
    %v6531 = vmul.f32 %v6510, %v456
    %v6532 = vmul.f32 %v6511, %v457
    %v6533 = vmul.f32 %v6512, %v458
    %v6534 = vmul.f32 %v6513, %v459
    %v6535 = vmul.f32 %v6514, %v460
    %v6536 = vmul.f32 %v6515, %v461
    %v6537 = vmul.f32 %v6379, %v462
    %v6538 = vmul.f32 %v6380, %v463
    %v6539 = vmul.f32 %v6446, %v464
    %v6541 = vsel %vm2315, %v6537, 0
    %v6544 = vsel %vm2315, %v6538, 0
    %v6547 = vsel %vm2315, %v6539, 0
    %6549 = vmatprep.subr.mxu0 0.0
    %6550 = vmatpush1.msra.mxu0 0.0
    %6551 = vmatprep.subr.mxu0 0.0
    %6552 = vmatpush1.msra.mxu0 0.0
    %6553 = vmatprep.subr.mxu0 0.0
    %6554 = vmatpush1.msra.mxu0 0.0
    %6555 = vmatprep.subr.mxu0 0.0
    %6556 = vmatpush1.msra.mxu0 0.0
    %6557 = vmatprep.subr.mxu0 0.0
    %6558 = vmatpush1.msra.mxu0 0.0
    %6559 = vmatprep.subr.mxu0 0.0
    %6560 = vmatpush1.msra.mxu0 0.0
    %6561 = vmatprep.subr.mxu0 0.0
    %6562 = vmatpush1.msra.mxu0 0.0
    %6563 = vmatprep.subr.mxu0 0.0
    %6564 = vmatpush1.msra.mxu0 0.0
    %6565 = vmatprep.subr.mxu0 %v6544
    %6566 = vmatpush1.msra.mxu0 %v6541
    %6567 = vmatprep.subr.mxu0 %v6535
    %6568 = vmatpush1.msra.mxu0 %v6534
    %6569 = vmatprep.subr.mxu0 %v6532
    %6570 = vmatpush1.msra.mxu0 %v6531
    %6571 = vmatprep.subr.mxu0 %v6529
    %6572 = vmatpush1.msra.mxu0 %v6528
    %6573 = vmatprep.subr.mxu0 %v6526
    %6574 = vmatpush1.msra.mxu0 %v6525
    %6575 = vmatprep.subr.mxu0 %v6523
    %6576 = vmatpush1.msra.mxu0 %v6522
    %6577 = vmatprep.subr.mxu0 %v6520
    %6578 = vmatpush1.msra.mxu0 %v6519
    %6579 = vmatprep.subr.mxu0 %v6517
    %6580 = vmatpush1.msra.mxu0 %v6516
    %6581 = vmatprep.subr.mxu0 0.0
    %6582 = vmatpush2.msra.mxu0 0.0
    %6583 = vmatprep.subr.mxu0 0.0
    %6584 = vmatpush2.msra.mxu0 0.0
    %6585 = vmatprep.subr.mxu0 0.0
    %6586 = vmatpush2.msra.mxu0 0.0
    %6587 = vmatprep.subr.mxu0 0.0
    %6588 = vmatpush2.msra.mxu0 0.0
    %6589 = vmatprep.subr.mxu0 0.0
    %6590 = vmatpush2.msra.mxu0 0.0
    %6591 = vmatprep.subr.mxu0 0.0
    %6592 = vmatpush2.msra.mxu0 0.0
    %6593 = vmatprep.subr.mxu0 0.0
    %6594 = vmatpush2.msra.mxu0 0.0
    %6595 = vmatprep.subr.mxu0 0.0
    %6596 = vmatpush2.msra.mxu0 0.0
    %6597 = vmatprep.subr.mxu0 0.0
    %6598 = vmatpush2.msra.mxu0 0.0
    %6599 = vmatprep.subr.mxu0 0.0
    %6600 = vmatpush2.msra.mxu0 0.0
    %6601 = vmatprep.subr.mxu0 0.0
    %6602 = vmatpush2.msra.mxu0 0.0
    %6603 = vmatprep.subr.mxu0 0.0
    %6604 = vmatpush2.msra.mxu0 0.0
    %6605 = vmatprep.subr.mxu0 0.0
    %6606 = vmatpush2.msra.mxu0 0.0
    %6607 = vmatprep.subr.mxu0 0.0
    %6608 = vmatpush2.msra.mxu0 0.0
    %6609 = vmatprep.subr.mxu0 0.0
    %6610 = vmatpush2.msra.mxu0 0.0
    %6611 = vmatprep.subr.mxu0 0.0
    %6612 = vmatpush2.msra.mxu0 0.0
    %6613 = vmatprep.mubr.f32.mxu0 0.0
    %6614 = vmatmul.mubr.f32.gmra.mxu0 %v2370
    %v6615 = vpop.f32.mrf.mxu0
    %v6616 = vadd.f32 %v2366, %v6615
    %v6617 = vpop.f32.mrf.mxu0
    %v6618 = vadd.f32 %v2366, %v6617
    %6619 = vdwg.mxu0
    %6620 = vmatprep.subr.mxu0 0.0
    %6621 = vmatpush1.msra.mxu0 0.0
    %6622 = vmatprep.subr.mxu0 0.0
    %6623 = vmatpush1.msra.mxu0 0.0
    %6624 = vmatprep.subr.mxu0 0.0
    %6625 = vmatpush1.msra.mxu0 0.0
    %6626 = vmatprep.subr.mxu0 0.0
    %6627 = vmatpush1.msra.mxu0 0.0
    %6628 = vmatprep.subr.mxu0 0.0
    %6629 = vmatpush1.msra.mxu0 0.0
    %6630 = vmatprep.subr.mxu0 0.0
    %6631 = vmatpush1.msra.mxu0 0.0
    %6632 = vmatprep.subr.mxu0 0.0
    %6633 = vmatpush1.msra.mxu0 0.0
    %6634 = vmatprep.subr.mxu0 0.0
    %6635 = vmatpush1.msra.mxu0 0.0
    %6636 = vmatprep.subr.mxu0 0.0
    %6637 = vmatpush1.msra.mxu0 %v6547
    %6638 = vmatprep.subr.mxu0 0.0
    %6639 = vmatpush1.msra.mxu0 %v6536
    %6640 = vmatprep.subr.mxu0 0.0
    %6641 = vmatpush1.msra.mxu0 %v6533
    %6642 = vmatprep.subr.mxu0 0.0
    %6643 = vmatpush1.msra.mxu0 %v6530
    %6644 = vmatprep.subr.mxu0 0.0
    %6645 = vmatpush1.msra.mxu0 %v6527
    %6646 = vmatprep.subr.mxu0 0.0
    %6647 = vmatpush1.msra.mxu0 %v6524
    %6648 = vmatprep.subr.mxu0 0.0
    %6649 = vmatpush1.msra.mxu0 %v6521
    %6650 = vmatprep.subr.mxu0 0.0
    %6651 = vmatpush1.msra.mxu0 %v6518
    %6652 = vmatprep.subr.mxu0 0.0
    %6653 = vmatpush2.msra.mxu0 0.0
    %6654 = vmatprep.subr.mxu0 0.0
    %6655 = vmatpush2.msra.mxu0 0.0
    %6656 = vmatprep.subr.mxu0 0.0
    %6657 = vmatpush2.msra.mxu0 0.0
    %6658 = vmatprep.subr.mxu0 0.0
    %6659 = vmatpush2.msra.mxu0 0.0
    %6660 = vmatprep.subr.mxu0 0.0
    %6661 = vmatpush2.msra.mxu0 0.0
    %6662 = vmatprep.subr.mxu0 0.0
    %6663 = vmatpush2.msra.mxu0 0.0
    %6664 = vmatprep.subr.mxu0 0.0
    %6665 = vmatpush2.msra.mxu0 0.0
    %6666 = vmatprep.subr.mxu0 0.0
    %6667 = vmatpush2.msra.mxu0 0.0
    %6668 = vmatprep.subr.mxu0 0.0
    %6669 = vmatpush2.msra.mxu0 0.0
    %6670 = vmatprep.subr.mxu0 0.0
    %6671 = vmatpush2.msra.mxu0 0.0
    %6672 = vmatprep.subr.mxu0 0.0
    %6673 = vmatpush2.msra.mxu0 0.0
    %6674 = vmatprep.subr.mxu0 0.0
    %6675 = vmatpush2.msra.mxu0 0.0
    %6676 = vmatprep.subr.mxu0 0.0
    %6677 = vmatpush2.msra.mxu0 0.0
    %6678 = vmatprep.subr.mxu0 0.0
    %6679 = vmatpush2.msra.mxu0 0.0
    %6680 = vmatprep.subr.mxu0 0.0
    %6681 = vmatpush2.msra.mxu0 0.0
    %6682 = vmatprep.subr.mxu0 0.0
    %6683 = vmatpush2.msra.mxu0 0.0
    %6684 = vmatprep.mubr.f32.mxu0 0.0
    %6685 = vmatmul.mubr.f32.gmra.mxu0 %v2370
    %v6686 = vpop.f32.mrf.mxu0
    %v6687 = vadd.f32 %v2366, %v6686
    %v6688 = vpop.f32.mrf.mxu0
    %6689 = vdwg.mxu0
    %vm6690 = vcmp.gt.f32.partialorder %v6616, 20.0
    %vm6691 = vcmp.gt.f32.partialorder %v6618, 20.0
    %vm6692 = vcmp.gt.f32.partialorder %v6687, 20.0
    %v6693 = vmin.f32 %v6616, 20.0
    %v6694 = vmin.f32 %v6618, 20.0
    %v6695 = vmin.f32 %v6687, 20.0
    %v6696 = vmul.f32 %v6693, 1.442695
    %v6697 = vpow.pop %v6696
    %v6698 = vmul.f32 %v6694, 1.442695
    %v6699 = vpow.pop %v6698
    %v6700 = vmul.f32 %v6695, 1.442695
    %v6701 = vpow.pop %v6700
    %v6702 = vadd.f32 %v6697, 1.0
    %v6703 = vadd.f32 %v6699, 1.0
    %v6704 = vadd.f32 %v6701, 1.0
    %v6705 = vlog2.pop %v6702
    %v6706 = vmul.f32 %v6705, 0.6931472
    %v6707 = vlog2.pop %v6703
    %v6708 = vmul.f32 %v6707, 0.6931472
    %v6709 = vlog2.pop %v6704
    %v6710 = vmul.f32 %v6709, 0.6931472
    %v6711 = vsel %vm6690, %v6616, %v6706
    %v6712 = vsel %vm6691, %v6618, %v6708
    %v6713 = vsel %vm6692, %v6687, %v6710
    %v6714 = vtanh.pop %v6711
    %v6715 = vtanh.pop %v6712
    %v6716 = vtanh.pop %v6713
    %v6717 = vmul.f32 %v6616, %v6714
    %v6718 = vmul.f32 %v6618, %v6715
    %v6719 = vmul.f32 %v6687, %v6716
    %6720 = vrot.lane.b32.xlu0 %v5695, 2
    %v6721 = vpop.permute.xlu0 %6720
    %6722 = vrot.lane.b32.xlu0 %v5696, 2
    %v6723 = vpop.permute.xlu0 %6722
    %6724 = vrot.lane.b32.xlu0 %v5697, 2
    %v6725 = vpop.permute.xlu0 %6724
    %v6726 = vsel %vm948, %v6721, %v6723
    %v6727 = vsel %vm948, %v6723, %v6725
    %v6731 = vsel %vm948, 0.0, %v6721
    %6732 = vrot.lane.b32.xlu0 %v5695, 126
    %v6733 = vpop.permute.xlu0 %6732
    %6734 = vrot.lane.b32.xlu0 %v5696, 126
    %v6735 = vpop.permute.xlu0 %6734
    %6736 = vrot.lane.b32.xlu0 %v5697, 126
    %v6737 = vpop.permute.xlu0 %6736
    %v6738 = vsel %vm981, %v6733, %v6735
    %v6739 = vsel %vm981, %v6735, %v6737
    %v6743 = vsel %vm981, %v6737, 0.0
    %v6744 = vrot.slane %v5742, 6
    %v6745 = vrot.slane %v5739, 6
    %v6746 = vrot.slane %v5740, 6
    %v6750 = vrot.slane %v5695, 4
    %v6751 = vrot.slane %v5696, 4
    %v6752 = vrot.slane %v5697, 4
    %v6756 = vrot.slane %v5749, 2
    %v6757 = vrot.slane %v5750, 2
    %v6758 = vrot.slane %v5752, 2
    %v6762 = vsel %vm1186, %v6731, %v6744
    %v6763 = vsel %vm1186, %v6726, %v6745
    %v6764 = vsel %vm1186, %v6727, %v6746
    %v6765 = vsel %vm1190, %v6762, %v6750
    %v6766 = vsel %vm1190, %v6763, %v6751
    %v6767 = vsel %vm1190, %v6764, %v6752
    %v6768 = vsel %vm1194, %v6765, %v6756
    %v6769 = vsel %vm1194, %v6766, %v6757
    %v6770 = vsel %vm1194, %v6767, %v6758
    %v6771 = vmul.f32 %v6768, %v465
    %v6772 = vmul.f32 %v6769, %v466
    %v6773 = vmul.f32 %v6770, %v467
    %v6774 = vmul.f32 %v6738, %v468
    %v6775 = vmul.f32 %v6739, %v469
    %v6776 = vmul.f32 %v6743, %v470
    %v6778 = vsel %vm1186, %v6774, 0
    %v6781 = vsel %vm1186, %v6775, 0
    %v6784 = vsel %vm1186, %v6776, 0
    %6786 = vmatprep.subr.mxu0 0.0
    %6787 = vmatpush1.msra.mxu0 0.0
    %6788 = vmatprep.subr.mxu0 0.0
    %6789 = vmatpush1.msra.mxu0 0.0
    %6790 = vmatprep.subr.mxu0 0.0
    %6791 = vmatpush1.msra.mxu0 0.0
    %6792 = vmatprep.subr.mxu0 0.0
    %6793 = vmatpush1.msra.mxu0 0.0
    %6794 = vmatprep.subr.mxu0 0.0
    %6795 = vmatpush1.msra.mxu0 0.0
    %6796 = vmatprep.subr.mxu0 0.0
    %6797 = vmatpush1.msra.mxu0 0.0
    %6798 = vmatprep.subr.mxu0 0.0
    %6799 = vmatpush1.msra.mxu0 0.0
    %6800 = vmatprep.subr.mxu0 0.0
    %6801 = vmatpush1.msra.mxu0 0.0
    %6802 = vmatprep.subr.mxu0 0.0
    %6803 = vmatpush1.msra.mxu0 0.0
    %6804 = vmatprep.subr.mxu0 0.0
    %6805 = vmatpush1.msra.mxu0 0.0
    %6806 = vmatprep.subr.mxu0 0.0
    %6807 = vmatpush1.msra.mxu0 0.0
    %6808 = vmatprep.subr.mxu0 0.0
    %6809 = vmatpush1.msra.mxu0 0.0
    %6810 = vmatprep.subr.mxu0 0.0
    %6811 = vmatpush1.msra.mxu0 0.0
    %6812 = vmatprep.subr.mxu0 0.0
    %6813 = vmatpush1.msra.mxu0 0.0
    %6814 = vmatprep.subr.mxu0 %v6781
    %6815 = vmatpush1.msra.mxu0 %v6778
    %6816 = vmatprep.subr.mxu0 %v6772
    %6817 = vmatpush1.msra.mxu0 %v6771
    %6818 = vmatprep.subr.mxu0 0.0
    %6819 = vmatpush2.msra.mxu0 0.0
    %6820 = vmatprep.subr.mxu0 0.0
    %6821 = vmatpush2.msra.mxu0 0.0
    %6822 = vmatprep.subr.mxu0 0.0
    %6823 = vmatpush2.msra.mxu0 0.0
    %6824 = vmatprep.subr.mxu0 0.0
    %6825 = vmatpush2.msra.mxu0 0.0
    %6826 = vmatprep.subr.mxu0 0.0
    %6827 = vmatpush2.msra.mxu0 0.0
    %6828 = vmatprep.subr.mxu0 0.0
    %6829 = vmatpush2.msra.mxu0 0.0
    %6830 = vmatprep.subr.mxu0 0.0
    %6831 = vmatpush2.msra.mxu0 0.0
    %6832 = vmatprep.subr.mxu0 0.0
    %6833 = vmatpush2.msra.mxu0 0.0
    %6834 = vmatprep.subr.mxu0 0.0
    %6835 = vmatpush2.msra.mxu0 0.0
    %6836 = vmatprep.subr.mxu0 0.0
    %6837 = vmatpush2.msra.mxu0 0.0
    %6838 = vmatprep.subr.mxu0 0.0
    %6839 = vmatpush2.msra.mxu0 0.0
    %6840 = vmatprep.subr.mxu0 0.0
    %6841 = vmatpush2.msra.mxu0 0.0
    %6842 = vmatprep.subr.mxu0 0.0
    %6843 = vmatpush2.msra.mxu0 0.0
    %6844 = vmatprep.subr.mxu0 0.0
    %6845 = vmatpush2.msra.mxu0 0.0
    %6846 = vmatprep.subr.mxu0 0.0
    %6847 = vmatpush2.msra.mxu0 0.0
    %6848 = vmatprep.subr.mxu0 0.0
    %6849 = vmatpush2.msra.mxu0 0.0
    %6850 = vmatprep.mubr.f32.mxu0 0.0
    %6851 = vmatmul.mubr.f32.gmra.mxu0 %v2616
    %v6852 = vpop.f32.mrf.mxu0
    %v6853 = vadd.f32 %v2612, %v6852
    %v6854 = vpop.f32.mrf.mxu0
    %v6855 = vadd.f32 %v2612, %v6854
    %6856 = vdwg.mxu0
    %6857 = vmatprep.subr.mxu0 0.0
    %6858 = vmatpush1.msra.mxu0 0.0
    %6859 = vmatprep.subr.mxu0 0.0
    %6860 = vmatpush1.msra.mxu0 0.0
    %6861 = vmatprep.subr.mxu0 0.0
    %6862 = vmatpush1.msra.mxu0 0.0
    %6863 = vmatprep.subr.mxu0 0.0
    %6864 = vmatpush1.msra.mxu0 0.0
    %6865 = vmatprep.subr.mxu0 0.0
    %6866 = vmatpush1.msra.mxu0 0.0
    %6867 = vmatprep.subr.mxu0 0.0
    %6868 = vmatpush1.msra.mxu0 0.0
    %6869 = vmatprep.subr.mxu0 0.0
    %6870 = vmatpush1.msra.mxu0 0.0
    %6871 = vmatprep.subr.mxu0 0.0
    %6872 = vmatpush1.msra.mxu0 0.0
    %6873 = vmatprep.subr.mxu0 0.0
    %6874 = vmatpush1.msra.mxu0 0.0
    %6875 = vmatprep.subr.mxu0 0.0
    %6876 = vmatpush1.msra.mxu0 0.0
    %6877 = vmatprep.subr.mxu0 0.0
    %6878 = vmatpush1.msra.mxu0 0.0
    %6879 = vmatprep.subr.mxu0 0.0
    %6880 = vmatpush1.msra.mxu0 0.0
    %6881 = vmatprep.subr.mxu0 0.0
    %6882 = vmatpush1.msra.mxu0 0.0
    %6883 = vmatprep.subr.mxu0 0.0
    %6884 = vmatpush1.msra.mxu0 0.0
    %6885 = vmatprep.subr.mxu0 0.0
    %6886 = vmatpush1.msra.mxu0 %v6784
    %6887 = vmatprep.subr.mxu0 0.0
    %6888 = vmatpush1.msra.mxu0 %v6773
    %6889 = vmatprep.subr.mxu0 0.0
    %6890 = vmatpush2.msra.mxu0 0.0
    %6891 = vmatprep.subr.mxu0 0.0
    %6892 = vmatpush2.msra.mxu0 0.0
    %6893 = vmatprep.subr.mxu0 0.0
    %6894 = vmatpush2.msra.mxu0 0.0
    %6895 = vmatprep.subr.mxu0 0.0
    %6896 = vmatpush2.msra.mxu0 0.0
    %6897 = vmatprep.subr.mxu0 0.0
    %6898 = vmatpush2.msra.mxu0 0.0
    %6899 = vmatprep.subr.mxu0 0.0
    %6900 = vmatpush2.msra.mxu0 0.0
    %6901 = vmatprep.subr.mxu0 0.0
    %6902 = vmatpush2.msra.mxu0 0.0
    %6903 = vmatprep.subr.mxu0 0.0
    %6904 = vmatpush2.msra.mxu0 0.0
    %6905 = vmatprep.subr.mxu0 0.0
    %6906 = vmatpush2.msra.mxu0 0.0
    %6907 = vmatprep.subr.mxu0 0.0
    %6908 = vmatpush2.msra.mxu0 0.0
    %6909 = vmatprep.subr.mxu0 0.0
    %6910 = vmatpush2.msra.mxu0 0.0
    %6911 = vmatprep.subr.mxu0 0.0
    %6912 = vmatpush2.msra.mxu0 0.0
    %6913 = vmatprep.subr.mxu0 0.0
    %6914 = vmatpush2.msra.mxu0 0.0
    %6915 = vmatprep.subr.mxu0 0.0
    %6916 = vmatpush2.msra.mxu0 0.0
    %6917 = vmatprep.subr.mxu0 0.0
    %6918 = vmatpush2.msra.mxu0 0.0
    %6919 = vmatprep.subr.mxu0 0.0
    %6920 = vmatpush2.msra.mxu0 0.0
    %6921 = vmatprep.mubr.f32.mxu0 0.0
    %6922 = vmatmul.mubr.f32.gmra.mxu0 %v2616
    %v6923 = vpop.f32.mrf.mxu0
    %v6924 = vadd.f32 %v2612, %v6923
    %v6925 = vpop.f32.mrf.mxu0
    %6926 = vdwg.mxu0
    %vm6927 = vcmp.gt.f32.partialorder %v6853, 20.0
    %vm6928 = vcmp.gt.f32.partialorder %v6855, 20.0
    %vm6929 = vcmp.gt.f32.partialorder %v6924, 20.0
    %v6930 = vmin.f32 %v6853, 20.0
    %v6931 = vmin.f32 %v6855, 20.0
    %v6932 = vmin.f32 %v6924, 20.0
    %v6933 = vmul.f32 %v6930, 1.442695
    %v6934 = vpow.pop %v6933
    %v6935 = vmul.f32 %v6931, 1.442695
    %v6936 = vpow.pop %v6935
    %v6937 = vmul.f32 %v6932, 1.442695
    %v6938 = vpow.pop %v6937
    %v6939 = vadd.f32 %v6934, 1.0
    %v6940 = vadd.f32 %v6936, 1.0
    %v6941 = vadd.f32 %v6938, 1.0
    %v6942 = vlog2.pop %v6939
    %v6943 = vmul.f32 %v6942, 0.6931472
    %v6944 = vlog2.pop %v6940
    %v6945 = vmul.f32 %v6944, 0.6931472
    %v6946 = vlog2.pop %v6941
    %v6947 = vmul.f32 %v6946, 0.6931472
    %v6948 = vsel %vm6927, %v6853, %v6943
    %v6949 = vsel %vm6928, %v6855, %v6945
    %v6950 = vsel %vm6929, %v6924, %v6947
    %v6951 = vtanh.pop %v6948
    %v6952 = vtanh.pop %v6949
    %v6953 = vtanh.pop %v6950
    %v6954 = vmul.f32 %v6853, %v6951
    %v6955 = vmul.f32 %v6855, %v6952
    %v6956 = vmul.f32 %v6924, %v6953
    %6960 = vrot.lane.b32.xlu0 %v6954, 32
    %v6961 = vpop.permute.xlu0 %6960
    %6962 = vrot.lane.b32.xlu0 %v6955, 32
    %v6963 = vpop.permute.xlu0 %6962
    %6964 = vrot.lane.b32.xlu0 %v6956, 32
    %v6965 = vpop.permute.xlu0 %6964
    %v6966 = vsel %vm534, %v6961, %v6963
    %v6967 = vsel %vm534, %v6963, %v6965
    %v6971 = vsel %vm534, 0.0, %v6961
    %6972 = vrot.lane.b32.xlu0 %v6954, 16
    %v6973 = vpop.permute.xlu0 %6972
    %6974 = vrot.lane.b32.xlu0 %v6955, 16
    %v6975 = vpop.permute.xlu0 %6974
    %6976 = vrot.lane.b32.xlu0 %v6956, 16
    %v6977 = vpop.permute.xlu0 %6976
    %v6978 = vsel %vm913, %v6973, %v6975
    %v6979 = vsel %vm913, %v6975, %v6977
    %v6981 = vsel %vm913, 0.0, %v6973
    %6982 = vrot.lane.b32.xlu0 %v6954, 112
    %v6983 = vpop.permute.xlu0 %6982
    %6984 = vrot.lane.b32.xlu0 %v6955, 112
    %v6985 = vpop.permute.xlu0 %6984
    %6986 = vrot.lane.b32.xlu0 %v6956, 112
    %v6987 = vpop.permute.xlu0 %6986
    %v6988 = vsel %vm1016, %v6983, %v6985
    %v6989 = vsel %vm1016, %v6985, %v6987
    %v6991 = vsel %vm1016, %v6987, 0.0
    %6992 = vrot.lane.b32.xlu0 %v6954, 96
    %v6993 = vpop.permute.xlu0 %6992
    %6994 = vrot.lane.b32.xlu0 %v6955, 96
    %v6995 = vpop.permute.xlu0 %6994
    %6996 = vrot.lane.b32.xlu0 %v6956, 96
    %v6997 = vpop.permute.xlu0 %6996
    %v6998 = vsel %vm1073, %v6993, %v6995
    %v6999 = vsel %vm1073, %v6995, %v6997
    %v7003 = vsel %vm1073, %v6997, 0.0
    %v7005 = vrot.slane %v6981, 6
    %v7006 = vrot.slane %v6978, 6
    %v7007 = vrot.slane %v6979, 6
    %v7011 = vrot.slane %v6954, 4
    %v7012 = vrot.slane %v6955, 4
    %v7013 = vrot.slane %v6956, 4
    %v7018 = vrot.slane %v6988, 2
    %v7019 = vrot.slane %v6989, 2
    %v7020 = vrot.slane %v6991, 2
    %v7024 = vsel %vm1186, %v6971, %v7005
    %v7025 = vsel %vm1186, %v6966, %v7006
    %v7026 = vsel %vm1186, %v6967, %v7007
    %v7027 = vsel %vm1190, %v7024, %v7011
    %v7028 = vsel %vm1190, %v7025, %v7012
    %v7029 = vsel %vm1190, %v7026, %v7013
    %v7030 = vsel %vm1194, %v7027, %v7018
    %v7031 = vsel %vm1194, %v7028, %v7019
    %v7032 = vsel %vm1194, %v7029, %v7020
    %v7033 = vmul.f32 %v7030, %v471
    %v7034 = vmul.f32 %v7031, %v472
    %v7035 = vmul.f32 %v7032, %v473
    %v7036 = vmul.f32 %v6998, %v474
    %v7037 = vmul.f32 %v6999, %v475
    %v7038 = vmul.f32 %v7003, %v476
    %v7040 = vsel %vm1186, %v7036, 0
    %v7043 = vsel %vm1186, %v7037, 0
    %v7046 = vsel %vm1186, %v7038, 0
    %7048 = vmatprep.subr.mxu0 0.0
    %7049 = vmatpush1.msra.mxu0 0.0
    %7050 = vmatprep.subr.mxu0 0.0
    %7051 = vmatpush1.msra.mxu0 0.0
    %7052 = vmatprep.subr.mxu0 0.0
    %7053 = vmatpush1.msra.mxu0 0.0
    %7054 = vmatprep.subr.mxu0 0.0
    %7055 = vmatpush1.msra.mxu0 0.0
    %7056 = vmatprep.subr.mxu0 0.0
    %7057 = vmatpush1.msra.mxu0 0.0
    %7058 = vmatprep.subr.mxu0 0.0
    %7059 = vmatpush1.msra.mxu0 0.0
    %7060 = vmatprep.subr.mxu0 0.0
    %7061 = vmatpush1.msra.mxu0 0.0
    %7062 = vmatprep.subr.mxu0 0.0
    %7063 = vmatpush1.msra.mxu0 0.0
    %7064 = vmatprep.subr.mxu0 0.0
    %7065 = vmatpush1.msra.mxu0 0.0
    %7066 = vmatprep.subr.mxu0 0.0
    %7067 = vmatpush1.msra.mxu0 0.0
    %7068 = vmatprep.subr.mxu0 0.0
    %7069 = vmatpush1.msra.mxu0 0.0
    %7070 = vmatprep.subr.mxu0 0.0
    %7071 = vmatpush1.msra.mxu0 0.0
    %7072 = vmatprep.subr.mxu0 0.0
    %7073 = vmatpush1.msra.mxu0 0.0
    %7074 = vmatprep.subr.mxu0 0.0
    %7075 = vmatpush1.msra.mxu0 0.0
    %7076 = vmatprep.subr.mxu0 %v7043
    %7077 = vmatpush1.msra.mxu0 %v7040
    %7078 = vmatprep.subr.mxu0 %v7034
    %7079 = vmatpush1.msra.mxu0 %v7033
    %7080 = vmatprep.subr.mxu0 0.0
    %7081 = vmatpush2.msra.mxu0 0.0
    %7082 = vmatprep.subr.mxu0 0.0
    %7083 = vmatpush2.msra.mxu0 0.0
    %7084 = vmatprep.subr.mxu0 0.0
    %7085 = vmatpush2.msra.mxu0 0.0
    %7086 = vmatprep.subr.mxu0 0.0
    %7087 = vmatpush2.msra.mxu0 0.0
    %7088 = vmatprep.subr.mxu0 0.0
    %7089 = vmatpush2.msra.mxu0 0.0
    %7090 = vmatprep.subr.mxu0 0.0
    %7091 = vmatpush2.msra.mxu0 0.0
    %7092 = vmatprep.subr.mxu0 0.0
    %7093 = vmatpush2.msra.mxu0 0.0
    %7094 = vmatprep.subr.mxu0 0.0
    %7095 = vmatpush2.msra.mxu0 0.0
    %7096 = vmatprep.subr.mxu0 0.0
    %7097 = vmatpush2.msra.mxu0 0.0
    %7098 = vmatprep.subr.mxu0 0.0
    %7099 = vmatpush2.msra.mxu0 0.0
    %7100 = vmatprep.subr.mxu0 0.0
    %7101 = vmatpush2.msra.mxu0 0.0
    %7102 = vmatprep.subr.mxu0 0.0
    %7103 = vmatpush2.msra.mxu0 0.0
    %7104 = vmatprep.subr.mxu0 0.0
    %7105 = vmatpush2.msra.mxu0 0.0
    %7106 = vmatprep.subr.mxu0 0.0
    %7107 = vmatpush2.msra.mxu0 0.0
    %7108 = vmatprep.subr.mxu0 0.0
    %7109 = vmatpush2.msra.mxu0 0.0
    %7110 = vmatprep.subr.mxu0 0.0
    %7111 = vmatpush2.msra.mxu0 0.0
    %7112 = vmatprep.mubr.f32.mxu0 0.0
    %7113 = vmatmul.mubr.f32.gmra.mxu0 %v2886
    %v7114 = vpop.f32.mrf.mxu0
    %v7115 = vadd.f32 %v2883, %v7114
    %v7116 = vpop.f32.mrf.mxu0
    %v7117 = vadd.f32 %v2883, %v7116
    %7118 = vdwg.mxu0
    %7119 = vmatprep.subr.mxu0 0.0
    %7120 = vmatpush1.msra.mxu0 0.0
    %7121 = vmatprep.subr.mxu0 0.0
    %7122 = vmatpush1.msra.mxu0 0.0
    %7123 = vmatprep.subr.mxu0 0.0
    %7124 = vmatpush1.msra.mxu0 0.0
    %7125 = vmatprep.subr.mxu0 0.0
    %7126 = vmatpush1.msra.mxu0 0.0
    %7127 = vmatprep.subr.mxu0 0.0
    %7128 = vmatpush1.msra.mxu0 0.0
    %7129 = vmatprep.subr.mxu0 0.0
    %7130 = vmatpush1.msra.mxu0 0.0
    %7131 = vmatprep.subr.mxu0 0.0
    %7132 = vmatpush1.msra.mxu0 0.0
    %7133 = vmatprep.subr.mxu0 0.0
    %7134 = vmatpush1.msra.mxu0 0.0
    %7135 = vmatprep.subr.mxu0 0.0
    %7136 = vmatpush1.msra.mxu0 0.0
    %7137 = vmatprep.subr.mxu0 0.0
    %7138 = vmatpush1.msra.mxu0 0.0
    %7139 = vmatprep.subr.mxu0 0.0
    %7140 = vmatpush1.msra.mxu0 0.0
    %7141 = vmatprep.subr.mxu0 0.0
    %7142 = vmatpush1.msra.mxu0 0.0
    %7143 = vmatprep.subr.mxu0 0.0
    %7144 = vmatpush1.msra.mxu0 0.0
    %7145 = vmatprep.subr.mxu0 0.0
    %7146 = vmatpush1.msra.mxu0 0.0
    %7147 = vmatprep.subr.mxu0 0.0
    %7148 = vmatpush1.msra.mxu0 %v7046
    %7149 = vmatprep.subr.mxu0 0.0
    %7150 = vmatpush1.msra.mxu0 %v7035
    %7151 = vmatprep.subr.mxu0 0.0
    %7152 = vmatpush2.msra.mxu0 0.0
    %7153 = vmatprep.subr.mxu0 0.0
    %7154 = vmatpush2.msra.mxu0 0.0
    %7155 = vmatprep.subr.mxu0 0.0
    %7156 = vmatpush2.msra.mxu0 0.0
    %7157 = vmatprep.subr.mxu0 0.0
    %7158 = vmatpush2.msra.mxu0 0.0
    %7159 = vmatprep.subr.mxu0 0.0
    %7160 = vmatpush2.msra.mxu0 0.0
    %7161 = vmatprep.subr.mxu0 0.0
    %7162 = vmatpush2.msra.mxu0 0.0
    %7163 = vmatprep.subr.mxu0 0.0
    %7164 = vmatpush2.msra.mxu0 0.0
    %7165 = vmatprep.subr.mxu0 0.0
    %7166 = vmatpush2.msra.mxu0 0.0
    %7167 = vmatprep.subr.mxu0 0.0
    %7168 = vmatpush2.msra.mxu0 0.0
    %7169 = vmatprep.subr.mxu0 0.0
    %7170 = vmatpush2.msra.mxu0 0.0
    %7171 = vmatprep.subr.mxu0 0.0
    %7172 = vmatpush2.msra.mxu0 0.0
    %7173 = vmatprep.subr.mxu0 0.0
    %7174 = vmatpush2.msra.mxu0 0.0
    %7175 = vmatprep.subr.mxu0 0.0
    %7176 = vmatpush2.msra.mxu0 0.0
    %7177 = vmatprep.subr.mxu0 0.0
    %7178 = vmatpush2.msra.mxu0 0.0
    %7179 = vmatprep.subr.mxu0 0.0
    %7180 = vmatpush2.msra.mxu0 0.0
    %7181 = vmatprep.subr.mxu0 0.0
    %7182 = vmatpush2.msra.mxu0 0.0
    %7183 = vmatprep.mubr.f32.mxu0 0.0
    %7184 = vmatmul.mubr.f32.gmra.mxu0 %v2886
    %v7185 = vpop.f32.mrf.mxu0
    %v7186 = vadd.f32 %v2883, %v7185
    %v7187 = vpop.f32.mrf.mxu0
    %7188 = vdwg.mxu0
    %vm7189 = vcmp.gt.f32.partialorder %v7115, 20.0
    %vm7190 = vcmp.gt.f32.partialorder %v7117, 20.0
    %vm7191 = vcmp.gt.f32.partialorder %v7186, 20.0
    %v7192 = vmin.f32 %v7115, 20.0
    %v7193 = vmin.f32 %v7117, 20.0
    %v7194 = vmin.f32 %v7186, 20.0
    %v7195 = vmul.f32 %v7192, 1.442695
    %v7196 = vpow.pop %v7195
    %v7197 = vmul.f32 %v7193, 1.442695
    %v7198 = vpow.pop %v7197
    %v7199 = vmul.f32 %v7194, 1.442695
    %v7200 = vpow.pop %v7199
    %v7201 = vadd.f32 %v7196, 1.0
    %v7202 = vadd.f32 %v7198, 1.0
    %v7203 = vadd.f32 %v7200, 1.0
    %v7204 = vlog2.pop %v7201
    %v7205 = vmul.f32 %v7204, 0.6931472
    %v7206 = vlog2.pop %v7202
    %v7207 = vmul.f32 %v7206, 0.6931472
    %v7208 = vlog2.pop %v7203
    %v7209 = vmul.f32 %v7208, 0.6931472
    %v7210 = vsel %vm7189, %v7115, %v7205
    %v7211 = vsel %vm7190, %v7117, %v7207
    %v7212 = vsel %vm7191, %v7186, %v7209
    %v7213 = vtanh.pop %v7210
    %v7214 = vtanh.pop %v7211
    %v7215 = vtanh.pop %v7212
    %v7216 = vmul.f32 %v7115, %v7213
    %v7217 = vmul.f32 %v7117, %v7214
    %v7218 = vmul.f32 %v7186, %v7215
    %v7222 = vrot.slane %v7216, 1
    %v7223 = vrot.slane %v7217, 1
    %v7224 = vrot.slane %v7218, 1
    %v7228 = vsel %vm2315, %v6717, %v7222
    %v7229 = vsel %vm2315, %v6718, %v7223
    %v7230 = vsel %vm2315, %v6719, %v7224
    %v7231 = vsel %vm1194, %v7222, 0
    %v7233 = vsel %vm1194, %v7223, 0
    %v7235 = vsel %vm1194, %v7224, 0
    %7237 = vmatprep.subr.mxu0 0.0
    %7238 = vmatpush1.msra.mxu0 0.0
    %7239 = vmatprep.subr.mxu0 0.0
    %7240 = vmatpush1.msra.mxu0 0.0
    %7241 = vmatprep.subr.mxu0 0.0
    %7242 = vmatpush1.msra.mxu0 0.0
    %7243 = vmatprep.subr.mxu0 0.0
    %7244 = vmatpush1.msra.mxu0 0.0
    %7245 = vmatprep.subr.mxu0 0.0
    %7246 = vmatpush1.msra.mxu0 0.0
    %7247 = vmatprep.subr.mxu0 0.0
    %7248 = vmatpush1.msra.mxu0 0.0
    %7249 = vmatprep.subr.mxu0 0.0
    %7250 = vmatpush1.msra.mxu0 0.0
    %7251 = vmatprep.subr.mxu0 0.0
    %7252 = vmatpush1.msra.mxu0 0.0
    %7253 = vmatprep.subr.mxu0 0.0
    %7254 = vmatpush1.msra.mxu0 0.0
    %7255 = vmatprep.subr.mxu0 0.0
    %7256 = vmatpush1.msra.mxu0 0.0
    %7257 = vmatprep.subr.mxu0 0.0
    %7258 = vmatpush1.msra.mxu0 0.0
    %7259 = vmatprep.subr.mxu0 0.0
    %7260 = vmatpush1.msra.mxu0 0.0
    %7261 = vmatprep.subr.mxu0 0.0
    %7262 = vmatpush1.msra.mxu0 0.0
    %7263 = vmatprep.subr.mxu0 0.0
    %7264 = vmatpush1.msra.mxu0 0.0
    %7265 = vmatprep.subr.mxu0 %v7233
    %7266 = vmatpush1.msra.mxu0 %v7231
    %7267 = vmatprep.subr.mxu0 %v7229
    %7268 = vmatpush1.msra.mxu0 %v7228
    %7269 = vmatprep.subr.mxu0 0.0
    %7270 = vmatpush2.msra.mxu0 0.0
    %7271 = vmatprep.subr.mxu0 0.0
    %7272 = vmatpush2.msra.mxu0 0.0
    %7273 = vmatprep.subr.mxu0 0.0
    %7274 = vmatpush2.msra.mxu0 0.0
    %7275 = vmatprep.subr.mxu0 0.0
    %7276 = vmatpush2.msra.mxu0 0.0
    %7277 = vmatprep.subr.mxu0 0.0
    %7278 = vmatpush2.msra.mxu0 0.0
    %7279 = vmatprep.subr.mxu0 0.0
    %7280 = vmatpush2.msra.mxu0 0.0
    %7281 = vmatprep.subr.mxu0 0.0
    %7282 = vmatpush2.msra.mxu0 0.0
    %7283 = vmatprep.subr.mxu0 0.0
    %7284 = vmatpush2.msra.mxu0 0.0
    %7285 = vmatprep.subr.mxu0 0.0
    %7286 = vmatpush2.msra.mxu0 0.0
    %7287 = vmatprep.subr.mxu0 0.0
    %7288 = vmatpush2.msra.mxu0 0.0
    %7289 = vmatprep.subr.mxu0 0.0
    %7290 = vmatpush2.msra.mxu0 0.0
    %7291 = vmatprep.subr.mxu0 0.0
    %7292 = vmatpush2.msra.mxu0 0.0
    %7293 = vmatprep.subr.mxu0 0.0
    %7294 = vmatpush2.msra.mxu0 0.0
    %7295 = vmatprep.subr.mxu0 0.0
    %7296 = vmatpush2.msra.mxu0 0.0
    %7297 = vmatprep.subr.mxu0 0.0
    %7298 = vmatpush2.msra.mxu0 0.0
    %7299 = vmatprep.subr.mxu0 0.0
    %7300 = vmatpush2.msra.mxu0 0.0
    %7301 = vmatprep.mubr.f32.mxu0 0.0
    %7302 = vmatmul.mubr.f32.gmra.mxu0 %v3086
    %v7303 = vpop.f32.mrf.mxu0
    %v7304 = vadd.f32 %v3083, %v7303
    %v7305 = vpop.f32.mrf.mxu0
    %v7306 = vadd.f32 %v3083, %v7305
    %7307 = vdwg.mxu0
    %7308 = vmatprep.subr.mxu0 0.0
    %7309 = vmatpush1.msra.mxu0 0.0
    %7310 = vmatprep.subr.mxu0 0.0
    %7311 = vmatpush1.msra.mxu0 0.0
    %7312 = vmatprep.subr.mxu0 0.0
    %7313 = vmatpush1.msra.mxu0 0.0
    %7314 = vmatprep.subr.mxu0 0.0
    %7315 = vmatpush1.msra.mxu0 0.0
    %7316 = vmatprep.subr.mxu0 0.0
    %7317 = vmatpush1.msra.mxu0 0.0
    %7318 = vmatprep.subr.mxu0 0.0
    %7319 = vmatpush1.msra.mxu0 0.0
    %7320 = vmatprep.subr.mxu0 0.0
    %7321 = vmatpush1.msra.mxu0 0.0
    %7322 = vmatprep.subr.mxu0 0.0
    %7323 = vmatpush1.msra.mxu0 0.0
    %7324 = vmatprep.subr.mxu0 0.0
    %7325 = vmatpush1.msra.mxu0 0.0
    %7326 = vmatprep.subr.mxu0 0.0
    %7327 = vmatpush1.msra.mxu0 0.0
    %7328 = vmatprep.subr.mxu0 0.0
    %7329 = vmatpush1.msra.mxu0 0.0
    %7330 = vmatprep.subr.mxu0 0.0
    %7331 = vmatpush1.msra.mxu0 0.0
    %7332 = vmatprep.subr.mxu0 0.0
    %7333 = vmatpush1.msra.mxu0 0.0
    %7334 = vmatprep.subr.mxu0 0.0
    %7335 = vmatpush1.msra.mxu0 0.0
    %7336 = vmatprep.subr.mxu0 0.0
    %7337 = vmatpush1.msra.mxu0 %v7235
    %7338 = vmatprep.subr.mxu0 0.0
    %7339 = vmatpush1.msra.mxu0 %v7230
    %7340 = vmatprep.subr.mxu0 0.0
    %7341 = vmatpush2.msra.mxu0 0.0
    %7342 = vmatprep.subr.mxu0 0.0
    %7343 = vmatpush2.msra.mxu0 0.0
    %7344 = vmatprep.subr.mxu0 0.0
    %7345 = vmatpush2.msra.mxu0 0.0
    %7346 = vmatprep.subr.mxu0 0.0
    %7347 = vmatpush2.msra.mxu0 0.0
    %7348 = vmatprep.subr.mxu0 0.0
    %7349 = vmatpush2.msra.mxu0 0.0
    %7350 = vmatprep.subr.mxu0 0.0
    %7351 = vmatpush2.msra.mxu0 0.0
    %7352 = vmatprep.subr.mxu0 0.0
    %7353 = vmatpush2.msra.mxu0 0.0
    %7354 = vmatprep.subr.mxu0 0.0
    %7355 = vmatpush2.msra.mxu0 0.0
    %7356 = vmatprep.subr.mxu0 0.0
    %7357 = vmatpush2.msra.mxu0 0.0
    %7358 = vmatprep.subr.mxu0 0.0
    %7359 = vmatpush2.msra.mxu0 0.0
    %7360 = vmatprep.subr.mxu0 0.0
    %7361 = vmatpush2.msra.mxu0 0.0
    %7362 = vmatprep.subr.mxu0 0.0
    %7363 = vmatpush2.msra.mxu0 0.0
    %7364 = vmatprep.subr.mxu0 0.0
    %7365 = vmatpush2.msra.mxu0 0.0
    %7366 = vmatprep.subr.mxu0 0.0
    %7367 = vmatpush2.msra.mxu0 0.0
    %7368 = vmatprep.subr.mxu0 0.0
    %7369 = vmatpush2.msra.mxu0 0.0
    %7370 = vmatprep.subr.mxu0 0.0
    %7371 = vmatpush2.msra.mxu0 0.0
    %7372 = vmatprep.mubr.f32.mxu0 0.0
    %7373 = vmatmul.mubr.f32.gmra.mxu0 %v3086
    %v7374 = vpop.f32.mrf.mxu0
    %v7375 = vadd.f32 %v3083, %v7374
    %v7376 = vpop.f32.mrf.mxu0
    %7377 = vdwg.mxu0
    %vm7378 = vcmp.gt.f32.partialorder %v7304, 20.0
    %vm7379 = vcmp.gt.f32.partialorder %v7306, 20.0
    %vm7380 = vcmp.gt.f32.partialorder %v7375, 20.0
    %v7381 = vmin.f32 %v7304, 20.0
    %v7382 = vmin.f32 %v7306, 20.0
    %v7383 = vmin.f32 %v7375, 20.0
    %v7384 = vmul.f32 %v7381, 1.442695
    %v7385 = vpow.pop %v7384
    %v7386 = vmul.f32 %v7382, 1.442695
    %v7387 = vpow.pop %v7386
    %v7388 = vmul.f32 %v7383, 1.442695
    %v7389 = vpow.pop %v7388
    %v7390 = vadd.f32 %v7385, 1.0
    %v7391 = vadd.f32 %v7387, 1.0
    %v7392 = vadd.f32 %v7389, 1.0
    %v7393 = vlog2.pop %v7390
    %v7394 = vmul.f32 %v7393, 0.6931472
    %v7395 = vlog2.pop %v7391
    %v7396 = vmul.f32 %v7395, 0.6931472
    %v7397 = vlog2.pop %v7392
    %v7398 = vmul.f32 %v7397, 0.6931472
    %v7399 = vsel %vm7378, %v7304, %v7394
    %v7400 = vsel %vm7379, %v7306, %v7396
    %v7401 = vsel %vm7380, %v7375, %v7398
    %v7402 = vtanh.pop %v7399
    %v7403 = vtanh.pop %v7400
    %v7404 = vtanh.pop %v7401
    %v7405 = vmul.f32 %v7304, %v7402
    %v7406 = vmul.f32 %v7306, %v7403
    %v7407 = vmul.f32 %v7375, %v7404
    %v7408 = vadd.f32 %v7405, %v5695
    %v7409 = vadd.f32 %v7406, %v5696
    %v7410 = vadd.f32 %v7407, %v5697
    %7414 = vrot.lane.b32.xlu0 %v7408, 17
    %v7415 = vpop.permute.xlu0 %7414
    %7416 = vrot.lane.b32.xlu0 %v7409, 17
    %v7417 = vpop.permute.xlu0 %7416
    %7418 = vrot.lane.b32.xlu0 %v7410, 17
    %v7419 = vpop.permute.xlu0 %7418
    %v7420 = vsel %vm902, %v7415, %v7417
    %v7421 = vsel %vm902, %v7417, %v7419
    %v7425 = vsel %vm902, 0.0, %v7415
    %7426 = vrot.lane.b32.xlu0 %v7408, 16
    %v7427 = vpop.permute.xlu0 %7426
    %7428 = vrot.lane.b32.xlu0 %v7409, 16
    %v7429 = vpop.permute.xlu0 %7428
    %7430 = vrot.lane.b32.xlu0 %v7410, 16
    %v7431 = vpop.permute.xlu0 %7430
    %v7432 = vsel %vm913, %v7427, %v7429
    %v7433 = vsel %vm913, %v7429, %v7431
    %v7435 = vsel %vm913, 0.0, %v7427
    %7436 = vrot.lane.b32.xlu0 %v7408, 15
    %v7437 = vpop.permute.xlu0 %7436
    %7438 = vrot.lane.b32.xlu0 %v7409, 15
    %v7439 = vpop.permute.xlu0 %7438
    %7440 = vrot.lane.b32.xlu0 %v7410, 15
    %v7441 = vpop.permute.xlu0 %7440
    %v7442 = vsel %vm924, %v7437, %v7439
    %v7443 = vsel %vm924, %v7439, %v7441
    %v7445 = vsel %vm924, 0.0, %v7437
    %7446 = vrot.lane.b32.xlu0 %v7408, 1
    %v7447 = vpop.permute.xlu0 %7446
    %7448 = vrot.lane.b32.xlu0 %v7409, 1
    %v7449 = vpop.permute.xlu0 %7448
    %7450 = vrot.lane.b32.xlu0 %v7410, 1
    %v7451 = vpop.permute.xlu0 %7450
    %v7452 = vsel %vm959, %v7447, %v7449
    %v7453 = vsel %vm959, %v7449, %v7451
    %v7455 = vsel %vm959, 0.0, %v7447
    %7456 = vrot.lane.b32.xlu0 %v7408, 127
    %v7457 = vpop.permute.xlu0 %7456
    %7458 = vrot.lane.b32.xlu0 %v7409, 127
    %v7459 = vpop.permute.xlu0 %7458
    %7460 = vrot.lane.b32.xlu0 %v7410, 127
    %v7461 = vpop.permute.xlu0 %7460
    %v7462 = vsel %vm970, %v7457, %v7459
    %v7463 = vsel %vm970, %v7459, %v7461
    %v7465 = vsel %vm970, %v7461, 0.0
    %7466 = vrot.lane.b32.xlu0 %v7408, 113
    %v7467 = vpop.permute.xlu0 %7466
    %7468 = vrot.lane.b32.xlu0 %v7409, 113
    %v7469 = vpop.permute.xlu0 %7468
    %7470 = vrot.lane.b32.xlu0 %v7410, 113
    %v7471 = vpop.permute.xlu0 %7470
    %v7472 = vsel %vm1003, %v7467, %v7469
    %v7473 = vsel %vm1003, %v7469, %v7471
    %v7475 = vsel %vm1003, %v7471, 0.0
    %7476 = vrot.lane.b32.xlu0 %v7408, 112
    %v7477 = vpop.permute.xlu0 %7476
    %7478 = vrot.lane.b32.xlu0 %v7409, 112
    %v7479 = vpop.permute.xlu0 %7478
    %7480 = vrot.lane.b32.xlu0 %v7410, 112
    %v7481 = vpop.permute.xlu0 %7480
    %v7482 = vsel %vm1016, %v7477, %v7479
    %v7483 = vsel %vm1016, %v7479, %v7481
    %v7485 = vsel %vm1016, %v7481, 0.0
    %7486 = vrot.lane.b32.xlu0 %v7408, 111
    %v7487 = vpop.permute.xlu0 %7486
    %7488 = vrot.lane.b32.xlu0 %v7409, 111
    %v7489 = vpop.permute.xlu0 %7488
    %7490 = vrot.lane.b32.xlu0 %v7410, 111
    %v7491 = vpop.permute.xlu0 %7490
    %v7492 = vsel %vm1027, %v7487, %v7489
    %v7493 = vsel %vm1027, %v7489, %v7491
    %v7497 = vsel %vm1027, %v7491, 0.0
    %v7499 = vrot.slane %v7435, 6
    %v7500 = vrot.slane %v7432, 6
    %v7501 = vrot.slane %v7433, 6
    %v7506 = vrot.slane %v7445, 4
    %v7507 = vrot.slane %v7442, 4
    %v7508 = vrot.slane %v7443, 4
    %v7513 = vrot.slane %v7455, 2
    %v7514 = vrot.slane %v7452, 2
    %v7515 = vrot.slane %v7453, 2
    %v7520 = vrot.slane %v7462, 6
    %v7521 = vrot.slane %v7463, 6
    %v7522 = vrot.slane %v7465, 6
    %v7527 = vrot.slane %v7472, 4
    %v7528 = vrot.slane %v7473, 4
    %v7529 = vrot.slane %v7475, 4
    %v7534 = vrot.slane %v7482, 2
    %v7535 = vrot.slane %v7483, 2
    %v7536 = vrot.slane %v7485, 2
    %v7540 = vsel %vm1186, %v7425, %v7499
    %v7541 = vsel %vm1186, %v7420, %v7500
    %v7542 = vsel %vm1186, %v7421, %v7501
    %v7543 = vsel %vm1190, %v7540, %v7506
    %v7544 = vsel %vm1190, %v7541, %v7507
    %v7545 = vsel %vm1190, %v7542, %v7508
    %v7546 = vsel %vm1194, %v7543, %v7513
    %v7547 = vsel %vm1194, %v7544, %v7514
    %v7548 = vsel %vm1194, %v7545, %v7515
    %v7549 = vsel %vm1186, %v7408, %v7520
    %v7550 = vsel %vm1186, %v7409, %v7521
    %v7551 = vsel %vm1186, %v7410, %v7522
    %v7552 = vsel %vm1190, %v7549, %v7527
    %v7553 = vsel %vm1190, %v7550, %v7528
    %v7554 = vsel %vm1190, %v7551, %v7529
    %v7555 = vsel %vm1194, %v7552, %v7534
    %v7556 = vsel %vm1194, %v7553, %v7535
    %v7557 = vsel %vm1194, %v7554, %v7536
    %v7558 = vmul.f32 %v7546, %v423
    %v7559 = vmul.f32 %v7547, %v424
    %v7560 = vmul.f32 %v7548, %v425
    %v7561 = vmul.f32 %v7555, %v426
    %v7562 = vmul.f32 %v7556, %v427
    %v7563 = vmul.f32 %v7557, %v428
    %v7564 = vmul.f32 %v7492, %v429
    %v7565 = vmul.f32 %v7493, %v430
    %v7566 = vmul.f32 %v7497, %v431
    %v7568 = vsel %vm1186, %v7564, 0
    %v7571 = vsel %vm1186, %v7565, 0
    %v7574 = vsel %vm1186, %v7566, 0
    %7576 = vmatprep.subr.mxu0 0.0
    %7577 = vmatpush1.msra.mxu0 0.0
    %7578 = vmatprep.subr.mxu0 0.0
    %7579 = vmatpush1.msra.mxu0 0.0
    %7580 = vmatprep.subr.mxu0 0.0
    %7581 = vmatpush1.msra.mxu0 0.0
    %7582 = vmatprep.subr.mxu0 0.0
    %7583 = vmatpush1.msra.mxu0 0.0
    %7584 = vmatprep.subr.mxu0 0.0
    %7585 = vmatpush1.msra.mxu0 0.0
    %7586 = vmatprep.subr.mxu0 0.0
    %7587 = vmatpush1.msra.mxu0 0.0
    %7588 = vmatprep.subr.mxu0 0.0
    %7589 = vmatpush1.msra.mxu0 0.0
    %7590 = vmatprep.subr.mxu0 0.0
    %7591 = vmatpush1.msra.mxu0 0.0
    %7592 = vmatprep.subr.mxu0 0.0
    %7593 = vmatpush1.msra.mxu0 0.0
    %7594 = vmatprep.subr.mxu0 0.0
    %7595 = vmatpush1.msra.mxu0 0.0
    %7596 = vmatprep.subr.mxu0 0.0
    %7597 = vmatpush1.msra.mxu0 0.0
    %7598 = vmatprep.subr.mxu0 0.0
    %7599 = vmatpush1.msra.mxu0 0.0
    %7600 = vmatprep.subr.mxu0 0.0
    %7601 = vmatpush1.msra.mxu0 0.0
    %7602 = vmatprep.subr.mxu0 %v7571
    %7603 = vmatpush1.msra.mxu0 %v7568
    %7604 = vmatprep.subr.mxu0 %v7562
    %7605 = vmatpush1.msra.mxu0 %v7561
    %7606 = vmatprep.subr.mxu0 %v7559
    %7607 = vmatpush1.msra.mxu0 %v7558
    %7608 = vmatprep.subr.mxu0 0.0
    %7609 = vmatpush2.msra.mxu0 0.0
    %7610 = vmatprep.subr.mxu0 0.0
    %7611 = vmatpush2.msra.mxu0 0.0
    %7612 = vmatprep.subr.mxu0 0.0
    %7613 = vmatpush2.msra.mxu0 0.0
    %7614 = vmatprep.subr.mxu0 0.0
    %7615 = vmatpush2.msra.mxu0 0.0
    %7616 = vmatprep.subr.mxu0 0.0
    %7617 = vmatpush2.msra.mxu0 0.0
    %7618 = vmatprep.subr.mxu0 0.0
    %7619 = vmatpush2.msra.mxu0 0.0
    %7620 = vmatprep.subr.mxu0 0.0
    %7621 = vmatpush2.msra.mxu0 0.0
    %7622 = vmatprep.subr.mxu0 0.0
    %7623 = vmatpush2.msra.mxu0 0.0
    %7624 = vmatprep.subr.mxu0 0.0
    %7625 = vmatpush2.msra.mxu0 0.0
    %7626 = vmatprep.subr.mxu0 0.0
    %7627 = vmatpush2.msra.mxu0 0.0
    %7628 = vmatprep.subr.mxu0 0.0
    %7629 = vmatpush2.msra.mxu0 0.0
    %7630 = vmatprep.subr.mxu0 0.0
    %7631 = vmatpush2.msra.mxu0 0.0
    %7632 = vmatprep.subr.mxu0 0.0
    %7633 = vmatpush2.msra.mxu0 0.0
    %7634 = vmatprep.subr.mxu0 0.0
    %7635 = vmatpush2.msra.mxu0 0.0
    %7636 = vmatprep.subr.mxu0 0.0
    %7637 = vmatpush2.msra.mxu0 0.0
    %7638 = vmatprep.subr.mxu0 0.0
    %7639 = vmatpush2.msra.mxu0 0.0
    %7640 = vmatprep.mubr.f32.mxu0 0.0
    %7641 = vmatmul.mubr.f32.gmra.mxu0 %v3430
    %v7642 = vpop.f32.mrf.mxu0
    %v7643 = vadd.f32 %v3427, %v7642
    %v7644 = vpop.f32.mrf.mxu0
    %v7645 = vadd.f32 %v3427, %v7644
    %7646 = vdwg.mxu0
    %7647 = vmatprep.subr.mxu0 0.0
    %7648 = vmatpush1.msra.mxu0 0.0
    %7649 = vmatprep.subr.mxu0 0.0
    %7650 = vmatpush1.msra.mxu0 0.0
    %7651 = vmatprep.subr.mxu0 0.0
    %7652 = vmatpush1.msra.mxu0 0.0
    %7653 = vmatprep.subr.mxu0 0.0
    %7654 = vmatpush1.msra.mxu0 0.0
    %7655 = vmatprep.subr.mxu0 0.0
    %7656 = vmatpush1.msra.mxu0 0.0
    %7657 = vmatprep.subr.mxu0 0.0
    %7658 = vmatpush1.msra.mxu0 0.0
    %7659 = vmatprep.subr.mxu0 0.0
    %7660 = vmatpush1.msra.mxu0 0.0
    %7661 = vmatprep.subr.mxu0 0.0
    %7662 = vmatpush1.msra.mxu0 0.0
    %7663 = vmatprep.subr.mxu0 0.0
    %7664 = vmatpush1.msra.mxu0 0.0
    %7665 = vmatprep.subr.mxu0 0.0
    %7666 = vmatpush1.msra.mxu0 0.0
    %7667 = vmatprep.subr.mxu0 0.0
    %7668 = vmatpush1.msra.mxu0 0.0
    %7669 = vmatprep.subr.mxu0 0.0
    %7670 = vmatpush1.msra.mxu0 0.0
    %7671 = vmatprep.subr.mxu0 0.0
    %7672 = vmatpush1.msra.mxu0 0.0
    %7673 = vmatprep.subr.mxu0 0.0
    %7674 = vmatpush1.msra.mxu0 %v7574
    %7675 = vmatprep.subr.mxu0 0.0
    %7676 = vmatpush1.msra.mxu0 %v7563
    %7677 = vmatprep.subr.mxu0 0.0
    %7678 = vmatpush1.msra.mxu0 %v7560
    %7679 = vmatprep.subr.mxu0 0.0
    %7680 = vmatpush2.msra.mxu0 0.0
    %7681 = vmatprep.subr.mxu0 0.0
    %7682 = vmatpush2.msra.mxu0 0.0
    %7683 = vmatprep.subr.mxu0 0.0
    %7684 = vmatpush2.msra.mxu0 0.0
    %7685 = vmatprep.subr.mxu0 0.0
    %7686 = vmatpush2.msra.mxu0 0.0
    %7687 = vmatprep.subr.mxu0 0.0
    %7688 = vmatpush2.msra.mxu0 0.0
    %7689 = vmatprep.subr.mxu0 0.0
    %7690 = vmatpush2.msra.mxu0 0.0
    %7691 = vmatprep.subr.mxu0 0.0
    %7692 = vmatpush2.msra.mxu0 0.0
    %7693 = vmatprep.subr.mxu0 0.0
    %7694 = vmatpush2.msra.mxu0 0.0
    %7695 = vmatprep.subr.mxu0 0.0
    %7696 = vmatpush2.msra.mxu0 0.0
    %7697 = vmatprep.subr.mxu0 0.0
    %7698 = vmatpush2.msra.mxu0 0.0
    %7699 = vmatprep.subr.mxu0 0.0
    %7700 = vmatpush2.msra.mxu0 0.0
    %7701 = vmatprep.subr.mxu0 0.0
    %7702 = vmatpush2.msra.mxu0 0.0
    %7703 = vmatprep.subr.mxu0 0.0
    %7704 = vmatpush2.msra.mxu0 0.0
    %7705 = vmatprep.subr.mxu0 0.0
    %7706 = vmatpush2.msra.mxu0 0.0
    %7707 = vmatprep.subr.mxu0 0.0
    %7708 = vmatpush2.msra.mxu0 0.0
    %7709 = vmatprep.subr.mxu0 0.0
    %7710 = vmatpush2.msra.mxu0 0.0
    %7711 = vmatprep.mubr.f32.mxu0 0.0
    %7712 = vmatmul.mubr.f32.gmra.mxu0 %v3430
    %v7713 = vpop.f32.mrf.mxu0
    %v7714 = vadd.f32 %v3427, %v7713
    %v7715 = vpop.f32.mrf.mxu0
    %7716 = vdwg.mxu0
    %vm7717 = vcmp.gt.f32.partialorder %v7643, 20.0
    %vm7718 = vcmp.gt.f32.partialorder %v7645, 20.0
    %vm7719 = vcmp.gt.f32.partialorder %v7714, 20.0
    %v7720 = vmin.f32 %v7643, 20.0
    %v7721 = vmin.f32 %v7645, 20.0
    %v7722 = vmin.f32 %v7714, 20.0
    %v7723 = vmul.f32 %v7720, 1.442695
    %v7724 = vpow.pop %v7723
    %v7725 = vmul.f32 %v7721, 1.442695
    %v7726 = vpow.pop %v7725
    %v7727 = vmul.f32 %v7722, 1.442695
    %v7728 = vpow.pop %v7727
    %v7729 = vadd.f32 %v7724, 1.0
    %v7730 = vadd.f32 %v7726, 1.0
    %v7731 = vadd.f32 %v7728, 1.0
    %v7732 = vlog2.pop %v7729
    %v7733 = vmul.f32 %v7732, 0.6931472
    %v7734 = vlog2.pop %v7730
    %v7735 = vmul.f32 %v7734, 0.6931472
    %v7736 = vlog2.pop %v7731
    %v7737 = vmul.f32 %v7736, 0.6931472
    %v7738 = vsel %vm7717, %v7643, %v7733
    %v7739 = vsel %vm7718, %v7645, %v7735
    %v7740 = vsel %vm7719, %v7714, %v7737
    %v7741 = vtanh.pop %v7738
    %v7742 = vtanh.pop %v7739
    %v7743 = vtanh.pop %v7740
    %v7744 = vmul.f32 %v7643, %v7741
    %v7745 = vmul.f32 %v7645, %v7742
    %v7746 = vmul.f32 %v7714, %v7743
    %7750 = vrot.lane.b32.xlu0 %v7744, 4
    %v7751 = vpop.permute.xlu0 %7750
    %7752 = vrot.lane.b32.xlu0 %v7745, 4
    %v7753 = vpop.permute.xlu0 %7752
    %7754 = vrot.lane.b32.xlu0 %v7746, 4
    %v7755 = vpop.permute.xlu0 %7754
    %v7756 = vsel %vm1848, %v7751, %v7753
    %v7757 = vsel %vm1848, %v7753, %v7755
    %v7761 = vsel %vm1848, 0.0, %v7751
    %7762 = vrot.lane.b32.xlu0 %v7744, 3
    %v7763 = vpop.permute.xlu0 %7762
    %7764 = vrot.lane.b32.xlu0 %v7745, 3
    %v7765 = vpop.permute.xlu0 %7764
    %7766 = vrot.lane.b32.xlu0 %v7746, 3
    %v7767 = vpop.permute.xlu0 %7766
    %v7768 = vsel %vm1861, %v7763, %v7765
    %v7769 = vsel %vm1861, %v7765, %v7767
    %v7771 = vsel %vm1861, 0.0, %v7763
    %7772 = vrot.lane.b32.xlu0 %v7744, 2
    %v7773 = vpop.permute.xlu0 %7772
    %7774 = vrot.lane.b32.xlu0 %v7745, 2
    %v7775 = vpop.permute.xlu0 %7774
    %7776 = vrot.lane.b32.xlu0 %v7746, 2
    %v7777 = vpop.permute.xlu0 %7776
    %v7778 = vsel %vm948, %v7773, %v7775
    %v7779 = vsel %vm948, %v7775, %v7777
    %v7781 = vsel %vm948, 0.0, %v7773
    %7782 = vrot.lane.b32.xlu0 %v7744, 1
    %v7783 = vpop.permute.xlu0 %7782
    %7784 = vrot.lane.b32.xlu0 %v7745, 1
    %v7785 = vpop.permute.xlu0 %7784
    %7786 = vrot.lane.b32.xlu0 %v7746, 1
    %v7787 = vpop.permute.xlu0 %7786
    %v7788 = vsel %vm959, %v7783, %v7785
    %v7789 = vsel %vm959, %v7785, %v7787
    %v7791 = vsel %vm959, 0.0, %v7783
    %7792 = vrot.lane.b32.xlu0 %v7744, 127
    %v7793 = vpop.permute.xlu0 %7792
    %7794 = vrot.lane.b32.xlu0 %v7745, 127
    %v7795 = vpop.permute.xlu0 %7794
    %7796 = vrot.lane.b32.xlu0 %v7746, 127
    %v7797 = vpop.permute.xlu0 %7796
    %v7798 = vsel %vm970, %v7793, %v7795
    %v7799 = vsel %vm970, %v7795, %v7797
    %v7801 = vsel %vm970, %v7797, 0.0
    %7802 = vrot.lane.b32.xlu0 %v7744, 126
    %v7803 = vpop.permute.xlu0 %7802
    %7804 = vrot.lane.b32.xlu0 %v7745, 126
    %v7805 = vpop.permute.xlu0 %7804
    %7806 = vrot.lane.b32.xlu0 %v7746, 126
    %v7807 = vpop.permute.xlu0 %7806
    %v7808 = vsel %vm981, %v7803, %v7805
    %v7809 = vsel %vm981, %v7805, %v7807
    %v7811 = vsel %vm981, %v7807, 0.0
    %7812 = vrot.lane.b32.xlu0 %v7744, 125
    %v7813 = vpop.permute.xlu0 %7812
    %7814 = vrot.lane.b32.xlu0 %v7745, 125
    %v7815 = vpop.permute.xlu0 %7814
    %7816 = vrot.lane.b32.xlu0 %v7746, 125
    %v7817 = vpop.permute.xlu0 %7816
    %v7818 = vsel %vm1912, %v7813, %v7815
    %v7819 = vsel %vm1912, %v7815, %v7817
    %v7821 = vsel %vm1912, %v7817, 0.0
    %7822 = vrot.lane.b32.xlu0 %v7744, 124
    %v7823 = vpop.permute.xlu0 %7822
    %7824 = vrot.lane.b32.xlu0 %v7745, 124
    %v7825 = vpop.permute.xlu0 %7824
    %7826 = vrot.lane.b32.xlu0 %v7746, 124
    %v7827 = vpop.permute.xlu0 %7826
    %v7828 = vsel %vm1923, %v7823, %v7825
    %v7829 = vsel %vm1923, %v7825, %v7827
    %v7833 = vsel %vm1923, %v7827, 0.0
    %v7835 = vrot.slane %v7771, 6
    %v7836 = vrot.slane %v7768, 6
    %v7837 = vrot.slane %v7769, 6
    %v7842 = vrot.slane %v7781, 4
    %v7843 = vrot.slane %v7778, 4
    %v7844 = vrot.slane %v7779, 4
    %v7849 = vrot.slane %v7791, 2
    %v7850 = vrot.slane %v7788, 2
    %v7851 = vrot.slane %v7789, 2
    %v7856 = vrot.slane %v7798, 6
    %v7857 = vrot.slane %v7799, 6
    %v7858 = vrot.slane %v7801, 6
    %v7863 = vrot.slane %v7808, 4
    %v7864 = vrot.slane %v7809, 4
    %v7865 = vrot.slane %v7811, 4
    %v7870 = vrot.slane %v7818, 2
    %v7871 = vrot.slane %v7819, 2
    %v7872 = vrot.slane %v7821, 2
    %v7876 = vsel %vm1186, %v7761, %v7835
    %v7877 = vsel %vm1186, %v7756, %v7836
    %v7878 = vsel %vm1186, %v7757, %v7837
    %v7879 = vsel %vm1190, %v7876, %v7842
    %v7880 = vsel %vm1190, %v7877, %v7843
    %v7881 = vsel %vm1190, %v7878, %v7844
    %v7882 = vsel %vm1194, %v7879, %v7849
    %v7883 = vsel %vm1194, %v7880, %v7850
    %v7884 = vsel %vm1194, %v7881, %v7851
    %v7885 = vsel %vm1186, %v7744, %v7856
    %v7886 = vsel %vm1186, %v7745, %v7857
    %v7887 = vsel %vm1186, %v7746, %v7858
    %v7888 = vsel %vm1190, %v7885, %v7863
    %v7889 = vsel %vm1190, %v7886, %v7864
    %v7890 = vsel %vm1190, %v7887, %v7865
    %v7891 = vsel %vm1194, %v7888, %v7870
    %v7892 = vsel %vm1194, %v7889, %v7871
    %v7893 = vsel %vm1194, %v7890, %v7872
    %v7894 = vmul.f32 %v7882, %v432
    %v7895 = vmul.f32 %v7883, %v433
    %v7896 = vmul.f32 %v7884, %v434
    %v7897 = vmul.f32 %v7891, %v435
    %v7898 = vmul.f32 %v7892, %v436
    %v7899 = vmul.f32 %v7893, %v437
    %v7900 = vmul.f32 %v7828, %v438
    %v7901 = vmul.f32 %v7829, %v439
    %v7902 = vmul.f32 %v7833, %v440
    %v7904 = vsel %vm1186, %v7900, 0
    %v7907 = vsel %vm1186, %v7901, 0
    %v7910 = vsel %vm1186, %v7902, 0
    %7912 = vmatprep.subr.mxu0 0.0
    %7913 = vmatpush1.msra.mxu0 0.0
    %7914 = vmatprep.subr.mxu0 0.0
    %7915 = vmatpush1.msra.mxu0 0.0
    %7916 = vmatprep.subr.mxu0 0.0
    %7917 = vmatpush1.msra.mxu0 0.0
    %7918 = vmatprep.subr.mxu0 0.0
    %7919 = vmatpush1.msra.mxu0 0.0
    %7920 = vmatprep.subr.mxu0 0.0
    %7921 = vmatpush1.msra.mxu0 0.0
    %7922 = vmatprep.subr.mxu0 0.0
    %7923 = vmatpush1.msra.mxu0 0.0
    %7924 = vmatprep.subr.mxu0 0.0
    %7925 = vmatpush1.msra.mxu0 0.0
    %7926 = vmatprep.subr.mxu0 0.0
    %7927 = vmatpush1.msra.mxu0 0.0
    %7928 = vmatprep.subr.mxu0 0.0
    %7929 = vmatpush1.msra.mxu0 0.0
    %7930 = vmatprep.subr.mxu0 0.0
    %7931 = vmatpush1.msra.mxu0 0.0
    %7932 = vmatprep.subr.mxu0 0.0
    %7933 = vmatpush1.msra.mxu0 0.0
    %7934 = vmatprep.subr.mxu0 0.0
    %7935 = vmatpush1.msra.mxu0 0.0
    %7936 = vmatprep.subr.mxu0 0.0
    %7937 = vmatpush1.msra.mxu0 0.0
    %7938 = vmatprep.subr.mxu0 %v7907
    %7939 = vmatpush1.msra.mxu0 %v7904
    %7940 = vmatprep.subr.mxu0 %v7898
    %7941 = vmatpush1.msra.mxu0 %v7897
    %7942 = vmatprep.subr.mxu0 %v7895
    %7943 = vmatpush1.msra.mxu0 %v7894
    %7944 = vmatprep.subr.mxu0 0.0
    %7945 = vmatpush2.msra.mxu0 0.0
    %7946 = vmatprep.subr.mxu0 0.0
    %7947 = vmatpush2.msra.mxu0 0.0
    %7948 = vmatprep.subr.mxu0 0.0
    %7949 = vmatpush2.msra.mxu0 0.0
    %7950 = vmatprep.subr.mxu0 0.0
    %7951 = vmatpush2.msra.mxu0 0.0
    %7952 = vmatprep.subr.mxu0 0.0
    %7953 = vmatpush2.msra.mxu0 0.0
    %7954 = vmatprep.subr.mxu0 0.0
    %7955 = vmatpush2.msra.mxu0 0.0
    %7956 = vmatprep.subr.mxu0 0.0
    %7957 = vmatpush2.msra.mxu0 0.0
    %7958 = vmatprep.subr.mxu0 0.0
    %7959 = vmatpush2.msra.mxu0 0.0
    %7960 = vmatprep.subr.mxu0 0.0
    %7961 = vmatpush2.msra.mxu0 0.0
    %7962 = vmatprep.subr.mxu0 0.0
    %7963 = vmatpush2.msra.mxu0 0.0
    %7964 = vmatprep.subr.mxu0 0.0
    %7965 = vmatpush2.msra.mxu0 0.0
    %7966 = vmatprep.subr.mxu0 0.0
    %7967 = vmatpush2.msra.mxu0 0.0
    %7968 = vmatprep.subr.mxu0 0.0
    %7969 = vmatpush2.msra.mxu0 0.0
    %7970 = vmatprep.subr.mxu0 0.0
    %7971 = vmatpush2.msra.mxu0 0.0
    %7972 = vmatprep.subr.mxu0 0.0
    %7973 = vmatpush2.msra.mxu0 0.0
    %7974 = vmatprep.subr.mxu0 0.0
    %7975 = vmatpush2.msra.mxu0 0.0
    %7976 = vmatprep.mubr.f32.mxu0 0.0
    %7977 = vmatmul.mubr.f32.gmra.mxu0 %v3774
    %v7978 = vpop.f32.mrf.mxu0
    %v7979 = vadd.f32 %v3771, %v7978
    %v7980 = vpop.f32.mrf.mxu0
    %v7981 = vadd.f32 %v3771, %v7980
    %7982 = vdwg.mxu0
    %7983 = vmatprep.subr.mxu0 0.0
    %7984 = vmatpush1.msra.mxu0 0.0
    %7985 = vmatprep.subr.mxu0 0.0
    %7986 = vmatpush1.msra.mxu0 0.0
    %7987 = vmatprep.subr.mxu0 0.0
    %7988 = vmatpush1.msra.mxu0 0.0
    %7989 = vmatprep.subr.mxu0 0.0
    %7990 = vmatpush1.msra.mxu0 0.0
    %7991 = vmatprep.subr.mxu0 0.0
    %7992 = vmatpush1.msra.mxu0 0.0
    %7993 = vmatprep.subr.mxu0 0.0
    %7994 = vmatpush1.msra.mxu0 0.0
    %7995 = vmatprep.subr.mxu0 0.0
    %7996 = vmatpush1.msra.mxu0 0.0
    %7997 = vmatprep.subr.mxu0 0.0
    %7998 = vmatpush1.msra.mxu0 0.0
    %7999 = vmatprep.subr.mxu0 0.0
    %8000 = vmatpush1.msra.mxu0 0.0
    %8001 = vmatprep.subr.mxu0 0.0
    %8002 = vmatpush1.msra.mxu0 0.0
    %8003 = vmatprep.subr.mxu0 0.0
    %8004 = vmatpush1.msra.mxu0 0.0
    %8005 = vmatprep.subr.mxu0 0.0
    %8006 = vmatpush1.msra.mxu0 0.0
    %8007 = vmatprep.subr.mxu0 0.0
    %8008 = vmatpush1.msra.mxu0 0.0
    %8009 = vmatprep.subr.mxu0 0.0
    %8010 = vmatpush1.msra.mxu0 %v7910
    %8011 = vmatprep.subr.mxu0 0.0
    %8012 = vmatpush1.msra.mxu0 %v7899
    %8013 = vmatprep.subr.mxu0 0.0
    %8014 = vmatpush1.msra.mxu0 %v7896
    %8015 = vmatprep.subr.mxu0 0.0
    %8016 = vmatpush2.msra.mxu0 0.0
    %8017 = vmatprep.subr.mxu0 0.0
    %8018 = vmatpush2.msra.mxu0 0.0
    %8019 = vmatprep.subr.mxu0 0.0
    %8020 = vmatpush2.msra.mxu0 0.0
    %8021 = vmatprep.subr.mxu0 0.0
    %8022 = vmatpush2.msra.mxu0 0.0
    %8023 = vmatprep.subr.mxu0 0.0
    %8024 = vmatpush2.msra.mxu0 0.0
    %8025 = vmatprep.subr.mxu0 0.0
    %8026 = vmatpush2.msra.mxu0 0.0
    %8027 = vmatprep.subr.mxu0 0.0
    %8028 = vmatpush2.msra.mxu0 0.0
    %8029 = vmatprep.subr.mxu0 0.0
    %8030 = vmatpush2.msra.mxu0 0.0
    %8031 = vmatprep.subr.mxu0 0.0
    %8032 = vmatpush2.msra.mxu0 0.0
    %8033 = vmatprep.subr.mxu0 0.0
    %8034 = vmatpush2.msra.mxu0 0.0
    %8035 = vmatprep.subr.mxu0 0.0
    %8036 = vmatpush2.msra.mxu0 0.0
    %8037 = vmatprep.subr.mxu0 0.0
    %8038 = vmatpush2.msra.mxu0 0.0
    %8039 = vmatprep.subr.mxu0 0.0
    %8040 = vmatpush2.msra.mxu0 0.0
    %8041 = vmatprep.subr.mxu0 0.0
    %8042 = vmatpush2.msra.mxu0 0.0
    %8043 = vmatprep.subr.mxu0 0.0
    %8044 = vmatpush2.msra.mxu0 0.0
    %8045 = vmatprep.subr.mxu0 0.0
    %8046 = vmatpush2.msra.mxu0 0.0
    %8047 = vmatprep.mubr.f32.mxu0 0.0
    %8048 = vmatmul.mubr.f32.gmra.mxu0 %v3774
    %v8049 = vpop.f32.mrf.mxu0
    %v8050 = vadd.f32 %v3771, %v8049
    %v8051 = vpop.f32.mrf.mxu0
    %8052 = vdwg.mxu0
    %vm8053 = vcmp.gt.f32.partialorder %v7979, 20.0
    %vm8054 = vcmp.gt.f32.partialorder %v7981, 20.0
    %vm8055 = vcmp.gt.f32.partialorder %v8050, 20.0
    %v8056 = vmin.f32 %v7979, 20.0
    %v8057 = vmin.f32 %v7981, 20.0
    %v8058 = vmin.f32 %v8050, 20.0
    %v8059 = vmul.f32 %v8056, 1.442695
    %v8060 = vpow.pop %v8059
    %v8061 = vmul.f32 %v8057, 1.442695
    %v8062 = vpow.pop %v8061
    %v8063 = vmul.f32 %v8058, 1.442695
    %v8064 = vpow.pop %v8063
    %v8065 = vadd.f32 %v8060, 1.0
    %v8066 = vadd.f32 %v8062, 1.0
    %v8067 = vadd.f32 %v8064, 1.0
    %v8068 = vlog2.pop %v8065
    %v8069 = vmul.f32 %v8068, 0.6931472
    %v8070 = vlog2.pop %v8066
    %v8071 = vmul.f32 %v8070, 0.6931472
    %v8072 = vlog2.pop %v8067
    %v8073 = vmul.f32 %v8072, 0.6931472
    %v8074 = vsel %vm8053, %v7979, %v8069
    %v8075 = vsel %vm8054, %v7981, %v8071
    %v8076 = vsel %vm8055, %v8050, %v8073
    %v8077 = vtanh.pop %v8074
    %v8078 = vtanh.pop %v8075
    %v8079 = vtanh.pop %v8076
    %v8080 = vmul.f32 %v7979, %v8077
    %v8081 = vmul.f32 %v7981, %v8078
    %v8082 = vmul.f32 %v8050, %v8079
    %8086 = vrot.lane.b32.xlu0 %v8080, 64
    %v8087 = vpop.permute.xlu0 %8086
    %8088 = vrot.lane.b32.xlu0 %v8081, 64
    %v8089 = vpop.permute.xlu0 %8088
    %8090 = vrot.lane.b32.xlu0 %v8082, 64
    %v8091 = vpop.permute.xlu0 %8090
    %v8092 = vsel %vm2196, %v8087, %v8089
    %v8093 = vsel %vm2196, %v8089, %v8091
    %v8097 = vsel %vm2196, 0.0, %v8087
    %8098 = vrot.lane.b32.xlu0 %v8080, 48
    %v8099 = vpop.permute.xlu0 %8098
    %8100 = vrot.lane.b32.xlu0 %v8081, 48
    %v8101 = vpop.permute.xlu0 %8100
    %8102 = vrot.lane.b32.xlu0 %v8082, 48
    %v8103 = vpop.permute.xlu0 %8102
    %v8104 = vsel %vm2209, %v8099, %v8101
    %v8105 = vsel %vm2209, %v8101, %v8103
    %v8107 = vsel %vm2209, 0.0, %v8099
    %8108 = vrot.lane.b32.xlu0 %v8080, 32
    %v8109 = vpop.permute.xlu0 %8108
    %8110 = vrot.lane.b32.xlu0 %v8081, 32
    %v8111 = vpop.permute.xlu0 %8110
    %8112 = vrot.lane.b32.xlu0 %v8082, 32
    %v8113 = vpop.permute.xlu0 %8112
    %v8114 = vsel %vm534, %v8109, %v8111
    %v8115 = vsel %vm534, %v8111, %v8113
    %v8117 = vsel %vm534, 0.0, %v8109
    %8118 = vrot.lane.b32.xlu0 %v8080, 16
    %v8119 = vpop.permute.xlu0 %8118
    %8120 = vrot.lane.b32.xlu0 %v8081, 16
    %v8121 = vpop.permute.xlu0 %8120
    %8122 = vrot.lane.b32.xlu0 %v8082, 16
    %v8123 = vpop.permute.xlu0 %8122
    %v8124 = vsel %vm913, %v8119, %v8121
    %v8125 = vsel %vm913, %v8121, %v8123
    %v8127 = vsel %vm913, 0.0, %v8119
    %8128 = vrot.lane.b32.xlu0 %v8080, 112
    %v8129 = vpop.permute.xlu0 %8128
    %8130 = vrot.lane.b32.xlu0 %v8081, 112
    %v8131 = vpop.permute.xlu0 %8130
    %8132 = vrot.lane.b32.xlu0 %v8082, 112
    %v8133 = vpop.permute.xlu0 %8132
    %v8134 = vsel %vm1016, %v8129, %v8131
    %v8135 = vsel %vm1016, %v8131, %v8133
    %v8137 = vsel %vm1016, %v8133, 0.0
    %8138 = vrot.lane.b32.xlu0 %v8080, 96
    %v8139 = vpop.permute.xlu0 %8138
    %8140 = vrot.lane.b32.xlu0 %v8081, 96
    %v8141 = vpop.permute.xlu0 %8140
    %8142 = vrot.lane.b32.xlu0 %v8082, 96
    %v8143 = vpop.permute.xlu0 %8142
    %v8144 = vsel %vm1073, %v8139, %v8141
    %v8145 = vsel %vm1073, %v8141, %v8143
    %v8147 = vsel %vm1073, %v8143, 0.0
    %8148 = vrot.lane.b32.xlu0 %v8080, 80
    %v8149 = vpop.permute.xlu0 %8148
    %8150 = vrot.lane.b32.xlu0 %v8081, 80
    %v8151 = vpop.permute.xlu0 %8150
    %8152 = vrot.lane.b32.xlu0 %v8082, 80
    %v8153 = vpop.permute.xlu0 %8152
    %v8154 = vsel %vm2260, %v8149, %v8151
    %v8155 = vsel %vm2260, %v8151, %v8153
    %v8157 = vsel %vm2260, %v8153, 0.0
    %v8159 = vsel %vm2196, %v8091, 0.0
    %v8161 = vrot.slane %v8107, 1
    %v8162 = vrot.slane %v8104, 1
    %v8163 = vrot.slane %v8105, 1
    %v8168 = vrot.slane %v8117, 2
    %v8169 = vrot.slane %v8114, 2
    %v8170 = vrot.slane %v8115, 2
    %v8175 = vrot.slane %v8127, 3
    %v8176 = vrot.slane %v8124, 3
    %v8177 = vrot.slane %v8125, 3
    %v8181 = vrot.slane %v8080, 4
    %v8182 = vrot.slane %v8081, 4
    %v8183 = vrot.slane %v8082, 4
    %v8188 = vrot.slane %v8134, 5
    %v8189 = vrot.slane %v8135, 5
    %v8190 = vrot.slane %v8137, 5
    %v8195 = vrot.slane %v8144, 6
    %v8196 = vrot.slane %v8145, 6
    %v8197 = vrot.slane %v8147, 6
    %v8202 = vrot.slane %v8154, 7
    %v8203 = vrot.slane %v8155, 7
    %v8204 = vrot.slane %v8157, 7
    %v8208 = vsel %vm2315, %v8097, %v8161
    %v8209 = vsel %vm2315, %v8092, %v8162
    %v8210 = vsel %vm2315, %v8093, %v8163
    %v8211 = vsel %vm1194, %v8161, %v8168
    %v8212 = vsel %vm1194, %v8162, %v8169
    %v8213 = vsel %vm1194, %v8163, %v8170
    %v8214 = vsel %vm2322, %v8168, %v8175
    %v8215 = vsel %vm2322, %v8169, %v8176
    %v8216 = vsel %vm2322, %v8170, %v8177
    %v8217 = vsel %vm1190, %v8175, %v8181
    %v8218 = vsel %vm1190, %v8176, %v8182
    %v8219 = vsel %vm1190, %v8177, %v8183
    %v8220 = vsel %vm2329, %v8181, %v8188
    %v8221 = vsel %vm2329, %v8182, %v8189
    %v8222 = vsel %vm2329, %v8183, %v8190
    %v8223 = vsel %vm1186, %v8188, %v8195
    %v8224 = vsel %vm1186, %v8189, %v8196
    %v8225 = vsel %vm1186, %v8190, %v8197
    %v8226 = vsel %vm820, %v8195, %v8202
    %v8227 = vsel %vm820, %v8196, %v8203
    %v8228 = vsel %vm820, %v8197, %v8204
    %v8229 = vmul.f32 %v8208, %v441
    %v8230 = vmul.f32 %v8209, %v442
    %v8231 = vmul.f32 %v8210, %v443
    %v8232 = vmul.f32 %v8211, %v444
    %v8233 = vmul.f32 %v8212, %v445
    %v8234 = vmul.f32 %v8213, %v446
    %v8235 = vmul.f32 %v8214, %v447
    %v8236 = vmul.f32 %v8215, %v448
    %v8237 = vmul.f32 %v8216, %v449
    %v8238 = vmul.f32 %v8217, %v450
    %v8239 = vmul.f32 %v8218, %v451
    %v8240 = vmul.f32 %v8219, %v452
    %v8241 = vmul.f32 %v8220, %v453
    %v8242 = vmul.f32 %v8221, %v454
    %v8243 = vmul.f32 %v8222, %v455
    %v8244 = vmul.f32 %v8223, %v456
    %v8245 = vmul.f32 %v8224, %v457
    %v8246 = vmul.f32 %v8225, %v458
    %v8247 = vmul.f32 %v8226, %v459
    %v8248 = vmul.f32 %v8227, %v460
    %v8249 = vmul.f32 %v8228, %v461
    %v8250 = vmul.f32 %v8092, %v462
    %v8251 = vmul.f32 %v8093, %v463
    %v8252 = vmul.f32 %v8159, %v464
    %v8254 = vsel %vm2315, %v8250, 0
    %v8257 = vsel %vm2315, %v8251, 0
    %v8260 = vsel %vm2315, %v8252, 0
    %8262 = vmatprep.subr.mxu0 0.0
    %8263 = vmatpush1.msra.mxu0 0.0
    %8264 = vmatprep.subr.mxu0 0.0
    %8265 = vmatpush1.msra.mxu0 0.0
    %8266 = vmatprep.subr.mxu0 0.0
    %8267 = vmatpush1.msra.mxu0 0.0
    %8268 = vmatprep.subr.mxu0 0.0
    %8269 = vmatpush1.msra.mxu0 0.0
    %8270 = vmatprep.subr.mxu0 0.0
    %8271 = vmatpush1.msra.mxu0 0.0
    %8272 = vmatprep.subr.mxu0 0.0
    %8273 = vmatpush1.msra.mxu0 0.0
    %8274 = vmatprep.subr.mxu0 0.0
    %8275 = vmatpush1.msra.mxu0 0.0
    %8276 = vmatprep.subr.mxu0 0.0
    %8277 = vmatpush1.msra.mxu0 0.0
    %8278 = vmatprep.subr.mxu0 %v8257
    %8279 = vmatpush1.msra.mxu0 %v8254
    %8280 = vmatprep.subr.mxu0 %v8248
    %8281 = vmatpush1.msra.mxu0 %v8247
    %8282 = vmatprep.subr.mxu0 %v8245
    %8283 = vmatpush1.msra.mxu0 %v8244
    %8284 = vmatprep.subr.mxu0 %v8242
    %8285 = vmatpush1.msra.mxu0 %v8241
    %8286 = vmatprep.subr.mxu0 %v8239
    %8287 = vmatpush1.msra.mxu0 %v8238
    %8288 = vmatprep.subr.mxu0 %v8236
    %8289 = vmatpush1.msra.mxu0 %v8235
    %8290 = vmatprep.subr.mxu0 %v8233
    %8291 = vmatpush1.msra.mxu0 %v8232
    %8292 = vmatprep.subr.mxu0 %v8230
    %8293 = vmatpush1.msra.mxu0 %v8229
    %8294 = vmatprep.subr.mxu0 0.0
    %8295 = vmatpush2.msra.mxu0 0.0
    %8296 = vmatprep.subr.mxu0 0.0
    %8297 = vmatpush2.msra.mxu0 0.0
    %8298 = vmatprep.subr.mxu0 0.0
    %8299 = vmatpush2.msra.mxu0 0.0
    %8300 = vmatprep.subr.mxu0 0.0
    %8301 = vmatpush2.msra.mxu0 0.0
    %8302 = vmatprep.subr.mxu0 0.0
    %8303 = vmatpush2.msra.mxu0 0.0
    %8304 = vmatprep.subr.mxu0 0.0
    %8305 = vmatpush2.msra.mxu0 0.0
    %8306 = vmatprep.subr.mxu0 0.0
    %8307 = vmatpush2.msra.mxu0 0.0
    %8308 = vmatprep.subr.mxu0 0.0
    %8309 = vmatpush2.msra.mxu0 0.0
    %8310 = vmatprep.subr.mxu0 0.0
    %8311 = vmatpush2.msra.mxu0 0.0
    %8312 = vmatprep.subr.mxu0 0.0
    %8313 = vmatpush2.msra.mxu0 0.0
    %8314 = vmatprep.subr.mxu0 0.0
    %8315 = vmatpush2.msra.mxu0 0.0
    %8316 = vmatprep.subr.mxu0 0.0
    %8317 = vmatpush2.msra.mxu0 0.0
    %8318 = vmatprep.subr.mxu0 0.0
    %8319 = vmatpush2.msra.mxu0 0.0
    %8320 = vmatprep.subr.mxu0 0.0
    %8321 = vmatpush2.msra.mxu0 0.0
    %8322 = vmatprep.subr.mxu0 0.0
    %8323 = vmatpush2.msra.mxu0 0.0
    %8324 = vmatprep.subr.mxu0 0.0
    %8325 = vmatpush2.msra.mxu0 0.0
    %8326 = vmatprep.mubr.f32.mxu0 0.0
    %8327 = vmatmul.mubr.f32.gmra.mxu0 %v4132
    %v8328 = vpop.f32.mrf.mxu0
    %v8329 = vadd.f32 %v4129, %v8328
    %v8330 = vpop.f32.mrf.mxu0
    %v8331 = vadd.f32 %v4129, %v8330
    %8332 = vdwg.mxu0
    %8333 = vmatprep.subr.mxu0 0.0
    %8334 = vmatpush1.msra.mxu0 0.0
    %8335 = vmatprep.subr.mxu0 0.0
    %8336 = vmatpush1.msra.mxu0 0.0
    %8337 = vmatprep.subr.mxu0 0.0
    %8338 = vmatpush1.msra.mxu0 0.0
    %8339 = vmatprep.subr.mxu0 0.0
    %8340 = vmatpush1.msra.mxu0 0.0
    %8341 = vmatprep.subr.mxu0 0.0
    %8342 = vmatpush1.msra.mxu0 0.0
    %8343 = vmatprep.subr.mxu0 0.0
    %8344 = vmatpush1.msra.mxu0 0.0
    %8345 = vmatprep.subr.mxu0 0.0
    %8346 = vmatpush1.msra.mxu0 0.0
    %8347 = vmatprep.subr.mxu0 0.0
    %8348 = vmatpush1.msra.mxu0 0.0
    %8349 = vmatprep.subr.mxu0 0.0
    %8350 = vmatpush1.msra.mxu0 %v8260
    %8351 = vmatprep.subr.mxu0 0.0
    %8352 = vmatpush1.msra.mxu0 %v8249
    %8353 = vmatprep.subr.mxu0 0.0
    %8354 = vmatpush1.msra.mxu0 %v8246
    %8355 = vmatprep.subr.mxu0 0.0
    %8356 = vmatpush1.msra.mxu0 %v8243
    %8357 = vmatprep.subr.mxu0 0.0
    %8358 = vmatpush1.msra.mxu0 %v8240
    %8359 = vmatprep.subr.mxu0 0.0
    %8360 = vmatpush1.msra.mxu0 %v8237
    %8361 = vmatprep.subr.mxu0 0.0
    %8362 = vmatpush1.msra.mxu0 %v8234
    %8363 = vmatprep.subr.mxu0 0.0
    %8364 = vmatpush1.msra.mxu0 %v8231
    %8365 = vmatprep.subr.mxu0 0.0
    %8366 = vmatpush2.msra.mxu0 0.0
    %8367 = vmatprep.subr.mxu0 0.0
    %8368 = vmatpush2.msra.mxu0 0.0
    %8369 = vmatprep.subr.mxu0 0.0
    %8370 = vmatpush2.msra.mxu0 0.0
    %8371 = vmatprep.subr.mxu0 0.0
    %8372 = vmatpush2.msra.mxu0 0.0
    %8373 = vmatprep.subr.mxu0 0.0
    %8374 = vmatpush2.msra.mxu0 0.0
    %8375 = vmatprep.subr.mxu0 0.0
    %8376 = vmatpush2.msra.mxu0 0.0
    %8377 = vmatprep.subr.mxu0 0.0
    %8378 = vmatpush2.msra.mxu0 0.0
    %8379 = vmatprep.subr.mxu0 0.0
    %8380 = vmatpush2.msra.mxu0 0.0
    %8381 = vmatprep.subr.mxu0 0.0
    %8382 = vmatpush2.msra.mxu0 0.0
    %8383 = vmatprep.subr.mxu0 0.0
    %8384 = vmatpush2.msra.mxu0 0.0
    %8385 = vmatprep.subr.mxu0 0.0
    %8386 = vmatpush2.msra.mxu0 0.0
    %8387 = vmatprep.subr.mxu0 0.0
    %8388 = vmatpush2.msra.mxu0 0.0
    %8389 = vmatprep.subr.mxu0 0.0
    %8390 = vmatpush2.msra.mxu0 0.0
    %8391 = vmatprep.subr.mxu0 0.0
    %8392 = vmatpush2.msra.mxu0 0.0
    %8393 = vmatprep.subr.mxu0 0.0
    %8394 = vmatpush2.msra.mxu0 0.0
    %8395 = vmatprep.subr.mxu0 0.0
    %8396 = vmatpush2.msra.mxu0 0.0
    %8397 = vmatprep.mubr.f32.mxu0 0.0
    %8398 = vmatmul.mubr.f32.gmra.mxu0 %v4132
    %v8399 = vpop.f32.mrf.mxu0
    %v8400 = vadd.f32 %v4129, %v8399
    %v8401 = vpop.f32.mrf.mxu0
    %8402 = vdwg.mxu0
    %vm8403 = vcmp.gt.f32.partialorder %v8329, 20.0
    %vm8404 = vcmp.gt.f32.partialorder %v8331, 20.0
    %vm8405 = vcmp.gt.f32.partialorder %v8400, 20.0
    %v8406 = vmin.f32 %v8329, 20.0
    %v8407 = vmin.f32 %v8331, 20.0
    %v8408 = vmin.f32 %v8400, 20.0
    %v8409 = vmul.f32 %v8406, 1.442695
    %v8410 = vpow.pop %v8409
    %v8411 = vmul.f32 %v8407, 1.442695
    %v8412 = vpow.pop %v8411
    %v8413 = vmul.f32 %v8408, 1.442695
    %v8414 = vpow.pop %v8413
    %v8415 = vadd.f32 %v8410, 1.0
    %v8416 = vadd.f32 %v8412, 1.0
    %v8417 = vadd.f32 %v8414, 1.0
    %v8418 = vlog2.pop %v8415
    %v8419 = vmul.f32 %v8418, 0.6931472
    %v8420 = vlog2.pop %v8416
    %v8421 = vmul.f32 %v8420, 0.6931472
    %v8422 = vlog2.pop %v8417
    %v8423 = vmul.f32 %v8422, 0.6931472
    %v8424 = vsel %vm8403, %v8329, %v8419
    %v8425 = vsel %vm8404, %v8331, %v8421
    %v8426 = vsel %vm8405, %v8400, %v8423
    %v8427 = vtanh.pop %v8424
    %v8428 = vtanh.pop %v8425
    %v8429 = vtanh.pop %v8426
    %v8430 = vmul.f32 %v8329, %v8427
    %v8431 = vmul.f32 %v8331, %v8428
    %v8432 = vmul.f32 %v8400, %v8429
    %8433 = vrot.lane.b32.xlu0 %v7408, 2
    %v8434 = vpop.permute.xlu0 %8433
    %8435 = vrot.lane.b32.xlu0 %v7409, 2
    %v8436 = vpop.permute.xlu0 %8435
    %8437 = vrot.lane.b32.xlu0 %v7410, 2
    %v8438 = vpop.permute.xlu0 %8437
    %v8439 = vsel %vm948, %v8434, %v8436
    %v8440 = vsel %vm948, %v8436, %v8438
    %v8444 = vsel %vm948, 0.0, %v8434
    %8445 = vrot.lane.b32.xlu0 %v7408, 126
    %v8446 = vpop.permute.xlu0 %8445
    %8447 = vrot.lane.b32.xlu0 %v7409, 126
    %v8448 = vpop.permute.xlu0 %8447
    %8449 = vrot.lane.b32.xlu0 %v7410, 126
    %v8450 = vpop.permute.xlu0 %8449
    %v8451 = vsel %vm981, %v8446, %v8448
    %v8452 = vsel %vm981, %v8448, %v8450
    %v8456 = vsel %vm981, %v8450, 0.0
    %v8457 = vrot.slane %v7455, 6
    %v8458 = vrot.slane %v7452, 6
    %v8459 = vrot.slane %v7453, 6
    %v8463 = vrot.slane %v7408, 4
    %v8464 = vrot.slane %v7409, 4
    %v8465 = vrot.slane %v7410, 4
    %v8469 = vrot.slane %v7462, 2
    %v8470 = vrot.slane %v7463, 2
    %v8471 = vrot.slane %v7465, 2
    %v8475 = vsel %vm1186, %v8444, %v8457
    %v8476 = vsel %vm1186, %v8439, %v8458
    %v8477 = vsel %vm1186, %v8440, %v8459
    %v8478 = vsel %vm1190, %v8475, %v8463
    %v8479 = vsel %vm1190, %v8476, %v8464
    %v8480 = vsel %vm1190, %v8477, %v8465
    %v8481 = vsel %vm1194, %v8478, %v8469
    %v8482 = vsel %vm1194, %v8479, %v8470
    %v8483 = vsel %vm1194, %v8480, %v8471
    %v8484 = vmul.f32 %v8481, %v465
    %v8485 = vmul.f32 %v8482, %v466
    %v8486 = vmul.f32 %v8483, %v467
    %v8487 = vmul.f32 %v8451, %v468
    %v8488 = vmul.f32 %v8452, %v469
    %v8489 = vmul.f32 %v8456, %v470
    %v8491 = vsel %vm1186, %v8487, 0
    %v8494 = vsel %vm1186, %v8488, 0
    %v8497 = vsel %vm1186, %v8489, 0
    %8499 = vmatprep.subr.mxu0 0.0
    %8500 = vmatpush1.msra.mxu0 0.0
    %8501 = vmatprep.subr.mxu0 0.0
    %8502 = vmatpush1.msra.mxu0 0.0
    %8503 = vmatprep.subr.mxu0 0.0
    %8504 = vmatpush1.msra.mxu0 0.0
    %8505 = vmatprep.subr.mxu0 0.0
    %8506 = vmatpush1.msra.mxu0 0.0
    %8507 = vmatprep.subr.mxu0 0.0
    %8508 = vmatpush1.msra.mxu0 0.0
    %8509 = vmatprep.subr.mxu0 0.0
    %8510 = vmatpush1.msra.mxu0 0.0
    %8511 = vmatprep.subr.mxu0 0.0
    %8512 = vmatpush1.msra.mxu0 0.0
    %8513 = vmatprep.subr.mxu0 0.0
    %8514 = vmatpush1.msra.mxu0 0.0
    %8515 = vmatprep.subr.mxu0 0.0
    %8516 = vmatpush1.msra.mxu0 0.0
    %8517 = vmatprep.subr.mxu0 0.0
    %8518 = vmatpush1.msra.mxu0 0.0
    %8519 = vmatprep.subr.mxu0 0.0
    %8520 = vmatpush1.msra.mxu0 0.0
    %8521 = vmatprep.subr.mxu0 0.0
    %8522 = vmatpush1.msra.mxu0 0.0
    %8523 = vmatprep.subr.mxu0 0.0
    %8524 = vmatpush1.msra.mxu0 0.0
    %8525 = vmatprep.subr.mxu0 0.0
    %8526 = vmatpush1.msra.mxu0 0.0
    %8527 = vmatprep.subr.mxu0 %v8494
    %8528 = vmatpush1.msra.mxu0 %v8491
    %8529 = vmatprep.subr.mxu0 %v8485
    %8530 = vmatpush1.msra.mxu0 %v8484
    %8531 = vmatprep.subr.mxu0 0.0
    %8532 = vmatpush2.msra.mxu0 0.0
    %8533 = vmatprep.subr.mxu0 0.0
    %8534 = vmatpush2.msra.mxu0 0.0
    %8535 = vmatprep.subr.mxu0 0.0
    %8536 = vmatpush2.msra.mxu0 0.0
    %8537 = vmatprep.subr.mxu0 0.0
    %8538 = vmatpush2.msra.mxu0 0.0
    %8539 = vmatprep.subr.mxu0 0.0
    %8540 = vmatpush2.msra.mxu0 0.0
    %8541 = vmatprep.subr.mxu0 0.0
    %8542 = vmatpush2.msra.mxu0 0.0
    %8543 = vmatprep.subr.mxu0 0.0
    %8544 = vmatpush2.msra.mxu0 0.0
    %8545 = vmatprep.subr.mxu0 0.0
    %8546 = vmatpush2.msra.mxu0 0.0
    %8547 = vmatprep.subr.mxu0 0.0
    %8548 = vmatpush2.msra.mxu0 0.0
    %8549 = vmatprep.subr.mxu0 0.0
    %8550 = vmatpush2.msra.mxu0 0.0
    %8551 = vmatprep.subr.mxu0 0.0
    %8552 = vmatpush2.msra.mxu0 0.0
    %8553 = vmatprep.subr.mxu0 0.0
    %8554 = vmatpush2.msra.mxu0 0.0
    %8555 = vmatprep.subr.mxu0 0.0
    %8556 = vmatpush2.msra.mxu0 0.0
    %8557 = vmatprep.subr.mxu0 0.0
    %8558 = vmatpush2.msra.mxu0 0.0
    %8559 = vmatprep.subr.mxu0 0.0
    %8560 = vmatpush2.msra.mxu0 0.0
    %8561 = vmatprep.subr.mxu0 0.0
    %8562 = vmatpush2.msra.mxu0 0.0
    %8563 = vmatprep.mubr.f32.mxu0 0.0
    %8564 = vmatmul.mubr.f32.gmra.mxu0 %v4377
    %v8565 = vpop.f32.mrf.mxu0
    %v8566 = vadd.f32 %v4374, %v8565
    %v8567 = vpop.f32.mrf.mxu0
    %v8568 = vadd.f32 %v4374, %v8567
    %8569 = vdwg.mxu0
    %8570 = vmatprep.subr.mxu0 0.0
    %8571 = vmatpush1.msra.mxu0 0.0
    %8572 = vmatprep.subr.mxu0 0.0
    %8573 = vmatpush1.msra.mxu0 0.0
    %8574 = vmatprep.subr.mxu0 0.0
    %8575 = vmatpush1.msra.mxu0 0.0
    %8576 = vmatprep.subr.mxu0 0.0
    %8577 = vmatpush1.msra.mxu0 0.0
    %8578 = vmatprep.subr.mxu0 0.0
    %8579 = vmatpush1.msra.mxu0 0.0
    %8580 = vmatprep.subr.mxu0 0.0
    %8581 = vmatpush1.msra.mxu0 0.0
    %8582 = vmatprep.subr.mxu0 0.0
    %8583 = vmatpush1.msra.mxu0 0.0
    %8584 = vmatprep.subr.mxu0 0.0
    %8585 = vmatpush1.msra.mxu0 0.0
    %8586 = vmatprep.subr.mxu0 0.0
    %8587 = vmatpush1.msra.mxu0 0.0
    %8588 = vmatprep.subr.mxu0 0.0
    %8589 = vmatpush1.msra.mxu0 0.0
    %8590 = vmatprep.subr.mxu0 0.0
    %8591 = vmatpush1.msra.mxu0 0.0
    %8592 = vmatprep.subr.mxu0 0.0
    %8593 = vmatpush1.msra.mxu0 0.0
    %8594 = vmatprep.subr.mxu0 0.0
    %8595 = vmatpush1.msra.mxu0 0.0
    %8596 = vmatprep.subr.mxu0 0.0
    %8597 = vmatpush1.msra.mxu0 0.0
    %8598 = vmatprep.subr.mxu0 0.0
    %8599 = vmatpush1.msra.mxu0 %v8497
    %8600 = vmatprep.subr.mxu0 0.0
    %8601 = vmatpush1.msra.mxu0 %v8486
    %8602 = vmatprep.subr.mxu0 0.0
    %8603 = vmatpush2.msra.mxu0 0.0
    %8604 = vmatprep.subr.mxu0 0.0
    %8605 = vmatpush2.msra.mxu0 0.0
    %8606 = vmatprep.subr.mxu0 0.0
    %8607 = vmatpush2.msra.mxu0 0.0
    %8608 = vmatprep.subr.mxu0 0.0
    %8609 = vmatpush2.msra.mxu0 0.0
    %8610 = vmatprep.subr.mxu0 0.0
    %8611 = vmatpush2.msra.mxu0 0.0
    %8612 = vmatprep.subr.mxu0 0.0
    %8613 = vmatpush2.msra.mxu0 0.0
    %8614 = vmatprep.subr.mxu0 0.0
    %8615 = vmatpush2.msra.mxu0 0.0
    %8616 = vmatprep.subr.mxu0 0.0
    %8617 = vmatpush2.msra.mxu0 0.0
    %8618 = vmatprep.subr.mxu0 0.0
    %8619 = vmatpush2.msra.mxu0 0.0
    %8620 = vmatprep.subr.mxu0 0.0
    %8621 = vmatpush2.msra.mxu0 0.0
    %8622 = vmatprep.subr.mxu0 0.0
    %8623 = vmatpush2.msra.mxu0 0.0
    %8624 = vmatprep.subr.mxu0 0.0
    %8625 = vmatpush2.msra.mxu0 0.0
    %8626 = vmatprep.subr.mxu0 0.0
    %8627 = vmatpush2.msra.mxu0 0.0
    %8628 = vmatprep.subr.mxu0 0.0
    %8629 = vmatpush2.msra.mxu0 0.0
    %8630 = vmatprep.subr.mxu0 0.0
    %8631 = vmatpush2.msra.mxu0 0.0
    %8632 = vmatprep.subr.mxu0 0.0
    %8633 = vmatpush2.msra.mxu0 0.0
    %8634 = vmatprep.mubr.f32.mxu0 0.0
    %8635 = vmatmul.mubr.f32.gmra.mxu0 %v4377
    %v8636 = vpop.f32.mrf.mxu0
    %v8637 = vadd.f32 %v4374, %v8636
    %v8638 = vpop.f32.mrf.mxu0
    %8639 = vdwg.mxu0
    %vm8640 = vcmp.gt.f32.partialorder %v8566, 20.0
    %vm8641 = vcmp.gt.f32.partialorder %v8568, 20.0
    %vm8642 = vcmp.gt.f32.partialorder %v8637, 20.0
    %v8643 = vmin.f32 %v8566, 20.0
    %v8644 = vmin.f32 %v8568, 20.0
    %v8645 = vmin.f32 %v8637, 20.0
    %v8646 = vmul.f32 %v8643, 1.442695
    %v8647 = vpow.pop %v8646
    %v8648 = vmul.f32 %v8644, 1.442695
    %v8649 = vpow.pop %v8648
    %v8650 = vmul.f32 %v8645, 1.442695
    %v8651 = vpow.pop %v8650
    %v8652 = vadd.f32 %v8647, 1.0
    %v8653 = vadd.f32 %v8649, 1.0
    %v8654 = vadd.f32 %v8651, 1.0
    %v8655 = vlog2.pop %v8652
    %v8656 = vmul.f32 %v8655, 0.6931472
    %v8657 = vlog2.pop %v8653
    %v8658 = vmul.f32 %v8657, 0.6931472
    %v8659 = vlog2.pop %v8654
    %v8660 = vmul.f32 %v8659, 0.6931472
    %v8661 = vsel %vm8640, %v8566, %v8656
    %v8662 = vsel %vm8641, %v8568, %v8658
    %v8663 = vsel %vm8642, %v8637, %v8660
    %v8664 = vtanh.pop %v8661
    %v8665 = vtanh.pop %v8662
    %v8666 = vtanh.pop %v8663
    %v8667 = vmul.f32 %v8566, %v8664
    %v8668 = vmul.f32 %v8568, %v8665
    %v8669 = vmul.f32 %v8637, %v8666
    %8673 = vrot.lane.b32.xlu0 %v8667, 32
    %v8674 = vpop.permute.xlu0 %8673
    %8675 = vrot.lane.b32.xlu0 %v8668, 32
    %v8676 = vpop.permute.xlu0 %8675
    %8677 = vrot.lane.b32.xlu0 %v8669, 32
    %v8678 = vpop.permute.xlu0 %8677
    %v8679 = vsel %vm534, %v8674, %v8676
    %v8680 = vsel %vm534, %v8676, %v8678
    %v8684 = vsel %vm534, 0.0, %v8674
    %8685 = vrot.lane.b32.xlu0 %v8667, 16
    %v8686 = vpop.permute.xlu0 %8685
    %8687 = vrot.lane.b32.xlu0 %v8668, 16
    %v8688 = vpop.permute.xlu0 %8687
    %8689 = vrot.lane.b32.xlu0 %v8669, 16
    %v8690 = vpop.permute.xlu0 %8689
    %v8691 = vsel %vm913, %v8686, %v8688
    %v8692 = vsel %vm913, %v8688, %v8690
    %v8694 = vsel %vm913, 0.0, %v8686
    %8695 = vrot.lane.b32.xlu0 %v8667, 112
    %v8696 = vpop.permute.xlu0 %8695
    %8697 = vrot.lane.b32.xlu0 %v8668, 112
    %v8698 = vpop.permute.xlu0 %8697
    %8699 = vrot.lane.b32.xlu0 %v8669, 112
    %v8700 = vpop.permute.xlu0 %8699
    %v8701 = vsel %vm1016, %v8696, %v8698
    %v8702 = vsel %vm1016, %v8698, %v8700
    %v8704 = vsel %vm1016, %v8700, 0.0
    %8705 = vrot.lane.b32.xlu0 %v8667, 96
    %v8706 = vpop.permute.xlu0 %8705
    %8707 = vrot.lane.b32.xlu0 %v8668, 96
    %v8708 = vpop.permute.xlu0 %8707
    %8709 = vrot.lane.b32.xlu0 %v8669, 96
    %v8710 = vpop.permute.xlu0 %8709
    %v8711 = vsel %vm1073, %v8706, %v8708
    %v8712 = vsel %vm1073, %v8708, %v8710
    %v8716 = vsel %vm1073, %v8710, 0.0
    %v8718 = vrot.slane %v8694, 6
    %v8719 = vrot.slane %v8691, 6
    %v8720 = vrot.slane %v8692, 6
    %v8724 = vrot.slane %v8667, 4
    %v8725 = vrot.slane %v8668, 4
    %v8726 = vrot.slane %v8669, 4
    %v8731 = vrot.slane %v8701, 2
    %v8732 = vrot.slane %v8702, 2
    %v8733 = vrot.slane %v8704, 2
    %v8737 = vsel %vm1186, %v8684, %v8718
    %v8738 = vsel %vm1186, %v8679, %v8719
    %v8739 = vsel %vm1186, %v8680, %v8720
    %v8740 = vsel %vm1190, %v8737, %v8724
    %v8741 = vsel %vm1190, %v8738, %v8725
    %v8742 = vsel %vm1190, %v8739, %v8726
    %v8743 = vsel %vm1194, %v8740, %v8731
    %v8744 = vsel %vm1194, %v8741, %v8732
    %v8745 = vsel %vm1194, %v8742, %v8733
    %v8746 = vmul.f32 %v8743, %v471
    %v8747 = vmul.f32 %v8744, %v472
    %v8748 = vmul.f32 %v8745, %v473
    %v8749 = vmul.f32 %v8711, %v474
    %v8750 = vmul.f32 %v8712, %v475
    %v8751 = vmul.f32 %v8716, %v476
    %v8753 = vsel %vm1186, %v8749, 0
    %v8756 = vsel %vm1186, %v8750, 0
    %v8759 = vsel %vm1186, %v8751, 0
    %8761 = vmatprep.subr.mxu0 0.0
    %8762 = vmatpush1.msra.mxu0 0.0
    %8763 = vmatprep.subr.mxu0 0.0
    %8764 = vmatpush1.msra.mxu0 0.0
    %8765 = vmatprep.subr.mxu0 0.0
    %8766 = vmatpush1.msra.mxu0 0.0
    %8767 = vmatprep.subr.mxu0 0.0
    %8768 = vmatpush1.msra.mxu0 0.0
    %8769 = vmatprep.subr.mxu0 0.0
    %8770 = vmatpush1.msra.mxu0 0.0
    %8771 = vmatprep.subr.mxu0 0.0
    %8772 = vmatpush1.msra.mxu0 0.0
    %8773 = vmatprep.subr.mxu0 0.0
    %8774 = vmatpush1.msra.mxu0 0.0
    %8775 = vmatprep.subr.mxu0 0.0
    %8776 = vmatpush1.msra.mxu0 0.0
    %8777 = vmatprep.subr.mxu0 0.0
    %8778 = vmatpush1.msra.mxu0 0.0
    %8779 = vmatprep.subr.mxu0 0.0
    %8780 = vmatpush1.msra.mxu0 0.0
    %8781 = vmatprep.subr.mxu0 0.0
    %8782 = vmatpush1.msra.mxu0 0.0
    %8783 = vmatprep.subr.mxu0 0.0
    %8784 = vmatpush1.msra.mxu0 0.0
    %8785 = vmatprep.subr.mxu0 0.0
    %8786 = vmatpush1.msra.mxu0 0.0
    %8787 = vmatprep.subr.mxu0 0.0
    %8788 = vmatpush1.msra.mxu0 0.0
    %8789 = vmatprep.subr.mxu0 %v8756
    %8790 = vmatpush1.msra.mxu0 %v8753
    %8791 = vmatprep.subr.mxu0 %v8747
    %8792 = vmatpush1.msra.mxu0 %v8746
    %8793 = vmatprep.subr.mxu0 0.0
    %8794 = vmatpush2.msra.mxu0 0.0
    %8795 = vmatprep.subr.mxu0 0.0
    %8796 = vmatpush2.msra.mxu0 0.0
    %8797 = vmatprep.subr.mxu0 0.0
    %8798 = vmatpush2.msra.mxu0 0.0
    %8799 = vmatprep.subr.mxu0 0.0
    %8800 = vmatpush2.msra.mxu0 0.0
    %8801 = vmatprep.subr.mxu0 0.0
    %8802 = vmatpush2.msra.mxu0 0.0
    %8803 = vmatprep.subr.mxu0 0.0
    %8804 = vmatpush2.msra.mxu0 0.0
    %8805 = vmatprep.subr.mxu0 0.0
    %8806 = vmatpush2.msra.mxu0 0.0
    %8807 = vmatprep.subr.mxu0 0.0
    %8808 = vmatpush2.msra.mxu0 0.0
    %8809 = vmatprep.subr.mxu0 0.0
    %8810 = vmatpush2.msra.mxu0 0.0
    %8811 = vmatprep.subr.mxu0 0.0
    %8812 = vmatpush2.msra.mxu0 0.0
    %8813 = vmatprep.subr.mxu0 0.0
    %8814 = vmatpush2.msra.mxu0 0.0
    %8815 = vmatprep.subr.mxu0 0.0
    %8816 = vmatpush2.msra.mxu0 0.0
    %8817 = vmatprep.subr.mxu0 0.0
    %8818 = vmatpush2.msra.mxu0 0.0
    %8819 = vmatprep.subr.mxu0 0.0
    %8820 = vmatpush2.msra.mxu0 0.0
    %8821 = vmatprep.subr.mxu0 0.0
    %8822 = vmatpush2.msra.mxu0 0.0
    %8823 = vmatprep.subr.mxu0 0.0
    %8824 = vmatpush2.msra.mxu0 0.0
    %8825 = vmatprep.mubr.f32.mxu0 0.0
    %8826 = vmatmul.mubr.f32.gmra.mxu0 %v4647
    %v8827 = vpop.f32.mrf.mxu0
    %v8828 = vadd.f32 %v4644, %v8827
    %v8829 = vpop.f32.mrf.mxu0
    %v8830 = vadd.f32 %v4644, %v8829
    %8831 = vdwg.mxu0
    %8832 = vmatprep.subr.mxu0 0.0
    %8833 = vmatpush1.msra.mxu0 0.0
    %8834 = vmatprep.subr.mxu0 0.0
    %8835 = vmatpush1.msra.mxu0 0.0
    %8836 = vmatprep.subr.mxu0 0.0
    %8837 = vmatpush1.msra.mxu0 0.0
    %8838 = vmatprep.subr.mxu0 0.0
    %8839 = vmatpush1.msra.mxu0 0.0
    %8840 = vmatprep.subr.mxu0 0.0
    %8841 = vmatpush1.msra.mxu0 0.0
    %8842 = vmatprep.subr.mxu0 0.0
    %8843 = vmatpush1.msra.mxu0 0.0
    %8844 = vmatprep.subr.mxu0 0.0
    %8845 = vmatpush1.msra.mxu0 0.0
    %8846 = vmatprep.subr.mxu0 0.0
    %8847 = vmatpush1.msra.mxu0 0.0
    %8848 = vmatprep.subr.mxu0 0.0
    %8849 = vmatpush1.msra.mxu0 0.0
    %8850 = vmatprep.subr.mxu0 0.0
    %8851 = vmatpush1.msra.mxu0 0.0
    %8852 = vmatprep.subr.mxu0 0.0
    %8853 = vmatpush1.msra.mxu0 0.0
    %8854 = vmatprep.subr.mxu0 0.0
    %8855 = vmatpush1.msra.mxu0 0.0
    %8856 = vmatprep.subr.mxu0 0.0
    %8857 = vmatpush1.msra.mxu0 0.0
    %8858 = vmatprep.subr.mxu0 0.0
    %8859 = vmatpush1.msra.mxu0 0.0
    %8860 = vmatprep.subr.mxu0 0.0
    %8861 = vmatpush1.msra.mxu0 %v8759
    %8862 = vmatprep.subr.mxu0 0.0
    %8863 = vmatpush1.msra.mxu0 %v8748
    %8864 = vmatprep.subr.mxu0 0.0
    %8865 = vmatpush2.msra.mxu0 0.0
    %8866 = vmatprep.subr.mxu0 0.0
    %8867 = vmatpush2.msra.mxu0 0.0
    %8868 = vmatprep.subr.mxu0 0.0
    %8869 = vmatpush2.msra.mxu0 0.0
    %8870 = vmatprep.subr.mxu0 0.0
    %8871 = vmatpush2.msra.mxu0 0.0
    %8872 = vmatprep.subr.mxu0 0.0
    %8873 = vmatpush2.msra.mxu0 0.0
    %8874 = vmatprep.subr.mxu0 0.0
    %8875 = vmatpush2.msra.mxu0 0.0
    %8876 = vmatprep.subr.mxu0 0.0
    %8877 = vmatpush2.msra.mxu0 0.0
    %8878 = vmatprep.subr.mxu0 0.0
    %8879 = vmatpush2.msra.mxu0 0.0
    %8880 = vmatprep.subr.mxu0 0.0
    %8881 = vmatpush2.msra.mxu0 0.0
    %8882 = vmatprep.subr.mxu0 0.0
    %8883 = vmatpush2.msra.mxu0 0.0
    %8884 = vmatprep.subr.mxu0 0.0
    %8885 = vmatpush2.msra.mxu0 0.0
    %8886 = vmatprep.subr.mxu0 0.0
    %8887 = vmatpush2.msra.mxu0 0.0
    %8888 = vmatprep.subr.mxu0 0.0
    %8889 = vmatpush2.msra.mxu0 0.0
    %8890 = vmatprep.subr.mxu0 0.0
    %8891 = vmatpush2.msra.mxu0 0.0
    %8892 = vmatprep.subr.mxu0 0.0
    %8893 = vmatpush2.msra.mxu0 0.0
    %8894 = vmatprep.subr.mxu0 0.0
    %8895 = vmatpush2.msra.mxu0 0.0
    %8896 = vmatprep.mubr.f32.mxu0 0.0
    %8897 = vmatmul.mubr.f32.gmra.mxu0 %v4647
    %v8898 = vpop.f32.mrf.mxu0
    %v8899 = vadd.f32 %v4644, %v8898
    %v8900 = vpop.f32.mrf.mxu0
    %8901 = vdwg.mxu0
    %vm8902 = vcmp.gt.f32.partialorder %v8828, 20.0
    %vm8903 = vcmp.gt.f32.partialorder %v8830, 20.0
    %vm8904 = vcmp.gt.f32.partialorder %v8899, 20.0
    %v8905 = vmin.f32 %v8828, 20.0
    %v8906 = vmin.f32 %v8830, 20.0
    %v8907 = vmin.f32 %v8899, 20.0
    %v8908 = vmul.f32 %v8905, 1.442695
    %v8909 = vpow.pop %v8908
    %v8910 = vmul.f32 %v8906, 1.442695
    %v8911 = vpow.pop %v8910
    %v8912 = vmul.f32 %v8907, 1.442695
    %v8913 = vpow.pop %v8912
    %v8914 = vadd.f32 %v8909, 1.0
    %v8915 = vadd.f32 %v8911, 1.0
    %v8916 = vadd.f32 %v8913, 1.0
    %v8917 = vlog2.pop %v8914
    %v8918 = vmul.f32 %v8917, 0.6931472
    %v8919 = vlog2.pop %v8915
    %v8920 = vmul.f32 %v8919, 0.6931472
    %v8921 = vlog2.pop %v8916
    %v8922 = vmul.f32 %v8921, 0.6931472
    %v8923 = vsel %vm8902, %v8828, %v8918
    %v8924 = vsel %vm8903, %v8830, %v8920
    %v8925 = vsel %vm8904, %v8899, %v8922
    %v8926 = vtanh.pop %v8923
    %v8927 = vtanh.pop %v8924
    %v8928 = vtanh.pop %v8925
    %v8929 = vmul.f32 %v8828, %v8926
    %v8930 = vmul.f32 %v8830, %v8927
    %v8931 = vmul.f32 %v8899, %v8928
    %v8935 = vrot.slane %v8929, 1
    %v8936 = vrot.slane %v8930, 1
    %v8937 = vrot.slane %v8931, 1
    %v8941 = vsel %vm2315, %v8430, %v8935
    %v8942 = vsel %vm2315, %v8431, %v8936
    %v8943 = vsel %vm2315, %v8432, %v8937
    %v8944 = vsel %vm1194, %v8935, 0
    %v8946 = vsel %vm1194, %v8936, 0
    %v8948 = vsel %vm1194, %v8937, 0
    %8950 = vmatprep.subr.mxu0 0.0
    %8951 = vmatpush1.msra.mxu0 0.0
    %8952 = vmatprep.subr.mxu0 0.0
    %8953 = vmatpush1.msra.mxu0 0.0
    %8954 = vmatprep.subr.mxu0 0.0
    %8955 = vmatpush1.msra.mxu0 0.0
    %8956 = vmatprep.subr.mxu0 0.0
    %8957 = vmatpush1.msra.mxu0 0.0
    %8958 = vmatprep.subr.mxu0 0.0
    %8959 = vmatpush1.msra.mxu0 0.0
    %8960 = vmatprep.subr.mxu0 0.0
    %8961 = vmatpush1.msra.mxu0 0.0
    %8962 = vmatprep.subr.mxu0 0.0
    %8963 = vmatpush1.msra.mxu0 0.0
    %8964 = vmatprep.subr.mxu0 0.0
    %8965 = vmatpush1.msra.mxu0 0.0
    %8966 = vmatprep.subr.mxu0 0.0
    %8967 = vmatpush1.msra.mxu0 0.0
    %8968 = vmatprep.subr.mxu0 0.0
    %8969 = vmatpush1.msra.mxu0 0.0
    %8970 = vmatprep.subr.mxu0 0.0
    %8971 = vmatpush1.msra.mxu0 0.0
    %8972 = vmatprep.subr.mxu0 0.0
    %8973 = vmatpush1.msra.mxu0 0.0
    %8974 = vmatprep.subr.mxu0 0.0
    %8975 = vmatpush1.msra.mxu0 0.0
    %8976 = vmatprep.subr.mxu0 0.0
    %8977 = vmatpush1.msra.mxu0 0.0
    %8978 = vmatprep.subr.mxu0 %v8946
    %8979 = vmatpush1.msra.mxu0 %v8944
    %8980 = vmatprep.subr.mxu0 %v8942
    %8981 = vmatpush1.msra.mxu0 %v8941
    %8982 = vmatprep.subr.mxu0 0.0
    %8983 = vmatpush2.msra.mxu0 0.0
    %8984 = vmatprep.subr.mxu0 0.0
    %8985 = vmatpush2.msra.mxu0 0.0
    %8986 = vmatprep.subr.mxu0 0.0
    %8987 = vmatpush2.msra.mxu0 0.0
    %8988 = vmatprep.subr.mxu0 0.0
    %8989 = vmatpush2.msra.mxu0 0.0
    %8990 = vmatprep.subr.mxu0 0.0
    %8991 = vmatpush2.msra.mxu0 0.0
    %8992 = vmatprep.subr.mxu0 0.0
    %8993 = vmatpush2.msra.mxu0 0.0
    %8994 = vmatprep.subr.mxu0 0.0
    %8995 = vmatpush2.msra.mxu0 0.0
    %8996 = vmatprep.subr.mxu0 0.0
    %8997 = vmatpush2.msra.mxu0 0.0
    %8998 = vmatprep.subr.mxu0 0.0
    %8999 = vmatpush2.msra.mxu0 0.0
    %9000 = vmatprep.subr.mxu0 0.0
    %9001 = vmatpush2.msra.mxu0 0.0
    %9002 = vmatprep.subr.mxu0 0.0
    %9003 = vmatpush2.msra.mxu0 0.0
    %9004 = vmatprep.subr.mxu0 0.0
    %9005 = vmatpush2.msra.mxu0 0.0
    %9006 = vmatprep.subr.mxu0 0.0
    %9007 = vmatpush2.msra.mxu0 0.0
    %9008 = vmatprep.subr.mxu0 0.0
    %9009 = vmatpush2.msra.mxu0 0.0
    %9010 = vmatprep.subr.mxu0 0.0
    %9011 = vmatpush2.msra.mxu0 0.0
    %9012 = vmatprep.subr.mxu0 0.0
    %9013 = vmatpush2.msra.mxu0 0.0
    %9014 = vmatprep.mubr.f32.mxu0 0.0
    %9015 = vmatmul.mubr.f32.gmra.mxu0 %v4847
    %v9016 = vpop.f32.mrf.mxu0
    %v9017 = vadd.f32 %v4844, %v9016
    %v9018 = vpop.f32.mrf.mxu0
    %v9019 = vadd.f32 %v4844, %v9018
    %9020 = vdwg.mxu0
    %9021 = vmatprep.subr.mxu0 0.0
    %9022 = vmatpush1.msra.mxu0 0.0
    %9023 = vmatprep.subr.mxu0 0.0
    %9024 = vmatpush1.msra.mxu0 0.0
    %9025 = vmatprep.subr.mxu0 0.0
    %9026 = vmatpush1.msra.mxu0 0.0
    %9027 = vmatprep.subr.mxu0 0.0
    %9028 = vmatpush1.msra.mxu0 0.0
    %9029 = vmatprep.subr.mxu0 0.0
    %9030 = vmatpush1.msra.mxu0 0.0
    %9031 = vmatprep.subr.mxu0 0.0
    %9032 = vmatpush1.msra.mxu0 0.0
    %9033 = vmatprep.subr.mxu0 0.0
    %9034 = vmatpush1.msra.mxu0 0.0
    %9035 = vmatprep.subr.mxu0 0.0
    %9036 = vmatpush1.msra.mxu0 0.0
    %9037 = vmatprep.subr.mxu0 0.0
    %9038 = vmatpush1.msra.mxu0 0.0
    %9039 = vmatprep.subr.mxu0 0.0
    %9040 = vmatpush1.msra.mxu0 0.0
    %9041 = vmatprep.subr.mxu0 0.0
    %9042 = vmatpush1.msra.mxu0 0.0
    %9043 = vmatprep.subr.mxu0 0.0
    %9044 = vmatpush1.msra.mxu0 0.0
    %9045 = vmatprep.subr.mxu0 0.0
    %9046 = vmatpush1.msra.mxu0 0.0
    %9047 = vmatprep.subr.mxu0 0.0
    %9048 = vmatpush1.msra.mxu0 0.0
    %9049 = vmatprep.subr.mxu0 0.0
    %9050 = vmatpush1.msra.mxu0 %v8948
    %9051 = vmatprep.subr.mxu0 0.0
    %9052 = vmatpush1.msra.mxu0 %v8943
    %9053 = vmatprep.subr.mxu0 0.0
    %9054 = vmatpush2.msra.mxu0 0.0
    %9055 = vmatprep.subr.mxu0 0.0
    %9056 = vmatpush2.msra.mxu0 0.0
    %9057 = vmatprep.subr.mxu0 0.0
    %9058 = vmatpush2.msra.mxu0 0.0
    %9059 = vmatprep.subr.mxu0 0.0
    %9060 = vmatpush2.msra.mxu0 0.0
    %9061 = vmatprep.subr.mxu0 0.0
    %9062 = vmatpush2.msra.mxu0 0.0
    %9063 = vmatprep.subr.mxu0 0.0
    %9064 = vmatpush2.msra.mxu0 0.0
    %9065 = vmatprep.subr.mxu0 0.0
    %9066 = vmatpush2.msra.mxu0 0.0
    %9067 = vmatprep.subr.mxu0 0.0
    %9068 = vmatpush2.msra.mxu0 0.0
    %9069 = vmatprep.subr.mxu0 0.0
    %9070 = vmatpush2.msra.mxu0 0.0
    %9071 = vmatprep.subr.mxu0 0.0
    %9072 = vmatpush2.msra.mxu0 0.0
    %9073 = vmatprep.subr.mxu0 0.0
    %9074 = vmatpush2.msra.mxu0 0.0
    %9075 = vmatprep.subr.mxu0 0.0
    %9076 = vmatpush2.msra.mxu0 0.0
    %9077 = vmatprep.subr.mxu0 0.0
    %9078 = vmatpush2.msra.mxu0 0.0
    %9079 = vmatprep.subr.mxu0 0.0
    %9080 = vmatpush2.msra.mxu0 0.0
    %9081 = vmatprep.subr.mxu0 0.0
    %9082 = vmatpush2.msra.mxu0 0.0
    %9083 = vmatprep.subr.mxu0 0.0
    %9084 = vmatpush2.msra.mxu0 0.0
    %9085 = vmatprep.mubr.f32.mxu0 0.0
    %9086 = vmatmul.mubr.f32.gmra.mxu0 %v4847
    %v9087 = vpop.f32.mrf.mxu0
    %v9088 = vadd.f32 %v4844, %v9087
    %v9089 = vpop.f32.mrf.mxu0
    %9090 = vdwg.mxu0
    %vm9091 = vcmp.gt.f32.partialorder %v9017, 20.0
    %vm9092 = vcmp.gt.f32.partialorder %v9019, 20.0
    %vm9093 = vcmp.gt.f32.partialorder %v9088, 20.0
    %v9094 = vmin.f32 %v9017, 20.0
    %v9095 = vmin.f32 %v9019, 20.0
    %v9096 = vmin.f32 %v9088, 20.0
    %v9097 = vmul.f32 %v9094, 1.442695
    %v9098 = vpow.pop %v9097
    %v9099 = vmul.f32 %v9095, 1.442695
    %v9100 = vpow.pop %v9099
    %v9101 = vmul.f32 %v9096, 1.442695
    %v9102 = vpow.pop %v9101
    %v9103 = vadd.f32 %v9098, 1.0
    %v9104 = vadd.f32 %v9100, 1.0
    %v9105 = vadd.f32 %v9102, 1.0
    %v9106 = vlog2.pop %v9103
    %v9107 = vmul.f32 %v9106, 0.6931472
    %v9108 = vlog2.pop %v9104
    %v9109 = vmul.f32 %v9108, 0.6931472
    %v9110 = vlog2.pop %v9105
    %v9111 = vmul.f32 %v9110, 0.6931472
    %v9112 = vsel %vm9091, %v9017, %v9107
    %v9113 = vsel %vm9092, %v9019, %v9109
    %v9114 = vsel %vm9093, %v9088, %v9111
    %v9115 = vtanh.pop %v9112
    %v9116 = vtanh.pop %v9113
    %v9117 = vtanh.pop %v9114
    %v9118 = vmul.f32 %v9017, %v9115
    %v9119 = vmul.f32 %v9019, %v9116
    %v9120 = vmul.f32 %v9088, %v9117
    %v9121 = vadd.f32 %v9118, %v7408
    %v9122 = vadd.f32 %v9119, %v7409
    %v9123 = vadd.f32 %v9120, %v7410
    %v9127 = vcombine.low %v9121, %v9122
    %v9129 = vunpack.c.l.s4 1983009808
    %v9130 = vunpack.c.0.s8 %v9129
    %v9131 = vlaneseq
    %v9132 = vshrl.u32 %v9131, 7
    %v9133 = vsub.s32 %v9130, %v9132
    %v9134 = vrot.slane %v9127, %v9133
    %v9136 = vunpack.c.l.s4 1983009808
    %v9137 = vunpack.c.0.s8 %v9136
    %v9138 = vlaneseq
    %v9139 = vshrl.u32 %v9138, 7
    %v9140 = vsub.s32 %v9137, %v9139
    %v9141 = vrot.slane %v9123, %v9140
    %v9142 = vcombine.low %v9134, %v9141
    %s9144 = scalar_lea.vmem [#allocation32], 6
    %9145 = vst [vmem:[%s9144] sm:$0x3f] %v9142
    // Predicated region
    $region218: #{tpu_custom_call.1} parent=1 // pred_check
      _
    $region219: #{tpu_custom_call.1} parent=1 // pred_check_branch
      %9147 = sbr.rel (0) target = $region221
    $region220: #{tpu_custom_call.1} parent=1 // pred_region
      %s9149 = ssub.s32 192, 192
      %9150 = vsyncadd [#allocation4], %s9149
      %s9151 = sshll.u32 [#allocation32], 4
      %s9152 = int_to_ptr.vmem [resolvable:$true] %s9151
      %9157 = dma.vmem_to_hbm [thread:$0]  %s9152, 192, %s71, [#allocation4], 96, 96, 6
    $region221: #{tpu_custom_call.1} parent=1 // pred_fallthru
      _
    // Predicated region
    $region222: #{tpu_custom_call.1} parent=1 // pred_check
      _
    $region223: #{tpu_custom_call.1} parent=1 // pred_check_branch
      %9159 = sbr.rel (0) target = $region225
    $region224: #{tpu_custom_call.1} parent=1 // pred_region
      %9160 = dma.done [#allocation4], 192
    $region225: #{tpu_custom_call.1} parent=1 // pred_fallthru
      _
    %9161 = vsyncpa [#allocation3], 1
    %9162 = vsyncpa [#allocation6], 1
    %9163 = vsyncpa [#allocation9], 1
    %9164 = vsyncpa [#allocation12], 1
    %9165 = vsyncpa [#allocation15], 1
    %9166 = vsyncpa [#allocation18], 1
    %9167 = vsyncpa [#allocation21], 1
    %9168 = vsyncpa [#allocation24], 1
    %9169 = vsyncpa [#allocation27], 1
    %9170 = vsyncpa [#allocation30], 1
    %9171 = vsyncpa [#allocation4], 1

</llo_original>
